<compile_context>
chip_gen: v5e
topology: v5e:2x2
jax: 0.10.0
libtpu: 0.0.40
codegen_flags: <defaults>
</compile_context>

<pallas_src>
import math
import numpy as np
import jax
import jax.numpy as jnp
from jax.experimental import pallas as pl
from jax.experimental.pallas import tpu as pltpu

# ---------------- model config (small shapes; dim_feedforward is the PyTorch default) ----
BATCH       = 200                       # demo batch (padded to a multiple of TILE_M)
TILE_M      = 128                       # batch tile per grid step (use 256 on v6e/v7x)
INPUT_DIM   = 16
NUM_CLASSES = 4
D_MODEL     = 64
NHEAD       = 8
NUM_LAYERS  = 2
DIM_FF      = 2048                      # nn.TransformerEncoderLayer default
HEAD_DIM    = D_MODEL // NHEAD
LN_EPS      = 1e-5
OUT_PAD     = 128                       # lane-dense output width (classes padded)
NEG_INF     = -1e30                     # pad-logit bias => exp() underflows to exactly 0

# ---- packed-parameter layouts ------------------------------------------------------------
# small pack `sp` : (SP_ROWS, D_MODEL) f32  (embedding + per-layer attn/LN/bias params)
SP_EMBW   = 0                           # rows 0:16   embedding weight, pre-transposed (in, out)
SP_EMBB   = INPUT_DIM                   # row  16     embedding bias
SP_LAYER0 = 24                          # first per-layer block (8-row aligned)
LP_WATTN  = 0                           # rows +0:64  folded attention weight (in, out)
LP_BATTN  = D_MODEL                     # row  +64    folded attention bias
LP_N1W    = D_MODEL + 1                 # +65 LayerNorm1 weight
LP_N1B    = D_MODEL + 2                 # +66 LayerNorm1 bias
LP_N2W    = D_MODEL + 3                 # +67 LayerNorm2 weight
LP_N2B    = D_MODEL + 4                 # +68 LayerNorm2 bias
LP_B2     = D_MODEL + 5                 # +69 FF linear2 bias
SP_LAYER_ROWS = 72
SP_ROWS   = SP_LAYER0 + NUM_LAYERS * SP_LAYER_ROWS          # 168

# fc head pack `fcp` : (FC_ROWS, OUT_PAD) f32  (lane-dense classification head)
FC_W    = 0                             # rows 0:64  fc weight, pre-transposed, pad cols zero
FC_B    = D_MODEL                       # row  64    fc bias; padded lanes = NEG_INF
FC_ROWS = D_MODEL + 8                   # 72

# FF slab `ffs` : (NUM_LAYERS, FF1_ROWS, DIM_FF) bf16  (linear1 weight^T + bias merged)
FF_W1    = 0                            # rows 0:64  linear1 weight, pre-transposed (D_MODEL, DIM_FF)
FF_B1    = D_MODEL                      # row  64    linear1 bias
FF1_ROWS = D_MODEL + 8                  # 72
# `w2t` : (NUM_LAYERS, DIM_FF, D_MODEL) bf16 : linear2 weight pre-transposed (in, out)


# ---------------------------------- Pallas kernel -----------------------------------------
def transformer_kernel(x_ref, sp_ref, fcp_ref, ffs_ref, w2t_ref, out_ref):
    f32, bf16 = jnp.float32, jnp.bfloat16

    def layer_norm(y, w, b):
        mu  = jnp.mean(y, axis=-1, keepdims=True)
        d   = y - mu
        var = jnp.mean(d * d, axis=-1, keepdims=True)
        return d * jax.lax.rsqrt(var + LN_EPS) * w + b

    # ---- embedding Linear(input_dim, d_model); seq_len == 1 so no sequence axis needed ----
    emb_w = sp_ref[SP_EMBW:SP_EMBW + INPUT_DIM, :]                    # (INPUT_DIM, D_MODEL)
    emb_b = sp_ref[SP_EMBB:SP_EMBB + 1, :]                            # (1, D_MODEL)
    h = jnp.dot(x_ref[...], emb_w, preferred_element_type=f32) + emb_b

    # ---- encoder layers (Python-unrolled; weights are VMEM-resident across batch tiles) ----
    for l in range(NUM_LAYERS):
        base = SP_LAYER0 + l * SP_LAYER_ROWS
        w_attn = sp_ref[base + LP_WATTN:base + LP_WATTN + D_MODEL, :]  # (D_MODEL, D_MODEL)
        b_attn = sp_ref[base + LP_BATTN:base + LP_BATTN + 1, :]        # (1, D_MODEL)
        n1w = sp_ref[base + LP_N1W:base + LP_N1W + 1, :]
        n1b = sp_ref[base + LP_N1B:base + LP_N1B + 1, :]
        n2w = sp_ref[base + LP_N2W:base + LP_N2W + 1, :]
        n2b = sp_ref[base + LP_N2B:base + LP_N2B + 1, :]
        b2  = sp_ref[base + LP_B2:base + LP_B2 + 1, :]

        # attention sublayer: seq_len == 1 => softmax == 1, folded into one affine map
        attn = jnp.dot(h, w_attn, preferred_element_type=f32) + b_attn
        h = layer_norm(h + attn, n1w, n1b)                # post-norm (norm_first=False)

        # feed-forward: bf16 weights AND bf16 activations fed straight to the MXU (f32 acc)
        w1 = ffs_ref[l, FF_W1:FF_W1 + D_MODEL, :]         # (D_MODEL, DIM_FF) bf16
        b1 = ffs_ref[l, FF_B1:FF_B1 + 1, :]               # (1, DIM_FF) bf16
        w2 = w2t_ref[l]                                   # (DIM_FF, D_MODEL) bf16
        ff = jnp.dot(h.astype(bf16), w1, preferred_element_type=f32) + b1.astype(f32)
        ff = jnp.maximum(ff, 0.0)
        ff = jnp.dot(ff.astype(bf16), w2, preferred_element_type=f32) + b2
        h = layer_norm(h + ff, n2w, n2b)

    # ---- mean(dim=1) = identity (seq_len==1); Dropout(0.3) = identity in eval mode ----
    # TODO(synk): train-mode dropout (p=0.3) not implemented; kernel is eval-only.
    hr = jnp.maximum(h, 0.0)                              # fc = Sequential(ReLU, Linear, Softmax)
    fc_w = fcp_ref[FC_W:FC_W + D_MODEL, :]                # (D_MODEL, OUT_PAD), pad cols zero
    fc_b = fcp_ref[FC_B:FC_B + 1, :]                      # (1, OUT_PAD), padded lanes = NEG_INF
    logits = jnp.dot(hr, fc_w, preferred_element_type=f32) + fc_b
    m = jnp.max(logits, axis=-1, keepdims=True)
    e = jnp.exp(logits - m)                               # padded lanes underflow to exactly 0
    out_ref[...] = e / jnp.sum(e, axis=-1, keepdims=True)


# ---------------------------------- wrapper ------------------------------------------------
def transformer_forward(x, packed, *, tile_m=TILE_M):
    sp, fcp, ffs, w2t = packed
    b = x.shape[0]
    b_pad = -(-b // tile_m) * tile_m
    if b_pad != b:
        x = jnp.pad(x, ((0, b_pad - b), (0, 0)))
    out = pl.pallas_call(
        transformer_kernel,
        out_shape=jax.ShapeDtypeStruct((b_pad, OUT_PAD), jnp.float32),
        grid_spec=pltpu.PrefetchScalarGridSpec(
            num_scalar_prefetch=0,
            grid=(b_pad // tile_m,),
            in_specs=[
                pl.BlockSpec((tile_m, INPUT_DIM), lambda m: (m, 0)),               # x (batch-tiled)
                pl.BlockSpec((SP_ROWS, D_MODEL), lambda m: (0, 0)),                # small params (resident)
                pl.BlockSpec((FC_ROWS, OUT_PAD), lambda m: (0, 0)),                # head params (resident)
                pl.BlockSpec((NUM_LAYERS, FF1_ROWS, DIM_FF), lambda m: (0, 0, 0)),  # w1^T+b1 bf16 slab
                pl.BlockSpec((NUM_LAYERS, DIM_FF, D_MODEL), lambda m: (0, 0, 0)),   # w2^T bf16
            ],
            out_specs=pl.BlockSpec((tile_m, OUT_PAD), lambda m: (m, 0)),           # lane-dense output
        ),
        compiler_params=pltpu.CompilerParams(dimension_semantics=("parallel",)),
    )(x, sp, fcp, ffs, w2t)
    return out[:b, :NUM_CLASSES]


# ---------------------------------- parameter init -----------------------------------------
def _linear_init(key, in_dim, out_dim):
    """PyTorch nn.Linear default init; returns weight (out,in) and bias (out,)."""
    k1, k2 = jax.random.split(key)
    bound = 1.0 / math.sqrt(in_dim)
    w = jax.random.uniform(k1, (out_dim, in_dim), jnp.float32, -bound, bound)
    b = jax.random.uniform(k2, (out_dim,), jnp.float32, -bound, bound)
    return w, b


def make_raw_params(key):
    keys = jax.random.split(key, 2 + 4 * NUM_LAYERS)
    it = iter(keys)
    raw = {'in_w': [], 'in_b': [], 'out_w': [], 'out_b': [],
           'w1': [], 'b1': [], 'w2': [], 'b2': [],
           'n1w': [], 'n1b': [], 'n2w': [], 'n2b': []}
    raw['emb_w'], raw['emb_b'] = _linear_init(next(it), INPUT_DIM, D_MODEL)
    for _ in range(NUM_LAYERS):
        ipw, ipb = _linear_init(next(it), D_MODEL, 3 * D_MODEL)      # in_proj (3d, d)
        raw['in_w'].append(ipw); raw['in_b'].append(ipb)
        ow, ob = _linear_init(next(it), D_MODEL, D_MODEL)            # out_proj
        raw['out_w'].append(ow); raw['out_b'].append(ob)
        w1, b1 = _linear_init(next(it), D_MODEL, DIM_FF)
        w2, b2 = _linear_init(next(it), DIM_FF, D_MODEL)
        raw['w1'].append(w1); raw['b1'].append(b1)
        raw['w2'].append(w2); raw['b2'].append(b2)
        raw['n1w'].append(jnp.ones((D_MODEL,), jnp.float32))
        raw['n1b'].append(jnp.zeros((D_MODEL,), jnp.float32))
        raw['n2w'].append(jnp.ones((D_MODEL,), jnp.float32))
        raw['n2b'].append(jnp.zeros((D_MODEL,), jnp.float32))
    raw['fc_w'], raw['fc_b'] = _linear_init(next(it), D_MODEL, NUM_CLASSES)
    return raw


def pack_params(raw):
    HIGH = jax.lax.Precision.HIGHEST

    # small pack: embedding + per-layer (folded attention, LN params, FF linear2 bias)
    sp = jnp.zeros((SP_ROWS, D_MODEL), jnp.float32)
    sp = sp.at[SP_EMBW:SP_EMBW + INPUT_DIM, :].set(raw['emb_w'].T)
    sp = sp.at[SP_EMBB, :].set(raw['emb_b'])
    for l in range(NUM_LAYERS):
        base = SP_LAYER0 + l * SP_LAYER_ROWS
        wv = raw['in_w'][l][2 * D_MODEL:]        # (D, D) value projection (out, in)
        bv = raw['in_b'][l][2 * D_MODEL:]        # (D,)
        wo = raw['out_w'][l]; bo = raw['out_b'][l]
        w_attn = jnp.dot(wv.T, wo.T, precision=HIGH)      # (D, D) pre-transposed (in, out)
        b_attn = jnp.dot(bv, wo.T, precision=HIGH) + bo   # (D,)
        sp = sp.at[base + LP_WATTN:base + LP_WATTN + D_MODEL, :].set(w_attn)
        sp = sp.at[base + LP_BATTN, :].set(b_attn)
        sp = sp.at[base + LP_N1W, :].set(raw['n1w'][l])
        sp = sp.at[base + LP_N1B, :].set(raw['n1b'][l])
        sp = sp.at[base + LP_N2W, :].set(raw['n2w'][l])
        sp = sp.at[base + LP_N2B, :].set(raw['n2b'][l])
        sp = sp.at[base + LP_B2, :].set(raw['b2'][l])

    # lane-dense head pack: zero pad columns, NEG_INF pad bias lanes (=> exact 0 after exp)
    fcp = jnp.zeros((FC_ROWS, OUT_PAD), jnp.float32)
    fcp = fcp.at[FC_W:FC_W + D_MODEL, :NUM_CLASSES].set(raw['fc_w'].T)
    fcp = fcp.at[FC_B, :].set(jnp.full((OUT_PAD,), NEG_INF, jnp.float32))
    fcp = fcp.at[FC_B, :NUM_CLASSES].set(raw['fc_b'])

    # bf16 FF slabs
    ffs = jnp.zeros((NUM_LAYERS, FF1_ROWS, DIM_FF), jnp.bfloat16)
    w2t = jnp.zeros((NUM_LAYERS, DIM_FF, D_MODEL), jnp.bfloat16)
    for l in range(NUM_LAYERS):
        ffs = ffs.at[l, FF_W1:FF_W1 + D_MODEL, :].set(raw['w1'][l].T.astype(jnp.bfloat16))
        ffs = ffs.at[l, FF_B1, :].set(raw['b1'][l].astype(jnp.bfloat16))
        w2t = w2t.at[l].set(raw['w2'][l].T.astype(jnp.bfloat16))
    return sp, fcp, ffs, w2t


# ---------------------------------- pure-JAX reference -------------------------------------
def reference_forward(x, raw):
    HIGH = jax.lax.Precision.HIGHEST
    f32, bf16 = jnp.float32, jnp.bfloat16
    mm = lambda a, b: jnp.dot(a, b, precision=HIGH)

    def ln(y, w, b):
        mu = y.mean(-1, keepdims=True)
        d = y - mu
        var = (d * d).mean(-1, keepdims=True)
        return d * jax.lax.rsqrt(var + LN_EPS) * w + b

    B = x.shape[0]
    h = mm(x, raw['emb_w'].T) + raw['emb_b']
    for l in range(NUM_LAYERS):
        W_in, b_in = raw['in_w'][l], raw['in_b'][l]
        q = mm(h, W_in[:D_MODEL].T) + b_in[:D_MODEL]
        k = mm(h, W_in[D_MODEL:2 * D_MODEL].T) + b_in[D_MODEL:2 * D_MODEL]
        v = mm(h, W_in[2 * D_MODEL:].T) + b_in[2 * D_MODEL:]
        qh = q.reshape(B, NHEAD, HEAD_DIM)
        kh = k.reshape(B, NHEAD, HEAD_DIM)
        vh = v.reshape(B, NHEAD, HEAD_DIM)
        s = (qh * kh).sum(-1, keepdims=True) / math.sqrt(HEAD_DIM)   # (B, H, 1), seq_len==1
        p = jax.nn.softmax(s, axis=-1)                               # identically 1
        attn = mm((p * vh).reshape(B, D_MODEL), raw['out_w'][l].T) + raw['out_b'][l]
        h = ln(h + attn, raw['n1w'][l], raw['n1b'][l])
        # mirror the kernel's bf16 FF path (bf16 weights, bf16 activations, f32 accumulation)
        w1_bf = raw['w1'][l].astype(bf16)
        b1_bf = raw['b1'][l].astype(bf16).astype(f32)
        w2_bf = raw['w2'][l].astype(bf16)
        ff = jnp.dot(h.astype(bf16), w1_bf.T, preferred_element_type=f32) + b1_bf
        ff = jnp.maximum(ff, 0.0)
        ff = jnp.dot(ff.astype(bf16), w2_bf.T, preferred_element_type=f32) + raw['b2'][l]
        h = ln(h + ff, raw['n2w'][l], raw['n2b'][l])
    logits = mm(jnp.maximum(h, 0.0), raw['fc_w'].T) + raw['fc_b']
    return jax.nn.softmax(logits, axis=1)


# ---------------------------------- main ----------------------------------------------------
if __name__ == "__main__":
    key = jax.random.PRNGKey(0)
    kx, kp = jax.random.split(key)
    x = jax.random.normal(kx, (BATCH, INPUT_DIM), jnp.float32)

    raw = make_raw_params(kp)
    packed = pack_params(raw)

    out = jax.block_until_ready(transformer_forward(x, packed))

    ref = reference_forward(x, raw)
    np.testing.assert_allclose(np.asarray(out), np.asarray(ref), atol=2e-3, rtol=2e-2)
    assert out.shape == (BATCH, NUM_CLASSES)
    assert np.allclose(np.asarray(out).sum(axis=1), 1.0, atol=1e-5)

    print("KERNEL_OK")
</pallas_src>

<mosaic_0001>
module attributes {stable_mosaic.version = 11 : i64} {
  func.func @transformer_kernel(%arg0: i32, %arg1: memref<128x16xf32, #tpu.memory_space<vmem>>, %arg2: memref<168x64xf32, #tpu.memory_space<vmem>>, %arg3: memref<72x128xf32, #tpu.memory_space<vmem>>, %arg4: memref<2x72x2048xbf16, #tpu.memory_space<vmem>>, %arg5: memref<2x2048x64xbf16, #tpu.memory_space<vmem>>, %arg6: memref<128x128xf32, #tpu.memory_space<vmem>>) attributes {dimension_semantics = [#tpu.dimension_semantics<parallel>], iteration_bounds = array<i64: 2>, scalar_prefetch = 0 : i64, scratch_operands = 0 : i64, tpu.core_type = #tpu.core_type<tc>, window_params = [{transform_indices = @transform_0, window_bounds = array<i64: 128, 16>}, {pipeline_mode = #tpu.pipeline_mode<synchronous>, transform_indices = @transform_1, window_bounds = array<i64: 168, 64>}, {pipeline_mode = #tpu.pipeline_mode<synchronous>, transform_indices = @transform_2, window_bounds = array<i64: 72, 128>}, {pipeline_mode = #tpu.pipeline_mode<synchronous>, transform_indices = @transform_3, window_bounds = array<i64: 2, 72, 2048>}, {pipeline_mode = #tpu.pipeline_mode<synchronous>, transform_indices = @transform_4, window_bounds = array<i64: 2, 2048, 64>}, {transform_indices = @transform_5, window_bounds = array<i64: 128, 128>}]} {
    %c0 = arith.constant 0 : index
    %c0_0 = arith.constant 0 : index
    %0 = vector.load %arg2[%c0, %c0_0] : memref<168x64xf32, #tpu.memory_space<vmem>>, vector<16x64xf32>
    %c16 = arith.constant 16 : index
    %c0_1 = arith.constant 0 : index
    %1 = vector.load %arg2[%c16, %c0_1] : memref<168x64xf32, #tpu.memory_space<vmem>>, vector<1x64xf32>
    %c0_2 = arith.constant 0 : index
    %c0_3 = arith.constant 0 : index
    %2 = vector.load %arg1[%c0_2, %c0_3] : memref<128x16xf32, #tpu.memory_space<vmem>>, vector<128x16xf32>
    %cst = arith.constant dense<0.000000e+00> : vector<128x64xf32>
    %3 = tpu.matmul %2, %0, %cst {dimension_numbers = #tpu.dot_dimension_numbers<[1], [0], [0], [1], [0, 0, 1, 1], [], []>} : vector<128x16xf32>, vector<16x64xf32>, vector<128x64xf32> -> vector<128x64xf32>
    %4 = vector.broadcast %1 : vector<1x64xf32> to vector<128x64xf32>
    %5 = arith.addf %3, %4 : vector<128x64xf32>
    %c24 = arith.constant 24 : index
    %c0_4 = arith.constant 0 : index
    %6 = vector.load %arg2[%c24, %c0_4] : memref<168x64xf32, #tpu.memory_space<vmem>>, vector<64x64xf32>
    %c88 = arith.constant 88 : index
    %c0_5 = arith.constant 0 : index
    %7 = vector.load %arg2[%c88, %c0_5] : memref<168x64xf32, #tpu.memory_space<vmem>>, vector<1x64xf32>
    %c89 = arith.constant 89 : index
    %c0_6 = arith.constant 0 : index
    %8 = vector.load %arg2[%c89, %c0_6] : memref<168x64xf32, #tpu.memory_space<vmem>>, vector<1x64xf32>
    %c90 = arith.constant 90 : index
    %c0_7 = arith.constant 0 : index
    %9 = vector.load %arg2[%c90, %c0_7] : memref<168x64xf32, #tpu.memory_space<vmem>>, vector<1x64xf32>
    %c91 = arith.constant 91 : index
    %c0_8 = arith.constant 0 : index
    %10 = vector.load %arg2[%c91, %c0_8] : memref<168x64xf32, #tpu.memory_space<vmem>>, vector<1x64xf32>
    %c92 = arith.constant 92 : index
    %c0_9 = arith.constant 0 : index
    %11 = vector.load %arg2[%c92, %c0_9] : memref<168x64xf32, #tpu.memory_space<vmem>>, vector<1x64xf32>
    %c93 = arith.constant 93 : index
    %c0_10 = arith.constant 0 : index
    %12 = vector.load %arg2[%c93, %c0_10] : memref<168x64xf32, #tpu.memory_space<vmem>>, vector<1x64xf32>
    %cst_11 = arith.constant dense<0.000000e+00> : vector<128x64xf32>
    %13 = tpu.matmul %5, %6, %cst_11 {dimension_numbers = #tpu.dot_dimension_numbers<[1], [0], [0], [1], [0, 0, 1, 1], [], []>} : vector<128x64xf32>, vector<64x64xf32>, vector<128x64xf32> -> vector<128x64xf32>
    %14 = vector.broadcast %7 : vector<1x64xf32> to vector<128x64xf32>
    %15 = arith.addf %13, %14 : vector<128x64xf32>
    %16 = arith.addf %5, %15 : vector<128x64xf32>
    %cst_12 = arith.constant dense<0.000000e+00> : vector<128xf32>
    %17 = vector.multi_reduction <add>, %16, %cst_12 [1] : vector<128x64xf32> to vector<128xf32>
    %18 = vector.shape_cast %17 : vector<128xf32> to vector<128x1xf32>
    %cst_13 = arith.constant 6.400000e+01 : f32
    %19 = vector.broadcast %cst_13 : f32 to vector<128x1xf32>
    %20 = arith.divf %18, %19 : vector<128x1xf32>
    %21 = vector.broadcast %20 : vector<128x1xf32> to vector<128x64xf32>
    %22 = arith.subf %16, %21 : vector<128x64xf32>
    %23 = arith.mulf %22, %22 : vector<128x64xf32>
    %cst_14 = arith.constant dense<0.000000e+00> : vector<128xf32>
    %24 = vector.multi_reduction <add>, %23, %cst_14 [1] : vector<128x64xf32> to vector<128xf32>
    %25 = vector.shape_cast %24 : vector<128xf32> to vector<128x1xf32>
    %cst_15 = arith.constant 6.400000e+01 : f32
    %26 = vector.broadcast %cst_15 : f32 to vector<128x1xf32>
    %27 = arith.divf %25, %26 : vector<128x1xf32>
    %cst_16 = arith.constant 9.99999974E-6 : f32
    %28 = vector.broadcast %cst_16 : f32 to vector<128x1xf32>
    %29 = arith.addf %27, %28 : vector<128x1xf32>
    %30 = math.rsqrt %29 : vector<128x1xf32>
    %31 = vector.broadcast %30 : vector<128x1xf32> to vector<128x64xf32>
    %32 = arith.mulf %22, %31 : vector<128x64xf32>
    %33 = vector.broadcast %8 : vector<1x64xf32> to vector<128x64xf32>
    %34 = arith.mulf %32, %33 : vector<128x64xf32>
    %35 = vector.broadcast %9 : vector<1x64xf32> to vector<128x64xf32>
    %36 = arith.addf %34, %35 : vector<128x64xf32>
    %c0_17 = arith.constant 0 : index
    %c0_18 = arith.constant 0 : index
    %c0_19 = arith.constant 0 : index
    %37 = vector.load %arg4[%c0_17, %c0_18, %c0_19] : memref<2x72x2048xbf16, #tpu.memory_space<vmem>>, vector<1x64x2048xbf16>
    %38 = vector.shape_cast %37 : vector<1x64x2048xbf16> to vector<64x2048xbf16>
    %c0_20 = arith.constant 0 : index
    %c64 = arith.constant 64 : index
    %c0_21 = arith.constant 0 : index
    %39 = vector.load %arg4[%c0_20, %c64, %c0_21] : memref<2x72x2048xbf16, #tpu.memory_space<vmem>>, vector<1x1x2048xbf16>
    %40 = vector.shape_cast %39 : vector<1x1x2048xbf16> to vector<1x2048xbf16>
    %c0_22 = arith.constant 0 : index
    %c0_23 = arith.constant 0 : index
    %c0_24 = arith.constant 0 : index
    %41 = vector.load %arg5[%c0_22, %c0_23, %c0_24] : memref<2x2048x64xbf16, #tpu.memory_space<vmem>>, vector<1x2048x64xbf16>
    %42 = vector.shape_cast %41 : vector<1x2048x64xbf16> to vector<2048x64xbf16>
    %43 = arith.truncf %36 : vector<128x64xf32> to vector<128x64xbf16>
    %cst_25 = arith.constant dense<0.000000e+00> : vector<128x2048xf32>
    %44 = tpu.matmul %43, %38, %cst_25 {dimension_numbers = #tpu.dot_dimension_numbers<[1], [0], [0], [1], [0, 0, 1, 1], [], []>} : vector<128x64xbf16>, vector<64x2048xbf16>, vector<128x2048xf32> -> vector<128x2048xf32>
    %45 = arith.extf %40 : vector<1x2048xbf16> to vector<1x2048xf32>
    %46 = vector.broadcast %45 : vector<1x2048xf32> to vector<128x2048xf32>
    %47 = arith.addf %44, %46 : vector<128x2048xf32>
    %cst_26 = arith.constant 0.000000e+00 : f32
    %48 = vector.broadcast %cst_26 : f32 to vector<128x2048xf32>
    %49 = arith.maximumf %47, %48 : vector<128x2048xf32>
    %50 = arith.truncf %49 : vector<128x2048xf32> to vector<128x2048xbf16>
    %cst_27 = arith.constant dense<0.000000e+00> : vector<128x64xf32>
    %51 = tpu.matmul %50, %42, %cst_27 {dimension_numbers = #tpu.dot_dimension_numbers<[1], [0], [0], [1], [0, 0, 1, 1], [], []>} : vector<128x2048xbf16>, vector<2048x64xbf16>, vector<128x64xf32> -> vector<128x64xf32>
    %52 = vector.broadcast %12 : vector<1x64xf32> to vector<128x64xf32>
    %53 = arith.addf %51, %52 : vector<128x64xf32>
    %54 = arith.addf %36, %53 : vector<128x64xf32>
    %cst_28 = arith.constant dense<0.000000e+00> : vector<128xf32>
    %55 = vector.multi_reduction <add>, %54, %cst_28 [1] : vector<128x64xf32> to vector<128xf32>
    %56 = vector.shape_cast %55 : vector<128xf32> to vector<128x1xf32>
    %cst_29 = arith.constant 6.400000e+01 : f32
    %57 = vector.broadcast %cst_29 : f32 to vector<128x1xf32>
    %58 = arith.divf %56, %57 : vector<128x1xf32>
    %59 = vector.broadcast %58 : vector<128x1xf32> to vector<128x64xf32>
    %60 = arith.subf %54, %59 : vector<128x64xf32>
    %61 = arith.mulf %60, %60 : vector<128x64xf32>
    %cst_30 = arith.constant dense<0.000000e+00> : vector<128xf32>
    %62 = vector.multi_reduction <add>, %61, %cst_30 [1] : vector<128x64xf32> to vector<128xf32>
    %63 = vector.shape_cast %62 : vector<128xf32> to vector<128x1xf32>
    %cst_31 = arith.constant 6.400000e+01 : f32
    %64 = vector.broadcast %cst_31 : f32 to vector<128x1xf32>
    %65 = arith.divf %63, %64 : vector<128x1xf32>
    %cst_32 = arith.constant 9.99999974E-6 : f32
    %66 = vector.broadcast %cst_32 : f32 to vector<128x1xf32>
    %67 = arith.addf %65, %66 : vector<128x1xf32>
    %68 = math.rsqrt %67 : vector<128x1xf32>
    %69 = vector.broadcast %68 : vector<128x1xf32> to vector<128x64xf32>
    %70 = arith.mulf %60, %69 : vector<128x64xf32>
    %71 = vector.broadcast %10 : vector<1x64xf32> to vector<128x64xf32>
    %72 = arith.mulf %70, %71 : vector<128x64xf32>
    %73 = vector.broadcast %11 : vector<1x64xf32> to vector<128x64xf32>
    %74 = arith.addf %72, %73 : vector<128x64xf32>
    %c96 = arith.constant 96 : index
    %c0_33 = arith.constant 0 : index
    %75 = vector.load %arg2[%c96, %c0_33] : memref<168x64xf32, #tpu.memory_space<vmem>>, vector<64x64xf32>
    %c160 = arith.constant 160 : index
    %c0_34 = arith.constant 0 : index
    %76 = vector.load %arg2[%c160, %c0_34] : memref<168x64xf32, #tpu.memory_space<vmem>>, vector<1x64xf32>
    %c161 = arith.constant 161 : index
    %c0_35 = arith.constant 0 : index
    %77 = vector.load %arg2[%c161, %c0_35] : memref<168x64xf32, #tpu.memory_space<vmem>>, vector<1x64xf32>
    %c162 = arith.constant 162 : index
    %c0_36 = arith.constant 0 : index
    %78 = vector.load %arg2[%c162, %c0_36] : memref<168x64xf32, #tpu.memory_space<vmem>>, vector<1x64xf32>
    %c163 = arith.constant 163 : index
    %c0_37 = arith.constant 0 : index
    %79 = vector.load %arg2[%c163, %c0_37] : memref<168x64xf32, #tpu.memory_space<vmem>>, vector<1x64xf32>
    %c164 = arith.constant 164 : index
    %c0_38 = arith.constant 0 : index
    %80 = vector.load %arg2[%c164, %c0_38] : memref<168x64xf32, #tpu.memory_space<vmem>>, vector<1x64xf32>
    %c165 = arith.constant 165 : index
    %c0_39 = arith.constant 0 : index
    %81 = vector.load %arg2[%c165, %c0_39] : memref<168x64xf32, #tpu.memory_space<vmem>>, vector<1x64xf32>
    %cst_40 = arith.constant dense<0.000000e+00> : vector<128x64xf32>
    %82 = tpu.matmul %74, %75, %cst_40 {dimension_numbers = #tpu.dot_dimension_numbers<[1], [0], [0], [1], [0, 0, 1, 1], [], []>} : vector<128x64xf32>, vector<64x64xf32>, vector<128x64xf32> -> vector<128x64xf32>
    %83 = vector.broadcast %76 : vector<1x64xf32> to vector<128x64xf32>
    %84 = arith.addf %82, %83 : vector<128x64xf32>
    %85 = arith.addf %74, %84 : vector<128x64xf32>
    %cst_41 = arith.constant dense<0.000000e+00> : vector<128xf32>
    %86 = vector.multi_reduction <add>, %85, %cst_41 [1] : vector<128x64xf32> to vector<128xf32>
    %87 = vector.shape_cast %86 : vector<128xf32> to vector<128x1xf32>
    %cst_42 = arith.constant 6.400000e+01 : f32
    %88 = vector.broadcast %cst_42 : f32 to vector<128x1xf32>
    %89 = arith.divf %87, %88 : vector<128x1xf32>
    %90 = vector.broadcast %89 : vector<128x1xf32> to vector<128x64xf32>
    %91 = arith.subf %85, %90 : vector<128x64xf32>
    %92 = arith.mulf %91, %91 : vector<128x64xf32>
    %cst_43 = arith.constant dense<0.000000e+00> : vector<128xf32>
    %93 = vector.multi_reduction <add>, %92, %cst_43 [1] : vector<128x64xf32> to vector<128xf32>
    %94 = vector.shape_cast %93 : vector<128xf32> to vector<128x1xf32>
    %cst_44 = arith.constant 6.400000e+01 : f32
    %95 = vector.broadcast %cst_44 : f32 to vector<128x1xf32>
    %96 = arith.divf %94, %95 : vector<128x1xf32>
    %cst_45 = arith.constant 9.99999974E-6 : f32
    %97 = vector.broadcast %cst_45 : f32 to vector<128x1xf32>
    %98 = arith.addf %96, %97 : vector<128x1xf32>
    %99 = math.rsqrt %98 : vector<128x1xf32>
    %100 = vector.broadcast %99 : vector<128x1xf32> to vector<128x64xf32>
    %101 = arith.mulf %91, %100 : vector<128x64xf32>
    %102 = vector.broadcast %77 : vector<1x64xf32> to vector<128x64xf32>
    %103 = arith.mulf %101, %102 : vector<128x64xf32>
    %104 = vector.broadcast %78 : vector<1x64xf32> to vector<128x64xf32>
    %105 = arith.addf %103, %104 : vector<128x64xf32>
    %c1 = arith.constant 1 : index
    %c0_46 = arith.constant 0 : index
    %c0_47 = arith.constant 0 : index
    %106 = vector.load %arg4[%c1, %c0_46, %c0_47] : memref<2x72x2048xbf16, #tpu.memory_space<vmem>>, vector<1x64x2048xbf16>
    %107 = vector.shape_cast %106 : vector<1x64x2048xbf16> to vector<64x2048xbf16>
    %c1_48 = arith.constant 1 : index
    %c64_49 = arith.constant 64 : index
    %c0_50 = arith.constant 0 : index
    %108 = vector.load %arg4[%c1_48, %c64_49, %c0_50] : memref<2x72x2048xbf16, #tpu.memory_space<vmem>>, vector<1x1x2048xbf16>
    %109 = vector.shape_cast %108 : vector<1x1x2048xbf16> to vector<1x2048xbf16>
    %c1_51 = arith.constant 1 : index
    %c0_52 = arith.constant 0 : index
    %c0_53 = arith.constant 0 : index
    %110 = vector.load %arg5[%c1_51, %c0_52, %c0_53] : memref<2x2048x64xbf16, #tpu.memory_space<vmem>>, vector<1x2048x64xbf16>
    %111 = vector.shape_cast %110 : vector<1x2048x64xbf16> to vector<2048x64xbf16>
    %112 = arith.truncf %105 : vector<128x64xf32> to vector<128x64xbf16>
    %cst_54 = arith.constant dense<0.000000e+00> : vector<128x2048xf32>
    %113 = tpu.matmul %112, %107, %cst_54 {dimension_numbers = #tpu.dot_dimension_numbers<[1], [0], [0], [1], [0, 0, 1, 1], [], []>} : vector<128x64xbf16>, vector<64x2048xbf16>, vector<128x2048xf32> -> vector<128x2048xf32>
    %114 = arith.extf %109 : vector<1x2048xbf16> to vector<1x2048xf32>
    %115 = vector.broadcast %114 : vector<1x2048xf32> to vector<128x2048xf32>
    %116 = arith.addf %113, %115 : vector<128x2048xf32>
    %cst_55 = arith.constant 0.000000e+00 : f32
    %117 = vector.broadcast %cst_55 : f32 to vector<128x2048xf32>
    %118 = arith.maximumf %116, %117 : vector<128x2048xf32>
    %119 = arith.truncf %118 : vector<128x2048xf32> to vector<128x2048xbf16>
    %cst_56 = arith.constant dense<0.000000e+00> : vector<128x64xf32>
    %120 = tpu.matmul %119, %111, %cst_56 {dimension_numbers = #tpu.dot_dimension_numbers<[1], [0], [0], [1], [0, 0, 1, 1], [], []>} : vector<128x2048xbf16>, vector<2048x64xbf16>, vector<128x64xf32> -> vector<128x64xf32>
    %121 = vector.broadcast %81 : vector<1x64xf32> to vector<128x64xf32>
    %122 = arith.addf %120, %121 : vector<128x64xf32>
    %123 = arith.addf %105, %122 : vector<128x64xf32>
    %cst_57 = arith.constant dense<0.000000e+00> : vector<128xf32>
    %124 = vector.multi_reduction <add>, %123, %cst_57 [1] : vector<128x64xf32> to vector<128xf32>
    %125 = vector.shape_cast %124 : vector<128xf32> to vector<128x1xf32>
    %cst_58 = arith.constant 6.400000e+01 : f32
    %126 = vector.broadcast %cst_58 : f32 to vector<128x1xf32>
    %127 = arith.divf %125, %126 : vector<128x1xf32>
    %128 = vector.broadcast %127 : vector<128x1xf32> to vector<128x64xf32>
    %129 = arith.subf %123, %128 : vector<128x64xf32>
    %130 = arith.mulf %129, %129 : vector<128x64xf32>
    %cst_59 = arith.constant dense<0.000000e+00> : vector<128xf32>
    %131 = vector.multi_reduction <add>, %130, %cst_59 [1] : vector<128x64xf32> to vector<128xf32>
    %132 = vector.shape_cast %131 : vector<128xf32> to vector<128x1xf32>
    %cst_60 = arith.constant 6.400000e+01 : f32
    %133 = vector.broadcast %cst_60 : f32 to vector<128x1xf32>
    %134 = arith.divf %132, %133 : vector<128x1xf32>
    %cst_61 = arith.constant 9.99999974E-6 : f32
    %135 = vector.broadcast %cst_61 : f32 to vector<128x1xf32>
    %136 = arith.addf %134, %135 : vector<128x1xf32>
    %137 = math.rsqrt %136 : vector<128x1xf32>
    %138 = vector.broadcast %137 : vector<128x1xf32> to vector<128x64xf32>
    %139 = arith.mulf %129, %138 : vector<128x64xf32>
    %140 = vector.broadcast %79 : vector<1x64xf32> to vector<128x64xf32>
    %141 = arith.mulf %139, %140 : vector<128x64xf32>
    %142 = vector.broadcast %80 : vector<1x64xf32> to vector<128x64xf32>
    %143 = arith.addf %141, %142 : vector<128x64xf32>
    %cst_62 = arith.constant 0.000000e+00 : f32
    %144 = vector.broadcast %cst_62 : f32 to vector<128x64xf32>
    %145 = arith.maximumf %143, %144 : vector<128x64xf32>
    %c0_63 = arith.constant 0 : index
    %c0_64 = arith.constant 0 : index
    %146 = vector.load %arg3[%c0_63, %c0_64] : memref<72x128xf32, #tpu.memory_space<vmem>>, vector<64x128xf32>
    %c64_65 = arith.constant 64 : index
    %c0_66 = arith.constant 0 : index
    %147 = vector.load %arg3[%c64_65, %c0_66] : memref<72x128xf32, #tpu.memory_space<vmem>>, vector<1x128xf32>
    %cst_67 = arith.constant dense<0.000000e+00> : vector<128x128xf32>
    %148 = tpu.matmul %145, %146, %cst_67 {dimension_numbers = #tpu.dot_dimension_numbers<[1], [0], [0], [1], [0, 0, 1, 1], [], []>} : vector<128x64xf32>, vector<64x128xf32>, vector<128x128xf32> -> vector<128x128xf32>
    %149 = vector.broadcast %147 : vector<1x128xf32> to vector<128x128xf32>
    %150 = arith.addf %148, %149 : vector<128x128xf32>
    %cst_68 = arith.constant dense<0xFF800000> : vector<128xf32>
    %151 = vector.multi_reduction <maximumf>, %150, %cst_68 [1] : vector<128x128xf32> to vector<128xf32>
    %152 = vector.shape_cast %151 : vector<128xf32> to vector<128x1xf32>
    %153 = vector.broadcast %152 : vector<128x1xf32> to vector<128x128xf32>
    %154 = arith.subf %150, %153 : vector<128x128xf32>
    %155 = math.exp %154 : vector<128x128xf32>
    %cst_69 = arith.constant dense<0.000000e+00> : vector<128xf32>
    %156 = vector.multi_reduction <add>, %155, %cst_69 [1] : vector<128x128xf32> to vector<128xf32>
    %157 = vector.shape_cast %156 : vector<128xf32> to vector<128x1xf32>
    %158 = vector.broadcast %157 : vector<128x1xf32> to vector<128x128xf32>
    %159 = arith.divf %155, %158 : vector<128x128xf32>
    %c0_70 = arith.constant 0 : index
    %c0_71 = arith.constant 0 : index
    %160 = vector.load %arg6[%c0_70, %c0_71] : memref<128x128xf32, #tpu.memory_space<vmem>>, vector<128x128xf32>
    tpu.vector_store %arg6[%c0_70, %c0_71], %159 {strides = array<i32>} : memref<128x128xf32, #tpu.memory_space<vmem>>, vector<128x128xf32>,
    return
  }
  func.func @transform_0(%arg0: i32) -> (i32, i32) {
    %c0_i32 = arith.constant 0 : i32
    %c0_i32_0 = arith.constant 0 : i32
    return %arg0, %c0_i32 : i32, i32
  }
  func.func @transform_1(%arg0: i32) -> (i32, i32) {
    %c0_i32 = arith.constant 0 : i32
    %c0_i32_0 = arith.constant 0 : i32
    %c0_i32_1 = arith.constant 0 : i32
    return %c0_i32, %c0_i32_0 : i32, i32
  }
  func.func @transform_2(%arg0: i32) -> (i32, i32) {
    %c0_i32 = arith.constant 0 : i32
    %c0_i32_0 = arith.constant 0 : i32
    %c0_i32_1 = arith.constant 0 : i32
    return %c0_i32, %c0_i32_0 : i32, i32
  }
  func.func @transform_3(%arg0: i32) -> (i32, i32, i32) {
    %c0_i32 = arith.constant 0 : i32
    %c0_i32_0 = arith.constant 0 : i32
    %c0_i32_1 = arith.constant 0 : i32
    %c0_i32_2 = arith.constant 0 : i32
    return %c0_i32, %c0_i32_0, %c0_i32_1 : i32, i32, i32
  }
  func.func @transform_4(%arg0: i32) -> (i32, i32, i32) {
    %c0_i32 = arith.constant 0 : i32
    %c0_i32_0 = arith.constant 0 : i32
    %c0_i32_1 = arith.constant 0 : i32
    %c0_i32_2 = arith.constant 0 : i32
    return %c0_i32, %c0_i32_0, %c0_i32_1 : i32, i32, i32
  }
  func.func @transform_5(%arg0: i32) -> (i32, i32) {
    %c0_i32 = arith.constant 0 : i32
    %c0_i32_0 = arith.constant 0 : i32
    return %arg0, %c0_i32 : i32, i32
  }
}

</mosaic_0001>

<llo_original>
// kernel: tpu_custom_call.1
$region0: #{tpu_custom_call.1}
  #allocation0 [shape = 'u32[]', space=smem, size = 0x4, offset = 0x4, fixed_abs, tag = 'smem constant byte address 0x4 - core index']
  #allocation1 [shape = 'u32[72,128]{1,0:T(1,128)}', space=vmem, size = 0x9000, scoped, tag = 'internal scratch']
  %s0 = inlined_call_operand.vmem [shape: f32[256,16], index: 0, kind: input, shape index: {}]
  %s1 = inlined_call_operand.vmem [shape: f32[168,64], index: 1, kind: input, shape index: {}]
  %s2 = inlined_call_operand.vmem [shape: f32[72,128], index: 2, kind: input, shape index: {}]
  %s3 = inlined_call_operand.vmem [shape: bf16[2,72,2048], index: 3, kind: input, shape index: {}]
  %s4 = inlined_call_operand.vmem [shape: bf16[2,2048,64], index: 4, kind: input, shape index: {}]
  %s5 = inlined_call_operand.hbm [shape: f32[256,128], index: 5, kind: output, shape index: {}]
  %s6 = sld [smem:[#allocation0]]
  $region53: #{tpu_custom_call.1} parent=0
    _
  %s8 = ssub.s32 1, %s6
  %s9 = scalar_select 0, %s8, %s6
  $region1: #{tpu_custom_call.1} parent=0
    #allocation2 [shape = 'u8[131072]{0}', space=vmem, size = 0x20000, scoped, tag = 'output window, operand 0']
    #allocation3 [shape = 's32[2]{0}', space=sflag, size = 0x8, scoped, tag = 'scoped memory for tpu_custom_call.1']
    %10 = vsyncpa [#allocation3], 0
    %s11 = scalar_lea.sflag [#allocation3], 1
    %12 = vsyncpa %s11, 0
    loop: start=0, step=1, limit=4
    $region2: #{tpu_custom_call.1} parent=1 // loop_pre_header
      _
    $region3: #{tpu_custom_call.1} parent=1 // loop_header
      %s14 = sphi 0, %s18
      %p15 = scmp.ge.s32.totalorder %s14, 4
      %s24 = sphi 0, %s26
      %s27 = sphi 0, %s24
      %s28 = sphi 0, %s27
      %s44 = sphi 0, %s28
      %s48 = sphi 0, %s48
      %s50 = sphi 0, %s48
      %s51 = sphi 0, %s50
      %s65 = sphi 0, %s51
      %s69 = sphi 0, %s69
      %s71 = sphi 0, %s69
      %s72 = sphi 0, %s71
      %s86 = sphi 0, %s72
      %s90 = sphi 0, %s90
      %s92 = sphi 0, %s90
      %s93 = sphi 0, %s92
      %s107 = sphi 0, %s93
      %s111 = sphi 0, %s111
      %s113 = sphi 0, %s111
      %s114 = sphi 0, %s113
      %s128 = sphi 0, %s114
      %s134 = sphi 0, %s136
      %s137 = sphi 0, %s134
      %s138 = sphi 0, %s137
      %s154 = sphi 0, %s138
    $region4: #{tpu_custom_call.1} parent=1 // loop_header_branch
      %17 = sbr.rel (%p15) target = $region8
    $region5: #{tpu_custom_call.1} parent=1 // loop_body
      %s19 = ssub.s32 %s14, 1
      %s20 = ssub.s32 %s14, 2
      %s21 = sadd.s32 %s14, 1
      %s22 = ssub.s32 %s14, %s21
      %p23 = scmp.eq.s32.totalorder %s22, 0
      %s25 = sadd.s32 %s24, 1
      %s26 = scalar_select %p23, %s24, %s25
      %p29 = pneg %p23
      %p30 = scmp.eq.s32.totalorder %s14, 1
      %p31 = por %p29, %p30
      %p32 = scmp.ne.s32.totalorder %s24, %s27
      %p33 = scmp.eq.s32.totalorder %s14, 0
      %p34 = por %p32, %p33
      %p35 = scmp.ne.s32.totalorder %s24, %s27
      %p36 = scmp.eq.s32.totalorder %s19, 1
      %p37 = por %p35, %p36
      %p38 = scmp.ne.s32.totalorder %s27, %s28
      %p39 = scmp.eq.s32.totalorder %s19, 0
      %p40 = por %p38, %p39
      %p41 = scmp.ne.s32.totalorder %s27, %s28
      %p42 = scmp.eq.s32.totalorder %s20, 1
      %p43 = por %p41, %p42
      %p45 = scmp.ne.s32.totalorder %s28, %s44
      %p46 = scmp.eq.s32.totalorder %s20, 0
      %p47 = por %p45, %p46
      %s49 = sadd.s32 %s48, 1
      %p52 = scmp.eq.s32.totalorder %s14, 1
      %p53 = scmp.ne.s32.totalorder %s48, %s50
      %p54 = scmp.eq.s32.totalorder %s14, 0
      %p55 = por %p53, %p54
      %p56 = scmp.ne.s32.totalorder %s48, %s50
      %p57 = scmp.eq.s32.totalorder %s19, 1
      %p58 = por %p56, %p57
      %p59 = scmp.ne.s32.totalorder %s50, %s51
      %p60 = scmp.eq.s32.totalorder %s19, 0
      %p61 = por %p59, %p60
      %p62 = scmp.ne.s32.totalorder %s50, %s51
      %p63 = scmp.eq.s32.totalorder %s20, 1
      %p64 = por %p62, %p63
      %p66 = scmp.ne.s32.totalorder %s51, %s65
      %p67 = scmp.eq.s32.totalorder %s20, 0
      %p68 = por %p66, %p67
      %s70 = sadd.s32 %s69, 1
      %p73 = scmp.eq.s32.totalorder %s14, 1
      %p74 = scmp.ne.s32.totalorder %s69, %s71
      %p75 = scmp.eq.s32.totalorder %s14, 0
      %p76 = por %p74, %p75
      %p77 = scmp.ne.s32.totalorder %s69, %s71
      %p78 = scmp.eq.s32.totalorder %s19, 1
      %p79 = por %p77, %p78
      %p80 = scmp.ne.s32.totalorder %s71, %s72
      %p81 = scmp.eq.s32.totalorder %s19, 0
      %p82 = por %p80, %p81
      %p83 = scmp.ne.s32.totalorder %s71, %s72
      %p84 = scmp.eq.s32.totalorder %s20, 1
      %p85 = por %p83, %p84
      %p87 = scmp.ne.s32.totalorder %s72, %s86
      %p88 = scmp.eq.s32.totalorder %s20, 0
      %p89 = por %p87, %p88
      %s91 = sadd.s32 %s90, 1
      %p94 = scmp.eq.s32.totalorder %s14, 1
      %p95 = scmp.ne.s32.totalorder %s90, %s92
      %p96 = scmp.eq.s32.totalorder %s14, 0
      %p97 = por %p95, %p96
      %p98 = scmp.ne.s32.totalorder %s90, %s92
      %p99 = scmp.eq.s32.totalorder %s19, 1
      %p100 = por %p98, %p99
      %p101 = scmp.ne.s32.totalorder %s92, %s93
      %p102 = scmp.eq.s32.totalorder %s19, 0
      %p103 = por %p101, %p102
      %p104 = scmp.ne.s32.totalorder %s92, %s93
      %p105 = scmp.eq.s32.totalorder %s20, 1
      %p106 = por %p104, %p105
      %p108 = scmp.ne.s32.totalorder %s93, %s107
      %p109 = scmp.eq.s32.totalorder %s20, 0
      %p110 = por %p108, %p109
      %s112 = sadd.s32 %s111, 1
      %p115 = scmp.eq.s32.totalorder %s14, 1
      %p116 = scmp.ne.s32.totalorder %s111, %s113
      %p117 = scmp.eq.s32.totalorder %s14, 0
      %p118 = por %p116, %p117
      %p119 = scmp.ne.s32.totalorder %s111, %s113
      %p120 = scmp.eq.s32.totalorder %s19, 1
      %p121 = por %p119, %p120
      %p122 = scmp.ne.s32.totalorder %s113, %s114
      %p123 = scmp.eq.s32.totalorder %s19, 0
      %p124 = por %p122, %p123
      %p125 = scmp.ne.s32.totalorder %s113, %s114
      %p126 = scmp.eq.s32.totalorder %s20, 1
      %p127 = por %p125, %p126
      %p129 = scmp.ne.s32.totalorder %s114, %s128
      %p130 = scmp.eq.s32.totalorder %s20, 0
      %p131 = por %p129, %p130
      %s132 = ssub.s32 %s14, %s21
      %p133 = scmp.eq.s32.totalorder %s132, 0
      %s135 = sadd.s32 %s134, 1
      %s136 = scalar_select %p133, %s134, %s135
      %p139 = pneg %p133
      %p140 = scmp.eq.s32.totalorder %s14, 1
      %p141 = por %p139, %p140
      %p142 = scmp.ne.s32.totalorder %s134, %s137
      %p143 = scmp.eq.s32.totalorder %s14, 0
      %p144 = por %p142, %p143
      %p145 = scmp.ne.s32.totalorder %s134, %s137
      %p146 = scmp.eq.s32.totalorder %s19, 1
      %p147 = por %p145, %p146
      %p148 = scmp.ne.s32.totalorder %s137, %s138
      %p149 = scmp.eq.s32.totalorder %s19, 0
      %p150 = por %p148, %p149
      %p151 = scmp.ne.s32.totalorder %s137, %s138
      %p152 = scmp.eq.s32.totalorder %s20, 1
      %p153 = por %p151, %p152
      %p155 = scmp.ne.s32.totalorder %s138, %s154
      %p156 = scmp.eq.s32.totalorder %s20, 0
      %p157 = por %p155, %p156
      %p158 = scmp.le.s32.totalorder 1, %s14
      %p159 = scmp.lt.s32.totalorder %s14, 3
      %p160 = pnand %p158, %p159
      %p161 = pneg %p160
      // Predicated region
      $region9: #{tpu_custom_call.1} parent=5 // pred_check
        _
      $region10: #{tpu_custom_call.1} parent=5 // pred_check_branch
        %163 = sbr.rel (%p160) target = $region12
      $region11: #{tpu_custom_call.1} parent=5 // pred_region
        %s164 = ssub.s32 %s14, 1
        // Predicated region
        $region13: #{tpu_custom_call.1} parent=11 // pred_check
          %p165 = pneg %p61
        $region14: #{tpu_custom_call.1} parent=11 // pred_check_branch
          %167 = sbr.rel (%p165) target = $region16
        $region15: #{tpu_custom_call.1} parent=11 // pred_region
          _
        $region16: #{tpu_custom_call.1} parent=11 // pred_fallthru
          _
        // Predicated region
        $region17: #{tpu_custom_call.1} parent=11 // pred_check
          %p168 = pneg %p82
        $region18: #{tpu_custom_call.1} parent=11 // pred_check_branch
          %170 = sbr.rel (%p168) target = $region20
        $region19: #{tpu_custom_call.1} parent=11 // pred_region
          _
        $region20: #{tpu_custom_call.1} parent=11 // pred_fallthru
          _
        // Predicated region
        $region21: #{tpu_custom_call.1} parent=11 // pred_check
          %p171 = pneg %p103
        $region22: #{tpu_custom_call.1} parent=11 // pred_check_branch
          %173 = sbr.rel (%p171) target = $region24
        $region23: #{tpu_custom_call.1} parent=11 // pred_region
          _
        $region24: #{tpu_custom_call.1} parent=11 // pred_fallthru
          _
        // Predicated region
        $region25: #{tpu_custom_call.1} parent=11 // pred_check
          %p174 = pneg %p124
        $region26: #{tpu_custom_call.1} parent=11 // pred_check_branch
          %176 = sbr.rel (%p174) target = $region28
        $region27: #{tpu_custom_call.1} parent=11 // pred_region
          _
        $region28: #{tpu_custom_call.1} parent=11 // pred_fallthru
          _
      $region12: #{tpu_custom_call.1} parent=5 // pred_fallthru
        _
      %p177 = scmp.lt.s32.totalorder %s14, 2
      // Predicated region
      $region29: #{tpu_custom_call.1} parent=5 // pred_check
        %p178 = pneg %p177
      $region30: #{tpu_custom_call.1} parent=5 // pred_check_branch
        %180 = sbr.rel (%p178) target = $region32
      $region31: #{tpu_custom_call.1} parent=5 // pred_region
        // Predicated region
        $region33: #{tpu_custom_call.1} parent=31 // pred_check
          %p181 = pneg %p34
        $region34: #{tpu_custom_call.1} parent=31 // pred_check_branch
          %183 = sbr.rel (%p181) target = $region36
        $region35: #{tpu_custom_call.1} parent=31 // pred_region
          %s184 = smul.u32 16, %s14
          %p185 = scmp.lt.s32.totalorder %s184, 31
          %s186 = scalar_select %p185, %s184, 31
          %s187 = smul.addr %s186, 8
          %s188 = scalar_lea.vmem %s0, %s187
          %s189 = smul.u32 16, %s14
        $region36: #{tpu_custom_call.1} parent=31 // pred_fallthru
          _
      $region32: #{tpu_custom_call.1} parent=5 // pred_fallthru
        _
      %p190 = scmp.le.s32.totalorder 1, %s14
      %p191 = scmp.lt.s32.totalorder %s14, 3
      %p192 = pnand %p190, %p191
      %p193 = pneg %p192
      // Predicated region
      $region37: #{tpu_custom_call.1} parent=5 // pred_check
        _
      $region38: #{tpu_custom_call.1} parent=5 // pred_check_branch
        %195 = sbr.rel (%p192) target = $region40
      $region39: #{tpu_custom_call.1} parent=5 // pred_region
        %s196 = ssub.s32 %s14, 1
        %s197 = smul.u32 16, %s19
        %p198 = scmp.lt.s32.totalorder %s197, 31
        %s199 = scalar_select %p198, %s197, 31
        %s200 = smul.addr %s199, 8
        %s201 = scalar_lea.vmem %s0, %s200
        %p202 = pneg %p40
        %p203 = pneg %p37
        %p204 = pneg %p61
        %p205 = pneg %p58
        %p206 = pneg %p82
        %p207 = pneg %p79
        %p208 = pneg %p103
        %p209 = pneg %p100
        %p210 = pneg %p124
        %p211 = pneg %p121
        %p212 = pneg %p150
        %p213 = pneg %p147
        %s214 = sand.u32 %s137, 1
        %s215 = scalar_lea.sflag [#allocation3], %s214
        %s216 = sand.u32 %s137, 1
        %s217 = smul.addr %s216, 128
        %s218 = scalar_lea.vmem [#allocation2], %s217
        %s219 = smul.u32 16, %s19
        %p220 = scmp.lt.s32.totalorder %s219, 31
        %s221 = scalar_select %p220, %s219, 31
        %s222 = smul.addr %s221, 8
        %s223 = scalar_lea.vmem %s0, %s222
        %s224 = smul.u32 16, %s19
        %s225 = smul.u32 16, %s19
        %v227 = vld [vmem:[%s1] sm:$0xff]
        %v228 = vld [vmem:[%s1 + $0x8] sm:$0xff]
        %v229 = vld [vmem:[%s1 + $0x10] sm:$0x1]
        %v230 = vld [vmem:[%s223] sm:$0xff]
        %v231 = vld [vmem:[%s223 + $0x8] sm:$0xff]
        %v232 = vld [vmem:[%s223 + $0x10] sm:$0xff]
        %v233 = vld [vmem:[%s223 + $0x18] sm:$0xff]
        %v234 = vld [vmem:[%s223 + $0x20] sm:$0xff]
        %v235 = vld [vmem:[%s223 + $0x28] sm:$0xff]
        %v236 = vld [vmem:[%s223 + $0x30] sm:$0xff]
        %v237 = vld [vmem:[%s223 + $0x38] sm:$0xff]
        %v238 = vld [vmem:[%s223 + $0x40] sm:$0xff]
        %v239 = vld [vmem:[%s223 + $0x48] sm:$0xff]
        %v240 = vld [vmem:[%s223 + $0x50] sm:$0xff]
        %v241 = vld [vmem:[%s223 + $0x58] sm:$0xff]
        %v242 = vld [vmem:[%s223 + $0x60] sm:$0xff]
        %v243 = vld [vmem:[%s223 + $0x68] sm:$0xff]
        %v244 = vld [vmem:[%s223 + $0x70] sm:$0xff]
        %v245 = vld [vmem:[%s223 + $0x78] sm:$0xff]
        %v246 = vperm.slane %v229, 0
        %vm247 = vcmask 130048
        %v249 = vsel %vm247, %v230, 0
        %v252 = vsel %vm247, %v231, 0
        %v255 = vsel %vm247, %v232, 0
        %v258 = vsel %vm247, %v233, 0
        %v261 = vsel %vm247, %v234, 0
        %v264 = vsel %vm247, %v235, 0
        %v267 = vsel %vm247, %v236, 0
        %v270 = vsel %vm247, %v237, 0
        %v273 = vsel %vm247, %v238, 0
        %v276 = vsel %vm247, %v239, 0
        %v279 = vsel %vm247, %v240, 0
        %v282 = vsel %vm247, %v241, 0
        %v285 = vsel %vm247, %v242, 0
        %v288 = vsel %vm247, %v243, 0
        %v291 = vsel %vm247, %v244, 0
        %v294 = vsel %vm247, %v245, 0
        %296 = vmatpush.msra.mxu0 0.0
        %297 = vmatpush.msra.mxu0 0.0
        %298 = vmatpush.msra.mxu0 0.0
        %299 = vmatpush.msra.mxu0 0.0
        %300 = vmatpush.msra.mxu0 0.0
        %301 = vmatpush.msra.mxu0 0.0
        %302 = vmatpush.msra.mxu0 0.0
        %303 = vmatpush.msra.mxu0 0.0
        %304 = vmatpush.msra.mxu0 0.0
        %305 = vmatpush.msra.mxu0 0.0
        %306 = vmatpush.msra.mxu0 0.0
        %307 = vmatpush.msra.mxu0 0.0
        %308 = vmatpush.msra.mxu0 0.0
        %309 = vmatpush.msra.mxu0 0.0
        %310 = vmatpush.msra.mxu0 %v228
        %311 = vmatpush.msra.mxu0 %v227
        %312 = vmatmul.f32.gmra.mxu0 %v249
        %v313 = vpop.f32.mrf.mxu0
        %v314 = vadd.f32 %v246, %v313
        %315 = vmatmul.f32.gmra.mxu0 %v252
        %v316 = vpop.f32.mrf.mxu0
        %v317 = vadd.f32 %v246, %v316
        %318 = vmatmul.f32.gmra.mxu0 %v255
        %v319 = vpop.f32.mrf.mxu0
        %v320 = vadd.f32 %v246, %v319
        %321 = vmatmul.f32.gmra.mxu0 %v258
        %v322 = vpop.f32.mrf.mxu0
        %v323 = vadd.f32 %v246, %v322
        %324 = vmatmul.f32.gmra.mxu0 %v261
        %v325 = vpop.f32.mrf.mxu0
        %v326 = vadd.f32 %v246, %v325
        %327 = vmatmul.f32.gmra.mxu0 %v264
        %v328 = vpop.f32.mrf.mxu0
        %v329 = vadd.f32 %v246, %v328
        %330 = vmatmul.f32.gmra.mxu0 %v267
        %v331 = vpop.f32.mrf.mxu0
        %v332 = vadd.f32 %v246, %v331
        %333 = vmatmul.f32.gmra.mxu0 %v270
        %v334 = vpop.f32.mrf.mxu0
        %v335 = vadd.f32 %v246, %v334
        %336 = vmatmul.f32.gmra.mxu0 %v273
        %v337 = vpop.f32.mrf.mxu0
        %v338 = vadd.f32 %v246, %v337
        %339 = vmatmul.f32.gmra.mxu0 %v276
        %v340 = vpop.f32.mrf.mxu0
        %v341 = vadd.f32 %v246, %v340
        %342 = vmatmul.f32.gmra.mxu0 %v279
        %v343 = vpop.f32.mrf.mxu0
        %v344 = vadd.f32 %v246, %v343
        %345 = vmatmul.f32.gmra.mxu0 %v282
        %v346 = vpop.f32.mrf.mxu0
        %v347 = vadd.f32 %v246, %v346
        %348 = vmatmul.f32.gmra.mxu0 %v285
        %v349 = vpop.f32.mrf.mxu0
        %v350 = vadd.f32 %v246, %v349
        %351 = vmatmul.f32.gmra.mxu0 %v288
        %v352 = vpop.f32.mrf.mxu0
        %v353 = vadd.f32 %v246, %v352
        %354 = vmatmul.f32.gmra.mxu0 %v291
        %v355 = vpop.f32.mrf.mxu0
        %v356 = vadd.f32 %v246, %v355
        %357 = vmatmul.f32.gmra.mxu0 %v294
        %v358 = vpop.f32.mrf.mxu0
        %v359 = vadd.f32 %v246, %v358
        %360 = vdwg.mxu0
        %v361 = vld [vmem:[%s1 + $0x18] sm:$0xff]
        %v362 = vld [vmem:[%s1 + $0x20] sm:$0xff]
        %v363 = vld [vmem:[%s1 + $0x28] sm:$0xff]
        %v364 = vld [vmem:[%s1 + $0x30] sm:$0xff]
        %v365 = vld [vmem:[%s1 + $0x38] sm:$0xff]
        %v366 = vld [vmem:[%s1 + $0x40] sm:$0xff]
        %v367 = vld [vmem:[%s1 + $0x48] sm:$0xff]
        %v368 = vld [vmem:[%s1 + $0x50] sm:$0xff]
        %v369 = vld [vmem:[%s1 + $0x58] sm:$0x1]
        %v370 = vld [vmem:[%s1 + $0x59] sm:$0x1]
        %v371 = vld [vmem:[%s1 + $0x5a] sm:$0x1]
        %v372 = vld [vmem:[%s1 + $0x5b] sm:$0x1]
        %v373 = vld [vmem:[%s1 + $0x5c] sm:$0x1]
        %v374 = vld [vmem:[%s1 + $0x5d] sm:$0x1]
        %v375 = vperm.slane %v369, 0
        %vm376 = vcmask 523264
        %v378 = vsel %vm376, %v314, 0
        %v381 = vsel %vm376, %v317, 0
        %v384 = vsel %vm376, %v320, 0
        %v387 = vsel %vm376, %v323, 0
        %v390 = vsel %vm376, %v326, 0
        %v393 = vsel %vm376, %v329, 0
        %v396 = vsel %vm376, %v332, 0
        %v399 = vsel %vm376, %v335, 0
        %v402 = vsel %vm376, %v338, 0
        %v405 = vsel %vm376, %v341, 0
        %v408 = vsel %vm376, %v344, 0
        %v411 = vsel %vm376, %v347, 0
        %v414 = vsel %vm376, %v350, 0
        %v417 = vsel %vm376, %v353, 0
        %v420 = vsel %vm376, %v356, 0
        %v423 = vsel %vm376, %v359, 0
        %425 = vmatpush.msra.mxu0 0.0
        %426 = vmatpush.msra.mxu0 0.0
        %427 = vmatpush.msra.mxu0 0.0
        %428 = vmatpush.msra.mxu0 0.0
        %429 = vmatpush.msra.mxu0 0.0
        %430 = vmatpush.msra.mxu0 0.0
        %431 = vmatpush.msra.mxu0 0.0
        %432 = vmatpush.msra.mxu0 0.0
        %433 = vmatpush.msra.mxu0 %v368
        %434 = vmatpush.msra.mxu0 %v367
        %435 = vmatpush.msra.mxu0 %v366
        %436 = vmatpush.msra.mxu0 %v365
        %437 = vmatpush.msra.mxu0 %v364
        %438 = vmatpush.msra.mxu0 %v363
        %439 = vmatpush.msra.mxu0 %v362
        %440 = vmatpush.msra.mxu0 %v361
        %441 = vmatmul.f32.gmra.mxu0 %v378
        %v442 = vpop.f32.mrf.mxu0
        %v443 = vadd.f32 %v375, %v442
        %444 = vmatmul.f32.gmra.mxu0 %v381
        %v445 = vpop.f32.mrf.mxu0
        %v446 = vadd.f32 %v375, %v445
        %447 = vmatmul.f32.gmra.mxu0 %v384
        %v448 = vpop.f32.mrf.mxu0
        %v449 = vadd.f32 %v375, %v448
        %450 = vmatmul.f32.gmra.mxu0 %v387
        %v451 = vpop.f32.mrf.mxu0
        %v452 = vadd.f32 %v375, %v451
        %453 = vmatmul.f32.gmra.mxu0 %v390
        %v454 = vpop.f32.mrf.mxu0
        %v455 = vadd.f32 %v375, %v454
        %456 = vmatmul.f32.gmra.mxu0 %v393
        %v457 = vpop.f32.mrf.mxu0
        %v458 = vadd.f32 %v375, %v457
        %459 = vmatmul.f32.gmra.mxu0 %v396
        %v460 = vpop.f32.mrf.mxu0
        %v461 = vadd.f32 %v375, %v460
        %462 = vmatmul.f32.gmra.mxu0 %v399
        %v463 = vpop.f32.mrf.mxu0
        %v464 = vadd.f32 %v375, %v463
        %465 = vmatmul.f32.gmra.mxu0 %v402
        %v466 = vpop.f32.mrf.mxu0
        %v467 = vadd.f32 %v375, %v466
        %468 = vmatmul.f32.gmra.mxu0 %v405
        %v469 = vpop.f32.mrf.mxu0
        %v470 = vadd.f32 %v375, %v469
        %471 = vmatmul.f32.gmra.mxu0 %v408
        %v472 = vpop.f32.mrf.mxu0
        %v473 = vadd.f32 %v375, %v472
        %474 = vmatmul.f32.gmra.mxu0 %v411
        %v475 = vpop.f32.mrf.mxu0
        %v476 = vadd.f32 %v375, %v475
        %477 = vmatmul.f32.gmra.mxu0 %v414
        %v478 = vpop.f32.mrf.mxu0
        %v479 = vadd.f32 %v375, %v478
        %480 = vmatmul.f32.gmra.mxu0 %v417
        %v481 = vpop.f32.mrf.mxu0
        %v482 = vadd.f32 %v375, %v481
        %483 = vmatmul.f32.gmra.mxu0 %v420
        %v484 = vpop.f32.mrf.mxu0
        %v485 = vadd.f32 %v375, %v484
        %486 = vmatmul.f32.gmra.mxu0 %v423
        %v487 = vpop.f32.mrf.mxu0
        %v488 = vadd.f32 %v375, %v487
        %489 = vdwg.mxu0
        %v490 = vadd.f32 %v314, %v443
        %v491 = vadd.f32 %v317, %v446
        %v492 = vadd.f32 %v320, %v449
        %v493 = vadd.f32 %v323, %v452
        %v494 = vadd.f32 %v326, %v455
        %v495 = vadd.f32 %v329, %v458
        %v496 = vadd.f32 %v332, %v461
        %v497 = vadd.f32 %v335, %v464
        %v498 = vadd.f32 %v338, %v467
        %v499 = vadd.f32 %v341, %v470
        %v500 = vadd.f32 %v344, %v473
        %v501 = vadd.f32 %v347, %v476
        %v502 = vadd.f32 %v350, %v479
        %v503 = vadd.f32 %v353, %v482
        %v504 = vadd.f32 %v356, %v485
        %v505 = vadd.f32 %v359, %v488
        %v506 = vsel %vm376, %v490, 0.0
        %507 = vadd.xlane.f32.xlu0 %v506
        %v508 = vpop.xlane.xlu0 %507
        %v509 = vsel %vm376, %v491, 0.0
        %510 = vadd.xlane.f32.xlu0 %v509
        %v511 = vpop.xlane.xlu0 %510
        %v512 = vsel %vm376, %v492, 0.0
        %513 = vadd.xlane.f32.xlu0 %v512
        %v514 = vpop.xlane.xlu0 %513
        %v515 = vsel %vm376, %v493, 0.0
        %516 = vadd.xlane.f32.xlu0 %v515
        %v517 = vpop.xlane.xlu0 %516
        %v518 = vsel %vm376, %v494, 0.0
        %519 = vadd.xlane.f32.xlu0 %v518
        %v520 = vpop.xlane.xlu0 %519
        %v521 = vsel %vm376, %v495, 0.0
        %522 = vadd.xlane.f32.xlu0 %v521
        %v523 = vpop.xlane.xlu0 %522
        %v524 = vsel %vm376, %v496, 0.0
        %525 = vadd.xlane.f32.xlu0 %v524
        %v526 = vpop.xlane.xlu0 %525
        %v527 = vsel %vm376, %v497, 0.0
        %528 = vadd.xlane.f32.xlu0 %v527
        %v529 = vpop.xlane.xlu0 %528
        %v530 = vsel %vm376, %v498, 0.0
        %531 = vadd.xlane.f32.xlu0 %v530
        %v532 = vpop.xlane.xlu0 %531
        %v533 = vsel %vm376, %v499, 0.0
        %534 = vadd.xlane.f32.xlu0 %v533
        %v535 = vpop.xlane.xlu0 %534
        %v536 = vsel %vm376, %v500, 0.0
        %537 = vadd.xlane.f32.xlu0 %v536
        %v538 = vpop.xlane.xlu0 %537
        %v539 = vsel %vm376, %v501, 0.0
        %540 = vadd.xlane.f32.xlu0 %v539
        %v541 = vpop.xlane.xlu0 %540
        %v542 = vsel %vm376, %v502, 0.0
        %543 = vadd.xlane.f32.xlu0 %v542
        %v544 = vpop.xlane.xlu0 %543
        %v545 = vsel %vm376, %v503, 0.0
        %546 = vadd.xlane.f32.xlu0 %v545
        %v547 = vpop.xlane.xlu0 %546
        %v548 = vsel %vm376, %v504, 0.0
        %549 = vadd.xlane.f32.xlu0 %v548
        %v550 = vpop.xlane.xlu0 %549
        %v551 = vsel %vm376, %v505, 0.0
        %552 = vadd.xlane.f32.xlu0 %v551
        %v553 = vpop.xlane.xlu0 %552
        %v554 = vrcp.pop 64.0
        %v555 = vmul.f32 64.0, %v554
        %v556 = vsub.f32 1.0, %v555
        %v557 = vmul.f32 %v554, %v556
        %v558 = vadd.f32 %v554, %v557
        %vm559 = vweird.f32 %v554
        %v560 = vsel %vm559, %v554, %v558
        %v561 = vmul.f32 %v508, %v560
        %v562 = vmul.f32 %v511, %v560
        %v563 = vmul.f32 %v514, %v560
        %v564 = vmul.f32 %v517, %v560
        %v565 = vmul.f32 %v520, %v560
        %v566 = vmul.f32 %v523, %v560
        %v567 = vmul.f32 %v526, %v560
        %v568 = vmul.f32 %v529, %v560
        %v569 = vmul.f32 %v532, %v560
        %v570 = vmul.f32 %v535, %v560
        %v571 = vmul.f32 %v538, %v560
        %v572 = vmul.f32 %v541, %v560
        %v573 = vmul.f32 %v544, %v560
        %v574 = vmul.f32 %v547, %v560
        %v575 = vmul.f32 %v550, %v560
        %v576 = vmul.f32 %v553, %v560
        %v577 = vsub.f32 %v490, %v561
        %v578 = vsub.f32 %v491, %v562
        %v579 = vsub.f32 %v492, %v563
        %v580 = vsub.f32 %v493, %v564
        %v581 = vsub.f32 %v494, %v565
        %v582 = vsub.f32 %v495, %v566
        %v583 = vsub.f32 %v496, %v567
        %v584 = vsub.f32 %v497, %v568
        %v585 = vsub.f32 %v498, %v569
        %v586 = vsub.f32 %v499, %v570
        %v587 = vsub.f32 %v500, %v571
        %v588 = vsub.f32 %v501, %v572
        %v589 = vsub.f32 %v502, %v573
        %v590 = vsub.f32 %v503, %v574
        %v591 = vsub.f32 %v504, %v575
        %v592 = vsub.f32 %v505, %v576
        %v593 = vmul.f32 %v577, %v577
        %v594 = vmul.f32 %v578, %v578
        %v595 = vmul.f32 %v579, %v579
        %v596 = vmul.f32 %v580, %v580
        %v597 = vmul.f32 %v581, %v581
        %v598 = vmul.f32 %v582, %v582
        %v599 = vmul.f32 %v583, %v583
        %v600 = vmul.f32 %v584, %v584
        %v601 = vmul.f32 %v585, %v585
        %v602 = vmul.f32 %v586, %v586
        %v603 = vmul.f32 %v587, %v587
        %v604 = vmul.f32 %v588, %v588
        %v605 = vmul.f32 %v589, %v589
        %v606 = vmul.f32 %v590, %v590
        %v607 = vmul.f32 %v591, %v591
        %v608 = vmul.f32 %v592, %v592
        %v609 = vsel %vm376, %v593, 0.0
        %610 = vadd.xlane.f32.xlu0 %v609
        %v611 = vpop.xlane.xlu0 %610
        %v612 = vsel %vm376, %v594, 0.0
        %613 = vadd.xlane.f32.xlu0 %v612
        %v614 = vpop.xlane.xlu0 %613
        %v615 = vsel %vm376, %v595, 0.0
        %616 = vadd.xlane.f32.xlu0 %v615
        %v617 = vpop.xlane.xlu0 %616
        %v618 = vsel %vm376, %v596, 0.0
        %619 = vadd.xlane.f32.xlu0 %v618
        %v620 = vpop.xlane.xlu0 %619
        %v621 = vsel %vm376, %v597, 0.0
        %622 = vadd.xlane.f32.xlu0 %v621
        %v623 = vpop.xlane.xlu0 %622
        %v624 = vsel %vm376, %v598, 0.0
        %625 = vadd.xlane.f32.xlu0 %v624
        %v626 = vpop.xlane.xlu0 %625
        %v627 = vsel %vm376, %v599, 0.0
        %628 = vadd.xlane.f32.xlu0 %v627
        %v629 = vpop.xlane.xlu0 %628
        %v630 = vsel %vm376, %v600, 0.0
        %631 = vadd.xlane.f32.xlu0 %v630
        %v632 = vpop.xlane.xlu0 %631
        %v633 = vsel %vm376, %v601, 0.0
        %634 = vadd.xlane.f32.xlu0 %v633
        %v635 = vpop.xlane.xlu0 %634
        %v636 = vsel %vm376, %v602, 0.0
        %637 = vadd.xlane.f32.xlu0 %v636
        %v638 = vpop.xlane.xlu0 %637
        %v639 = vsel %vm376, %v603, 0.0
        %640 = vadd.xlane.f32.xlu0 %v639
        %v641 = vpop.xlane.xlu0 %640
        %v642 = vsel %vm376, %v604, 0.0
        %643 = vadd.xlane.f32.xlu0 %v642
        %v644 = vpop.xlane.xlu0 %643
        %v645 = vsel %vm376, %v605, 0.0
        %646 = vadd.xlane.f32.xlu0 %v645
        %v647 = vpop.xlane.xlu0 %646
        %v648 = vsel %vm376, %v606, 0.0
        %649 = vadd.xlane.f32.xlu0 %v648
        %v650 = vpop.xlane.xlu0 %649
        %v651 = vsel %vm376, %v607, 0.0
        %652 = vadd.xlane.f32.xlu0 %v651
        %v653 = vpop.xlane.xlu0 %652
        %v654 = vsel %vm376, %v608, 0.0
        %655 = vadd.xlane.f32.xlu0 %v654
        %v656 = vpop.xlane.xlu0 %655
        %v657 = vmul.f32 %v611, %v560
        %v658 = vmul.f32 %v614, %v560
        %v659 = vmul.f32 %v617, %v560
        %v660 = vmul.f32 %v620, %v560
        %v661 = vmul.f32 %v623, %v560
        %v662 = vmul.f32 %v626, %v560
        %v663 = vmul.f32 %v629, %v560
        %v664 = vmul.f32 %v632, %v560
        %v665 = vmul.f32 %v635, %v560
        %v666 = vmul.f32 %v638, %v560
        %v667 = vmul.f32 %v641, %v560
        %v668 = vmul.f32 %v644, %v560
        %v669 = vmul.f32 %v647, %v560
        %v670 = vmul.f32 %v650, %v560
        %v671 = vmul.f32 %v653, %v560
        %v672 = vmul.f32 %v656, %v560
        %v673 = vadd.f32 %v657, 1e-05
        %v674 = vadd.f32 %v658, 1e-05
        %v675 = vadd.f32 %v659, 1e-05
        %v676 = vadd.f32 %v660, 1e-05
        %v677 = vadd.f32 %v661, 1e-05
        %v678 = vadd.f32 %v662, 1e-05
        %v679 = vadd.f32 %v663, 1e-05
        %v680 = vadd.f32 %v664, 1e-05
        %v681 = vadd.f32 %v665, 1e-05
        %v682 = vadd.f32 %v666, 1e-05
        %v683 = vadd.f32 %v667, 1e-05
        %v684 = vadd.f32 %v668, 1e-05
        %v685 = vadd.f32 %v669, 1e-05
        %v686 = vadd.f32 %v670, 1e-05
        %v687 = vadd.f32 %v671, 1e-05
        %v688 = vadd.f32 %v672, 1e-05
        %v689 = vrsqrt.pop %v673
        %v690 = vmul.f32 %v689, %v673
        %v691 = vmul.f32 %v690, %v689
        %v692 = vmul.f32 0.5, %v691
        %v693 = vsub.f32 1.5, %v692
        %v694 = vmul.f32 %v689, %v693
        %vm695 = vweird.f32 %v673
        %vm696 = vweird.f32 %v689
        %vm697 = vmor %vm695, %vm696
        %v698 = vsel %vm697, %v689, %v694
        %v699 = vrsqrt.pop %v674
        %v700 = vmul.f32 %v699, %v674
        %v701 = vmul.f32 %v700, %v699
        %v702 = vmul.f32 0.5, %v701
        %v703 = vsub.f32 1.5, %v702
        %v704 = vmul.f32 %v699, %v703
        %vm705 = vweird.f32 %v674
        %vm706 = vweird.f32 %v699
        %vm707 = vmor %vm705, %vm706
        %v708 = vsel %vm707, %v699, %v704
        %v709 = vrsqrt.pop %v675
        %v710 = vmul.f32 %v709, %v675
        %v711 = vmul.f32 %v710, %v709
        %v712 = vmul.f32 0.5, %v711
        %v713 = vsub.f32 1.5, %v712
        %v714 = vmul.f32 %v709, %v713
        %vm715 = vweird.f32 %v675
        %vm716 = vweird.f32 %v709
        %vm717 = vmor %vm715, %vm716
        %v718 = vsel %vm717, %v709, %v714
        %v719 = vrsqrt.pop %v676
        %v720 = vmul.f32 %v719, %v676
        %v721 = vmul.f32 %v720, %v719
        %v722 = vmul.f32 0.5, %v721
        %v723 = vsub.f32 1.5, %v722
        %v724 = vmul.f32 %v719, %v723
        %vm725 = vweird.f32 %v676
        %vm726 = vweird.f32 %v719
        %vm727 = vmor %vm725, %vm726
        %v728 = vsel %vm727, %v719, %v724
        %v729 = vrsqrt.pop %v677
        %v730 = vmul.f32 %v729, %v677
        %v731 = vmul.f32 %v730, %v729
        %v732 = vmul.f32 0.5, %v731
        %v733 = vsub.f32 1.5, %v732
        %v734 = vmul.f32 %v729, %v733
        %vm735 = vweird.f32 %v677
        %vm736 = vweird.f32 %v729
        %vm737 = vmor %vm735, %vm736
        %v738 = vsel %vm737, %v729, %v734
        %v739 = vrsqrt.pop %v678
        %v740 = vmul.f32 %v739, %v678
        %v741 = vmul.f32 %v740, %v739
        %v742 = vmul.f32 0.5, %v741
        %v743 = vsub.f32 1.5, %v742
        %v744 = vmul.f32 %v739, %v743
        %vm745 = vweird.f32 %v678
        %vm746 = vweird.f32 %v739
        %vm747 = vmor %vm745, %vm746
        %v748 = vsel %vm747, %v739, %v744
        %v749 = vrsqrt.pop %v679
        %v750 = vmul.f32 %v749, %v679
        %v751 = vmul.f32 %v750, %v749
        %v752 = vmul.f32 0.5, %v751
        %v753 = vsub.f32 1.5, %v752
        %v754 = vmul.f32 %v749, %v753
        %vm755 = vweird.f32 %v679
        %vm756 = vweird.f32 %v749
        %vm757 = vmor %vm755, %vm756
        %v758 = vsel %vm757, %v749, %v754
        %v759 = vrsqrt.pop %v680
        %v760 = vmul.f32 %v759, %v680
        %v761 = vmul.f32 %v760, %v759
        %v762 = vmul.f32 0.5, %v761
        %v763 = vsub.f32 1.5, %v762
        %v764 = vmul.f32 %v759, %v763
        %vm765 = vweird.f32 %v680
        %vm766 = vweird.f32 %v759
        %vm767 = vmor %vm765, %vm766
        %v768 = vsel %vm767, %v759, %v764
        %v769 = vrsqrt.pop %v681
        %v770 = vmul.f32 %v769, %v681
        %v771 = vmul.f32 %v770, %v769
        %v772 = vmul.f32 0.5, %v771
        %v773 = vsub.f32 1.5, %v772
        %v774 = vmul.f32 %v769, %v773
        %vm775 = vweird.f32 %v681
        %vm776 = vweird.f32 %v769
        %vm777 = vmor %vm775, %vm776
        %v778 = vsel %vm777, %v769, %v774
        %v779 = vrsqrt.pop %v682
        %v780 = vmul.f32 %v779, %v682
        %v781 = vmul.f32 %v780, %v779
        %v782 = vmul.f32 0.5, %v781
        %v783 = vsub.f32 1.5, %v782
        %v784 = vmul.f32 %v779, %v783
        %vm785 = vweird.f32 %v682
        %vm786 = vweird.f32 %v779
        %vm787 = vmor %vm785, %vm786
        %v788 = vsel %vm787, %v779, %v784
        %v789 = vrsqrt.pop %v683
        %v790 = vmul.f32 %v789, %v683
        %v791 = vmul.f32 %v790, %v789
        %v792 = vmul.f32 0.5, %v791
        %v793 = vsub.f32 1.5, %v792
        %v794 = vmul.f32 %v789, %v793
        %vm795 = vweird.f32 %v683
        %vm796 = vweird.f32 %v789
        %vm797 = vmor %vm795, %vm796
        %v798 = vsel %vm797, %v789, %v794
        %v799 = vrsqrt.pop %v684
        %v800 = vmul.f32 %v799, %v684
        %v801 = vmul.f32 %v800, %v799
        %v802 = vmul.f32 0.5, %v801
        %v803 = vsub.f32 1.5, %v802
        %v804 = vmul.f32 %v799, %v803
        %vm805 = vweird.f32 %v684
        %vm806 = vweird.f32 %v799
        %vm807 = vmor %vm805, %vm806
        %v808 = vsel %vm807, %v799, %v804
        %v809 = vrsqrt.pop %v685
        %v810 = vmul.f32 %v809, %v685
        %v811 = vmul.f32 %v810, %v809
        %v812 = vmul.f32 0.5, %v811
        %v813 = vsub.f32 1.5, %v812
        %v814 = vmul.f32 %v809, %v813
        %vm815 = vweird.f32 %v685
        %vm816 = vweird.f32 %v809
        %vm817 = vmor %vm815, %vm816
        %v818 = vsel %vm817, %v809, %v814
        %v819 = vrsqrt.pop %v686
        %v820 = vmul.f32 %v819, %v686
        %v821 = vmul.f32 %v820, %v819
        %v822 = vmul.f32 0.5, %v821
        %v823 = vsub.f32 1.5, %v822
        %v824 = vmul.f32 %v819, %v823
        %vm825 = vweird.f32 %v686
        %vm826 = vweird.f32 %v819
        %vm827 = vmor %vm825, %vm826
        %v828 = vsel %vm827, %v819, %v824
        %v829 = vrsqrt.pop %v687
        %v830 = vmul.f32 %v829, %v687
        %v831 = vmul.f32 %v830, %v829
        %v832 = vmul.f32 0.5, %v831
        %v833 = vsub.f32 1.5, %v832
        %v834 = vmul.f32 %v829, %v833
        %vm835 = vweird.f32 %v687
        %vm836 = vweird.f32 %v829
        %vm837 = vmor %vm835, %vm836
        %v838 = vsel %vm837, %v829, %v834
        %v839 = vrsqrt.pop %v688
        %v840 = vmul.f32 %v839, %v688
        %v841 = vmul.f32 %v840, %v839
        %v842 = vmul.f32 0.5, %v841
        %v843 = vsub.f32 1.5, %v842
        %v844 = vmul.f32 %v839, %v843
        %vm845 = vweird.f32 %v688
        %vm846 = vweird.f32 %v839
        %vm847 = vmor %vm845, %vm846
        %v848 = vsel %vm847, %v839, %v844
        %v849 = vmul.f32 %v577, %v698
        %v850 = vmul.f32 %v578, %v708
        %v851 = vmul.f32 %v579, %v718
        %v852 = vmul.f32 %v580, %v728
        %v853 = vmul.f32 %v581, %v738
        %v854 = vmul.f32 %v582, %v748
        %v855 = vmul.f32 %v583, %v758
        %v856 = vmul.f32 %v584, %v768
        %v857 = vmul.f32 %v585, %v778
        %v858 = vmul.f32 %v586, %v788
        %v859 = vmul.f32 %v587, %v798
        %v860 = vmul.f32 %v588, %v808
        %v861 = vmul.f32 %v589, %v818
        %v862 = vmul.f32 %v590, %v828
        %v863 = vmul.f32 %v591, %v838
        %v864 = vmul.f32 %v592, %v848
        %v865 = vperm.slane %v370, 0
        %v866 = vmul.f32 %v849, %v865
        %v867 = vmul.f32 %v850, %v865
        %v868 = vmul.f32 %v851, %v865
        %v869 = vmul.f32 %v852, %v865
        %v870 = vmul.f32 %v853, %v865
        %v871 = vmul.f32 %v854, %v865
        %v872 = vmul.f32 %v855, %v865
        %v873 = vmul.f32 %v856, %v865
        %v874 = vmul.f32 %v857, %v865
        %v875 = vmul.f32 %v858, %v865
        %v876 = vmul.f32 %v859, %v865
        %v877 = vmul.f32 %v860, %v865
        %v878 = vmul.f32 %v861, %v865
        %v879 = vmul.f32 %v862, %v865
        %v880 = vmul.f32 %v863, %v865
        %v881 = vmul.f32 %v864, %v865
        %v882 = vperm.slane %v371, 0
        %v883 = vadd.f32 %v866, %v882
        %v884 = vadd.f32 %v867, %v882
        %v885 = vadd.f32 %v868, %v882
        %v886 = vadd.f32 %v869, %v882
        %v887 = vadd.f32 %v870, %v882
        %v888 = vadd.f32 %v871, %v882
        %v889 = vadd.f32 %v872, %v882
        %v890 = vadd.f32 %v873, %v882
        %v891 = vadd.f32 %v874, %v882
        %v892 = vadd.f32 %v875, %v882
        %v893 = vadd.f32 %v876, %v882
        %v894 = vadd.f32 %v877, %v882
        %v895 = vadd.f32 %v878, %v882
        %v896 = vadd.f32 %v879, %v882
        %v897 = vadd.f32 %v880, %v882
        %v898 = vadd.f32 %v881, %v882
        %v899 = vld [vmem:[%s3] sm:$0xff]
        %v900 = vld [vmem:[%s3 + $0x8] sm:$0xff]
        %v901 = vld [vmem:[%s3 + $0x10] sm:$0xff]
        %v902 = vld [vmem:[%s3 + $0x18] sm:$0xff]
        %v903 = vld [vmem:[%s3 + $0x20] sm:$0xff]
        %v904 = vld [vmem:[%s3 + $0x28] sm:$0xff]
        %v905 = vld [vmem:[%s3 + $0x30] sm:$0xff]
        %v906 = vld [vmem:[%s3 + $0x38] sm:$0xff]
        %v907 = vld [vmem:[%s3 + $0x40] sm:$0xff]
        %v908 = vld [vmem:[%s3 + $0x48] sm:$0xff]
        %v909 = vld [vmem:[%s3 + $0x50] sm:$0xff]
        %v910 = vld [vmem:[%s3 + $0x58] sm:$0xff]
        %v911 = vld [vmem:[%s3 + $0x60] sm:$0xff]
        %v912 = vld [vmem:[%s3 + $0x68] sm:$0xff]
        %v913 = vld [vmem:[%s3 + $0x70] sm:$0xff]
        %v914 = vld [vmem:[%s3 + $0x78] sm:$0xff]
        %v915 = vld [vmem:[%s3 + $0x80] sm:$0xff]
        %v916 = vld [vmem:[%s3 + $0x88] sm:$0xff]
        %v917 = vld [vmem:[%s3 + $0x90] sm:$0xff]
        %v918 = vld [vmem:[%s3 + $0x98] sm:$0xff]
        %v919 = vld [vmem:[%s3 + $0xa0] sm:$0xff]
        %v920 = vld [vmem:[%s3 + $0xa8] sm:$0xff]
        %v921 = vld [vmem:[%s3 + $0xb0] sm:$0xff]
        %v922 = vld [vmem:[%s3 + $0xb8] sm:$0xff]
        %v923 = vld [vmem:[%s3 + $0xc0] sm:$0xff]
        %v924 = vld [vmem:[%s3 + $0xc8] sm:$0xff]
        %v925 = vld [vmem:[%s3 + $0xd0] sm:$0xff]
        %v926 = vld [vmem:[%s3 + $0xd8] sm:$0xff]
        %v927 = vld [vmem:[%s3 + $0xe0] sm:$0xff]
        %v928 = vld [vmem:[%s3 + $0xe8] sm:$0xff]
        %v929 = vld [vmem:[%s3 + $0xf0] sm:$0xff]
        %v930 = vld [vmem:[%s3 + $0xf8] sm:$0xff]
        %v931 = vld [vmem:[%s3 + $0x100] sm:$0xff]
        %v932 = vld [vmem:[%s3 + $0x108] sm:$0xff]
        %v933 = vld [vmem:[%s3 + $0x110] sm:$0xff]
        %v934 = vld [vmem:[%s3 + $0x118] sm:$0xff]
        %v935 = vld [vmem:[%s3 + $0x120] sm:$0xff]
        %v936 = vld [vmem:[%s3 + $0x128] sm:$0xff]
        %v937 = vld [vmem:[%s3 + $0x130] sm:$0xff]
        %v938 = vld [vmem:[%s3 + $0x138] sm:$0xff]
        %v939 = vld [vmem:[%s3 + $0x140] sm:$0xff]
        %v940 = vld [vmem:[%s3 + $0x148] sm:$0xff]
        %v941 = vld [vmem:[%s3 + $0x150] sm:$0xff]
        %v942 = vld [vmem:[%s3 + $0x158] sm:$0xff]
        %v943 = vld [vmem:[%s3 + $0x160] sm:$0xff]
        %v944 = vld [vmem:[%s3 + $0x168] sm:$0xff]
        %v945 = vld [vmem:[%s3 + $0x170] sm:$0xff]
        %v946 = vld [vmem:[%s3 + $0x178] sm:$0xff]
        %v947 = vld [vmem:[%s3 + $0x180] sm:$0xff]
        %v948 = vld [vmem:[%s3 + $0x188] sm:$0xff]
        %v949 = vld [vmem:[%s3 + $0x190] sm:$0xff]
        %v950 = vld [vmem:[%s3 + $0x198] sm:$0xff]
        %v951 = vld [vmem:[%s3 + $0x1a0] sm:$0xff]
        %v952 = vld [vmem:[%s3 + $0x1a8] sm:$0xff]
        %v953 = vld [vmem:[%s3 + $0x1b0] sm:$0xff]
        %v954 = vld [vmem:[%s3 + $0x1b8] sm:$0xff]
        %v955 = vld [vmem:[%s3 + $0x1c0] sm:$0xff]
        %v956 = vld [vmem:[%s3 + $0x1c8] sm:$0xff]
        %v957 = vld [vmem:[%s3 + $0x1d0] sm:$0xff]
        %v958 = vld [vmem:[%s3 + $0x1d8] sm:$0xff]
        %v959 = vld [vmem:[%s3 + $0x1e0] sm:$0xff]
        %v960 = vld [vmem:[%s3 + $0x1e8] sm:$0xff]
        %v961 = vld [vmem:[%s3 + $0x1f0] sm:$0xff]
        %v962 = vld [vmem:[%s3 + $0x1f8] sm:$0xff]
        %v963 = vld [vmem:[%s3 + $0x200] sm:$0x11]
        %v964 = vld [vmem:[%s3 + $0x208] sm:$0x11]
        %v965 = vld [vmem:[%s3 + $0x210] sm:$0x11]
        %v966 = vld [vmem:[%s3 + $0x218] sm:$0x11]
        %v967 = vld [vmem:[%s3 + $0x220] sm:$0x11]
        %v968 = vld [vmem:[%s3 + $0x228] sm:$0x11]
        %v969 = vld [vmem:[%s3 + $0x230] sm:$0x11]
        %v970 = vld [vmem:[%s3 + $0x238] sm:$0x11]
        %v971 = vld [vmem:[%s4] sm:$0xf]
        %v972 = vld [vmem:[%s4 + $0x4] sm:$0xf]
        %v973 = vld [vmem:[%s4 + $0x8] sm:$0xf]
        %v974 = vld [vmem:[%s4 + $0xc] sm:$0xf]
        %v975 = vld [vmem:[%s4 + $0x10] sm:$0xf]
        %v976 = vld [vmem:[%s4 + $0x14] sm:$0xf]
        %v977 = vld [vmem:[%s4 + $0x18] sm:$0xf]
        %v978 = vld [vmem:[%s4 + $0x1c] sm:$0xf]
        %v979 = vld [vmem:[%s4 + $0x20] sm:$0xf]
        %v980 = vld [vmem:[%s4 + $0x24] sm:$0xf]
        %v981 = vld [vmem:[%s4 + $0x28] sm:$0xf]
        %v982 = vld [vmem:[%s4 + $0x2c] sm:$0xf]
        %v983 = vld [vmem:[%s4 + $0x30] sm:$0xf]
        %v984 = vld [vmem:[%s4 + $0x34] sm:$0xf]
        %v985 = vld [vmem:[%s4 + $0x38] sm:$0xf]
        %v986 = vld [vmem:[%s4 + $0x3c] sm:$0xf]
        %v987 = vld [vmem:[%s4 + $0x40] sm:$0xf]
        %v988 = vld [vmem:[%s4 + $0x44] sm:$0xf]
        %v989 = vld [vmem:[%s4 + $0x48] sm:$0xf]
        %v990 = vld [vmem:[%s4 + $0x4c] sm:$0xf]
        %v991 = vld [vmem:[%s4 + $0x50] sm:$0xf]
        %v992 = vld [vmem:[%s4 + $0x54] sm:$0xf]
        %v993 = vld [vmem:[%s4 + $0x58] sm:$0xf]
        %v994 = vld [vmem:[%s4 + $0x5c] sm:$0xf]
        %v995 = vld [vmem:[%s4 + $0x60] sm:$0xf]
        %v996 = vld [vmem:[%s4 + $0x64] sm:$0xf]
        %v997 = vld [vmem:[%s4 + $0x68] sm:$0xf]
        %v998 = vld [vmem:[%s4 + $0x6c] sm:$0xf]
        %v999 = vld [vmem:[%s4 + $0x70] sm:$0xf]
        %v1000 = vld [vmem:[%s4 + $0x74] sm:$0xf]
        %v1001 = vld [vmem:[%s4 + $0x78] sm:$0xf]
        %v1002 = vld [vmem:[%s4 + $0x7c] sm:$0xf]
        %v1003 = vld [vmem:[%s4 + $0x80] sm:$0xf]
        %v1004 = vld [vmem:[%s4 + $0x84] sm:$0xf]
        %v1005 = vld [vmem:[%s4 + $0x88] sm:$0xf]
        %v1006 = vld [vmem:[%s4 + $0x8c] sm:$0xf]
        %v1007 = vld [vmem:[%s4 + $0x90] sm:$0xf]
        %v1008 = vld [vmem:[%s4 + $0x94] sm:$0xf]
        %v1009 = vld [vmem:[%s4 + $0x98] sm:$0xf]
        %v1010 = vld [vmem:[%s4 + $0x9c] sm:$0xf]
        %v1011 = vld [vmem:[%s4 + $0xa0] sm:$0xf]
        %v1012 = vld [vmem:[%s4 + $0xa4] sm:$0xf]
        %v1013 = vld [vmem:[%s4 + $0xa8] sm:$0xf]
        %v1014 = vld [vmem:[%s4 + $0xac] sm:$0xf]
        %v1015 = vld [vmem:[%s4 + $0xb0] sm:$0xf]
        %v1016 = vld [vmem:[%s4 + $0xb4] sm:$0xf]
        %v1017 = vld [vmem:[%s4 + $0xb8] sm:$0xf]
        %v1018 = vld [vmem:[%s4 + $0xbc] sm:$0xf]
        %v1019 = vld [vmem:[%s4 + $0xc0] sm:$0xf]
        %v1020 = vld [vmem:[%s4 + $0xc4] sm:$0xf]
        %v1021 = vld [vmem:[%s4 + $0xc8] sm:$0xf]
        %v1022 = vld [vmem:[%s4 + $0xcc] sm:$0xf]
        %v1023 = vld [vmem:[%s4 + $0xd0] sm:$0xf]
        %v1024 = vld [vmem:[%s4 + $0xd4] sm:$0xf]
        %v1025 = vld [vmem:[%s4 + $0xd8] sm:$0xf]
        %v1026 = vld [vmem:[%s4 + $0xdc] sm:$0xf]
        %v1027 = vld [vmem:[%s4 + $0xe0] sm:$0xf]
        %v1028 = vld [vmem:[%s4 + $0xe4] sm:$0xf]
        %v1029 = vld [vmem:[%s4 + $0xe8] sm:$0xf]
        %v1030 = vld [vmem:[%s4 + $0xec] sm:$0xf]
        %v1031 = vld [vmem:[%s4 + $0xf0] sm:$0xf]
        %v1032 = vld [vmem:[%s4 + $0xf4] sm:$0xf]
        %v1033 = vld [vmem:[%s4 + $0xf8] sm:$0xf]
        %v1034 = vld [vmem:[%s4 + $0xfc] sm:$0xf]
        %v1035 = vld [vmem:[%s4 + $0x100] sm:$0xf]
        %v1036 = vld [vmem:[%s4 + $0x104] sm:$0xf]
        %v1037 = vld [vmem:[%s4 + $0x108] sm:$0xf]
        %v1038 = vld [vmem:[%s4 + $0x10c] sm:$0xf]
        %v1039 = vld [vmem:[%s4 + $0x110] sm:$0xf]
        %v1040 = vld [vmem:[%s4 + $0x114] sm:$0xf]
        %v1041 = vld [vmem:[%s4 + $0x118] sm:$0xf]
        %v1042 = vld [vmem:[%s4 + $0x11c] sm:$0xf]
        %v1043 = vld [vmem:[%s4 + $0x120] sm:$0xf]
        %v1044 = vld [vmem:[%s4 + $0x124] sm:$0xf]
        %v1045 = vld [vmem:[%s4 + $0x128] sm:$0xf]
        %v1046 = vld [vmem:[%s4 + $0x12c] sm:$0xf]
        %v1047 = vld [vmem:[%s4 + $0x130] sm:$0xf]
        %v1048 = vld [vmem:[%s4 + $0x134] sm:$0xf]
        %v1049 = vld [vmem:[%s4 + $0x138] sm:$0xf]
        %v1050 = vld [vmem:[%s4 + $0x13c] sm:$0xf]
        %v1051 = vld [vmem:[%s4 + $0x140] sm:$0xf]
        %v1052 = vld [vmem:[%s4 + $0x144] sm:$0xf]
        %v1053 = vld [vmem:[%s4 + $0x148] sm:$0xf]
        %v1054 = vld [vmem:[%s4 + $0x14c] sm:$0xf]
        %v1055 = vld [vmem:[%s4 + $0x150] sm:$0xf]
        %v1056 = vld [vmem:[%s4 + $0x154] sm:$0xf]
        %v1057 = vld [vmem:[%s4 + $0x158] sm:$0xf]
        %v1058 = vld [vmem:[%s4 + $0x15c] sm:$0xf]
        %v1059 = vld [vmem:[%s4 + $0x160] sm:$0xf]
        %v1060 = vld [vmem:[%s4 + $0x164] sm:$0xf]
        %v1061 = vld [vmem:[%s4 + $0x168] sm:$0xf]
        %v1062 = vld [vmem:[%s4 + $0x16c] sm:$0xf]
        %v1063 = vld [vmem:[%s4 + $0x170] sm:$0xf]
        %v1064 = vld [vmem:[%s4 + $0x174] sm:$0xf]
        %v1065 = vld [vmem:[%s4 + $0x178] sm:$0xf]
        %v1066 = vld [vmem:[%s4 + $0x17c] sm:$0xf]
        %v1067 = vld [vmem:[%s4 + $0x180] sm:$0xf]
        %v1068 = vld [vmem:[%s4 + $0x184] sm:$0xf]
        %v1069 = vld [vmem:[%s4 + $0x188] sm:$0xf]
        %v1070 = vld [vmem:[%s4 + $0x18c] sm:$0xf]
        %v1071 = vld [vmem:[%s4 + $0x190] sm:$0xf]
        %v1072 = vld [vmem:[%s4 + $0x194] sm:$0xf]
        %v1073 = vld [vmem:[%s4 + $0x198] sm:$0xf]
        %v1074 = vld [vmem:[%s4 + $0x19c] sm:$0xf]
        %v1075 = vld [vmem:[%s4 + $0x1a0] sm:$0xf]
        %v1076 = vld [vmem:[%s4 + $0x1a4] sm:$0xf]
        %v1077 = vld [vmem:[%s4 + $0x1a8] sm:$0xf]
        %v1078 = vld [vmem:[%s4 + $0x1ac] sm:$0xf]
        %v1079 = vld [vmem:[%s4 + $0x1b0] sm:$0xf]
        %v1080 = vld [vmem:[%s4 + $0x1b4] sm:$0xf]
        %v1081 = vld [vmem:[%s4 + $0x1b8] sm:$0xf]
        %v1082 = vld [vmem:[%s4 + $0x1bc] sm:$0xf]
        %v1083 = vld [vmem:[%s4 + $0x1c0] sm:$0xf]
        %v1084 = vld [vmem:[%s4 + $0x1c4] sm:$0xf]
        %v1085 = vld [vmem:[%s4 + $0x1c8] sm:$0xf]
        %v1086 = vld [vmem:[%s4 + $0x1cc] sm:$0xf]
        %v1087 = vld [vmem:[%s4 + $0x1d0] sm:$0xf]
        %v1088 = vld [vmem:[%s4 + $0x1d4] sm:$0xf]
        %v1089 = vld [vmem:[%s4 + $0x1d8] sm:$0xf]
        %v1090 = vld [vmem:[%s4 + $0x1dc] sm:$0xf]
        %v1091 = vld [vmem:[%s4 + $0x1e0] sm:$0xf]
        %v1092 = vld [vmem:[%s4 + $0x1e4] sm:$0xf]
        %v1093 = vld [vmem:[%s4 + $0x1e8] sm:$0xf]
        %v1094 = vld [vmem:[%s4 + $0x1ec] sm:$0xf]
        %v1095 = vld [vmem:[%s4 + $0x1f0] sm:$0xf]
        %v1096 = vld [vmem:[%s4 + $0x1f4] sm:$0xf]
        %v1097 = vld [vmem:[%s4 + $0x1f8] sm:$0xf]
        %v1098 = vld [vmem:[%s4 + $0x1fc] sm:$0xf]
        %v1099 = vld [vmem:[%s4 + $0x200] sm:$0xf]
        %v1100 = vld [vmem:[%s4 + $0x204] sm:$0xf]
        %v1101 = vld [vmem:[%s4 + $0x208] sm:$0xf]
        %v1102 = vld [vmem:[%s4 + $0x20c] sm:$0xf]
        %v1103 = vld [vmem:[%s4 + $0x210] sm:$0xf]
        %v1104 = vld [vmem:[%s4 + $0x214] sm:$0xf]
        %v1105 = vld [vmem:[%s4 + $0x218] sm:$0xf]
        %v1106 = vld [vmem:[%s4 + $0x21c] sm:$0xf]
        %v1107 = vld [vmem:[%s4 + $0x220] sm:$0xf]
        %v1108 = vld [vmem:[%s4 + $0x224] sm:$0xf]
        %v1109 = vld [vmem:[%s4 + $0x228] sm:$0xf]
        %v1110 = vld [vmem:[%s4 + $0x22c] sm:$0xf]
        %v1111 = vld [vmem:[%s4 + $0x230] sm:$0xf]
        %v1112 = vld [vmem:[%s4 + $0x234] sm:$0xf]
        %v1113 = vld [vmem:[%s4 + $0x238] sm:$0xf]
        %v1114 = vld [vmem:[%s4 + $0x23c] sm:$0xf]
        %v1115 = vld [vmem:[%s4 + $0x240] sm:$0xf]
        %v1116 = vld [vmem:[%s4 + $0x244] sm:$0xf]
        %v1117 = vld [vmem:[%s4 + $0x248] sm:$0xf]
        %v1118 = vld [vmem:[%s4 + $0x24c] sm:$0xf]
        %v1119 = vld [vmem:[%s4 + $0x250] sm:$0xf]
        %v1120 = vld [vmem:[%s4 + $0x254] sm:$0xf]
        %v1121 = vld [vmem:[%s4 + $0x258] sm:$0xf]
        %v1122 = vld [vmem:[%s4 + $0x25c] sm:$0xf]
        %v1123 = vld [vmem:[%s4 + $0x260] sm:$0xf]
        %v1124 = vld [vmem:[%s4 + $0x264] sm:$0xf]
        %v1125 = vld [vmem:[%s4 + $0x268] sm:$0xf]
        %v1126 = vld [vmem:[%s4 + $0x26c] sm:$0xf]
        %v1127 = vld [vmem:[%s4 + $0x270] sm:$0xf]
        %v1128 = vld [vmem:[%s4 + $0x274] sm:$0xf]
        %v1129 = vld [vmem:[%s4 + $0x278] sm:$0xf]
        %v1130 = vld [vmem:[%s4 + $0x27c] sm:$0xf]
        %v1131 = vld [vmem:[%s4 + $0x280] sm:$0xf]
        %v1132 = vld [vmem:[%s4 + $0x284] sm:$0xf]
        %v1133 = vld [vmem:[%s4 + $0x288] sm:$0xf]
        %v1134 = vld [vmem:[%s4 + $0x28c] sm:$0xf]
        %v1135 = vld [vmem:[%s4 + $0x290] sm:$0xf]
        %v1136 = vld [vmem:[%s4 + $0x294] sm:$0xf]
        %v1137 = vld [vmem:[%s4 + $0x298] sm:$0xf]
        %v1138 = vld [vmem:[%s4 + $0x29c] sm:$0xf]
        %v1139 = vld [vmem:[%s4 + $0x2a0] sm:$0xf]
        %v1140 = vld [vmem:[%s4 + $0x2a4] sm:$0xf]
        %v1141 = vld [vmem:[%s4 + $0x2a8] sm:$0xf]
        %v1142 = vld [vmem:[%s4 + $0x2ac] sm:$0xf]
        %v1143 = vld [vmem:[%s4 + $0x2b0] sm:$0xf]
        %v1144 = vld [vmem:[%s4 + $0x2b4] sm:$0xf]
        %v1145 = vld [vmem:[%s4 + $0x2b8] sm:$0xf]
        %v1146 = vld [vmem:[%s4 + $0x2bc] sm:$0xf]
        %v1147 = vld [vmem:[%s4 + $0x2c0] sm:$0xf]
        %v1148 = vld [vmem:[%s4 + $0x2c4] sm:$0xf]
        %v1149 = vld [vmem:[%s4 + $0x2c8] sm:$0xf]
        %v1150 = vld [vmem:[%s4 + $0x2cc] sm:$0xf]
        %v1151 = vld [vmem:[%s4 + $0x2d0] sm:$0xf]
        %v1152 = vld [vmem:[%s4 + $0x2d4] sm:$0xf]
        %v1153 = vld [vmem:[%s4 + $0x2d8] sm:$0xf]
        %v1154 = vld [vmem:[%s4 + $0x2dc] sm:$0xf]
        %v1155 = vld [vmem:[%s4 + $0x2e0] sm:$0xf]
        %v1156 = vld [vmem:[%s4 + $0x2e4] sm:$0xf]
        %v1157 = vld [vmem:[%s4 + $0x2e8] sm:$0xf]
        %v1158 = vld [vmem:[%s4 + $0x2ec] sm:$0xf]
        %v1159 = vld [vmem:[%s4 + $0x2f0] sm:$0xf]
        %v1160 = vld [vmem:[%s4 + $0x2f4] sm:$0xf]
        %v1161 = vld [vmem:[%s4 + $0x2f8] sm:$0xf]
        %v1162 = vld [vmem:[%s4 + $0x2fc] sm:$0xf]
        %v1163 = vld [vmem:[%s4 + $0x300] sm:$0xf]
        %v1164 = vld [vmem:[%s4 + $0x304] sm:$0xf]
        %v1165 = vld [vmem:[%s4 + $0x308] sm:$0xf]
        %v1166 = vld [vmem:[%s4 + $0x30c] sm:$0xf]
        %v1167 = vld [vmem:[%s4 + $0x310] sm:$0xf]
        %v1168 = vld [vmem:[%s4 + $0x314] sm:$0xf]
        %v1169 = vld [vmem:[%s4 + $0x318] sm:$0xf]
        %v1170 = vld [vmem:[%s4 + $0x31c] sm:$0xf]
        %v1171 = vld [vmem:[%s4 + $0x320] sm:$0xf]
        %v1172 = vld [vmem:[%s4 + $0x324] sm:$0xf]
        %v1173 = vld [vmem:[%s4 + $0x328] sm:$0xf]
        %v1174 = vld [vmem:[%s4 + $0x32c] sm:$0xf]
        %v1175 = vld [vmem:[%s4 + $0x330] sm:$0xf]
        %v1176 = vld [vmem:[%s4 + $0x334] sm:$0xf]
        %v1177 = vld [vmem:[%s4 + $0x338] sm:$0xf]
        %v1178 = vld [vmem:[%s4 + $0x33c] sm:$0xf]
        %v1179 = vld [vmem:[%s4 + $0x340] sm:$0xf]
        %v1180 = vld [vmem:[%s4 + $0x344] sm:$0xf]
        %v1181 = vld [vmem:[%s4 + $0x348] sm:$0xf]
        %v1182 = vld [vmem:[%s4 + $0x34c] sm:$0xf]
        %v1183 = vld [vmem:[%s4 + $0x350] sm:$0xf]
        %v1184 = vld [vmem:[%s4 + $0x354] sm:$0xf]
        %v1185 = vld [vmem:[%s4 + $0x358] sm:$0xf]
        %v1186 = vld [vmem:[%s4 + $0x35c] sm:$0xf]
        %v1187 = vld [vmem:[%s4 + $0x360] sm:$0xf]
        %v1188 = vld [vmem:[%s4 + $0x364] sm:$0xf]
        %v1189 = vld [vmem:[%s4 + $0x368] sm:$0xf]
        %v1190 = vld [vmem:[%s4 + $0x36c] sm:$0xf]
        %v1191 = vld [vmem:[%s4 + $0x370] sm:$0xf]
        %v1192 = vld [vmem:[%s4 + $0x374] sm:$0xf]
        %v1193 = vld [vmem:[%s4 + $0x378] sm:$0xf]
        %v1194 = vld [vmem:[%s4 + $0x37c] sm:$0xf]
        %v1195 = vld [vmem:[%s4 + $0x380] sm:$0xf]
        %v1196 = vld [vmem:[%s4 + $0x384] sm:$0xf]
        %v1197 = vld [vmem:[%s4 + $0x388] sm:$0xf]
        %v1198 = vld [vmem:[%s4 + $0x38c] sm:$0xf]
        %v1199 = vld [vmem:[%s4 + $0x390] sm:$0xf]
        %v1200 = vld [vmem:[%s4 + $0x394] sm:$0xf]
        %v1201 = vld [vmem:[%s4 + $0x398] sm:$0xf]
        %v1202 = vld [vmem:[%s4 + $0x39c] sm:$0xf]
        %v1203 = vld [vmem:[%s4 + $0x3a0] sm:$0xf]
        %v1204 = vld [vmem:[%s4 + $0x3a4] sm:$0xf]
        %v1205 = vld [vmem:[%s4 + $0x3a8] sm:$0xf]
        %v1206 = vld [vmem:[%s4 + $0x3ac] sm:$0xf]
        %v1207 = vld [vmem:[%s4 + $0x3b0] sm:$0xf]
        %v1208 = vld [vmem:[%s4 + $0x3b4] sm:$0xf]
        %v1209 = vld [vmem:[%s4 + $0x3b8] sm:$0xf]
        %v1210 = vld [vmem:[%s4 + $0x3bc] sm:$0xf]
        %v1211 = vld [vmem:[%s4 + $0x3c0] sm:$0xf]
        %v1212 = vld [vmem:[%s4 + $0x3c4] sm:$0xf]
        %v1213 = vld [vmem:[%s4 + $0x3c8] sm:$0xf]
        %v1214 = vld [vmem:[%s4 + $0x3cc] sm:$0xf]
        %v1215 = vld [vmem:[%s4 + $0x3d0] sm:$0xf]
        %v1216 = vld [vmem:[%s4 + $0x3d4] sm:$0xf]
        %v1217 = vld [vmem:[%s4 + $0x3d8] sm:$0xf]
        %v1218 = vld [vmem:[%s4 + $0x3dc] sm:$0xf]
        %v1219 = vld [vmem:[%s4 + $0x3e0] sm:$0xf]
        %v1220 = vld [vmem:[%s4 + $0x3e4] sm:$0xf]
        %v1221 = vld [vmem:[%s4 + $0x3e8] sm:$0xf]
        %v1222 = vld [vmem:[%s4 + $0x3ec] sm:$0xf]
        %v1223 = vld [vmem:[%s4 + $0x3f0] sm:$0xf]
        %v1224 = vld [vmem:[%s4 + $0x3f4] sm:$0xf]
        %v1225 = vld [vmem:[%s4 + $0x3f8] sm:$0xf]
        %v1226 = vld [vmem:[%s4 + $0x3fc] sm:$0xf]
        %v1227 = vpack.c.bf16 %v884, %v883
        %v1228 = vpack.c.bf16 %v886, %v885
        %v1229 = vpack.c.bf16 %v888, %v887
        %v1230 = vpack.c.bf16 %v890, %v889
        %v1231 = vpack.c.bf16 %v892, %v891
        %v1232 = vpack.c.bf16 %v894, %v893
        %v1233 = vpack.c.bf16 %v896, %v895
        %v1234 = vpack.c.bf16 %v898, %v897
        %v1235 = vunpack.c.l.bf16 %v963
        %v1236 = vunpack.c.h.bf16 %v963
        %v1237 = vunpack.c.l.bf16 %v964
        %v1238 = vunpack.c.h.bf16 %v964
        %v1239 = vunpack.c.l.bf16 %v965
        %v1240 = vunpack.c.h.bf16 %v965
        %v1241 = vunpack.c.l.bf16 %v966
        %v1242 = vunpack.c.h.bf16 %v966
        %v1243 = vunpack.c.l.bf16 %v967
        %v1244 = vunpack.c.h.bf16 %v967
        %v1245 = vunpack.c.l.bf16 %v968
        %v1246 = vunpack.c.h.bf16 %v968
        %v1247 = vunpack.c.l.bf16 %v969
        %v1248 = vunpack.c.h.bf16 %v969
        %v1249 = vunpack.c.l.bf16 %v970
        %v1250 = vunpack.c.h.bf16 %v970
        %v1251 = vperm.slane %v1235, 0
        %v1252 = vperm.slane %v1236, 0
        %v1253 = vperm.slane %v1237, 0
        %v1254 = vperm.slane %v1238, 0
        %v1255 = vperm.slane %v1239, 0
        %v1256 = vperm.slane %v1240, 0
        %v1257 = vperm.slane %v1241, 0
        %v1258 = vperm.slane %v1242, 0
        %v1259 = vperm.slane %v1243, 0
        %v1260 = vperm.slane %v1244, 0
        %v1261 = vperm.slane %v1245, 0
        %v1262 = vperm.slane %v1246, 0
        %v1263 = vperm.slane %v1247, 0
        %v1264 = vperm.slane %v1248, 0
        %v1265 = vperm.slane %v1249, 0
        %v1266 = vperm.slane %v1250, 0
        %v1331 = vunpack.c.l.b16 %v899
        %v1332 = vunpack.c.h.b16 %v899
        %v1333 = vunpack.c.l.b16 %v900
        %v1334 = vunpack.c.h.b16 %v900
        %v1335 = vunpack.c.l.b16 %v901
        %v1336 = vunpack.c.h.b16 %v901
        %v1337 = vunpack.c.l.b16 %v902
        %v1338 = vunpack.c.h.b16 %v902
        %v1339 = vunpack.c.l.b16 %v903
        %v1340 = vunpack.c.h.b16 %v903
        %v1341 = vunpack.c.l.b16 %v904
        %v1342 = vunpack.c.h.b16 %v904
        %v1343 = vunpack.c.l.b16 %v905
        %v1344 = vunpack.c.h.b16 %v905
        %v1345 = vunpack.c.l.b16 %v906
        %v1346 = vunpack.c.h.b16 %v906
        %v1347 = vunpack.c.l.b16 %v907
        %v1348 = vunpack.c.h.b16 %v907
        %v1349 = vunpack.c.l.b16 %v908
        %v1350 = vunpack.c.h.b16 %v908
        %v1351 = vunpack.c.l.b16 %v909
        %v1352 = vunpack.c.h.b16 %v909
        %v1353 = vunpack.c.l.b16 %v910
        %v1354 = vunpack.c.h.b16 %v910
        %v1355 = vunpack.c.l.b16 %v911
        %v1356 = vunpack.c.h.b16 %v911
        %v1357 = vunpack.c.l.b16 %v912
        %v1358 = vunpack.c.h.b16 %v912
        %v1359 = vunpack.c.l.b16 %v913
        %v1360 = vunpack.c.h.b16 %v913
        %v1361 = vunpack.c.l.b16 %v914
        %v1362 = vunpack.c.h.b16 %v914
        %v1363 = vunpack.c.l.b16 %v915
        %v1364 = vunpack.c.h.b16 %v915
        %v1365 = vunpack.c.l.b16 %v916
        %v1366 = vunpack.c.h.b16 %v916
        %v1367 = vunpack.c.l.b16 %v917
        %v1368 = vunpack.c.h.b16 %v917
        %v1369 = vunpack.c.l.b16 %v918
        %v1370 = vunpack.c.h.b16 %v918
        %v1371 = vunpack.c.l.b16 %v919
        %v1372 = vunpack.c.h.b16 %v919
        %v1373 = vunpack.c.l.b16 %v920
        %v1374 = vunpack.c.h.b16 %v920
        %v1375 = vunpack.c.l.b16 %v921
        %v1376 = vunpack.c.h.b16 %v921
        %v1377 = vunpack.c.l.b16 %v922
        %v1378 = vunpack.c.h.b16 %v922
        %v1379 = vunpack.c.l.b16 %v923
        %v1380 = vunpack.c.h.b16 %v923
        %v1381 = vunpack.c.l.b16 %v924
        %v1382 = vunpack.c.h.b16 %v924
        %v1383 = vunpack.c.l.b16 %v925
        %v1384 = vunpack.c.h.b16 %v925
        %v1385 = vunpack.c.l.b16 %v926
        %v1386 = vunpack.c.h.b16 %v926
        %v1387 = vunpack.c.l.b16 %v927
        %v1388 = vunpack.c.h.b16 %v927
        %v1389 = vunpack.c.l.b16 %v928
        %v1390 = vunpack.c.h.b16 %v928
        %v1391 = vunpack.c.l.b16 %v929
        %v1392 = vunpack.c.h.b16 %v929
        %v1393 = vunpack.c.l.b16 %v930
        %v1394 = vunpack.c.h.b16 %v930
        %v1395 = vunpack.c.l.b16 %v931
        %v1396 = vunpack.c.h.b16 %v931
        %v1397 = vunpack.c.l.b16 %v932
        %v1398 = vunpack.c.h.b16 %v932
        %v1399 = vunpack.c.l.b16 %v933
        %v1400 = vunpack.c.h.b16 %v933
        %v1401 = vunpack.c.l.b16 %v934
        %v1402 = vunpack.c.h.b16 %v934
        %v1403 = vunpack.c.l.b16 %v935
        %v1404 = vunpack.c.h.b16 %v935
        %v1405 = vunpack.c.l.b16 %v936
        %v1406 = vunpack.c.h.b16 %v936
        %v1407 = vunpack.c.l.b16 %v937
        %v1408 = vunpack.c.h.b16 %v937
        %v1409 = vunpack.c.l.b16 %v938
        %v1410 = vunpack.c.h.b16 %v938
        %v1411 = vunpack.c.l.b16 %v939
        %v1412 = vunpack.c.h.b16 %v939
        %v1413 = vunpack.c.l.b16 %v940
        %v1414 = vunpack.c.h.b16 %v940
        %v1415 = vunpack.c.l.b16 %v941
        %v1416 = vunpack.c.h.b16 %v941
        %v1417 = vunpack.c.l.b16 %v942
        %v1418 = vunpack.c.h.b16 %v942
        %v1419 = vunpack.c.l.b16 %v943
        %v1420 = vunpack.c.h.b16 %v943
        %v1421 = vunpack.c.l.b16 %v944
        %v1422 = vunpack.c.h.b16 %v944
        %v1423 = vunpack.c.l.b16 %v945
        %v1424 = vunpack.c.h.b16 %v945
        %v1425 = vunpack.c.l.b16 %v946
        %v1426 = vunpack.c.h.b16 %v946
        %v1427 = vunpack.c.l.b16 %v947
        %v1428 = vunpack.c.h.b16 %v947
        %v1429 = vunpack.c.l.b16 %v948
        %v1430 = vunpack.c.h.b16 %v948
        %v1431 = vunpack.c.l.b16 %v949
        %v1432 = vunpack.c.h.b16 %v949
        %v1433 = vunpack.c.l.b16 %v950
        %v1434 = vunpack.c.h.b16 %v950
        %v1435 = vunpack.c.l.b16 %v951
        %v1436 = vunpack.c.h.b16 %v951
        %v1437 = vunpack.c.l.b16 %v952
        %v1438 = vunpack.c.h.b16 %v952
        %v1439 = vunpack.c.l.b16 %v953
        %v1440 = vunpack.c.h.b16 %v953
        %v1441 = vunpack.c.l.b16 %v954
        %v1442 = vunpack.c.h.b16 %v954
        %v1443 = vunpack.c.l.b16 %v955
        %v1444 = vunpack.c.h.b16 %v955
        %v1445 = vunpack.c.l.b16 %v956
        %v1446 = vunpack.c.h.b16 %v956
        %v1447 = vunpack.c.l.b16 %v957
        %v1448 = vunpack.c.h.b16 %v957
        %v1449 = vunpack.c.l.b16 %v958
        %v1450 = vunpack.c.h.b16 %v958
        %v1451 = vunpack.c.l.b16 %v959
        %v1452 = vunpack.c.h.b16 %v959
        %v1453 = vunpack.c.l.b16 %v960
        %v1454 = vunpack.c.h.b16 %v960
        %v1455 = vunpack.c.l.b16 %v961
        %v1456 = vunpack.c.h.b16 %v961
        %v1457 = vunpack.c.l.b16 %v962
        %v1458 = vunpack.c.h.b16 %v962
        %v1459 = vpack.c.b16 %v1347, %v1331
        %v1460 = vpack.c.b16 %v1348, %v1332
        %v1461 = vpack.c.b16 %v1349, %v1333
        %v1462 = vpack.c.b16 %v1350, %v1334
        %v1463 = vpack.c.b16 %v1351, %v1335
        %v1464 = vpack.c.b16 %v1352, %v1336
        %v1465 = vpack.c.b16 %v1353, %v1337
        %v1466 = vpack.c.b16 %v1354, %v1338
        %v1467 = vpack.c.b16 %v1355, %v1339
        %v1468 = vpack.c.b16 %v1356, %v1340
        %v1469 = vpack.c.b16 %v1357, %v1341
        %v1470 = vpack.c.b16 %v1358, %v1342
        %v1471 = vpack.c.b16 %v1359, %v1343
        %v1472 = vpack.c.b16 %v1360, %v1344
        %v1473 = vpack.c.b16 %v1361, %v1345
        %v1474 = vpack.c.b16 %v1362, %v1346
        %v1475 = vpack.c.b16 %v1379, %v1363
        %v1476 = vpack.c.b16 %v1380, %v1364
        %v1477 = vpack.c.b16 %v1381, %v1365
        %v1478 = vpack.c.b16 %v1382, %v1366
        %v1479 = vpack.c.b16 %v1383, %v1367
        %v1480 = vpack.c.b16 %v1384, %v1368
        %v1481 = vpack.c.b16 %v1385, %v1369
        %v1482 = vpack.c.b16 %v1386, %v1370
        %v1483 = vpack.c.b16 %v1387, %v1371
        %v1484 = vpack.c.b16 %v1388, %v1372
        %v1485 = vpack.c.b16 %v1389, %v1373
        %v1486 = vpack.c.b16 %v1390, %v1374
        %v1487 = vpack.c.b16 %v1391, %v1375
        %v1488 = vpack.c.b16 %v1392, %v1376
        %v1489 = vpack.c.b16 %v1393, %v1377
        %v1490 = vpack.c.b16 %v1394, %v1378
        %v1491 = vpack.c.b16 %v1411, %v1395
        %v1492 = vpack.c.b16 %v1412, %v1396
        %v1493 = vpack.c.b16 %v1413, %v1397
        %v1494 = vpack.c.b16 %v1414, %v1398
        %v1495 = vpack.c.b16 %v1415, %v1399
        %v1496 = vpack.c.b16 %v1416, %v1400
        %v1497 = vpack.c.b16 %v1417, %v1401
        %v1498 = vpack.c.b16 %v1418, %v1402
        %v1499 = vpack.c.b16 %v1419, %v1403
        %v1500 = vpack.c.b16 %v1420, %v1404
        %v1501 = vpack.c.b16 %v1421, %v1405
        %v1502 = vpack.c.b16 %v1422, %v1406
        %v1503 = vpack.c.b16 %v1423, %v1407
        %v1504 = vpack.c.b16 %v1424, %v1408
        %v1505 = vpack.c.b16 %v1425, %v1409
        %v1506 = vpack.c.b16 %v1426, %v1410
        %v1507 = vpack.c.b16 %v1443, %v1427
        %v1508 = vpack.c.b16 %v1444, %v1428
        %v1509 = vpack.c.b16 %v1445, %v1429
        %v1510 = vpack.c.b16 %v1446, %v1430
        %v1511 = vpack.c.b16 %v1447, %v1431
        %v1512 = vpack.c.b16 %v1448, %v1432
        %v1513 = vpack.c.b16 %v1449, %v1433
        %v1514 = vpack.c.b16 %v1450, %v1434
        %v1515 = vpack.c.b16 %v1451, %v1435
        %v1516 = vpack.c.b16 %v1452, %v1436
        %v1517 = vpack.c.b16 %v1453, %v1437
        %v1518 = vpack.c.b16 %v1454, %v1438
        %v1519 = vpack.c.b16 %v1455, %v1439
        %v1520 = vpack.c.b16 %v1456, %v1440
        %v1521 = vpack.c.b16 %v1457, %v1441
        %v1522 = vpack.c.b16 %v1458, %v1442
        %v1588 = vsel %vm376, %v1227, 0
        %v1591 = vsel %vm376, %v1228, 0
        %v1594 = vsel %vm376, %v1229, 0
        %v1597 = vsel %vm376, %v1230, 0
        %v1600 = vsel %vm376, %v1231, 0
        %v1603 = vsel %vm376, %v1232, 0
        %v1606 = vsel %vm376, %v1233, 0
        %v1609 = vsel %vm376, %v1234, 0
        %1611 = vmatpush.bf16.msra.mxu0 0
        %1612 = vmatpush.bf16.msra.mxu0 0
        %1613 = vmatpush.bf16.msra.mxu0 0
        %1614 = vmatpush.bf16.msra.mxu0 0
        %1615 = vmatpush.bf16.msra.mxu0 %v1507
        %1616 = vmatpush.bf16.msra.mxu0 %v1491
        %1617 = vmatpush.bf16.msra.mxu0 %v1475
        %1618 = vmatpush.bf16.msra.mxu0 %v1459
        %1619 = vmatmul.bf16.gmra.mxu0 %v1588
        %v1620 = vpop.f32.mrf.mxu0
        %v1621 = vadd.f32 %v1251, %v1620
        %v1622 = vpop.f32.mrf.mxu0
        %v1623 = vadd.f32 %v1251, %v1622
        %1624 = vmatmul.bf16.gmra.mxu0 %v1591
        %v1625 = vpop.f32.mrf.mxu0
        %v1626 = vadd.f32 %v1251, %v1625
        %v1627 = vpop.f32.mrf.mxu0
        %v1628 = vadd.f32 %v1251, %v1627
        %1629 = vmatmul.bf16.gmra.mxu0 %v1594
        %v1630 = vpop.f32.mrf.mxu0
        %v1631 = vadd.f32 %v1251, %v1630
        %v1632 = vpop.f32.mrf.mxu0
        %v1633 = vadd.f32 %v1251, %v1632
        %1634 = vmatmul.bf16.gmra.mxu0 %v1597
        %v1635 = vpop.f32.mrf.mxu0
        %v1636 = vadd.f32 %v1251, %v1635
        %v1637 = vpop.f32.mrf.mxu0
        %v1638 = vadd.f32 %v1251, %v1637
        %1639 = vmatmul.bf16.gmra.mxu0 %v1600
        %v1640 = vpop.f32.mrf.mxu0
        %v1641 = vadd.f32 %v1251, %v1640
        %v1642 = vpop.f32.mrf.mxu0
        %v1643 = vadd.f32 %v1251, %v1642
        %1644 = vmatmul.bf16.gmra.mxu0 %v1603
        %v1645 = vpop.f32.mrf.mxu0
        %v1646 = vadd.f32 %v1251, %v1645
        %v1647 = vpop.f32.mrf.mxu0
        %v1648 = vadd.f32 %v1251, %v1647
        %1649 = vmatmul.bf16.gmra.mxu0 %v1606
        %v1650 = vpop.f32.mrf.mxu0
        %v1651 = vadd.f32 %v1251, %v1650
        %v1652 = vpop.f32.mrf.mxu0
        %v1653 = vadd.f32 %v1251, %v1652
        %1654 = vmatmul.bf16.gmra.mxu0 %v1609
        %v1655 = vpop.f32.mrf.mxu0
        %v1656 = vadd.f32 %v1251, %v1655
        %v1657 = vpop.f32.mrf.mxu0
        %v1658 = vadd.f32 %v1251, %v1657
        %1659 = vdwg.mxu0
        %1660 = vmatpush.bf16.msra.mxu0 0
        %1661 = vmatpush.bf16.msra.mxu0 0
        %1662 = vmatpush.bf16.msra.mxu0 0
        %1663 = vmatpush.bf16.msra.mxu0 0
        %1664 = vmatpush.bf16.msra.mxu0 %v1508
        %1665 = vmatpush.bf16.msra.mxu0 %v1492
        %1666 = vmatpush.bf16.msra.mxu0 %v1476
        %1667 = vmatpush.bf16.msra.mxu0 %v1460
        %1668 = vmatmul.bf16.gmra.mxu0 %v1588
        %v1669 = vpop.f32.mrf.mxu0
        %v1670 = vadd.f32 %v1252, %v1669
        %v1671 = vpop.f32.mrf.mxu0
        %v1672 = vadd.f32 %v1252, %v1671
        %1673 = vmatmul.bf16.gmra.mxu0 %v1591
        %v1674 = vpop.f32.mrf.mxu0
        %v1675 = vadd.f32 %v1252, %v1674
        %v1676 = vpop.f32.mrf.mxu0
        %v1677 = vadd.f32 %v1252, %v1676
        %1678 = vmatmul.bf16.gmra.mxu0 %v1594
        %v1679 = vpop.f32.mrf.mxu0
        %v1680 = vadd.f32 %v1252, %v1679
        %v1681 = vpop.f32.mrf.mxu0
        %v1682 = vadd.f32 %v1252, %v1681
        %1683 = vmatmul.bf16.gmra.mxu0 %v1597
        %v1684 = vpop.f32.mrf.mxu0
        %v1685 = vadd.f32 %v1252, %v1684
        %v1686 = vpop.f32.mrf.mxu0
        %v1687 = vadd.f32 %v1252, %v1686
        %1688 = vmatmul.bf16.gmra.mxu0 %v1600
        %v1689 = vpop.f32.mrf.mxu0
        %v1690 = vadd.f32 %v1252, %v1689
        %v1691 = vpop.f32.mrf.mxu0
        %v1692 = vadd.f32 %v1252, %v1691
        %1693 = vmatmul.bf16.gmra.mxu0 %v1603
        %v1694 = vpop.f32.mrf.mxu0
        %v1695 = vadd.f32 %v1252, %v1694
        %v1696 = vpop.f32.mrf.mxu0
        %v1697 = vadd.f32 %v1252, %v1696
        %1698 = vmatmul.bf16.gmra.mxu0 %v1606
        %v1699 = vpop.f32.mrf.mxu0
        %v1700 = vadd.f32 %v1252, %v1699
        %v1701 = vpop.f32.mrf.mxu0
        %v1702 = vadd.f32 %v1252, %v1701
        %1703 = vmatmul.bf16.gmra.mxu0 %v1609
        %v1704 = vpop.f32.mrf.mxu0
        %v1705 = vadd.f32 %v1252, %v1704
        %v1706 = vpop.f32.mrf.mxu0
        %v1707 = vadd.f32 %v1252, %v1706
        %1708 = vdwg.mxu0
        %1709 = vmatpush.bf16.msra.mxu0 0
        %1710 = vmatpush.bf16.msra.mxu0 0
        %1711 = vmatpush.bf16.msra.mxu0 0
        %1712 = vmatpush.bf16.msra.mxu0 0
        %1713 = vmatpush.bf16.msra.mxu0 %v1509
        %1714 = vmatpush.bf16.msra.mxu0 %v1493
        %1715 = vmatpush.bf16.msra.mxu0 %v1477
        %1716 = vmatpush.bf16.msra.mxu0 %v1461
        %1717 = vmatmul.bf16.gmra.mxu0 %v1588
        %v1718 = vpop.f32.mrf.mxu0
        %v1719 = vadd.f32 %v1253, %v1718
        %v1720 = vpop.f32.mrf.mxu0
        %v1721 = vadd.f32 %v1253, %v1720
        %1722 = vmatmul.bf16.gmra.mxu0 %v1591
        %v1723 = vpop.f32.mrf.mxu0
        %v1724 = vadd.f32 %v1253, %v1723
        %v1725 = vpop.f32.mrf.mxu0
        %v1726 = vadd.f32 %v1253, %v1725
        %1727 = vmatmul.bf16.gmra.mxu0 %v1594
        %v1728 = vpop.f32.mrf.mxu0
        %v1729 = vadd.f32 %v1253, %v1728
        %v1730 = vpop.f32.mrf.mxu0
        %v1731 = vadd.f32 %v1253, %v1730
        %1732 = vmatmul.bf16.gmra.mxu0 %v1597
        %v1733 = vpop.f32.mrf.mxu0
        %v1734 = vadd.f32 %v1253, %v1733
        %v1735 = vpop.f32.mrf.mxu0
        %v1736 = vadd.f32 %v1253, %v1735
        %1737 = vmatmul.bf16.gmra.mxu0 %v1600
        %v1738 = vpop.f32.mrf.mxu0
        %v1739 = vadd.f32 %v1253, %v1738
        %v1740 = vpop.f32.mrf.mxu0
        %v1741 = vadd.f32 %v1253, %v1740
        %1742 = vmatmul.bf16.gmra.mxu0 %v1603
        %v1743 = vpop.f32.mrf.mxu0
        %v1744 = vadd.f32 %v1253, %v1743
        %v1745 = vpop.f32.mrf.mxu0
        %v1746 = vadd.f32 %v1253, %v1745
        %1747 = vmatmul.bf16.gmra.mxu0 %v1606
        %v1748 = vpop.f32.mrf.mxu0
        %v1749 = vadd.f32 %v1253, %v1748
        %v1750 = vpop.f32.mrf.mxu0
        %v1751 = vadd.f32 %v1253, %v1750
        %1752 = vmatmul.bf16.gmra.mxu0 %v1609
        %v1753 = vpop.f32.mrf.mxu0
        %v1754 = vadd.f32 %v1253, %v1753
        %v1755 = vpop.f32.mrf.mxu0
        %v1756 = vadd.f32 %v1253, %v1755
        %1757 = vdwg.mxu0
        %1758 = vmatpush.bf16.msra.mxu0 0
        %1759 = vmatpush.bf16.msra.mxu0 0
        %1760 = vmatpush.bf16.msra.mxu0 0
        %1761 = vmatpush.bf16.msra.mxu0 0
        %1762 = vmatpush.bf16.msra.mxu0 %v1510
        %1763 = vmatpush.bf16.msra.mxu0 %v1494
        %1764 = vmatpush.bf16.msra.mxu0 %v1478
        %1765 = vmatpush.bf16.msra.mxu0 %v1462
        %1766 = vmatmul.bf16.gmra.mxu0 %v1588
        %v1767 = vpop.f32.mrf.mxu0
        %v1768 = vadd.f32 %v1254, %v1767
        %v1769 = vpop.f32.mrf.mxu0
        %v1770 = vadd.f32 %v1254, %v1769
        %1771 = vmatmul.bf16.gmra.mxu0 %v1591
        %v1772 = vpop.f32.mrf.mxu0
        %v1773 = vadd.f32 %v1254, %v1772
        %v1774 = vpop.f32.mrf.mxu0
        %v1775 = vadd.f32 %v1254, %v1774
        %1776 = vmatmul.bf16.gmra.mxu0 %v1594
        %v1777 = vpop.f32.mrf.mxu0
        %v1778 = vadd.f32 %v1254, %v1777
        %v1779 = vpop.f32.mrf.mxu0
        %v1780 = vadd.f32 %v1254, %v1779
        %1781 = vmatmul.bf16.gmra.mxu0 %v1597
        %v1782 = vpop.f32.mrf.mxu0
        %v1783 = vadd.f32 %v1254, %v1782
        %v1784 = vpop.f32.mrf.mxu0
        %v1785 = vadd.f32 %v1254, %v1784
        %1786 = vmatmul.bf16.gmra.mxu0 %v1600
        %v1787 = vpop.f32.mrf.mxu0
        %v1788 = vadd.f32 %v1254, %v1787
        %v1789 = vpop.f32.mrf.mxu0
        %v1790 = vadd.f32 %v1254, %v1789
        %1791 = vmatmul.bf16.gmra.mxu0 %v1603
        %v1792 = vpop.f32.mrf.mxu0
        %v1793 = vadd.f32 %v1254, %v1792
        %v1794 = vpop.f32.mrf.mxu0
        %v1795 = vadd.f32 %v1254, %v1794
        %1796 = vmatmul.bf16.gmra.mxu0 %v1606
        %v1797 = vpop.f32.mrf.mxu0
        %v1798 = vadd.f32 %v1254, %v1797
        %v1799 = vpop.f32.mrf.mxu0
        %v1800 = vadd.f32 %v1254, %v1799
        %1801 = vmatmul.bf16.gmra.mxu0 %v1609
        %v1802 = vpop.f32.mrf.mxu0
        %v1803 = vadd.f32 %v1254, %v1802
        %v1804 = vpop.f32.mrf.mxu0
        %v1805 = vadd.f32 %v1254, %v1804
        %1806 = vdwg.mxu0
        %1807 = vmatpush.bf16.msra.mxu0 0
        %1808 = vmatpush.bf16.msra.mxu0 0
        %1809 = vmatpush.bf16.msra.mxu0 0
        %1810 = vmatpush.bf16.msra.mxu0 0
        %1811 = vmatpush.bf16.msra.mxu0 %v1511
        %1812 = vmatpush.bf16.msra.mxu0 %v1495
        %1813 = vmatpush.bf16.msra.mxu0 %v1479
        %1814 = vmatpush.bf16.msra.mxu0 %v1463
        %1815 = vmatmul.bf16.gmra.mxu0 %v1588
        %v1816 = vpop.f32.mrf.mxu0
        %v1817 = vadd.f32 %v1255, %v1816
        %v1818 = vpop.f32.mrf.mxu0
        %v1819 = vadd.f32 %v1255, %v1818
        %1820 = vmatmul.bf16.gmra.mxu0 %v1591
        %v1821 = vpop.f32.mrf.mxu0
        %v1822 = vadd.f32 %v1255, %v1821
        %v1823 = vpop.f32.mrf.mxu0
        %v1824 = vadd.f32 %v1255, %v1823
        %1825 = vmatmul.bf16.gmra.mxu0 %v1594
        %v1826 = vpop.f32.mrf.mxu0
        %v1827 = vadd.f32 %v1255, %v1826
        %v1828 = vpop.f32.mrf.mxu0
        %v1829 = vadd.f32 %v1255, %v1828
        %1830 = vmatmul.bf16.gmra.mxu0 %v1597
        %v1831 = vpop.f32.mrf.mxu0
        %v1832 = vadd.f32 %v1255, %v1831
        %v1833 = vpop.f32.mrf.mxu0
        %v1834 = vadd.f32 %v1255, %v1833
        %1835 = vmatmul.bf16.gmra.mxu0 %v1600
        %v1836 = vpop.f32.mrf.mxu0
        %v1837 = vadd.f32 %v1255, %v1836
        %v1838 = vpop.f32.mrf.mxu0
        %v1839 = vadd.f32 %v1255, %v1838
        %1840 = vmatmul.bf16.gmra.mxu0 %v1603
        %v1841 = vpop.f32.mrf.mxu0
        %v1842 = vadd.f32 %v1255, %v1841
        %v1843 = vpop.f32.mrf.mxu0
        %v1844 = vadd.f32 %v1255, %v1843
        %1845 = vmatmul.bf16.gmra.mxu0 %v1606
        %v1846 = vpop.f32.mrf.mxu0
        %v1847 = vadd.f32 %v1255, %v1846
        %v1848 = vpop.f32.mrf.mxu0
        %v1849 = vadd.f32 %v1255, %v1848
        %1850 = vmatmul.bf16.gmra.mxu0 %v1609
        %v1851 = vpop.f32.mrf.mxu0
        %v1852 = vadd.f32 %v1255, %v1851
        %v1853 = vpop.f32.mrf.mxu0
        %v1854 = vadd.f32 %v1255, %v1853
        %1855 = vdwg.mxu0
        %1856 = vmatpush.bf16.msra.mxu0 0
        %1857 = vmatpush.bf16.msra.mxu0 0
        %1858 = vmatpush.bf16.msra.mxu0 0
        %1859 = vmatpush.bf16.msra.mxu0 0
        %1860 = vmatpush.bf16.msra.mxu0 %v1512
        %1861 = vmatpush.bf16.msra.mxu0 %v1496
        %1862 = vmatpush.bf16.msra.mxu0 %v1480
        %1863 = vmatpush.bf16.msra.mxu0 %v1464
        %1864 = vmatmul.bf16.gmra.mxu0 %v1588
        %v1865 = vpop.f32.mrf.mxu0
        %v1866 = vadd.f32 %v1256, %v1865
        %v1867 = vpop.f32.mrf.mxu0
        %v1868 = vadd.f32 %v1256, %v1867
        %1869 = vmatmul.bf16.gmra.mxu0 %v1591
        %v1870 = vpop.f32.mrf.mxu0
        %v1871 = vadd.f32 %v1256, %v1870
        %v1872 = vpop.f32.mrf.mxu0
        %v1873 = vadd.f32 %v1256, %v1872
        %1874 = vmatmul.bf16.gmra.mxu0 %v1594
        %v1875 = vpop.f32.mrf.mxu0
        %v1876 = vadd.f32 %v1256, %v1875
        %v1877 = vpop.f32.mrf.mxu0
        %v1878 = vadd.f32 %v1256, %v1877
        %1879 = vmatmul.bf16.gmra.mxu0 %v1597
        %v1880 = vpop.f32.mrf.mxu0
        %v1881 = vadd.f32 %v1256, %v1880
        %v1882 = vpop.f32.mrf.mxu0
        %v1883 = vadd.f32 %v1256, %v1882
        %1884 = vmatmul.bf16.gmra.mxu0 %v1600
        %v1885 = vpop.f32.mrf.mxu0
        %v1886 = vadd.f32 %v1256, %v1885
        %v1887 = vpop.f32.mrf.mxu0
        %v1888 = vadd.f32 %v1256, %v1887
        %1889 = vmatmul.bf16.gmra.mxu0 %v1603
        %v1890 = vpop.f32.mrf.mxu0
        %v1891 = vadd.f32 %v1256, %v1890
        %v1892 = vpop.f32.mrf.mxu0
        %v1893 = vadd.f32 %v1256, %v1892
        %1894 = vmatmul.bf16.gmra.mxu0 %v1606
        %v1895 = vpop.f32.mrf.mxu0
        %v1896 = vadd.f32 %v1256, %v1895
        %v1897 = vpop.f32.mrf.mxu0
        %v1898 = vadd.f32 %v1256, %v1897
        %1899 = vmatmul.bf16.gmra.mxu0 %v1609
        %v1900 = vpop.f32.mrf.mxu0
        %v1901 = vadd.f32 %v1256, %v1900
        %v1902 = vpop.f32.mrf.mxu0
        %v1903 = vadd.f32 %v1256, %v1902
        %1904 = vdwg.mxu0
        %1905 = vmatpush.bf16.msra.mxu0 0
        %1906 = vmatpush.bf16.msra.mxu0 0
        %1907 = vmatpush.bf16.msra.mxu0 0
        %1908 = vmatpush.bf16.msra.mxu0 0
        %1909 = vmatpush.bf16.msra.mxu0 %v1513
        %1910 = vmatpush.bf16.msra.mxu0 %v1497
        %1911 = vmatpush.bf16.msra.mxu0 %v1481
        %1912 = vmatpush.bf16.msra.mxu0 %v1465
        %1913 = vmatmul.bf16.gmra.mxu0 %v1588
        %v1914 = vpop.f32.mrf.mxu0
        %v1915 = vadd.f32 %v1257, %v1914
        %v1916 = vpop.f32.mrf.mxu0
        %v1917 = vadd.f32 %v1257, %v1916
        %1918 = vmatmul.bf16.gmra.mxu0 %v1591
        %v1919 = vpop.f32.mrf.mxu0
        %v1920 = vadd.f32 %v1257, %v1919
        %v1921 = vpop.f32.mrf.mxu0
        %v1922 = vadd.f32 %v1257, %v1921
        %1923 = vmatmul.bf16.gmra.mxu0 %v1594
        %v1924 = vpop.f32.mrf.mxu0
        %v1925 = vadd.f32 %v1257, %v1924
        %v1926 = vpop.f32.mrf.mxu0
        %v1927 = vadd.f32 %v1257, %v1926
        %1928 = vmatmul.bf16.gmra.mxu0 %v1597
        %v1929 = vpop.f32.mrf.mxu0
        %v1930 = vadd.f32 %v1257, %v1929
        %v1931 = vpop.f32.mrf.mxu0
        %v1932 = vadd.f32 %v1257, %v1931
        %1933 = vmatmul.bf16.gmra.mxu0 %v1600
        %v1934 = vpop.f32.mrf.mxu0
        %v1935 = vadd.f32 %v1257, %v1934
        %v1936 = vpop.f32.mrf.mxu0
        %v1937 = vadd.f32 %v1257, %v1936
        %1938 = vmatmul.bf16.gmra.mxu0 %v1603
        %v1939 = vpop.f32.mrf.mxu0
        %v1940 = vadd.f32 %v1257, %v1939
        %v1941 = vpop.f32.mrf.mxu0
        %v1942 = vadd.f32 %v1257, %v1941
        %1943 = vmatmul.bf16.gmra.mxu0 %v1606
        %v1944 = vpop.f32.mrf.mxu0
        %v1945 = vadd.f32 %v1257, %v1944
        %v1946 = vpop.f32.mrf.mxu0
        %v1947 = vadd.f32 %v1257, %v1946
        %1948 = vmatmul.bf16.gmra.mxu0 %v1609
        %v1949 = vpop.f32.mrf.mxu0
        %v1950 = vadd.f32 %v1257, %v1949
        %v1951 = vpop.f32.mrf.mxu0
        %v1952 = vadd.f32 %v1257, %v1951
        %1953 = vdwg.mxu0
        %1954 = vmatpush.bf16.msra.mxu0 0
        %1955 = vmatpush.bf16.msra.mxu0 0
        %1956 = vmatpush.bf16.msra.mxu0 0
        %1957 = vmatpush.bf16.msra.mxu0 0
        %1958 = vmatpush.bf16.msra.mxu0 %v1514
        %1959 = vmatpush.bf16.msra.mxu0 %v1498
        %1960 = vmatpush.bf16.msra.mxu0 %v1482
        %1961 = vmatpush.bf16.msra.mxu0 %v1466
        %1962 = vmatmul.bf16.gmra.mxu0 %v1588
        %v1963 = vpop.f32.mrf.mxu0
        %v1964 = vadd.f32 %v1258, %v1963
        %v1965 = vpop.f32.mrf.mxu0
        %v1966 = vadd.f32 %v1258, %v1965
        %1967 = vmatmul.bf16.gmra.mxu0 %v1591
        %v1968 = vpop.f32.mrf.mxu0
        %v1969 = vadd.f32 %v1258, %v1968
        %v1970 = vpop.f32.mrf.mxu0
        %v1971 = vadd.f32 %v1258, %v1970
        %1972 = vmatmul.bf16.gmra.mxu0 %v1594
        %v1973 = vpop.f32.mrf.mxu0
        %v1974 = vadd.f32 %v1258, %v1973
        %v1975 = vpop.f32.mrf.mxu0
        %v1976 = vadd.f32 %v1258, %v1975
        %1977 = vmatmul.bf16.gmra.mxu0 %v1597
        %v1978 = vpop.f32.mrf.mxu0
        %v1979 = vadd.f32 %v1258, %v1978
        %v1980 = vpop.f32.mrf.mxu0
        %v1981 = vadd.f32 %v1258, %v1980
        %1982 = vmatmul.bf16.gmra.mxu0 %v1600
        %v1983 = vpop.f32.mrf.mxu0
        %v1984 = vadd.f32 %v1258, %v1983
        %v1985 = vpop.f32.mrf.mxu0
        %v1986 = vadd.f32 %v1258, %v1985
        %1987 = vmatmul.bf16.gmra.mxu0 %v1603
        %v1988 = vpop.f32.mrf.mxu0
        %v1989 = vadd.f32 %v1258, %v1988
        %v1990 = vpop.f32.mrf.mxu0
        %v1991 = vadd.f32 %v1258, %v1990
        %1992 = vmatmul.bf16.gmra.mxu0 %v1606
        %v1993 = vpop.f32.mrf.mxu0
        %v1994 = vadd.f32 %v1258, %v1993
        %v1995 = vpop.f32.mrf.mxu0
        %v1996 = vadd.f32 %v1258, %v1995
        %1997 = vmatmul.bf16.gmra.mxu0 %v1609
        %v1998 = vpop.f32.mrf.mxu0
        %v1999 = vadd.f32 %v1258, %v1998
        %v2000 = vpop.f32.mrf.mxu0
        %v2001 = vadd.f32 %v1258, %v2000
        %2002 = vdwg.mxu0
        %2003 = vmatpush.bf16.msra.mxu0 0
        %2004 = vmatpush.bf16.msra.mxu0 0
        %2005 = vmatpush.bf16.msra.mxu0 0
        %2006 = vmatpush.bf16.msra.mxu0 0
        %2007 = vmatpush.bf16.msra.mxu0 %v1515
        %2008 = vmatpush.bf16.msra.mxu0 %v1499
        %2009 = vmatpush.bf16.msra.mxu0 %v1483
        %2010 = vmatpush.bf16.msra.mxu0 %v1467
        %2011 = vmatmul.bf16.gmra.mxu0 %v1588
        %v2012 = vpop.f32.mrf.mxu0
        %v2013 = vadd.f32 %v1259, %v2012
        %v2014 = vpop.f32.mrf.mxu0
        %v2015 = vadd.f32 %v1259, %v2014
        %2016 = vmatmul.bf16.gmra.mxu0 %v1591
        %v2017 = vpop.f32.mrf.mxu0
        %v2018 = vadd.f32 %v1259, %v2017
        %v2019 = vpop.f32.mrf.mxu0
        %v2020 = vadd.f32 %v1259, %v2019
        %2021 = vmatmul.bf16.gmra.mxu0 %v1594
        %v2022 = vpop.f32.mrf.mxu0
        %v2023 = vadd.f32 %v1259, %v2022
        %v2024 = vpop.f32.mrf.mxu0
        %v2025 = vadd.f32 %v1259, %v2024
        %2026 = vmatmul.bf16.gmra.mxu0 %v1597
        %v2027 = vpop.f32.mrf.mxu0
        %v2028 = vadd.f32 %v1259, %v2027
        %v2029 = vpop.f32.mrf.mxu0
        %v2030 = vadd.f32 %v1259, %v2029
        %2031 = vmatmul.bf16.gmra.mxu0 %v1600
        %v2032 = vpop.f32.mrf.mxu0
        %v2033 = vadd.f32 %v1259, %v2032
        %v2034 = vpop.f32.mrf.mxu0
        %v2035 = vadd.f32 %v1259, %v2034
        %2036 = vmatmul.bf16.gmra.mxu0 %v1603
        %v2037 = vpop.f32.mrf.mxu0
        %v2038 = vadd.f32 %v1259, %v2037
        %v2039 = vpop.f32.mrf.mxu0
        %v2040 = vadd.f32 %v1259, %v2039
        %2041 = vmatmul.bf16.gmra.mxu0 %v1606
        %v2042 = vpop.f32.mrf.mxu0
        %v2043 = vadd.f32 %v1259, %v2042
        %v2044 = vpop.f32.mrf.mxu0
        %v2045 = vadd.f32 %v1259, %v2044
        %2046 = vmatmul.bf16.gmra.mxu0 %v1609
        %v2047 = vpop.f32.mrf.mxu0
        %v2048 = vadd.f32 %v1259, %v2047
        %v2049 = vpop.f32.mrf.mxu0
        %v2050 = vadd.f32 %v1259, %v2049
        %2051 = vdwg.mxu0
        %2052 = vmatpush.bf16.msra.mxu0 0
        %2053 = vmatpush.bf16.msra.mxu0 0
        %2054 = vmatpush.bf16.msra.mxu0 0
        %2055 = vmatpush.bf16.msra.mxu0 0
        %2056 = vmatpush.bf16.msra.mxu0 %v1516
        %2057 = vmatpush.bf16.msra.mxu0 %v1500
        %2058 = vmatpush.bf16.msra.mxu0 %v1484
        %2059 = vmatpush.bf16.msra.mxu0 %v1468
        %2060 = vmatmul.bf16.gmra.mxu0 %v1588
        %v2061 = vpop.f32.mrf.mxu0
        %v2062 = vadd.f32 %v1260, %v2061
        %v2063 = vpop.f32.mrf.mxu0
        %v2064 = vadd.f32 %v1260, %v2063
        %2065 = vmatmul.bf16.gmra.mxu0 %v1591
        %v2066 = vpop.f32.mrf.mxu0
        %v2067 = vadd.f32 %v1260, %v2066
        %v2068 = vpop.f32.mrf.mxu0
        %v2069 = vadd.f32 %v1260, %v2068
        %2070 = vmatmul.bf16.gmra.mxu0 %v1594
        %v2071 = vpop.f32.mrf.mxu0
        %v2072 = vadd.f32 %v1260, %v2071
        %v2073 = vpop.f32.mrf.mxu0
        %v2074 = vadd.f32 %v1260, %v2073
        %2075 = vmatmul.bf16.gmra.mxu0 %v1597
        %v2076 = vpop.f32.mrf.mxu0
        %v2077 = vadd.f32 %v1260, %v2076
        %v2078 = vpop.f32.mrf.mxu0
        %v2079 = vadd.f32 %v1260, %v2078
        %2080 = vmatmul.bf16.gmra.mxu0 %v1600
        %v2081 = vpop.f32.mrf.mxu0
        %v2082 = vadd.f32 %v1260, %v2081
        %v2083 = vpop.f32.mrf.mxu0
        %v2084 = vadd.f32 %v1260, %v2083
        %2085 = vmatmul.bf16.gmra.mxu0 %v1603
        %v2086 = vpop.f32.mrf.mxu0
        %v2087 = vadd.f32 %v1260, %v2086
        %v2088 = vpop.f32.mrf.mxu0
        %v2089 = vadd.f32 %v1260, %v2088
        %2090 = vmatmul.bf16.gmra.mxu0 %v1606
        %v2091 = vpop.f32.mrf.mxu0
        %v2092 = vadd.f32 %v1260, %v2091
        %v2093 = vpop.f32.mrf.mxu0
        %v2094 = vadd.f32 %v1260, %v2093
        %2095 = vmatmul.bf16.gmra.mxu0 %v1609
        %v2096 = vpop.f32.mrf.mxu0
        %v2097 = vadd.f32 %v1260, %v2096
        %v2098 = vpop.f32.mrf.mxu0
        %v2099 = vadd.f32 %v1260, %v2098
        %2100 = vdwg.mxu0
        %2101 = vmatpush.bf16.msra.mxu0 0
        %2102 = vmatpush.bf16.msra.mxu0 0
        %2103 = vmatpush.bf16.msra.mxu0 0
        %2104 = vmatpush.bf16.msra.mxu0 0
        %2105 = vmatpush.bf16.msra.mxu0 %v1517
        %2106 = vmatpush.bf16.msra.mxu0 %v1501
        %2107 = vmatpush.bf16.msra.mxu0 %v1485
        %2108 = vmatpush.bf16.msra.mxu0 %v1469
        %2109 = vmatmul.bf16.gmra.mxu0 %v1588
        %v2110 = vpop.f32.mrf.mxu0
        %v2111 = vadd.f32 %v1261, %v2110
        %v2112 = vpop.f32.mrf.mxu0
        %v2113 = vadd.f32 %v1261, %v2112
        %2114 = vmatmul.bf16.gmra.mxu0 %v1591
        %v2115 = vpop.f32.mrf.mxu0
        %v2116 = vadd.f32 %v1261, %v2115
        %v2117 = vpop.f32.mrf.mxu0
        %v2118 = vadd.f32 %v1261, %v2117
        %2119 = vmatmul.bf16.gmra.mxu0 %v1594
        %v2120 = vpop.f32.mrf.mxu0
        %v2121 = vadd.f32 %v1261, %v2120
        %v2122 = vpop.f32.mrf.mxu0
        %v2123 = vadd.f32 %v1261, %v2122
        %2124 = vmatmul.bf16.gmra.mxu0 %v1597
        %v2125 = vpop.f32.mrf.mxu0
        %v2126 = vadd.f32 %v1261, %v2125
        %v2127 = vpop.f32.mrf.mxu0
        %v2128 = vadd.f32 %v1261, %v2127
        %2129 = vmatmul.bf16.gmra.mxu0 %v1600
        %v2130 = vpop.f32.mrf.mxu0
        %v2131 = vadd.f32 %v1261, %v2130
        %v2132 = vpop.f32.mrf.mxu0
        %v2133 = vadd.f32 %v1261, %v2132
        %2134 = vmatmul.bf16.gmra.mxu0 %v1603
        %v2135 = vpop.f32.mrf.mxu0
        %v2136 = vadd.f32 %v1261, %v2135
        %v2137 = vpop.f32.mrf.mxu0
        %v2138 = vadd.f32 %v1261, %v2137
        %2139 = vmatmul.bf16.gmra.mxu0 %v1606
        %v2140 = vpop.f32.mrf.mxu0
        %v2141 = vadd.f32 %v1261, %v2140
        %v2142 = vpop.f32.mrf.mxu0
        %v2143 = vadd.f32 %v1261, %v2142
        %2144 = vmatmul.bf16.gmra.mxu0 %v1609
        %v2145 = vpop.f32.mrf.mxu0
        %v2146 = vadd.f32 %v1261, %v2145
        %v2147 = vpop.f32.mrf.mxu0
        %v2148 = vadd.f32 %v1261, %v2147
        %2149 = vdwg.mxu0
        %2150 = vmatpush.bf16.msra.mxu0 0
        %2151 = vmatpush.bf16.msra.mxu0 0
        %2152 = vmatpush.bf16.msra.mxu0 0
        %2153 = vmatpush.bf16.msra.mxu0 0
        %2154 = vmatpush.bf16.msra.mxu0 %v1518
        %2155 = vmatpush.bf16.msra.mxu0 %v1502
        %2156 = vmatpush.bf16.msra.mxu0 %v1486
        %2157 = vmatpush.bf16.msra.mxu0 %v1470
        %2158 = vmatmul.bf16.gmra.mxu0 %v1588
        %v2159 = vpop.f32.mrf.mxu0
        %v2160 = vadd.f32 %v1262, %v2159
        %v2161 = vpop.f32.mrf.mxu0
        %v2162 = vadd.f32 %v1262, %v2161
        %2163 = vmatmul.bf16.gmra.mxu0 %v1591
        %v2164 = vpop.f32.mrf.mxu0
        %v2165 = vadd.f32 %v1262, %v2164
        %v2166 = vpop.f32.mrf.mxu0
        %v2167 = vadd.f32 %v1262, %v2166
        %2168 = vmatmul.bf16.gmra.mxu0 %v1594
        %v2169 = vpop.f32.mrf.mxu0
        %v2170 = vadd.f32 %v1262, %v2169
        %v2171 = vpop.f32.mrf.mxu0
        %v2172 = vadd.f32 %v1262, %v2171
        %2173 = vmatmul.bf16.gmra.mxu0 %v1597
        %v2174 = vpop.f32.mrf.mxu0
        %v2175 = vadd.f32 %v1262, %v2174
        %v2176 = vpop.f32.mrf.mxu0
        %v2177 = vadd.f32 %v1262, %v2176
        %2178 = vmatmul.bf16.gmra.mxu0 %v1600
        %v2179 = vpop.f32.mrf.mxu0
        %v2180 = vadd.f32 %v1262, %v2179
        %v2181 = vpop.f32.mrf.mxu0
        %v2182 = vadd.f32 %v1262, %v2181
        %2183 = vmatmul.bf16.gmra.mxu0 %v1603
        %v2184 = vpop.f32.mrf.mxu0
        %v2185 = vadd.f32 %v1262, %v2184
        %v2186 = vpop.f32.mrf.mxu0
        %v2187 = vadd.f32 %v1262, %v2186
        %2188 = vmatmul.bf16.gmra.mxu0 %v1606
        %v2189 = vpop.f32.mrf.mxu0
        %v2190 = vadd.f32 %v1262, %v2189
        %v2191 = vpop.f32.mrf.mxu0
        %v2192 = vadd.f32 %v1262, %v2191
        %2193 = vmatmul.bf16.gmra.mxu0 %v1609
        %v2194 = vpop.f32.mrf.mxu0
        %v2195 = vadd.f32 %v1262, %v2194
        %v2196 = vpop.f32.mrf.mxu0
        %v2197 = vadd.f32 %v1262, %v2196
        %2198 = vdwg.mxu0
        %2199 = vmatpush.bf16.msra.mxu0 0
        %2200 = vmatpush.bf16.msra.mxu0 0
        %2201 = vmatpush.bf16.msra.mxu0 0
        %2202 = vmatpush.bf16.msra.mxu0 0
        %2203 = vmatpush.bf16.msra.mxu0 %v1519
        %2204 = vmatpush.bf16.msra.mxu0 %v1503
        %2205 = vmatpush.bf16.msra.mxu0 %v1487
        %2206 = vmatpush.bf16.msra.mxu0 %v1471
        %2207 = vmatmul.bf16.gmra.mxu0 %v1588
        %v2208 = vpop.f32.mrf.mxu0
        %v2209 = vadd.f32 %v1263, %v2208
        %v2210 = vpop.f32.mrf.mxu0
        %v2211 = vadd.f32 %v1263, %v2210
        %2212 = vmatmul.bf16.gmra.mxu0 %v1591
        %v2213 = vpop.f32.mrf.mxu0
        %v2214 = vadd.f32 %v1263, %v2213
        %v2215 = vpop.f32.mrf.mxu0
        %v2216 = vadd.f32 %v1263, %v2215
        %2217 = vmatmul.bf16.gmra.mxu0 %v1594
        %v2218 = vpop.f32.mrf.mxu0
        %v2219 = vadd.f32 %v1263, %v2218
        %v2220 = vpop.f32.mrf.mxu0
        %v2221 = vadd.f32 %v1263, %v2220
        %2222 = vmatmul.bf16.gmra.mxu0 %v1597
        %v2223 = vpop.f32.mrf.mxu0
        %v2224 = vadd.f32 %v1263, %v2223
        %v2225 = vpop.f32.mrf.mxu0
        %v2226 = vadd.f32 %v1263, %v2225
        %2227 = vmatmul.bf16.gmra.mxu0 %v1600
        %v2228 = vpop.f32.mrf.mxu0
        %v2229 = vadd.f32 %v1263, %v2228
        %v2230 = vpop.f32.mrf.mxu0
        %v2231 = vadd.f32 %v1263, %v2230
        %2232 = vmatmul.bf16.gmra.mxu0 %v1603
        %v2233 = vpop.f32.mrf.mxu0
        %v2234 = vadd.f32 %v1263, %v2233
        %v2235 = vpop.f32.mrf.mxu0
        %v2236 = vadd.f32 %v1263, %v2235
        %2237 = vmatmul.bf16.gmra.mxu0 %v1606
        %v2238 = vpop.f32.mrf.mxu0
        %v2239 = vadd.f32 %v1263, %v2238
        %v2240 = vpop.f32.mrf.mxu0
        %v2241 = vadd.f32 %v1263, %v2240
        %2242 = vmatmul.bf16.gmra.mxu0 %v1609
        %v2243 = vpop.f32.mrf.mxu0
        %v2244 = vadd.f32 %v1263, %v2243
        %v2245 = vpop.f32.mrf.mxu0
        %v2246 = vadd.f32 %v1263, %v2245
        %2247 = vdwg.mxu0
        %2248 = vmatpush.bf16.msra.mxu0 0
        %2249 = vmatpush.bf16.msra.mxu0 0
        %2250 = vmatpush.bf16.msra.mxu0 0
        %2251 = vmatpush.bf16.msra.mxu0 0
        %2252 = vmatpush.bf16.msra.mxu0 %v1520
        %2253 = vmatpush.bf16.msra.mxu0 %v1504
        %2254 = vmatpush.bf16.msra.mxu0 %v1488
        %2255 = vmatpush.bf16.msra.mxu0 %v1472
        %2256 = vmatmul.bf16.gmra.mxu0 %v1588
        %v2257 = vpop.f32.mrf.mxu0
        %v2258 = vadd.f32 %v1264, %v2257
        %v2259 = vpop.f32.mrf.mxu0
        %v2260 = vadd.f32 %v1264, %v2259
        %2261 = vmatmul.bf16.gmra.mxu0 %v1591
        %v2262 = vpop.f32.mrf.mxu0
        %v2263 = vadd.f32 %v1264, %v2262
        %v2264 = vpop.f32.mrf.mxu0
        %v2265 = vadd.f32 %v1264, %v2264
        %2266 = vmatmul.bf16.gmra.mxu0 %v1594
        %v2267 = vpop.f32.mrf.mxu0
        %v2268 = vadd.f32 %v1264, %v2267
        %v2269 = vpop.f32.mrf.mxu0
        %v2270 = vadd.f32 %v1264, %v2269
        %2271 = vmatmul.bf16.gmra.mxu0 %v1597
        %v2272 = vpop.f32.mrf.mxu0
        %v2273 = vadd.f32 %v1264, %v2272
        %v2274 = vpop.f32.mrf.mxu0
        %v2275 = vadd.f32 %v1264, %v2274
        %2276 = vmatmul.bf16.gmra.mxu0 %v1600
        %v2277 = vpop.f32.mrf.mxu0
        %v2278 = vadd.f32 %v1264, %v2277
        %v2279 = vpop.f32.mrf.mxu0
        %v2280 = vadd.f32 %v1264, %v2279
        %2281 = vmatmul.bf16.gmra.mxu0 %v1603
        %v2282 = vpop.f32.mrf.mxu0
        %v2283 = vadd.f32 %v1264, %v2282
        %v2284 = vpop.f32.mrf.mxu0
        %v2285 = vadd.f32 %v1264, %v2284
        %2286 = vmatmul.bf16.gmra.mxu0 %v1606
        %v2287 = vpop.f32.mrf.mxu0
        %v2288 = vadd.f32 %v1264, %v2287
        %v2289 = vpop.f32.mrf.mxu0
        %v2290 = vadd.f32 %v1264, %v2289
        %2291 = vmatmul.bf16.gmra.mxu0 %v1609
        %v2292 = vpop.f32.mrf.mxu0
        %v2293 = vadd.f32 %v1264, %v2292
        %v2294 = vpop.f32.mrf.mxu0
        %v2295 = vadd.f32 %v1264, %v2294
        %2296 = vdwg.mxu0
        %2297 = vmatpush.bf16.msra.mxu0 0
        %2298 = vmatpush.bf16.msra.mxu0 0
        %2299 = vmatpush.bf16.msra.mxu0 0
        %2300 = vmatpush.bf16.msra.mxu0 0
        %2301 = vmatpush.bf16.msra.mxu0 %v1521
        %2302 = vmatpush.bf16.msra.mxu0 %v1505
        %2303 = vmatpush.bf16.msra.mxu0 %v1489
        %2304 = vmatpush.bf16.msra.mxu0 %v1473
        %2305 = vmatmul.bf16.gmra.mxu0 %v1588
        %v2306 = vpop.f32.mrf.mxu0
        %v2307 = vadd.f32 %v1265, %v2306
        %v2308 = vpop.f32.mrf.mxu0
        %v2309 = vadd.f32 %v1265, %v2308
        %2310 = vmatmul.bf16.gmra.mxu0 %v1591
        %v2311 = vpop.f32.mrf.mxu0
        %v2312 = vadd.f32 %v1265, %v2311
        %v2313 = vpop.f32.mrf.mxu0
        %v2314 = vadd.f32 %v1265, %v2313
        %2315 = vmatmul.bf16.gmra.mxu0 %v1594
        %v2316 = vpop.f32.mrf.mxu0
        %v2317 = vadd.f32 %v1265, %v2316
        %v2318 = vpop.f32.mrf.mxu0
        %v2319 = vadd.f32 %v1265, %v2318
        %2320 = vmatmul.bf16.gmra.mxu0 %v1597
        %v2321 = vpop.f32.mrf.mxu0
        %v2322 = vadd.f32 %v1265, %v2321
        %v2323 = vpop.f32.mrf.mxu0
        %v2324 = vadd.f32 %v1265, %v2323
        %2325 = vmatmul.bf16.gmra.mxu0 %v1600
        %v2326 = vpop.f32.mrf.mxu0
        %v2327 = vadd.f32 %v1265, %v2326
        %v2328 = vpop.f32.mrf.mxu0
        %v2329 = vadd.f32 %v1265, %v2328
        %2330 = vmatmul.bf16.gmra.mxu0 %v1603
        %v2331 = vpop.f32.mrf.mxu0
        %v2332 = vadd.f32 %v1265, %v2331
        %v2333 = vpop.f32.mrf.mxu0
        %v2334 = vadd.f32 %v1265, %v2333
        %2335 = vmatmul.bf16.gmra.mxu0 %v1606
        %v2336 = vpop.f32.mrf.mxu0
        %v2337 = vadd.f32 %v1265, %v2336
        %v2338 = vpop.f32.mrf.mxu0
        %v2339 = vadd.f32 %v1265, %v2338
        %2340 = vmatmul.bf16.gmra.mxu0 %v1609
        %v2341 = vpop.f32.mrf.mxu0
        %v2342 = vadd.f32 %v1265, %v2341
        %v2343 = vpop.f32.mrf.mxu0
        %v2344 = vadd.f32 %v1265, %v2343
        %2345 = vdwg.mxu0
        %2346 = vmatpush.bf16.msra.mxu0 0
        %2347 = vmatpush.bf16.msra.mxu0 0
        %2348 = vmatpush.bf16.msra.mxu0 0
        %2349 = vmatpush.bf16.msra.mxu0 0
        %2350 = vmatpush.bf16.msra.mxu0 %v1522
        %2351 = vmatpush.bf16.msra.mxu0 %v1506
        %2352 = vmatpush.bf16.msra.mxu0 %v1490
        %2353 = vmatpush.bf16.msra.mxu0 %v1474
        %2354 = vmatmul.bf16.gmra.mxu0 %v1588
        %v2355 = vpop.f32.mrf.mxu0
        %v2356 = vadd.f32 %v1266, %v2355
        %v2357 = vpop.f32.mrf.mxu0
        %v2358 = vadd.f32 %v1266, %v2357
        %2359 = vmatmul.bf16.gmra.mxu0 %v1591
        %v2360 = vpop.f32.mrf.mxu0
        %v2361 = vadd.f32 %v1266, %v2360
        %v2362 = vpop.f32.mrf.mxu0
        %v2363 = vadd.f32 %v1266, %v2362
        %2364 = vmatmul.bf16.gmra.mxu0 %v1594
        %v2365 = vpop.f32.mrf.mxu0
        %v2366 = vadd.f32 %v1266, %v2365
        %v2367 = vpop.f32.mrf.mxu0
        %v2368 = vadd.f32 %v1266, %v2367
        %2369 = vmatmul.bf16.gmra.mxu0 %v1597
        %v2370 = vpop.f32.mrf.mxu0
        %v2371 = vadd.f32 %v1266, %v2370
        %v2372 = vpop.f32.mrf.mxu0
        %v2373 = vadd.f32 %v1266, %v2372
        %2374 = vmatmul.bf16.gmra.mxu0 %v1600
        %v2375 = vpop.f32.mrf.mxu0
        %v2376 = vadd.f32 %v1266, %v2375
        %v2377 = vpop.f32.mrf.mxu0
        %v2378 = vadd.f32 %v1266, %v2377
        %2379 = vmatmul.bf16.gmra.mxu0 %v1603
        %v2380 = vpop.f32.mrf.mxu0
        %v2381 = vadd.f32 %v1266, %v2380
        %v2382 = vpop.f32.mrf.mxu0
        %v2383 = vadd.f32 %v1266, %v2382
        %2384 = vmatmul.bf16.gmra.mxu0 %v1606
        %v2385 = vpop.f32.mrf.mxu0
        %v2386 = vadd.f32 %v1266, %v2385
        %v2387 = vpop.f32.mrf.mxu0
        %v2388 = vadd.f32 %v1266, %v2387
        %2389 = vmatmul.bf16.gmra.mxu0 %v1609
        %v2390 = vpop.f32.mrf.mxu0
        %v2391 = vadd.f32 %v1266, %v2390
        %v2392 = vpop.f32.mrf.mxu0
        %v2393 = vadd.f32 %v1266, %v2392
        %2394 = vdwg.mxu0
        %v2395 = vmax.f32 %v1621, 0.0
        %v2396 = vmax.f32 %v1670, 0.0
        %v2397 = vmax.f32 %v1719, 0.0
        %v2398 = vmax.f32 %v1768, 0.0
        %v2399 = vmax.f32 %v1817, 0.0
        %v2400 = vmax.f32 %v1866, 0.0
        %v2401 = vmax.f32 %v1915, 0.0
        %v2402 = vmax.f32 %v1964, 0.0
        %v2403 = vmax.f32 %v2013, 0.0
        %v2404 = vmax.f32 %v2062, 0.0
        %v2405 = vmax.f32 %v2111, 0.0
        %v2406 = vmax.f32 %v2160, 0.0
        %v2407 = vmax.f32 %v2209, 0.0
        %v2408 = vmax.f32 %v2258, 0.0
        %v2409 = vmax.f32 %v2307, 0.0
        %v2410 = vmax.f32 %v2356, 0.0
        %v2411 = vmax.f32 %v1623, 0.0
        %v2412 = vmax.f32 %v1672, 0.0
        %v2413 = vmax.f32 %v1721, 0.0
        %v2414 = vmax.f32 %v1770, 0.0
        %v2415 = vmax.f32 %v1819, 0.0
        %v2416 = vmax.f32 %v1868, 0.0
        %v2417 = vmax.f32 %v1917, 0.0
        %v2418 = vmax.f32 %v1966, 0.0
        %v2419 = vmax.f32 %v2015, 0.0
        %v2420 = vmax.f32 %v2064, 0.0
        %v2421 = vmax.f32 %v2113, 0.0
        %v2422 = vmax.f32 %v2162, 0.0
        %v2423 = vmax.f32 %v2211, 0.0
        %v2424 = vmax.f32 %v2260, 0.0
        %v2425 = vmax.f32 %v2309, 0.0
        %v2426 = vmax.f32 %v2358, 0.0
        %v2427 = vmax.f32 %v1626, 0.0
        %v2428 = vmax.f32 %v1675, 0.0
        %v2429 = vmax.f32 %v1724, 0.0
        %v2430 = vmax.f32 %v1773, 0.0
        %v2431 = vmax.f32 %v1822, 0.0
        %v2432 = vmax.f32 %v1871, 0.0
        %v2433 = vmax.f32 %v1920, 0.0
        %v2434 = vmax.f32 %v1969, 0.0
        %v2435 = vmax.f32 %v2018, 0.0
        %v2436 = vmax.f32 %v2067, 0.0
        %v2437 = vmax.f32 %v2116, 0.0
        %v2438 = vmax.f32 %v2165, 0.0
        %v2439 = vmax.f32 %v2214, 0.0
        %v2440 = vmax.f32 %v2263, 0.0
        %v2441 = vmax.f32 %v2312, 0.0
        %v2442 = vmax.f32 %v2361, 0.0
        %v2443 = vmax.f32 %v1628, 0.0
        %v2444 = vmax.f32 %v1677, 0.0
        %v2445 = vmax.f32 %v1726, 0.0
        %v2446 = vmax.f32 %v1775, 0.0
        %v2447 = vmax.f32 %v1824, 0.0
        %v2448 = vmax.f32 %v1873, 0.0
        %v2449 = vmax.f32 %v1922, 0.0
        %v2450 = vmax.f32 %v1971, 0.0
        %v2451 = vmax.f32 %v2020, 0.0
        %v2452 = vmax.f32 %v2069, 0.0
        %v2453 = vmax.f32 %v2118, 0.0
        %v2454 = vmax.f32 %v2167, 0.0
        %v2455 = vmax.f32 %v2216, 0.0
        %v2456 = vmax.f32 %v2265, 0.0
        %v2457 = vmax.f32 %v2314, 0.0
        %v2458 = vmax.f32 %v2363, 0.0
        %v2459 = vmax.f32 %v1631, 0.0
        %v2460 = vmax.f32 %v1680, 0.0
        %v2461 = vmax.f32 %v1729, 0.0
        %v2462 = vmax.f32 %v1778, 0.0
        %v2463 = vmax.f32 %v1827, 0.0
        %v2464 = vmax.f32 %v1876, 0.0
        %v2465 = vmax.f32 %v1925, 0.0
        %v2466 = vmax.f32 %v1974, 0.0
        %v2467 = vmax.f32 %v2023, 0.0
        %v2468 = vmax.f32 %v2072, 0.0
        %v2469 = vmax.f32 %v2121, 0.0
        %v2470 = vmax.f32 %v2170, 0.0
        %v2471 = vmax.f32 %v2219, 0.0
        %v2472 = vmax.f32 %v2268, 0.0
        %v2473 = vmax.f32 %v2317, 0.0
        %v2474 = vmax.f32 %v2366, 0.0
        %v2475 = vmax.f32 %v1633, 0.0
        %v2476 = vmax.f32 %v1682, 0.0
        %v2477 = vmax.f32 %v1731, 0.0
        %v2478 = vmax.f32 %v1780, 0.0
        %v2479 = vmax.f32 %v1829, 0.0
        %v2480 = vmax.f32 %v1878, 0.0
        %v2481 = vmax.f32 %v1927, 0.0
        %v2482 = vmax.f32 %v1976, 0.0
        %v2483 = vmax.f32 %v2025, 0.0
        %v2484 = vmax.f32 %v2074, 0.0
        %v2485 = vmax.f32 %v2123, 0.0
        %v2486 = vmax.f32 %v2172, 0.0
        %v2487 = vmax.f32 %v2221, 0.0
        %v2488 = vmax.f32 %v2270, 0.0
        %v2489 = vmax.f32 %v2319, 0.0
        %v2490 = vmax.f32 %v2368, 0.0
        %v2491 = vmax.f32 %v1636, 0.0
        %v2492 = vmax.f32 %v1685, 0.0
        %v2493 = vmax.f32 %v1734, 0.0
        %v2494 = vmax.f32 %v1783, 0.0
        %v2495 = vmax.f32 %v1832, 0.0
        %v2496 = vmax.f32 %v1881, 0.0
        %v2497 = vmax.f32 %v1930, 0.0
        %v2498 = vmax.f32 %v1979, 0.0
        %v2499 = vmax.f32 %v2028, 0.0
        %v2500 = vmax.f32 %v2077, 0.0
        %v2501 = vmax.f32 %v2126, 0.0
        %v2502 = vmax.f32 %v2175, 0.0
        %v2503 = vmax.f32 %v2224, 0.0
        %v2504 = vmax.f32 %v2273, 0.0
        %v2505 = vmax.f32 %v2322, 0.0
        %v2506 = vmax.f32 %v2371, 0.0
        %v2507 = vmax.f32 %v1638, 0.0
        %v2508 = vmax.f32 %v1687, 0.0
        %v2509 = vmax.f32 %v1736, 0.0
        %v2510 = vmax.f32 %v1785, 0.0
        %v2511 = vmax.f32 %v1834, 0.0
        %v2512 = vmax.f32 %v1883, 0.0
        %v2513 = vmax.f32 %v1932, 0.0
        %v2514 = vmax.f32 %v1981, 0.0
        %v2515 = vmax.f32 %v2030, 0.0
        %v2516 = vmax.f32 %v2079, 0.0
        %v2517 = vmax.f32 %v2128, 0.0
        %v2518 = vmax.f32 %v2177, 0.0
        %v2519 = vmax.f32 %v2226, 0.0
        %v2520 = vmax.f32 %v2275, 0.0
        %v2521 = vmax.f32 %v2324, 0.0
        %v2522 = vmax.f32 %v2373, 0.0
        %v2523 = vmax.f32 %v1641, 0.0
        %v2524 = vmax.f32 %v1690, 0.0
        %v2525 = vmax.f32 %v1739, 0.0
        %v2526 = vmax.f32 %v1788, 0.0
        %v2527 = vmax.f32 %v1837, 0.0
        %v2528 = vmax.f32 %v1886, 0.0
        %v2529 = vmax.f32 %v1935, 0.0
        %v2530 = vmax.f32 %v1984, 0.0
        %v2531 = vmax.f32 %v2033, 0.0
        %v2532 = vmax.f32 %v2082, 0.0
        %v2533 = vmax.f32 %v2131, 0.0
        %v2534 = vmax.f32 %v2180, 0.0
        %v2535 = vmax.f32 %v2229, 0.0
        %v2536 = vmax.f32 %v2278, 0.0
        %v2537 = vmax.f32 %v2327, 0.0
        %v2538 = vmax.f32 %v2376, 0.0
        %v2539 = vmax.f32 %v1643, 0.0
        %v2540 = vmax.f32 %v1692, 0.0
        %v2541 = vmax.f32 %v1741, 0.0
        %v2542 = vmax.f32 %v1790, 0.0
        %v2543 = vmax.f32 %v1839, 0.0
        %v2544 = vmax.f32 %v1888, 0.0
        %v2545 = vmax.f32 %v1937, 0.0
        %v2546 = vmax.f32 %v1986, 0.0
        %v2547 = vmax.f32 %v2035, 0.0
        %v2548 = vmax.f32 %v2084, 0.0
        %v2549 = vmax.f32 %v2133, 0.0
        %v2550 = vmax.f32 %v2182, 0.0
        %v2551 = vmax.f32 %v2231, 0.0
        %v2552 = vmax.f32 %v2280, 0.0
        %v2553 = vmax.f32 %v2329, 0.0
        %v2554 = vmax.f32 %v2378, 0.0
        %v2555 = vmax.f32 %v1646, 0.0
        %v2556 = vmax.f32 %v1695, 0.0
        %v2557 = vmax.f32 %v1744, 0.0
        %v2558 = vmax.f32 %v1793, 0.0
        %v2559 = vmax.f32 %v1842, 0.0
        %v2560 = vmax.f32 %v1891, 0.0
        %v2561 = vmax.f32 %v1940, 0.0
        %v2562 = vmax.f32 %v1989, 0.0
        %v2563 = vmax.f32 %v2038, 0.0
        %v2564 = vmax.f32 %v2087, 0.0
        %v2565 = vmax.f32 %v2136, 0.0
        %v2566 = vmax.f32 %v2185, 0.0
        %v2567 = vmax.f32 %v2234, 0.0
        %v2568 = vmax.f32 %v2283, 0.0
        %v2569 = vmax.f32 %v2332, 0.0
        %v2570 = vmax.f32 %v2381, 0.0
        %v2571 = vmax.f32 %v1648, 0.0
        %v2572 = vmax.f32 %v1697, 0.0
        %v2573 = vmax.f32 %v1746, 0.0
        %v2574 = vmax.f32 %v1795, 0.0
        %v2575 = vmax.f32 %v1844, 0.0
        %v2576 = vmax.f32 %v1893, 0.0
        %v2577 = vmax.f32 %v1942, 0.0
        %v2578 = vmax.f32 %v1991, 0.0
        %v2579 = vmax.f32 %v2040, 0.0
        %v2580 = vmax.f32 %v2089, 0.0
        %v2581 = vmax.f32 %v2138, 0.0
        %v2582 = vmax.f32 %v2187, 0.0
        %v2583 = vmax.f32 %v2236, 0.0
        %v2584 = vmax.f32 %v2285, 0.0
        %v2585 = vmax.f32 %v2334, 0.0
        %v2586 = vmax.f32 %v2383, 0.0
        %v2587 = vmax.f32 %v1651, 0.0
        %v2588 = vmax.f32 %v1700, 0.0
        %v2589 = vmax.f32 %v1749, 0.0
        %v2590 = vmax.f32 %v1798, 0.0
        %v2591 = vmax.f32 %v1847, 0.0
        %v2592 = vmax.f32 %v1896, 0.0
        %v2593 = vmax.f32 %v1945, 0.0
        %v2594 = vmax.f32 %v1994, 0.0
        %v2595 = vmax.f32 %v2043, 0.0
        %v2596 = vmax.f32 %v2092, 0.0
        %v2597 = vmax.f32 %v2141, 0.0
        %v2598 = vmax.f32 %v2190, 0.0
        %v2599 = vmax.f32 %v2239, 0.0
        %v2600 = vmax.f32 %v2288, 0.0
        %v2601 = vmax.f32 %v2337, 0.0
        %v2602 = vmax.f32 %v2386, 0.0
        %v2603 = vmax.f32 %v1653, 0.0
        %v2604 = vmax.f32 %v1702, 0.0
        %v2605 = vmax.f32 %v1751, 0.0
        %v2606 = vmax.f32 %v1800, 0.0
        %v2607 = vmax.f32 %v1849, 0.0
        %v2608 = vmax.f32 %v1898, 0.0
        %v2609 = vmax.f32 %v1947, 0.0
        %v2610 = vmax.f32 %v1996, 0.0
        %v2611 = vmax.f32 %v2045, 0.0
        %v2612 = vmax.f32 %v2094, 0.0
        %v2613 = vmax.f32 %v2143, 0.0
        %v2614 = vmax.f32 %v2192, 0.0
        %v2615 = vmax.f32 %v2241, 0.0
        %v2616 = vmax.f32 %v2290, 0.0
        %v2617 = vmax.f32 %v2339, 0.0
        %v2618 = vmax.f32 %v2388, 0.0
        %v2619 = vmax.f32 %v1656, 0.0
        %v2620 = vmax.f32 %v1705, 0.0
        %v2621 = vmax.f32 %v1754, 0.0
        %v2622 = vmax.f32 %v1803, 0.0
        %v2623 = vmax.f32 %v1852, 0.0
        %v2624 = vmax.f32 %v1901, 0.0
        %v2625 = vmax.f32 %v1950, 0.0
        %v2626 = vmax.f32 %v1999, 0.0
        %v2627 = vmax.f32 %v2048, 0.0
        %v2628 = vmax.f32 %v2097, 0.0
        %v2629 = vmax.f32 %v2146, 0.0
        %v2630 = vmax.f32 %v2195, 0.0
        %v2631 = vmax.f32 %v2244, 0.0
        %v2632 = vmax.f32 %v2293, 0.0
        %v2633 = vmax.f32 %v2342, 0.0
        %v2634 = vmax.f32 %v2391, 0.0
        %v2635 = vmax.f32 %v1658, 0.0
        %v2636 = vmax.f32 %v1707, 0.0
        %v2637 = vmax.f32 %v1756, 0.0
        %v2638 = vmax.f32 %v1805, 0.0
        %v2639 = vmax.f32 %v1854, 0.0
        %v2640 = vmax.f32 %v1903, 0.0
        %v2641 = vmax.f32 %v1952, 0.0
        %v2642 = vmax.f32 %v2001, 0.0
        %v2643 = vmax.f32 %v2050, 0.0
        %v2644 = vmax.f32 %v2099, 0.0
        %v2645 = vmax.f32 %v2148, 0.0
        %v2646 = vmax.f32 %v2197, 0.0
        %v2647 = vmax.f32 %v2246, 0.0
        %v2648 = vmax.f32 %v2295, 0.0
        %v2649 = vmax.f32 %v2344, 0.0
        %v2650 = vmax.f32 %v2393, 0.0
        %v2651 = vpack.c.bf16 %v2411, %v2395
        %v2652 = vpack.c.bf16 %v2412, %v2396
        %v2653 = vpack.c.bf16 %v2413, %v2397
        %v2654 = vpack.c.bf16 %v2414, %v2398
        %v2655 = vpack.c.bf16 %v2415, %v2399
        %v2656 = vpack.c.bf16 %v2416, %v2400
        %v2657 = vpack.c.bf16 %v2417, %v2401
        %v2658 = vpack.c.bf16 %v2418, %v2402
        %v2659 = vpack.c.bf16 %v2419, %v2403
        %v2660 = vpack.c.bf16 %v2420, %v2404
        %v2661 = vpack.c.bf16 %v2421, %v2405
        %v2662 = vpack.c.bf16 %v2422, %v2406
        %v2663 = vpack.c.bf16 %v2423, %v2407
        %v2664 = vpack.c.bf16 %v2424, %v2408
        %v2665 = vpack.c.bf16 %v2425, %v2409
        %v2666 = vpack.c.bf16 %v2426, %v2410
        %v2667 = vpack.c.bf16 %v2443, %v2427
        %v2668 = vpack.c.bf16 %v2444, %v2428
        %v2669 = vpack.c.bf16 %v2445, %v2429
        %v2670 = vpack.c.bf16 %v2446, %v2430
        %v2671 = vpack.c.bf16 %v2447, %v2431
        %v2672 = vpack.c.bf16 %v2448, %v2432
        %v2673 = vpack.c.bf16 %v2449, %v2433
        %v2674 = vpack.c.bf16 %v2450, %v2434
        %v2675 = vpack.c.bf16 %v2451, %v2435
        %v2676 = vpack.c.bf16 %v2452, %v2436
        %v2677 = vpack.c.bf16 %v2453, %v2437
        %v2678 = vpack.c.bf16 %v2454, %v2438
        %v2679 = vpack.c.bf16 %v2455, %v2439
        %v2680 = vpack.c.bf16 %v2456, %v2440
        %v2681 = vpack.c.bf16 %v2457, %v2441
        %v2682 = vpack.c.bf16 %v2458, %v2442
        %v2683 = vpack.c.bf16 %v2475, %v2459
        %v2684 = vpack.c.bf16 %v2476, %v2460
        %v2685 = vpack.c.bf16 %v2477, %v2461
        %v2686 = vpack.c.bf16 %v2478, %v2462
        %v2687 = vpack.c.bf16 %v2479, %v2463
        %v2688 = vpack.c.bf16 %v2480, %v2464
        %v2689 = vpack.c.bf16 %v2481, %v2465
        %v2690 = vpack.c.bf16 %v2482, %v2466
        %v2691 = vpack.c.bf16 %v2483, %v2467
        %v2692 = vpack.c.bf16 %v2484, %v2468
        %v2693 = vpack.c.bf16 %v2485, %v2469
        %v2694 = vpack.c.bf16 %v2486, %v2470
        %v2695 = vpack.c.bf16 %v2487, %v2471
        %v2696 = vpack.c.bf16 %v2488, %v2472
        %v2697 = vpack.c.bf16 %v2489, %v2473
        %v2698 = vpack.c.bf16 %v2490, %v2474
        %v2699 = vpack.c.bf16 %v2507, %v2491
        %v2700 = vpack.c.bf16 %v2508, %v2492
        %v2701 = vpack.c.bf16 %v2509, %v2493
        %v2702 = vpack.c.bf16 %v2510, %v2494
        %v2703 = vpack.c.bf16 %v2511, %v2495
        %v2704 = vpack.c.bf16 %v2512, %v2496
        %v2705 = vpack.c.bf16 %v2513, %v2497
        %v2706 = vpack.c.bf16 %v2514, %v2498
        %v2707 = vpack.c.bf16 %v2515, %v2499
        %v2708 = vpack.c.bf16 %v2516, %v2500
        %v2709 = vpack.c.bf16 %v2517, %v2501
        %v2710 = vpack.c.bf16 %v2518, %v2502
        %v2711 = vpack.c.bf16 %v2519, %v2503
        %v2712 = vpack.c.bf16 %v2520, %v2504
        %v2713 = vpack.c.bf16 %v2521, %v2505
        %v2714 = vpack.c.bf16 %v2522, %v2506
        %v2715 = vpack.c.bf16 %v2539, %v2523
        %v2716 = vpack.c.bf16 %v2540, %v2524
        %v2717 = vpack.c.bf16 %v2541, %v2525
        %v2718 = vpack.c.bf16 %v2542, %v2526
        %v2719 = vpack.c.bf16 %v2543, %v2527
        %v2720 = vpack.c.bf16 %v2544, %v2528
        %v2721 = vpack.c.bf16 %v2545, %v2529
        %v2722 = vpack.c.bf16 %v2546, %v2530
        %v2723 = vpack.c.bf16 %v2547, %v2531
        %v2724 = vpack.c.bf16 %v2548, %v2532
        %v2725 = vpack.c.bf16 %v2549, %v2533
        %v2726 = vpack.c.bf16 %v2550, %v2534
        %v2727 = vpack.c.bf16 %v2551, %v2535
        %v2728 = vpack.c.bf16 %v2552, %v2536
        %v2729 = vpack.c.bf16 %v2553, %v2537
        %v2730 = vpack.c.bf16 %v2554, %v2538
        %v2731 = vpack.c.bf16 %v2571, %v2555
        %v2732 = vpack.c.bf16 %v2572, %v2556
        %v2733 = vpack.c.bf16 %v2573, %v2557
        %v2734 = vpack.c.bf16 %v2574, %v2558
        %v2735 = vpack.c.bf16 %v2575, %v2559
        %v2736 = vpack.c.bf16 %v2576, %v2560
        %v2737 = vpack.c.bf16 %v2577, %v2561
        %v2738 = vpack.c.bf16 %v2578, %v2562
        %v2739 = vpack.c.bf16 %v2579, %v2563
        %v2740 = vpack.c.bf16 %v2580, %v2564
        %v2741 = vpack.c.bf16 %v2581, %v2565
        %v2742 = vpack.c.bf16 %v2582, %v2566
        %v2743 = vpack.c.bf16 %v2583, %v2567
        %v2744 = vpack.c.bf16 %v2584, %v2568
        %v2745 = vpack.c.bf16 %v2585, %v2569
        %v2746 = vpack.c.bf16 %v2586, %v2570
        %v2747 = vpack.c.bf16 %v2603, %v2587
        %v2748 = vpack.c.bf16 %v2604, %v2588
        %v2749 = vpack.c.bf16 %v2605, %v2589
        %v2750 = vpack.c.bf16 %v2606, %v2590
        %v2751 = vpack.c.bf16 %v2607, %v2591
        %v2752 = vpack.c.bf16 %v2608, %v2592
        %v2753 = vpack.c.bf16 %v2609, %v2593
        %v2754 = vpack.c.bf16 %v2610, %v2594
        %v2755 = vpack.c.bf16 %v2611, %v2595
        %v2756 = vpack.c.bf16 %v2612, %v2596
        %v2757 = vpack.c.bf16 %v2613, %v2597
        %v2758 = vpack.c.bf16 %v2614, %v2598
        %v2759 = vpack.c.bf16 %v2615, %v2599
        %v2760 = vpack.c.bf16 %v2616, %v2600
        %v2761 = vpack.c.bf16 %v2617, %v2601
        %v2762 = vpack.c.bf16 %v2618, %v2602
        %v2763 = vpack.c.bf16 %v2635, %v2619
        %v2764 = vpack.c.bf16 %v2636, %v2620
        %v2765 = vpack.c.bf16 %v2637, %v2621
        %v2766 = vpack.c.bf16 %v2638, %v2622
        %v2767 = vpack.c.bf16 %v2639, %v2623
        %v2768 = vpack.c.bf16 %v2640, %v2624
        %v2769 = vpack.c.bf16 %v2641, %v2625
        %v2770 = vpack.c.bf16 %v2642, %v2626
        %v2771 = vpack.c.bf16 %v2643, %v2627
        %v2772 = vpack.c.bf16 %v2644, %v2628
        %v2773 = vpack.c.bf16 %v2645, %v2629
        %v2774 = vpack.c.bf16 %v2646, %v2630
        %v2775 = vpack.c.bf16 %v2647, %v2631
        %v2776 = vpack.c.bf16 %v2648, %v2632
        %v2777 = vpack.c.bf16 %v2649, %v2633
        %v2778 = vpack.c.bf16 %v2650, %v2634
        %v2779 = vperm.slane %v374, 0
        %v3036 = vunpack.c.l.b16 %v971
        %v3037 = vunpack.c.l.b16 %v972
        %v3038 = vunpack.c.l.b16 %v973
        %v3039 = vunpack.c.l.b16 %v974
        %v3040 = vunpack.c.l.b16 %v975
        %v3041 = vunpack.c.l.b16 %v976
        %v3042 = vunpack.c.l.b16 %v977
        %v3043 = vunpack.c.l.b16 %v978
        %v3044 = vunpack.c.l.b16 %v979
        %v3045 = vunpack.c.l.b16 %v980
        %v3046 = vunpack.c.l.b16 %v981
        %v3047 = vunpack.c.l.b16 %v982
        %v3048 = vunpack.c.l.b16 %v983
        %v3049 = vunpack.c.l.b16 %v984
        %v3050 = vunpack.c.l.b16 %v985
        %v3051 = vunpack.c.l.b16 %v986
        %v3052 = vunpack.c.l.b16 %v987
        %v3053 = vunpack.c.l.b16 %v988
        %v3054 = vunpack.c.l.b16 %v989
        %v3055 = vunpack.c.l.b16 %v990
        %v3056 = vunpack.c.l.b16 %v991
        %v3057 = vunpack.c.l.b16 %v992
        %v3058 = vunpack.c.l.b16 %v993
        %v3059 = vunpack.c.l.b16 %v994
        %v3060 = vunpack.c.l.b16 %v995
        %v3061 = vunpack.c.l.b16 %v996
        %v3062 = vunpack.c.l.b16 %v997
        %v3063 = vunpack.c.l.b16 %v998
        %v3064 = vunpack.c.l.b16 %v999
        %v3065 = vunpack.c.l.b16 %v1000
        %v3066 = vunpack.c.l.b16 %v1001
        %v3067 = vunpack.c.l.b16 %v1002
        %v3068 = vunpack.c.l.b16 %v1003
        %v3069 = vunpack.c.l.b16 %v1004
        %v3070 = vunpack.c.l.b16 %v1005
        %v3071 = vunpack.c.l.b16 %v1006
        %v3072 = vunpack.c.l.b16 %v1007
        %v3073 = vunpack.c.l.b16 %v1008
        %v3074 = vunpack.c.l.b16 %v1009
        %v3075 = vunpack.c.l.b16 %v1010
        %v3076 = vunpack.c.l.b16 %v1011
        %v3077 = vunpack.c.l.b16 %v1012
        %v3078 = vunpack.c.l.b16 %v1013
        %v3079 = vunpack.c.l.b16 %v1014
        %v3080 = vunpack.c.l.b16 %v1015
        %v3081 = vunpack.c.l.b16 %v1016
        %v3082 = vunpack.c.l.b16 %v1017
        %v3083 = vunpack.c.l.b16 %v1018
        %v3084 = vunpack.c.l.b16 %v1019
        %v3085 = vunpack.c.l.b16 %v1020
        %v3086 = vunpack.c.l.b16 %v1021
        %v3087 = vunpack.c.l.b16 %v1022
        %v3088 = vunpack.c.l.b16 %v1023
        %v3089 = vunpack.c.l.b16 %v1024
        %v3090 = vunpack.c.l.b16 %v1025
        %v3091 = vunpack.c.l.b16 %v1026
        %v3092 = vunpack.c.l.b16 %v1027
        %v3093 = vunpack.c.l.b16 %v1028
        %v3094 = vunpack.c.l.b16 %v1029
        %v3095 = vunpack.c.l.b16 %v1030
        %v3096 = vunpack.c.l.b16 %v1031
        %v3097 = vunpack.c.l.b16 %v1032
        %v3098 = vunpack.c.l.b16 %v1033
        %v3099 = vunpack.c.l.b16 %v1034
        %v3100 = vunpack.c.l.b16 %v1035
        %v3101 = vunpack.c.l.b16 %v1036
        %v3102 = vunpack.c.l.b16 %v1037
        %v3103 = vunpack.c.l.b16 %v1038
        %v3104 = vunpack.c.l.b16 %v1039
        %v3105 = vunpack.c.l.b16 %v1040
        %v3106 = vunpack.c.l.b16 %v1041
        %v3107 = vunpack.c.l.b16 %v1042
        %v3108 = vunpack.c.l.b16 %v1043
        %v3109 = vunpack.c.l.b16 %v1044
        %v3110 = vunpack.c.l.b16 %v1045
        %v3111 = vunpack.c.l.b16 %v1046
        %v3112 = vunpack.c.l.b16 %v1047
        %v3113 = vunpack.c.l.b16 %v1048
        %v3114 = vunpack.c.l.b16 %v1049
        %v3115 = vunpack.c.l.b16 %v1050
        %v3116 = vunpack.c.l.b16 %v1051
        %v3117 = vunpack.c.l.b16 %v1052
        %v3118 = vunpack.c.l.b16 %v1053
        %v3119 = vunpack.c.l.b16 %v1054
        %v3120 = vunpack.c.l.b16 %v1055
        %v3121 = vunpack.c.l.b16 %v1056
        %v3122 = vunpack.c.l.b16 %v1057
        %v3123 = vunpack.c.l.b16 %v1058
        %v3124 = vunpack.c.l.b16 %v1059
        %v3125 = vunpack.c.l.b16 %v1060
        %v3126 = vunpack.c.l.b16 %v1061
        %v3127 = vunpack.c.l.b16 %v1062
        %v3128 = vunpack.c.l.b16 %v1063
        %v3129 = vunpack.c.l.b16 %v1064
        %v3130 = vunpack.c.l.b16 %v1065
        %v3131 = vunpack.c.l.b16 %v1066
        %v3132 = vunpack.c.l.b16 %v1067
        %v3133 = vunpack.c.l.b16 %v1068
        %v3134 = vunpack.c.l.b16 %v1069
        %v3135 = vunpack.c.l.b16 %v1070
        %v3136 = vunpack.c.l.b16 %v1071
        %v3137 = vunpack.c.l.b16 %v1072
        %v3138 = vunpack.c.l.b16 %v1073
        %v3139 = vunpack.c.l.b16 %v1074
        %v3140 = vunpack.c.l.b16 %v1075
        %v3141 = vunpack.c.l.b16 %v1076
        %v3142 = vunpack.c.l.b16 %v1077
        %v3143 = vunpack.c.l.b16 %v1078
        %v3144 = vunpack.c.l.b16 %v1079
        %v3145 = vunpack.c.l.b16 %v1080
        %v3146 = vunpack.c.l.b16 %v1081
        %v3147 = vunpack.c.l.b16 %v1082
        %v3148 = vunpack.c.l.b16 %v1083
        %v3149 = vunpack.c.l.b16 %v1084
        %v3150 = vunpack.c.l.b16 %v1085
        %v3151 = vunpack.c.l.b16 %v1086
        %v3152 = vunpack.c.l.b16 %v1087
        %v3153 = vunpack.c.l.b16 %v1088
        %v3154 = vunpack.c.l.b16 %v1089
        %v3155 = vunpack.c.l.b16 %v1090
        %v3156 = vunpack.c.l.b16 %v1091
        %v3157 = vunpack.c.l.b16 %v1092
        %v3158 = vunpack.c.l.b16 %v1093
        %v3159 = vunpack.c.l.b16 %v1094
        %v3160 = vunpack.c.l.b16 %v1095
        %v3161 = vunpack.c.l.b16 %v1096
        %v3162 = vunpack.c.l.b16 %v1097
        %v3163 = vunpack.c.l.b16 %v1098
        %v3164 = vunpack.c.l.b16 %v1099
        %v3165 = vunpack.c.l.b16 %v1100
        %v3166 = vunpack.c.l.b16 %v1101
        %v3167 = vunpack.c.l.b16 %v1102
        %v3168 = vunpack.c.l.b16 %v1103
        %v3169 = vunpack.c.l.b16 %v1104
        %v3170 = vunpack.c.l.b16 %v1105
        %v3171 = vunpack.c.l.b16 %v1106
        %v3172 = vunpack.c.l.b16 %v1107
        %v3173 = vunpack.c.l.b16 %v1108
        %v3174 = vunpack.c.l.b16 %v1109
        %v3175 = vunpack.c.l.b16 %v1110
        %v3176 = vunpack.c.l.b16 %v1111
        %v3177 = vunpack.c.l.b16 %v1112
        %v3178 = vunpack.c.l.b16 %v1113
        %v3179 = vunpack.c.l.b16 %v1114
        %v3180 = vunpack.c.l.b16 %v1115
        %v3181 = vunpack.c.l.b16 %v1116
        %v3182 = vunpack.c.l.b16 %v1117
        %v3183 = vunpack.c.l.b16 %v1118
        %v3184 = vunpack.c.l.b16 %v1119
        %v3185 = vunpack.c.l.b16 %v1120
        %v3186 = vunpack.c.l.b16 %v1121
        %v3187 = vunpack.c.l.b16 %v1122
        %v3188 = vunpack.c.l.b16 %v1123
        %v3189 = vunpack.c.l.b16 %v1124
        %v3190 = vunpack.c.l.b16 %v1125
        %v3191 = vunpack.c.l.b16 %v1126
        %v3192 = vunpack.c.l.b16 %v1127
        %v3193 = vunpack.c.l.b16 %v1128
        %v3194 = vunpack.c.l.b16 %v1129
        %v3195 = vunpack.c.l.b16 %v1130
        %v3196 = vunpack.c.l.b16 %v1131
        %v3197 = vunpack.c.l.b16 %v1132
        %v3198 = vunpack.c.l.b16 %v1133
        %v3199 = vunpack.c.l.b16 %v1134
        %v3200 = vunpack.c.l.b16 %v1135
        %v3201 = vunpack.c.l.b16 %v1136
        %v3202 = vunpack.c.l.b16 %v1137
        %v3203 = vunpack.c.l.b16 %v1138
        %v3204 = vunpack.c.l.b16 %v1139
        %v3205 = vunpack.c.l.b16 %v1140
        %v3206 = vunpack.c.l.b16 %v1141
        %v3207 = vunpack.c.l.b16 %v1142
        %v3208 = vunpack.c.l.b16 %v1143
        %v3209 = vunpack.c.l.b16 %v1144
        %v3210 = vunpack.c.l.b16 %v1145
        %v3211 = vunpack.c.l.b16 %v1146
        %v3212 = vunpack.c.l.b16 %v1147
        %v3213 = vunpack.c.l.b16 %v1148
        %v3214 = vunpack.c.l.b16 %v1149
        %v3215 = vunpack.c.l.b16 %v1150
        %v3216 = vunpack.c.l.b16 %v1151
        %v3217 = vunpack.c.l.b16 %v1152
        %v3218 = vunpack.c.l.b16 %v1153
        %v3219 = vunpack.c.l.b16 %v1154
        %v3220 = vunpack.c.l.b16 %v1155
        %v3221 = vunpack.c.l.b16 %v1156
        %v3222 = vunpack.c.l.b16 %v1157
        %v3223 = vunpack.c.l.b16 %v1158
        %v3224 = vunpack.c.l.b16 %v1159
        %v3225 = vunpack.c.l.b16 %v1160
        %v3226 = vunpack.c.l.b16 %v1161
        %v3227 = vunpack.c.l.b16 %v1162
        %v3228 = vunpack.c.l.b16 %v1163
        %v3229 = vunpack.c.l.b16 %v1164
        %v3230 = vunpack.c.l.b16 %v1165
        %v3231 = vunpack.c.l.b16 %v1166
        %v3232 = vunpack.c.l.b16 %v1167
        %v3233 = vunpack.c.l.b16 %v1168
        %v3234 = vunpack.c.l.b16 %v1169
        %v3235 = vunpack.c.l.b16 %v1170
        %v3236 = vunpack.c.l.b16 %v1171
        %v3237 = vunpack.c.l.b16 %v1172
        %v3238 = vunpack.c.l.b16 %v1173
        %v3239 = vunpack.c.l.b16 %v1174
        %v3240 = vunpack.c.l.b16 %v1175
        %v3241 = vunpack.c.l.b16 %v1176
        %v3242 = vunpack.c.l.b16 %v1177
        %v3243 = vunpack.c.l.b16 %v1178
        %v3244 = vunpack.c.l.b16 %v1179
        %v3245 = vunpack.c.l.b16 %v1180
        %v3246 = vunpack.c.l.b16 %v1181
        %v3247 = vunpack.c.l.b16 %v1182
        %v3248 = vunpack.c.l.b16 %v1183
        %v3249 = vunpack.c.l.b16 %v1184
        %v3250 = vunpack.c.l.b16 %v1185
        %v3251 = vunpack.c.l.b16 %v1186
        %v3252 = vunpack.c.l.b16 %v1187
        %v3253 = vunpack.c.l.b16 %v1188
        %v3254 = vunpack.c.l.b16 %v1189
        %v3255 = vunpack.c.l.b16 %v1190
        %v3256 = vunpack.c.l.b16 %v1191
        %v3257 = vunpack.c.l.b16 %v1192
        %v3258 = vunpack.c.l.b16 %v1193
        %v3259 = vunpack.c.l.b16 %v1194
        %v3260 = vunpack.c.l.b16 %v1195
        %v3261 = vunpack.c.l.b16 %v1196
        %v3262 = vunpack.c.l.b16 %v1197
        %v3263 = vunpack.c.l.b16 %v1198
        %v3264 = vunpack.c.l.b16 %v1199
        %v3265 = vunpack.c.l.b16 %v1200
        %v3266 = vunpack.c.l.b16 %v1201
        %v3267 = vunpack.c.l.b16 %v1202
        %v3268 = vunpack.c.l.b16 %v1203
        %v3269 = vunpack.c.l.b16 %v1204
        %v3270 = vunpack.c.l.b16 %v1205
        %v3271 = vunpack.c.l.b16 %v1206
        %v3272 = vunpack.c.l.b16 %v1207
        %v3273 = vunpack.c.l.b16 %v1208
        %v3274 = vunpack.c.l.b16 %v1209
        %v3275 = vunpack.c.l.b16 %v1210
        %v3276 = vunpack.c.l.b16 %v1211
        %v3277 = vunpack.c.l.b16 %v1212
        %v3278 = vunpack.c.l.b16 %v1213
        %v3279 = vunpack.c.l.b16 %v1214
        %v3280 = vunpack.c.l.b16 %v1215
        %v3281 = vunpack.c.l.b16 %v1216
        %v3282 = vunpack.c.l.b16 %v1217
        %v3283 = vunpack.c.l.b16 %v1218
        %v3284 = vunpack.c.l.b16 %v1219
        %v3285 = vunpack.c.l.b16 %v1220
        %v3286 = vunpack.c.l.b16 %v1221
        %v3287 = vunpack.c.l.b16 %v1222
        %v3288 = vunpack.c.l.b16 %v1223
        %v3289 = vunpack.c.l.b16 %v1224
        %v3290 = vunpack.c.l.b16 %v1225
        %v3291 = vunpack.c.l.b16 %v1226
        %v3292 = vpack.c.b16 %v3037, %v3036
        %v3293 = vpack.c.b16 %v3039, %v3038
        %v3294 = vpack.c.b16 %v3041, %v3040
        %v3295 = vpack.c.b16 %v3043, %v3042
        %v3296 = vpack.c.b16 %v3045, %v3044
        %v3297 = vpack.c.b16 %v3047, %v3046
        %v3298 = vpack.c.b16 %v3049, %v3048
        %v3299 = vpack.c.b16 %v3051, %v3050
        %v3300 = vpack.c.b16 %v3053, %v3052
        %v3301 = vpack.c.b16 %v3055, %v3054
        %v3302 = vpack.c.b16 %v3057, %v3056
        %v3303 = vpack.c.b16 %v3059, %v3058
        %v3304 = vpack.c.b16 %v3061, %v3060
        %v3305 = vpack.c.b16 %v3063, %v3062
        %v3306 = vpack.c.b16 %v3065, %v3064
        %v3307 = vpack.c.b16 %v3067, %v3066
        %v3308 = vpack.c.b16 %v3069, %v3068
        %v3309 = vpack.c.b16 %v3071, %v3070
        %v3310 = vpack.c.b16 %v3073, %v3072
        %v3311 = vpack.c.b16 %v3075, %v3074
        %v3312 = vpack.c.b16 %v3077, %v3076
        %v3313 = vpack.c.b16 %v3079, %v3078
        %v3314 = vpack.c.b16 %v3081, %v3080
        %v3315 = vpack.c.b16 %v3083, %v3082
        %v3316 = vpack.c.b16 %v3085, %v3084
        %v3317 = vpack.c.b16 %v3087, %v3086
        %v3318 = vpack.c.b16 %v3089, %v3088
        %v3319 = vpack.c.b16 %v3091, %v3090
        %v3320 = vpack.c.b16 %v3093, %v3092
        %v3321 = vpack.c.b16 %v3095, %v3094
        %v3322 = vpack.c.b16 %v3097, %v3096
        %v3323 = vpack.c.b16 %v3099, %v3098
        %v3324 = vpack.c.b16 %v3101, %v3100
        %v3325 = vpack.c.b16 %v3103, %v3102
        %v3326 = vpack.c.b16 %v3105, %v3104
        %v3327 = vpack.c.b16 %v3107, %v3106
        %v3328 = vpack.c.b16 %v3109, %v3108
        %v3329 = vpack.c.b16 %v3111, %v3110
        %v3330 = vpack.c.b16 %v3113, %v3112
        %v3331 = vpack.c.b16 %v3115, %v3114
        %v3332 = vpack.c.b16 %v3117, %v3116
        %v3333 = vpack.c.b16 %v3119, %v3118
        %v3334 = vpack.c.b16 %v3121, %v3120
        %v3335 = vpack.c.b16 %v3123, %v3122
        %v3336 = vpack.c.b16 %v3125, %v3124
        %v3337 = vpack.c.b16 %v3127, %v3126
        %v3338 = vpack.c.b16 %v3129, %v3128
        %v3339 = vpack.c.b16 %v3131, %v3130
        %v3340 = vpack.c.b16 %v3133, %v3132
        %v3341 = vpack.c.b16 %v3135, %v3134
        %v3342 = vpack.c.b16 %v3137, %v3136
        %v3343 = vpack.c.b16 %v3139, %v3138
        %v3344 = vpack.c.b16 %v3141, %v3140
        %v3345 = vpack.c.b16 %v3143, %v3142
        %v3346 = vpack.c.b16 %v3145, %v3144
        %v3347 = vpack.c.b16 %v3147, %v3146
        %v3348 = vpack.c.b16 %v3149, %v3148
        %v3349 = vpack.c.b16 %v3151, %v3150
        %v3350 = vpack.c.b16 %v3153, %v3152
        %v3351 = vpack.c.b16 %v3155, %v3154
        %v3352 = vpack.c.b16 %v3157, %v3156
        %v3353 = vpack.c.b16 %v3159, %v3158
        %v3354 = vpack.c.b16 %v3161, %v3160
        %v3355 = vpack.c.b16 %v3163, %v3162
        %v3356 = vpack.c.b16 %v3165, %v3164
        %v3357 = vpack.c.b16 %v3167, %v3166
        %v3358 = vpack.c.b16 %v3169, %v3168
        %v3359 = vpack.c.b16 %v3171, %v3170
        %v3360 = vpack.c.b16 %v3173, %v3172
        %v3361 = vpack.c.b16 %v3175, %v3174
        %v3362 = vpack.c.b16 %v3177, %v3176
        %v3363 = vpack.c.b16 %v3179, %v3178
        %v3364 = vpack.c.b16 %v3181, %v3180
        %v3365 = vpack.c.b16 %v3183, %v3182
        %v3366 = vpack.c.b16 %v3185, %v3184
        %v3367 = vpack.c.b16 %v3187, %v3186
        %v3368 = vpack.c.b16 %v3189, %v3188
        %v3369 = vpack.c.b16 %v3191, %v3190
        %v3370 = vpack.c.b16 %v3193, %v3192
        %v3371 = vpack.c.b16 %v3195, %v3194
        %v3372 = vpack.c.b16 %v3197, %v3196
        %v3373 = vpack.c.b16 %v3199, %v3198
        %v3374 = vpack.c.b16 %v3201, %v3200
        %v3375 = vpack.c.b16 %v3203, %v3202
        %v3376 = vpack.c.b16 %v3205, %v3204
        %v3377 = vpack.c.b16 %v3207, %v3206
        %v3378 = vpack.c.b16 %v3209, %v3208
        %v3379 = vpack.c.b16 %v3211, %v3210
        %v3380 = vpack.c.b16 %v3213, %v3212
        %v3381 = vpack.c.b16 %v3215, %v3214
        %v3382 = vpack.c.b16 %v3217, %v3216
        %v3383 = vpack.c.b16 %v3219, %v3218
        %v3384 = vpack.c.b16 %v3221, %v3220
        %v3385 = vpack.c.b16 %v3223, %v3222
        %v3386 = vpack.c.b16 %v3225, %v3224
        %v3387 = vpack.c.b16 %v3227, %v3226
        %v3388 = vpack.c.b16 %v3229, %v3228
        %v3389 = vpack.c.b16 %v3231, %v3230
        %v3390 = vpack.c.b16 %v3233, %v3232
        %v3391 = vpack.c.b16 %v3235, %v3234
        %v3392 = vpack.c.b16 %v3237, %v3236
        %v3393 = vpack.c.b16 %v3239, %v3238
        %v3394 = vpack.c.b16 %v3241, %v3240
        %v3395 = vpack.c.b16 %v3243, %v3242
        %v3396 = vpack.c.b16 %v3245, %v3244
        %v3397 = vpack.c.b16 %v3247, %v3246
        %v3398 = vpack.c.b16 %v3249, %v3248
        %v3399 = vpack.c.b16 %v3251, %v3250
        %v3400 = vpack.c.b16 %v3253, %v3252
        %v3401 = vpack.c.b16 %v3255, %v3254
        %v3402 = vpack.c.b16 %v3257, %v3256
        %v3403 = vpack.c.b16 %v3259, %v3258
        %v3404 = vpack.c.b16 %v3261, %v3260
        %v3405 = vpack.c.b16 %v3263, %v3262
        %v3406 = vpack.c.b16 %v3265, %v3264
        %v3407 = vpack.c.b16 %v3267, %v3266
        %v3408 = vpack.c.b16 %v3269, %v3268
        %v3409 = vpack.c.b16 %v3271, %v3270
        %v3410 = vpack.c.b16 %v3273, %v3272
        %v3411 = vpack.c.b16 %v3275, %v3274
        %v3412 = vpack.c.b16 %v3277, %v3276
        %v3413 = vpack.c.b16 %v3279, %v3278
        %v3414 = vpack.c.b16 %v3281, %v3280
        %v3415 = vpack.c.b16 %v3283, %v3282
        %v3416 = vpack.c.b16 %v3285, %v3284
        %v3417 = vpack.c.b16 %v3287, %v3286
        %v3418 = vpack.c.b16 %v3289, %v3288
        %v3419 = vpack.c.b16 %v3291, %v3290
        %3548 = vmatpush.bf16.msra.mxu0 %v3299
        %3549 = vmatpush.bf16.msra.mxu0 %v3298
        %3550 = vmatpush.bf16.msra.mxu0 %v3297
        %3551 = vmatpush.bf16.msra.mxu0 %v3296
        %3552 = vmatpush.bf16.msra.mxu0 %v3295
        %3553 = vmatpush.bf16.msra.mxu0 %v3294
        %3554 = vmatpush.bf16.msra.mxu0 %v3293
        %3555 = vmatpush.bf16.msra.mxu0 %v3292
        %3556 = vmatmul.bf16.gmra.mxu0 %v2651
        %v3557 = vpop.f32.mrf.mxu0
        %v3558 = vadd.f32 %v2779, %v3557
        %v3559 = vpop.f32.mrf.mxu0
        %v3560 = vadd.f32 %v2779, %v3559
        %3561 = vmatmul.bf16.gmra.mxu0 %v2667
        %v3562 = vpop.f32.mrf.mxu0
        %v3563 = vadd.f32 %v2779, %v3562
        %v3564 = vpop.f32.mrf.mxu0
        %v3565 = vadd.f32 %v2779, %v3564
        %3566 = vmatmul.bf16.gmra.mxu0 %v2683
        %v3567 = vpop.f32.mrf.mxu0
        %v3568 = vadd.f32 %v2779, %v3567
        %v3569 = vpop.f32.mrf.mxu0
        %v3570 = vadd.f32 %v2779, %v3569
        %3571 = vmatmul.bf16.gmra.mxu0 %v2699
        %v3572 = vpop.f32.mrf.mxu0
        %v3573 = vadd.f32 %v2779, %v3572
        %v3574 = vpop.f32.mrf.mxu0
        %v3575 = vadd.f32 %v2779, %v3574
        %3576 = vmatmul.bf16.gmra.mxu0 %v2715
        %v3577 = vpop.f32.mrf.mxu0
        %v3578 = vadd.f32 %v2779, %v3577
        %v3579 = vpop.f32.mrf.mxu0
        %v3580 = vadd.f32 %v2779, %v3579
        %3581 = vmatmul.bf16.gmra.mxu0 %v2731
        %v3582 = vpop.f32.mrf.mxu0
        %v3583 = vadd.f32 %v2779, %v3582
        %v3584 = vpop.f32.mrf.mxu0
        %v3585 = vadd.f32 %v2779, %v3584
        %3586 = vmatmul.bf16.gmra.mxu0 %v2747
        %v3587 = vpop.f32.mrf.mxu0
        %v3588 = vadd.f32 %v2779, %v3587
        %v3589 = vpop.f32.mrf.mxu0
        %v3590 = vadd.f32 %v2779, %v3589
        %3591 = vmatmul.bf16.gmra.mxu0 %v2763
        %v3592 = vpop.f32.mrf.mxu0
        %v3593 = vadd.f32 %v2779, %v3592
        %v3594 = vpop.f32.mrf.mxu0
        %v3595 = vadd.f32 %v2779, %v3594
        %3596 = vdwg.mxu0
        %3597 = vmatpush.bf16.msra.mxu0 %v3307
        %3598 = vmatpush.bf16.msra.mxu0 %v3306
        %3599 = vmatpush.bf16.msra.mxu0 %v3305
        %3600 = vmatpush.bf16.msra.mxu0 %v3304
        %3601 = vmatpush.bf16.msra.mxu0 %v3303
        %3602 = vmatpush.bf16.msra.mxu0 %v3302
        %3603 = vmatpush.bf16.msra.mxu0 %v3301
        %3604 = vmatpush.bf16.msra.mxu0 %v3300
        %3605 = vmatmul.bf16.gmra.mxu0 %v2652
        %v3606 = vpop.f32.mrf.mxu0
        %v3607 = vadd.f32 %v3558, %v3606
        %v3608 = vpop.f32.mrf.mxu0
        %v3609 = vadd.f32 %v3560, %v3608
        %3610 = vmatmul.bf16.gmra.mxu0 %v2668
        %v3611 = vpop.f32.mrf.mxu0
        %v3612 = vadd.f32 %v3563, %v3611
        %v3613 = vpop.f32.mrf.mxu0
        %v3614 = vadd.f32 %v3565, %v3613
        %3615 = vmatmul.bf16.gmra.mxu0 %v2684
        %v3616 = vpop.f32.mrf.mxu0
        %v3617 = vadd.f32 %v3568, %v3616
        %v3618 = vpop.f32.mrf.mxu0
        %v3619 = vadd.f32 %v3570, %v3618
        %3620 = vmatmul.bf16.gmra.mxu0 %v2700
        %v3621 = vpop.f32.mrf.mxu0
        %v3622 = vadd.f32 %v3573, %v3621
        %v3623 = vpop.f32.mrf.mxu0
        %v3624 = vadd.f32 %v3575, %v3623
        %3625 = vmatmul.bf16.gmra.mxu0 %v2716
        %v3626 = vpop.f32.mrf.mxu0
        %v3627 = vadd.f32 %v3578, %v3626
        %v3628 = vpop.f32.mrf.mxu0
        %v3629 = vadd.f32 %v3580, %v3628
        %3630 = vmatmul.bf16.gmra.mxu0 %v2732
        %v3631 = vpop.f32.mrf.mxu0
        %v3632 = vadd.f32 %v3583, %v3631
        %v3633 = vpop.f32.mrf.mxu0
        %v3634 = vadd.f32 %v3585, %v3633
        %3635 = vmatmul.bf16.gmra.mxu0 %v2748
        %v3636 = vpop.f32.mrf.mxu0
        %v3637 = vadd.f32 %v3588, %v3636
        %v3638 = vpop.f32.mrf.mxu0
        %v3639 = vadd.f32 %v3590, %v3638
        %3640 = vmatmul.bf16.gmra.mxu0 %v2764
        %v3641 = vpop.f32.mrf.mxu0
        %v3642 = vadd.f32 %v3593, %v3641
        %v3643 = vpop.f32.mrf.mxu0
        %v3644 = vadd.f32 %v3595, %v3643
        %3645 = vdwg.mxu0
        %3646 = vmatpush.bf16.msra.mxu0 %v3315
        %3647 = vmatpush.bf16.msra.mxu0 %v3314
        %3648 = vmatpush.bf16.msra.mxu0 %v3313
        %3649 = vmatpush.bf16.msra.mxu0 %v3312
        %3650 = vmatpush.bf16.msra.mxu0 %v3311
        %3651 = vmatpush.bf16.msra.mxu0 %v3310
        %3652 = vmatpush.bf16.msra.mxu0 %v3309
        %3653 = vmatpush.bf16.msra.mxu0 %v3308
        %3654 = vmatmul.bf16.gmra.mxu0 %v2653
        %v3655 = vpop.f32.mrf.mxu0
        %v3656 = vadd.f32 %v3607, %v3655
        %v3657 = vpop.f32.mrf.mxu0
        %v3658 = vadd.f32 %v3609, %v3657
        %3659 = vmatmul.bf16.gmra.mxu0 %v2669
        %v3660 = vpop.f32.mrf.mxu0
        %v3661 = vadd.f32 %v3612, %v3660
        %v3662 = vpop.f32.mrf.mxu0
        %v3663 = vadd.f32 %v3614, %v3662
        %3664 = vmatmul.bf16.gmra.mxu0 %v2685
        %v3665 = vpop.f32.mrf.mxu0
        %v3666 = vadd.f32 %v3617, %v3665
        %v3667 = vpop.f32.mrf.mxu0
        %v3668 = vadd.f32 %v3619, %v3667
        %3669 = vmatmul.bf16.gmra.mxu0 %v2701
        %v3670 = vpop.f32.mrf.mxu0
        %v3671 = vadd.f32 %v3622, %v3670
        %v3672 = vpop.f32.mrf.mxu0
        %v3673 = vadd.f32 %v3624, %v3672
        %3674 = vmatmul.bf16.gmra.mxu0 %v2717
        %v3675 = vpop.f32.mrf.mxu0
        %v3676 = vadd.f32 %v3627, %v3675
        %v3677 = vpop.f32.mrf.mxu0
        %v3678 = vadd.f32 %v3629, %v3677
        %3679 = vmatmul.bf16.gmra.mxu0 %v2733
        %v3680 = vpop.f32.mrf.mxu0
        %v3681 = vadd.f32 %v3632, %v3680
        %v3682 = vpop.f32.mrf.mxu0
        %v3683 = vadd.f32 %v3634, %v3682
        %3684 = vmatmul.bf16.gmra.mxu0 %v2749
        %v3685 = vpop.f32.mrf.mxu0
        %v3686 = vadd.f32 %v3637, %v3685
        %v3687 = vpop.f32.mrf.mxu0
        %v3688 = vadd.f32 %v3639, %v3687
        %3689 = vmatmul.bf16.gmra.mxu0 %v2765
        %v3690 = vpop.f32.mrf.mxu0
        %v3691 = vadd.f32 %v3642, %v3690
        %v3692 = vpop.f32.mrf.mxu0
        %v3693 = vadd.f32 %v3644, %v3692
        %3694 = vdwg.mxu0
        %3695 = vmatpush.bf16.msra.mxu0 %v3323
        %3696 = vmatpush.bf16.msra.mxu0 %v3322
        %3697 = vmatpush.bf16.msra.mxu0 %v3321
        %3698 = vmatpush.bf16.msra.mxu0 %v3320
        %3699 = vmatpush.bf16.msra.mxu0 %v3319
        %3700 = vmatpush.bf16.msra.mxu0 %v3318
        %3701 = vmatpush.bf16.msra.mxu0 %v3317
        %3702 = vmatpush.bf16.msra.mxu0 %v3316
        %3703 = vmatmul.bf16.gmra.mxu0 %v2654
        %v3704 = vpop.f32.mrf.mxu0
        %v3705 = vadd.f32 %v3656, %v3704
        %v3706 = vpop.f32.mrf.mxu0
        %v3707 = vadd.f32 %v3658, %v3706
        %3708 = vmatmul.bf16.gmra.mxu0 %v2670
        %v3709 = vpop.f32.mrf.mxu0
        %v3710 = vadd.f32 %v3661, %v3709
        %v3711 = vpop.f32.mrf.mxu0
        %v3712 = vadd.f32 %v3663, %v3711
        %3713 = vmatmul.bf16.gmra.mxu0 %v2686
        %v3714 = vpop.f32.mrf.mxu0
        %v3715 = vadd.f32 %v3666, %v3714
        %v3716 = vpop.f32.mrf.mxu0
        %v3717 = vadd.f32 %v3668, %v3716
        %3718 = vmatmul.bf16.gmra.mxu0 %v2702
        %v3719 = vpop.f32.mrf.mxu0
        %v3720 = vadd.f32 %v3671, %v3719
        %v3721 = vpop.f32.mrf.mxu0
        %v3722 = vadd.f32 %v3673, %v3721
        %3723 = vmatmul.bf16.gmra.mxu0 %v2718
        %v3724 = vpop.f32.mrf.mxu0
        %v3725 = vadd.f32 %v3676, %v3724
        %v3726 = vpop.f32.mrf.mxu0
        %v3727 = vadd.f32 %v3678, %v3726
        %3728 = vmatmul.bf16.gmra.mxu0 %v2734
        %v3729 = vpop.f32.mrf.mxu0
        %v3730 = vadd.f32 %v3681, %v3729
        %v3731 = vpop.f32.mrf.mxu0
        %v3732 = vadd.f32 %v3683, %v3731
        %3733 = vmatmul.bf16.gmra.mxu0 %v2750
        %v3734 = vpop.f32.mrf.mxu0
        %v3735 = vadd.f32 %v3686, %v3734
        %v3736 = vpop.f32.mrf.mxu0
        %v3737 = vadd.f32 %v3688, %v3736
        %3738 = vmatmul.bf16.gmra.mxu0 %v2766
        %v3739 = vpop.f32.mrf.mxu0
        %v3740 = vadd.f32 %v3691, %v3739
        %v3741 = vpop.f32.mrf.mxu0
        %v3742 = vadd.f32 %v3693, %v3741
        %3743 = vdwg.mxu0
        %3744 = vmatpush.bf16.msra.mxu0 %v3331
        %3745 = vmatpush.bf16.msra.mxu0 %v3330
        %3746 = vmatpush.bf16.msra.mxu0 %v3329
        %3747 = vmatpush.bf16.msra.mxu0 %v3328
        %3748 = vmatpush.bf16.msra.mxu0 %v3327
        %3749 = vmatpush.bf16.msra.mxu0 %v3326
        %3750 = vmatpush.bf16.msra.mxu0 %v3325
        %3751 = vmatpush.bf16.msra.mxu0 %v3324
        %3752 = vmatmul.bf16.gmra.mxu0 %v2655
        %v3753 = vpop.f32.mrf.mxu0
        %v3754 = vadd.f32 %v3705, %v3753
        %v3755 = vpop.f32.mrf.mxu0
        %v3756 = vadd.f32 %v3707, %v3755
        %3757 = vmatmul.bf16.gmra.mxu0 %v2671
        %v3758 = vpop.f32.mrf.mxu0
        %v3759 = vadd.f32 %v3710, %v3758
        %v3760 = vpop.f32.mrf.mxu0
        %v3761 = vadd.f32 %v3712, %v3760
        %3762 = vmatmul.bf16.gmra.mxu0 %v2687
        %v3763 = vpop.f32.mrf.mxu0
        %v3764 = vadd.f32 %v3715, %v3763
        %v3765 = vpop.f32.mrf.mxu0
        %v3766 = vadd.f32 %v3717, %v3765
        %3767 = vmatmul.bf16.gmra.mxu0 %v2703
        %v3768 = vpop.f32.mrf.mxu0
        %v3769 = vadd.f32 %v3720, %v3768
        %v3770 = vpop.f32.mrf.mxu0
        %v3771 = vadd.f32 %v3722, %v3770
        %3772 = vmatmul.bf16.gmra.mxu0 %v2719
        %v3773 = vpop.f32.mrf.mxu0
        %v3774 = vadd.f32 %v3725, %v3773
        %v3775 = vpop.f32.mrf.mxu0
        %v3776 = vadd.f32 %v3727, %v3775
        %3777 = vmatmul.bf16.gmra.mxu0 %v2735
        %v3778 = vpop.f32.mrf.mxu0
        %v3779 = vadd.f32 %v3730, %v3778
        %v3780 = vpop.f32.mrf.mxu0
        %v3781 = vadd.f32 %v3732, %v3780
        %3782 = vmatmul.bf16.gmra.mxu0 %v2751
        %v3783 = vpop.f32.mrf.mxu0
        %v3784 = vadd.f32 %v3735, %v3783
        %v3785 = vpop.f32.mrf.mxu0
        %v3786 = vadd.f32 %v3737, %v3785
        %3787 = vmatmul.bf16.gmra.mxu0 %v2767
        %v3788 = vpop.f32.mrf.mxu0
        %v3789 = vadd.f32 %v3740, %v3788
        %v3790 = vpop.f32.mrf.mxu0
        %v3791 = vadd.f32 %v3742, %v3790
        %3792 = vdwg.mxu0
        %3793 = vmatpush.bf16.msra.mxu0 %v3339
        %3794 = vmatpush.bf16.msra.mxu0 %v3338
        %3795 = vmatpush.bf16.msra.mxu0 %v3337
        %3796 = vmatpush.bf16.msra.mxu0 %v3336
        %3797 = vmatpush.bf16.msra.mxu0 %v3335
        %3798 = vmatpush.bf16.msra.mxu0 %v3334
        %3799 = vmatpush.bf16.msra.mxu0 %v3333
        %3800 = vmatpush.bf16.msra.mxu0 %v3332
        %3801 = vmatmul.bf16.gmra.mxu0 %v2656
        %v3802 = vpop.f32.mrf.mxu0
        %v3803 = vadd.f32 %v3754, %v3802
        %v3804 = vpop.f32.mrf.mxu0
        %v3805 = vadd.f32 %v3756, %v3804
        %3806 = vmatmul.bf16.gmra.mxu0 %v2672
        %v3807 = vpop.f32.mrf.mxu0
        %v3808 = vadd.f32 %v3759, %v3807
        %v3809 = vpop.f32.mrf.mxu0
        %v3810 = vadd.f32 %v3761, %v3809
        %3811 = vmatmul.bf16.gmra.mxu0 %v2688
        %v3812 = vpop.f32.mrf.mxu0
        %v3813 = vadd.f32 %v3764, %v3812
        %v3814 = vpop.f32.mrf.mxu0
        %v3815 = vadd.f32 %v3766, %v3814
        %3816 = vmatmul.bf16.gmra.mxu0 %v2704
        %v3817 = vpop.f32.mrf.mxu0
        %v3818 = vadd.f32 %v3769, %v3817
        %v3819 = vpop.f32.mrf.mxu0
        %v3820 = vadd.f32 %v3771, %v3819
        %3821 = vmatmul.bf16.gmra.mxu0 %v2720
        %v3822 = vpop.f32.mrf.mxu0
        %v3823 = vadd.f32 %v3774, %v3822
        %v3824 = vpop.f32.mrf.mxu0
        %v3825 = vadd.f32 %v3776, %v3824
        %3826 = vmatmul.bf16.gmra.mxu0 %v2736
        %v3827 = vpop.f32.mrf.mxu0
        %v3828 = vadd.f32 %v3779, %v3827
        %v3829 = vpop.f32.mrf.mxu0
        %v3830 = vadd.f32 %v3781, %v3829
        %3831 = vmatmul.bf16.gmra.mxu0 %v2752
        %v3832 = vpop.f32.mrf.mxu0
        %v3833 = vadd.f32 %v3784, %v3832
        %v3834 = vpop.f32.mrf.mxu0
        %v3835 = vadd.f32 %v3786, %v3834
        %3836 = vmatmul.bf16.gmra.mxu0 %v2768
        %v3837 = vpop.f32.mrf.mxu0
        %v3838 = vadd.f32 %v3789, %v3837
        %v3839 = vpop.f32.mrf.mxu0
        %v3840 = vadd.f32 %v3791, %v3839
        %3841 = vdwg.mxu0
        %3842 = vmatpush.bf16.msra.mxu0 %v3347
        %3843 = vmatpush.bf16.msra.mxu0 %v3346
        %3844 = vmatpush.bf16.msra.mxu0 %v3345
        %3845 = vmatpush.bf16.msra.mxu0 %v3344
        %3846 = vmatpush.bf16.msra.mxu0 %v3343
        %3847 = vmatpush.bf16.msra.mxu0 %v3342
        %3848 = vmatpush.bf16.msra.mxu0 %v3341
        %3849 = vmatpush.bf16.msra.mxu0 %v3340
        %3850 = vmatmul.bf16.gmra.mxu0 %v2657
        %v3851 = vpop.f32.mrf.mxu0
        %v3852 = vadd.f32 %v3803, %v3851
        %v3853 = vpop.f32.mrf.mxu0
        %v3854 = vadd.f32 %v3805, %v3853
        %3855 = vmatmul.bf16.gmra.mxu0 %v2673
        %v3856 = vpop.f32.mrf.mxu0
        %v3857 = vadd.f32 %v3808, %v3856
        %v3858 = vpop.f32.mrf.mxu0
        %v3859 = vadd.f32 %v3810, %v3858
        %3860 = vmatmul.bf16.gmra.mxu0 %v2689
        %v3861 = vpop.f32.mrf.mxu0
        %v3862 = vadd.f32 %v3813, %v3861
        %v3863 = vpop.f32.mrf.mxu0
        %v3864 = vadd.f32 %v3815, %v3863
        %3865 = vmatmul.bf16.gmra.mxu0 %v2705
        %v3866 = vpop.f32.mrf.mxu0
        %v3867 = vadd.f32 %v3818, %v3866
        %v3868 = vpop.f32.mrf.mxu0
        %v3869 = vadd.f32 %v3820, %v3868
        %3870 = vmatmul.bf16.gmra.mxu0 %v2721
        %v3871 = vpop.f32.mrf.mxu0
        %v3872 = vadd.f32 %v3823, %v3871
        %v3873 = vpop.f32.mrf.mxu0
        %v3874 = vadd.f32 %v3825, %v3873
        %3875 = vmatmul.bf16.gmra.mxu0 %v2737
        %v3876 = vpop.f32.mrf.mxu0
        %v3877 = vadd.f32 %v3828, %v3876
        %v3878 = vpop.f32.mrf.mxu0
        %v3879 = vadd.f32 %v3830, %v3878
        %3880 = vmatmul.bf16.gmra.mxu0 %v2753
        %v3881 = vpop.f32.mrf.mxu0
        %v3882 = vadd.f32 %v3833, %v3881
        %v3883 = vpop.f32.mrf.mxu0
        %v3884 = vadd.f32 %v3835, %v3883
        %3885 = vmatmul.bf16.gmra.mxu0 %v2769
        %v3886 = vpop.f32.mrf.mxu0
        %v3887 = vadd.f32 %v3838, %v3886
        %v3888 = vpop.f32.mrf.mxu0
        %v3889 = vadd.f32 %v3840, %v3888
        %3890 = vdwg.mxu0
        %3891 = vmatpush.bf16.msra.mxu0 %v3355
        %3892 = vmatpush.bf16.msra.mxu0 %v3354
        %3893 = vmatpush.bf16.msra.mxu0 %v3353
        %3894 = vmatpush.bf16.msra.mxu0 %v3352
        %3895 = vmatpush.bf16.msra.mxu0 %v3351
        %3896 = vmatpush.bf16.msra.mxu0 %v3350
        %3897 = vmatpush.bf16.msra.mxu0 %v3349
        %3898 = vmatpush.bf16.msra.mxu0 %v3348
        %3899 = vmatmul.bf16.gmra.mxu0 %v2658
        %v3900 = vpop.f32.mrf.mxu0
        %v3901 = vadd.f32 %v3852, %v3900
        %v3902 = vpop.f32.mrf.mxu0
        %v3903 = vadd.f32 %v3854, %v3902
        %3904 = vmatmul.bf16.gmra.mxu0 %v2674
        %v3905 = vpop.f32.mrf.mxu0
        %v3906 = vadd.f32 %v3857, %v3905
        %v3907 = vpop.f32.mrf.mxu0
        %v3908 = vadd.f32 %v3859, %v3907
        %3909 = vmatmul.bf16.gmra.mxu0 %v2690
        %v3910 = vpop.f32.mrf.mxu0
        %v3911 = vadd.f32 %v3862, %v3910
        %v3912 = vpop.f32.mrf.mxu0
        %v3913 = vadd.f32 %v3864, %v3912
        %3914 = vmatmul.bf16.gmra.mxu0 %v2706
        %v3915 = vpop.f32.mrf.mxu0
        %v3916 = vadd.f32 %v3867, %v3915
        %v3917 = vpop.f32.mrf.mxu0
        %v3918 = vadd.f32 %v3869, %v3917
        %3919 = vmatmul.bf16.gmra.mxu0 %v2722
        %v3920 = vpop.f32.mrf.mxu0
        %v3921 = vadd.f32 %v3872, %v3920
        %v3922 = vpop.f32.mrf.mxu0
        %v3923 = vadd.f32 %v3874, %v3922
        %3924 = vmatmul.bf16.gmra.mxu0 %v2738
        %v3925 = vpop.f32.mrf.mxu0
        %v3926 = vadd.f32 %v3877, %v3925
        %v3927 = vpop.f32.mrf.mxu0
        %v3928 = vadd.f32 %v3879, %v3927
        %3929 = vmatmul.bf16.gmra.mxu0 %v2754
        %v3930 = vpop.f32.mrf.mxu0
        %v3931 = vadd.f32 %v3882, %v3930
        %v3932 = vpop.f32.mrf.mxu0
        %v3933 = vadd.f32 %v3884, %v3932
        %3934 = vmatmul.bf16.gmra.mxu0 %v2770
        %v3935 = vpop.f32.mrf.mxu0
        %v3936 = vadd.f32 %v3887, %v3935
        %v3937 = vpop.f32.mrf.mxu0
        %v3938 = vadd.f32 %v3889, %v3937
        %3939 = vdwg.mxu0
        %3940 = vmatpush.bf16.msra.mxu0 %v3363
        %3941 = vmatpush.bf16.msra.mxu0 %v3362
        %3942 = vmatpush.bf16.msra.mxu0 %v3361
        %3943 = vmatpush.bf16.msra.mxu0 %v3360
        %3944 = vmatpush.bf16.msra.mxu0 %v3359
        %3945 = vmatpush.bf16.msra.mxu0 %v3358
        %3946 = vmatpush.bf16.msra.mxu0 %v3357
        %3947 = vmatpush.bf16.msra.mxu0 %v3356
        %3948 = vmatmul.bf16.gmra.mxu0 %v2659
        %v3949 = vpop.f32.mrf.mxu0
        %v3950 = vadd.f32 %v3901, %v3949
        %v3951 = vpop.f32.mrf.mxu0
        %v3952 = vadd.f32 %v3903, %v3951
        %3953 = vmatmul.bf16.gmra.mxu0 %v2675
        %v3954 = vpop.f32.mrf.mxu0
        %v3955 = vadd.f32 %v3906, %v3954
        %v3956 = vpop.f32.mrf.mxu0
        %v3957 = vadd.f32 %v3908, %v3956
        %3958 = vmatmul.bf16.gmra.mxu0 %v2691
        %v3959 = vpop.f32.mrf.mxu0
        %v3960 = vadd.f32 %v3911, %v3959
        %v3961 = vpop.f32.mrf.mxu0
        %v3962 = vadd.f32 %v3913, %v3961
        %3963 = vmatmul.bf16.gmra.mxu0 %v2707
        %v3964 = vpop.f32.mrf.mxu0
        %v3965 = vadd.f32 %v3916, %v3964
        %v3966 = vpop.f32.mrf.mxu0
        %v3967 = vadd.f32 %v3918, %v3966
        %3968 = vmatmul.bf16.gmra.mxu0 %v2723
        %v3969 = vpop.f32.mrf.mxu0
        %v3970 = vadd.f32 %v3921, %v3969
        %v3971 = vpop.f32.mrf.mxu0
        %v3972 = vadd.f32 %v3923, %v3971
        %3973 = vmatmul.bf16.gmra.mxu0 %v2739
        %v3974 = vpop.f32.mrf.mxu0
        %v3975 = vadd.f32 %v3926, %v3974
        %v3976 = vpop.f32.mrf.mxu0
        %v3977 = vadd.f32 %v3928, %v3976
        %3978 = vmatmul.bf16.gmra.mxu0 %v2755
        %v3979 = vpop.f32.mrf.mxu0
        %v3980 = vadd.f32 %v3931, %v3979
        %v3981 = vpop.f32.mrf.mxu0
        %v3982 = vadd.f32 %v3933, %v3981
        %3983 = vmatmul.bf16.gmra.mxu0 %v2771
        %v3984 = vpop.f32.mrf.mxu0
        %v3985 = vadd.f32 %v3936, %v3984
        %v3986 = vpop.f32.mrf.mxu0
        %v3987 = vadd.f32 %v3938, %v3986
        %3988 = vdwg.mxu0
        %3989 = vmatpush.bf16.msra.mxu0 %v3371
        %3990 = vmatpush.bf16.msra.mxu0 %v3370
        %3991 = vmatpush.bf16.msra.mxu0 %v3369
        %3992 = vmatpush.bf16.msra.mxu0 %v3368
        %3993 = vmatpush.bf16.msra.mxu0 %v3367
        %3994 = vmatpush.bf16.msra.mxu0 %v3366
        %3995 = vmatpush.bf16.msra.mxu0 %v3365
        %3996 = vmatpush.bf16.msra.mxu0 %v3364
        %3997 = vmatmul.bf16.gmra.mxu0 %v2660
        %v3998 = vpop.f32.mrf.mxu0
        %v3999 = vadd.f32 %v3950, %v3998
        %v4000 = vpop.f32.mrf.mxu0
        %v4001 = vadd.f32 %v3952, %v4000
        %4002 = vmatmul.bf16.gmra.mxu0 %v2676
        %v4003 = vpop.f32.mrf.mxu0
        %v4004 = vadd.f32 %v3955, %v4003
        %v4005 = vpop.f32.mrf.mxu0
        %v4006 = vadd.f32 %v3957, %v4005
        %4007 = vmatmul.bf16.gmra.mxu0 %v2692
        %v4008 = vpop.f32.mrf.mxu0
        %v4009 = vadd.f32 %v3960, %v4008
        %v4010 = vpop.f32.mrf.mxu0
        %v4011 = vadd.f32 %v3962, %v4010
        %4012 = vmatmul.bf16.gmra.mxu0 %v2708
        %v4013 = vpop.f32.mrf.mxu0
        %v4014 = vadd.f32 %v3965, %v4013
        %v4015 = vpop.f32.mrf.mxu0
        %v4016 = vadd.f32 %v3967, %v4015
        %4017 = vmatmul.bf16.gmra.mxu0 %v2724
        %v4018 = vpop.f32.mrf.mxu0
        %v4019 = vadd.f32 %v3970, %v4018
        %v4020 = vpop.f32.mrf.mxu0
        %v4021 = vadd.f32 %v3972, %v4020
        %4022 = vmatmul.bf16.gmra.mxu0 %v2740
        %v4023 = vpop.f32.mrf.mxu0
        %v4024 = vadd.f32 %v3975, %v4023
        %v4025 = vpop.f32.mrf.mxu0
        %v4026 = vadd.f32 %v3977, %v4025
        %4027 = vmatmul.bf16.gmra.mxu0 %v2756
        %v4028 = vpop.f32.mrf.mxu0
        %v4029 = vadd.f32 %v3980, %v4028
        %v4030 = vpop.f32.mrf.mxu0
        %v4031 = vadd.f32 %v3982, %v4030
        %4032 = vmatmul.bf16.gmra.mxu0 %v2772
        %v4033 = vpop.f32.mrf.mxu0
        %v4034 = vadd.f32 %v3985, %v4033
        %v4035 = vpop.f32.mrf.mxu0
        %v4036 = vadd.f32 %v3987, %v4035
        %4037 = vdwg.mxu0
        %4038 = vmatpush.bf16.msra.mxu0 %v3379
        %4039 = vmatpush.bf16.msra.mxu0 %v3378
        %4040 = vmatpush.bf16.msra.mxu0 %v3377
        %4041 = vmatpush.bf16.msra.mxu0 %v3376
        %4042 = vmatpush.bf16.msra.mxu0 %v3375
        %4043 = vmatpush.bf16.msra.mxu0 %v3374
        %4044 = vmatpush.bf16.msra.mxu0 %v3373
        %4045 = vmatpush.bf16.msra.mxu0 %v3372
        %4046 = vmatmul.bf16.gmra.mxu0 %v2661
        %v4047 = vpop.f32.mrf.mxu0
        %v4048 = vadd.f32 %v3999, %v4047
        %v4049 = vpop.f32.mrf.mxu0
        %v4050 = vadd.f32 %v4001, %v4049
        %4051 = vmatmul.bf16.gmra.mxu0 %v2677
        %v4052 = vpop.f32.mrf.mxu0
        %v4053 = vadd.f32 %v4004, %v4052
        %v4054 = vpop.f32.mrf.mxu0
        %v4055 = vadd.f32 %v4006, %v4054
        %4056 = vmatmul.bf16.gmra.mxu0 %v2693
        %v4057 = vpop.f32.mrf.mxu0
        %v4058 = vadd.f32 %v4009, %v4057
        %v4059 = vpop.f32.mrf.mxu0
        %v4060 = vadd.f32 %v4011, %v4059
        %4061 = vmatmul.bf16.gmra.mxu0 %v2709
        %v4062 = vpop.f32.mrf.mxu0
        %v4063 = vadd.f32 %v4014, %v4062
        %v4064 = vpop.f32.mrf.mxu0
        %v4065 = vadd.f32 %v4016, %v4064
        %4066 = vmatmul.bf16.gmra.mxu0 %v2725
        %v4067 = vpop.f32.mrf.mxu0
        %v4068 = vadd.f32 %v4019, %v4067
        %v4069 = vpop.f32.mrf.mxu0
        %v4070 = vadd.f32 %v4021, %v4069
        %4071 = vmatmul.bf16.gmra.mxu0 %v2741
        %v4072 = vpop.f32.mrf.mxu0
        %v4073 = vadd.f32 %v4024, %v4072
        %v4074 = vpop.f32.mrf.mxu0
        %v4075 = vadd.f32 %v4026, %v4074
        %4076 = vmatmul.bf16.gmra.mxu0 %v2757
        %v4077 = vpop.f32.mrf.mxu0
        %v4078 = vadd.f32 %v4029, %v4077
        %v4079 = vpop.f32.mrf.mxu0
        %v4080 = vadd.f32 %v4031, %v4079
        %4081 = vmatmul.bf16.gmra.mxu0 %v2773
        %v4082 = vpop.f32.mrf.mxu0
        %v4083 = vadd.f32 %v4034, %v4082
        %v4084 = vpop.f32.mrf.mxu0
        %v4085 = vadd.f32 %v4036, %v4084
        %4086 = vdwg.mxu0
        %4087 = vmatpush.bf16.msra.mxu0 %v3387
        %4088 = vmatpush.bf16.msra.mxu0 %v3386
        %4089 = vmatpush.bf16.msra.mxu0 %v3385
        %4090 = vmatpush.bf16.msra.mxu0 %v3384
        %4091 = vmatpush.bf16.msra.mxu0 %v3383
        %4092 = vmatpush.bf16.msra.mxu0 %v3382
        %4093 = vmatpush.bf16.msra.mxu0 %v3381
        %4094 = vmatpush.bf16.msra.mxu0 %v3380
        %4095 = vmatmul.bf16.gmra.mxu0 %v2662
        %v4096 = vpop.f32.mrf.mxu0
        %v4097 = vadd.f32 %v4048, %v4096
        %v4098 = vpop.f32.mrf.mxu0
        %v4099 = vadd.f32 %v4050, %v4098
        %4100 = vmatmul.bf16.gmra.mxu0 %v2678
        %v4101 = vpop.f32.mrf.mxu0
        %v4102 = vadd.f32 %v4053, %v4101
        %v4103 = vpop.f32.mrf.mxu0
        %v4104 = vadd.f32 %v4055, %v4103
        %4105 = vmatmul.bf16.gmra.mxu0 %v2694
        %v4106 = vpop.f32.mrf.mxu0
        %v4107 = vadd.f32 %v4058, %v4106
        %v4108 = vpop.f32.mrf.mxu0
        %v4109 = vadd.f32 %v4060, %v4108
        %4110 = vmatmul.bf16.gmra.mxu0 %v2710
        %v4111 = vpop.f32.mrf.mxu0
        %v4112 = vadd.f32 %v4063, %v4111
        %v4113 = vpop.f32.mrf.mxu0
        %v4114 = vadd.f32 %v4065, %v4113
        %4115 = vmatmul.bf16.gmra.mxu0 %v2726
        %v4116 = vpop.f32.mrf.mxu0
        %v4117 = vadd.f32 %v4068, %v4116
        %v4118 = vpop.f32.mrf.mxu0
        %v4119 = vadd.f32 %v4070, %v4118
        %4120 = vmatmul.bf16.gmra.mxu0 %v2742
        %v4121 = vpop.f32.mrf.mxu0
        %v4122 = vadd.f32 %v4073, %v4121
        %v4123 = vpop.f32.mrf.mxu0
        %v4124 = vadd.f32 %v4075, %v4123
        %4125 = vmatmul.bf16.gmra.mxu0 %v2758
        %v4126 = vpop.f32.mrf.mxu0
        %v4127 = vadd.f32 %v4078, %v4126
        %v4128 = vpop.f32.mrf.mxu0
        %v4129 = vadd.f32 %v4080, %v4128
        %4130 = vmatmul.bf16.gmra.mxu0 %v2774
        %v4131 = vpop.f32.mrf.mxu0
        %v4132 = vadd.f32 %v4083, %v4131
        %v4133 = vpop.f32.mrf.mxu0
        %v4134 = vadd.f32 %v4085, %v4133
        %4135 = vdwg.mxu0
        %4136 = vmatpush.bf16.msra.mxu0 %v3395
        %4137 = vmatpush.bf16.msra.mxu0 %v3394
        %4138 = vmatpush.bf16.msra.mxu0 %v3393
        %4139 = vmatpush.bf16.msra.mxu0 %v3392
        %4140 = vmatpush.bf16.msra.mxu0 %v3391
        %4141 = vmatpush.bf16.msra.mxu0 %v3390
        %4142 = vmatpush.bf16.msra.mxu0 %v3389
        %4143 = vmatpush.bf16.msra.mxu0 %v3388
        %4144 = vmatmul.bf16.gmra.mxu0 %v2663
        %v4145 = vpop.f32.mrf.mxu0
        %v4146 = vadd.f32 %v4097, %v4145
        %v4147 = vpop.f32.mrf.mxu0
        %v4148 = vadd.f32 %v4099, %v4147
        %4149 = vmatmul.bf16.gmra.mxu0 %v2679
        %v4150 = vpop.f32.mrf.mxu0
        %v4151 = vadd.f32 %v4102, %v4150
        %v4152 = vpop.f32.mrf.mxu0
        %v4153 = vadd.f32 %v4104, %v4152
        %4154 = vmatmul.bf16.gmra.mxu0 %v2695
        %v4155 = vpop.f32.mrf.mxu0
        %v4156 = vadd.f32 %v4107, %v4155
        %v4157 = vpop.f32.mrf.mxu0
        %v4158 = vadd.f32 %v4109, %v4157
        %4159 = vmatmul.bf16.gmra.mxu0 %v2711
        %v4160 = vpop.f32.mrf.mxu0
        %v4161 = vadd.f32 %v4112, %v4160
        %v4162 = vpop.f32.mrf.mxu0
        %v4163 = vadd.f32 %v4114, %v4162
        %4164 = vmatmul.bf16.gmra.mxu0 %v2727
        %v4165 = vpop.f32.mrf.mxu0
        %v4166 = vadd.f32 %v4117, %v4165
        %v4167 = vpop.f32.mrf.mxu0
        %v4168 = vadd.f32 %v4119, %v4167
        %4169 = vmatmul.bf16.gmra.mxu0 %v2743
        %v4170 = vpop.f32.mrf.mxu0
        %v4171 = vadd.f32 %v4122, %v4170
        %v4172 = vpop.f32.mrf.mxu0
        %v4173 = vadd.f32 %v4124, %v4172
        %4174 = vmatmul.bf16.gmra.mxu0 %v2759
        %v4175 = vpop.f32.mrf.mxu0
        %v4176 = vadd.f32 %v4127, %v4175
        %v4177 = vpop.f32.mrf.mxu0
        %v4178 = vadd.f32 %v4129, %v4177
        %4179 = vmatmul.bf16.gmra.mxu0 %v2775
        %v4180 = vpop.f32.mrf.mxu0
        %v4181 = vadd.f32 %v4132, %v4180
        %v4182 = vpop.f32.mrf.mxu0
        %v4183 = vadd.f32 %v4134, %v4182
        %4184 = vdwg.mxu0
        %4185 = vmatpush.bf16.msra.mxu0 %v3403
        %4186 = vmatpush.bf16.msra.mxu0 %v3402
        %4187 = vmatpush.bf16.msra.mxu0 %v3401
        %4188 = vmatpush.bf16.msra.mxu0 %v3400
        %4189 = vmatpush.bf16.msra.mxu0 %v3399
        %4190 = vmatpush.bf16.msra.mxu0 %v3398
        %4191 = vmatpush.bf16.msra.mxu0 %v3397
        %4192 = vmatpush.bf16.msra.mxu0 %v3396
        %4193 = vmatmul.bf16.gmra.mxu0 %v2664
        %v4194 = vpop.f32.mrf.mxu0
        %v4195 = vadd.f32 %v4146, %v4194
        %v4196 = vpop.f32.mrf.mxu0
        %v4197 = vadd.f32 %v4148, %v4196
        %4198 = vmatmul.bf16.gmra.mxu0 %v2680
        %v4199 = vpop.f32.mrf.mxu0
        %v4200 = vadd.f32 %v4151, %v4199
        %v4201 = vpop.f32.mrf.mxu0
        %v4202 = vadd.f32 %v4153, %v4201
        %4203 = vmatmul.bf16.gmra.mxu0 %v2696
        %v4204 = vpop.f32.mrf.mxu0
        %v4205 = vadd.f32 %v4156, %v4204
        %v4206 = vpop.f32.mrf.mxu0
        %v4207 = vadd.f32 %v4158, %v4206
        %4208 = vmatmul.bf16.gmra.mxu0 %v2712
        %v4209 = vpop.f32.mrf.mxu0
        %v4210 = vadd.f32 %v4161, %v4209
        %v4211 = vpop.f32.mrf.mxu0
        %v4212 = vadd.f32 %v4163, %v4211
        %4213 = vmatmul.bf16.gmra.mxu0 %v2728
        %v4214 = vpop.f32.mrf.mxu0
        %v4215 = vadd.f32 %v4166, %v4214
        %v4216 = vpop.f32.mrf.mxu0
        %v4217 = vadd.f32 %v4168, %v4216
        %4218 = vmatmul.bf16.gmra.mxu0 %v2744
        %v4219 = vpop.f32.mrf.mxu0
        %v4220 = vadd.f32 %v4171, %v4219
        %v4221 = vpop.f32.mrf.mxu0
        %v4222 = vadd.f32 %v4173, %v4221
        %4223 = vmatmul.bf16.gmra.mxu0 %v2760
        %v4224 = vpop.f32.mrf.mxu0
        %v4225 = vadd.f32 %v4176, %v4224
        %v4226 = vpop.f32.mrf.mxu0
        %v4227 = vadd.f32 %v4178, %v4226
        %4228 = vmatmul.bf16.gmra.mxu0 %v2776
        %v4229 = vpop.f32.mrf.mxu0
        %v4230 = vadd.f32 %v4181, %v4229
        %v4231 = vpop.f32.mrf.mxu0
        %v4232 = vadd.f32 %v4183, %v4231
        %4233 = vdwg.mxu0
        %4234 = vmatpush.bf16.msra.mxu0 %v3411
        %4235 = vmatpush.bf16.msra.mxu0 %v3410
        %4236 = vmatpush.bf16.msra.mxu0 %v3409
        %4237 = vmatpush.bf16.msra.mxu0 %v3408
        %4238 = vmatpush.bf16.msra.mxu0 %v3407
        %4239 = vmatpush.bf16.msra.mxu0 %v3406
        %4240 = vmatpush.bf16.msra.mxu0 %v3405
        %4241 = vmatpush.bf16.msra.mxu0 %v3404
        %4242 = vmatmul.bf16.gmra.mxu0 %v2665
        %v4243 = vpop.f32.mrf.mxu0
        %v4244 = vadd.f32 %v4195, %v4243
        %v4245 = vpop.f32.mrf.mxu0
        %v4246 = vadd.f32 %v4197, %v4245
        %4247 = vmatmul.bf16.gmra.mxu0 %v2681
        %v4248 = vpop.f32.mrf.mxu0
        %v4249 = vadd.f32 %v4200, %v4248
        %v4250 = vpop.f32.mrf.mxu0
        %v4251 = vadd.f32 %v4202, %v4250
        %4252 = vmatmul.bf16.gmra.mxu0 %v2697
        %v4253 = vpop.f32.mrf.mxu0
        %v4254 = vadd.f32 %v4205, %v4253
        %v4255 = vpop.f32.mrf.mxu0
        %v4256 = vadd.f32 %v4207, %v4255
        %4257 = vmatmul.bf16.gmra.mxu0 %v2713
        %v4258 = vpop.f32.mrf.mxu0
        %v4259 = vadd.f32 %v4210, %v4258
        %v4260 = vpop.f32.mrf.mxu0
        %v4261 = vadd.f32 %v4212, %v4260
        %4262 = vmatmul.bf16.gmra.mxu0 %v2729
        %v4263 = vpop.f32.mrf.mxu0
        %v4264 = vadd.f32 %v4215, %v4263
        %v4265 = vpop.f32.mrf.mxu0
        %v4266 = vadd.f32 %v4217, %v4265
        %4267 = vmatmul.bf16.gmra.mxu0 %v2745
        %v4268 = vpop.f32.mrf.mxu0
        %v4269 = vadd.f32 %v4220, %v4268
        %v4270 = vpop.f32.mrf.mxu0
        %v4271 = vadd.f32 %v4222, %v4270
        %4272 = vmatmul.bf16.gmra.mxu0 %v2761
        %v4273 = vpop.f32.mrf.mxu0
        %v4274 = vadd.f32 %v4225, %v4273
        %v4275 = vpop.f32.mrf.mxu0
        %v4276 = vadd.f32 %v4227, %v4275
        %4277 = vmatmul.bf16.gmra.mxu0 %v2777
        %v4278 = vpop.f32.mrf.mxu0
        %v4279 = vadd.f32 %v4230, %v4278
        %v4280 = vpop.f32.mrf.mxu0
        %v4281 = vadd.f32 %v4232, %v4280
        %4282 = vdwg.mxu0
        %4283 = vmatpush.bf16.msra.mxu0 %v3419
        %4284 = vmatpush.bf16.msra.mxu0 %v3418
        %4285 = vmatpush.bf16.msra.mxu0 %v3417
        %4286 = vmatpush.bf16.msra.mxu0 %v3416
        %4287 = vmatpush.bf16.msra.mxu0 %v3415
        %4288 = vmatpush.bf16.msra.mxu0 %v3414
        %4289 = vmatpush.bf16.msra.mxu0 %v3413
        %4290 = vmatpush.bf16.msra.mxu0 %v3412
        %4291 = vmatmul.bf16.gmra.mxu0 %v2666
        %v4292 = vpop.f32.mrf.mxu0
        %v4293 = vadd.f32 %v4244, %v4292
        %v4294 = vpop.f32.mrf.mxu0
        %v4295 = vadd.f32 %v4246, %v4294
        %4296 = vmatmul.bf16.gmra.mxu0 %v2682
        %v4297 = vpop.f32.mrf.mxu0
        %v4298 = vadd.f32 %v4249, %v4297
        %v4299 = vpop.f32.mrf.mxu0
        %v4300 = vadd.f32 %v4251, %v4299
        %4301 = vmatmul.bf16.gmra.mxu0 %v2698
        %v4302 = vpop.f32.mrf.mxu0
        %v4303 = vadd.f32 %v4254, %v4302
        %v4304 = vpop.f32.mrf.mxu0
        %v4305 = vadd.f32 %v4256, %v4304
        %4306 = vmatmul.bf16.gmra.mxu0 %v2714
        %v4307 = vpop.f32.mrf.mxu0
        %v4308 = vadd.f32 %v4259, %v4307
        %v4309 = vpop.f32.mrf.mxu0
        %v4310 = vadd.f32 %v4261, %v4309
        %4311 = vmatmul.bf16.gmra.mxu0 %v2730
        %v4312 = vpop.f32.mrf.mxu0
        %v4313 = vadd.f32 %v4264, %v4312
        %v4314 = vpop.f32.mrf.mxu0
        %v4315 = vadd.f32 %v4266, %v4314
        %4316 = vmatmul.bf16.gmra.mxu0 %v2746
        %v4317 = vpop.f32.mrf.mxu0
        %v4318 = vadd.f32 %v4269, %v4317
        %v4319 = vpop.f32.mrf.mxu0
        %v4320 = vadd.f32 %v4271, %v4319
        %4321 = vmatmul.bf16.gmra.mxu0 %v2762
        %v4322 = vpop.f32.mrf.mxu0
        %v4323 = vadd.f32 %v4274, %v4322
        %v4324 = vpop.f32.mrf.mxu0
        %v4325 = vadd.f32 %v4276, %v4324
        %4326 = vmatmul.bf16.gmra.mxu0 %v2778
        %v4327 = vpop.f32.mrf.mxu0
        %v4328 = vadd.f32 %v4279, %v4327
        %v4329 = vpop.f32.mrf.mxu0
        %v4330 = vadd.f32 %v4281, %v4329
        %4331 = vdwg.mxu0
        %v4332 = vadd.f32 %v883, %v4293
        %v4333 = vadd.f32 %v884, %v4295
        %v4334 = vadd.f32 %v885, %v4298
        %v4335 = vadd.f32 %v886, %v4300
        %v4336 = vadd.f32 %v887, %v4303
        %v4337 = vadd.f32 %v888, %v4305
        %v4338 = vadd.f32 %v889, %v4308
        %v4339 = vadd.f32 %v890, %v4310
        %v4340 = vadd.f32 %v891, %v4313
        %v4341 = vadd.f32 %v892, %v4315
        %v4342 = vadd.f32 %v893, %v4318
        %v4343 = vadd.f32 %v894, %v4320
        %v4344 = vadd.f32 %v895, %v4323
        %v4345 = vadd.f32 %v896, %v4325
        %v4346 = vadd.f32 %v897, %v4328
        %v4347 = vadd.f32 %v898, %v4330
        %v4348 = vsel %vm376, %v4332, 0.0
        %4349 = vadd.xlane.f32.xlu0 %v4348
        %v4350 = vpop.xlane.xlu0 %4349
        %v4351 = vsel %vm376, %v4333, 0.0
        %4352 = vadd.xlane.f32.xlu0 %v4351
        %v4353 = vpop.xlane.xlu0 %4352
        %v4354 = vsel %vm376, %v4334, 0.0
        %4355 = vadd.xlane.f32.xlu0 %v4354
        %v4356 = vpop.xlane.xlu0 %4355
        %v4357 = vsel %vm376, %v4335, 0.0
        %4358 = vadd.xlane.f32.xlu0 %v4357
        %v4359 = vpop.xlane.xlu0 %4358
        %v4360 = vsel %vm376, %v4336, 0.0
        %4361 = vadd.xlane.f32.xlu0 %v4360
        %v4362 = vpop.xlane.xlu0 %4361
        %v4363 = vsel %vm376, %v4337, 0.0
        %4364 = vadd.xlane.f32.xlu0 %v4363
        %v4365 = vpop.xlane.xlu0 %4364
        %v4366 = vsel %vm376, %v4338, 0.0
        %4367 = vadd.xlane.f32.xlu0 %v4366
        %v4368 = vpop.xlane.xlu0 %4367
        %v4369 = vsel %vm376, %v4339, 0.0
        %4370 = vadd.xlane.f32.xlu0 %v4369
        %v4371 = vpop.xlane.xlu0 %4370
        %v4372 = vsel %vm376, %v4340, 0.0
        %4373 = vadd.xlane.f32.xlu0 %v4372
        %v4374 = vpop.xlane.xlu0 %4373
        %v4375 = vsel %vm376, %v4341, 0.0
        %4376 = vadd.xlane.f32.xlu0 %v4375
        %v4377 = vpop.xlane.xlu0 %4376
        %v4378 = vsel %vm376, %v4342, 0.0
        %4379 = vadd.xlane.f32.xlu0 %v4378
        %v4380 = vpop.xlane.xlu0 %4379
        %v4381 = vsel %vm376, %v4343, 0.0
        %4382 = vadd.xlane.f32.xlu0 %v4381
        %v4383 = vpop.xlane.xlu0 %4382
        %v4384 = vsel %vm376, %v4344, 0.0
        %4385 = vadd.xlane.f32.xlu0 %v4384
        %v4386 = vpop.xlane.xlu0 %4385
        %v4387 = vsel %vm376, %v4345, 0.0
        %4388 = vadd.xlane.f32.xlu0 %v4387
        %v4389 = vpop.xlane.xlu0 %4388
        %v4390 = vsel %vm376, %v4346, 0.0
        %4391 = vadd.xlane.f32.xlu0 %v4390
        %v4392 = vpop.xlane.xlu0 %4391
        %v4393 = vsel %vm376, %v4347, 0.0
        %4394 = vadd.xlane.f32.xlu0 %v4393
        %v4395 = vpop.xlane.xlu0 %4394
        %v4396 = vmul.f32 %v4350, %v560
        %v4397 = vmul.f32 %v4353, %v560
        %v4398 = vmul.f32 %v4356, %v560
        %v4399 = vmul.f32 %v4359, %v560
        %v4400 = vmul.f32 %v4362, %v560
        %v4401 = vmul.f32 %v4365, %v560
        %v4402 = vmul.f32 %v4368, %v560
        %v4403 = vmul.f32 %v4371, %v560
        %v4404 = vmul.f32 %v4374, %v560
        %v4405 = vmul.f32 %v4377, %v560
        %v4406 = vmul.f32 %v4380, %v560
        %v4407 = vmul.f32 %v4383, %v560
        %v4408 = vmul.f32 %v4386, %v560
        %v4409 = vmul.f32 %v4389, %v560
        %v4410 = vmul.f32 %v4392, %v560
        %v4411 = vmul.f32 %v4395, %v560
        %v4412 = vsub.f32 %v4332, %v4396
        %v4413 = vsub.f32 %v4333, %v4397
        %v4414 = vsub.f32 %v4334, %v4398
        %v4415 = vsub.f32 %v4335, %v4399
        %v4416 = vsub.f32 %v4336, %v4400
        %v4417 = vsub.f32 %v4337, %v4401
        %v4418 = vsub.f32 %v4338, %v4402
        %v4419 = vsub.f32 %v4339, %v4403
        %v4420 = vsub.f32 %v4340, %v4404
        %v4421 = vsub.f32 %v4341, %v4405
        %v4422 = vsub.f32 %v4342, %v4406
        %v4423 = vsub.f32 %v4343, %v4407
        %v4424 = vsub.f32 %v4344, %v4408
        %v4425 = vsub.f32 %v4345, %v4409
        %v4426 = vsub.f32 %v4346, %v4410
        %v4427 = vsub.f32 %v4347, %v4411
        %v4428 = vmul.f32 %v4412, %v4412
        %v4429 = vmul.f32 %v4413, %v4413
        %v4430 = vmul.f32 %v4414, %v4414
        %v4431 = vmul.f32 %v4415, %v4415
        %v4432 = vmul.f32 %v4416, %v4416
        %v4433 = vmul.f32 %v4417, %v4417
        %v4434 = vmul.f32 %v4418, %v4418
        %v4435 = vmul.f32 %v4419, %v4419
        %v4436 = vmul.f32 %v4420, %v4420
        %v4437 = vmul.f32 %v4421, %v4421
        %v4438 = vmul.f32 %v4422, %v4422
        %v4439 = vmul.f32 %v4423, %v4423
        %v4440 = vmul.f32 %v4424, %v4424
        %v4441 = vmul.f32 %v4425, %v4425
        %v4442 = vmul.f32 %v4426, %v4426
        %v4443 = vmul.f32 %v4427, %v4427
        %v4444 = vsel %vm376, %v4428, 0.0
        %4445 = vadd.xlane.f32.xlu0 %v4444
        %v4446 = vpop.xlane.xlu0 %4445
        %v4447 = vsel %vm376, %v4429, 0.0
        %4448 = vadd.xlane.f32.xlu0 %v4447
        %v4449 = vpop.xlane.xlu0 %4448
        %v4450 = vsel %vm376, %v4430, 0.0
        %4451 = vadd.xlane.f32.xlu0 %v4450
        %v4452 = vpop.xlane.xlu0 %4451
        %v4453 = vsel %vm376, %v4431, 0.0
        %4454 = vadd.xlane.f32.xlu0 %v4453
        %v4455 = vpop.xlane.xlu0 %4454
        %v4456 = vsel %vm376, %v4432, 0.0
        %4457 = vadd.xlane.f32.xlu0 %v4456
        %v4458 = vpop.xlane.xlu0 %4457
        %v4459 = vsel %vm376, %v4433, 0.0
        %4460 = vadd.xlane.f32.xlu0 %v4459
        %v4461 = vpop.xlane.xlu0 %4460
        %v4462 = vsel %vm376, %v4434, 0.0
        %4463 = vadd.xlane.f32.xlu0 %v4462
        %v4464 = vpop.xlane.xlu0 %4463
        %v4465 = vsel %vm376, %v4435, 0.0
        %4466 = vadd.xlane.f32.xlu0 %v4465
        %v4467 = vpop.xlane.xlu0 %4466
        %v4468 = vsel %vm376, %v4436, 0.0
        %4469 = vadd.xlane.f32.xlu0 %v4468
        %v4470 = vpop.xlane.xlu0 %4469
        %v4471 = vsel %vm376, %v4437, 0.0
        %4472 = vadd.xlane.f32.xlu0 %v4471
        %v4473 = vpop.xlane.xlu0 %4472
        %v4474 = vsel %vm376, %v4438, 0.0
        %4475 = vadd.xlane.f32.xlu0 %v4474
        %v4476 = vpop.xlane.xlu0 %4475
        %v4477 = vsel %vm376, %v4439, 0.0
        %4478 = vadd.xlane.f32.xlu0 %v4477
        %v4479 = vpop.xlane.xlu0 %4478
        %v4480 = vsel %vm376, %v4440, 0.0
        %4481 = vadd.xlane.f32.xlu0 %v4480
        %v4482 = vpop.xlane.xlu0 %4481
        %v4483 = vsel %vm376, %v4441, 0.0
        %4484 = vadd.xlane.f32.xlu0 %v4483
        %v4485 = vpop.xlane.xlu0 %4484
        %v4486 = vsel %vm376, %v4442, 0.0
        %4487 = vadd.xlane.f32.xlu0 %v4486
        %v4488 = vpop.xlane.xlu0 %4487
        %v4489 = vsel %vm376, %v4443, 0.0
        %4490 = vadd.xlane.f32.xlu0 %v4489
        %v4491 = vpop.xlane.xlu0 %4490
        %v4492 = vmul.f32 %v4446, %v560
        %v4493 = vmul.f32 %v4449, %v560
        %v4494 = vmul.f32 %v4452, %v560
        %v4495 = vmul.f32 %v4455, %v560
        %v4496 = vmul.f32 %v4458, %v560
        %v4497 = vmul.f32 %v4461, %v560
        %v4498 = vmul.f32 %v4464, %v560
        %v4499 = vmul.f32 %v4467, %v560
        %v4500 = vmul.f32 %v4470, %v560
        %v4501 = vmul.f32 %v4473, %v560
        %v4502 = vmul.f32 %v4476, %v560
        %v4503 = vmul.f32 %v4479, %v560
        %v4504 = vmul.f32 %v4482, %v560
        %v4505 = vmul.f32 %v4485, %v560
        %v4506 = vmul.f32 %v4488, %v560
        %v4507 = vmul.f32 %v4491, %v560
        %v4508 = vadd.f32 %v4492, 1e-05
        %v4509 = vadd.f32 %v4493, 1e-05
        %v4510 = vadd.f32 %v4494, 1e-05
        %v4511 = vadd.f32 %v4495, 1e-05
        %v4512 = vadd.f32 %v4496, 1e-05
        %v4513 = vadd.f32 %v4497, 1e-05
        %v4514 = vadd.f32 %v4498, 1e-05
        %v4515 = vadd.f32 %v4499, 1e-05
        %v4516 = vadd.f32 %v4500, 1e-05
        %v4517 = vadd.f32 %v4501, 1e-05
        %v4518 = vadd.f32 %v4502, 1e-05
        %v4519 = vadd.f32 %v4503, 1e-05
        %v4520 = vadd.f32 %v4504, 1e-05
        %v4521 = vadd.f32 %v4505, 1e-05
        %v4522 = vadd.f32 %v4506, 1e-05
        %v4523 = vadd.f32 %v4507, 1e-05
        %v4524 = vrsqrt.pop %v4508
        %v4525 = vmul.f32 %v4524, %v4508
        %v4526 = vmul.f32 %v4525, %v4524
        %v4527 = vmul.f32 0.5, %v4526
        %v4528 = vsub.f32 1.5, %v4527
        %v4529 = vmul.f32 %v4524, %v4528
        %vm4530 = vweird.f32 %v4508
        %vm4531 = vweird.f32 %v4524
        %vm4532 = vmor %vm4530, %vm4531
        %v4533 = vsel %vm4532, %v4524, %v4529
        %v4534 = vrsqrt.pop %v4509
        %v4535 = vmul.f32 %v4534, %v4509
        %v4536 = vmul.f32 %v4535, %v4534
        %v4537 = vmul.f32 0.5, %v4536
        %v4538 = vsub.f32 1.5, %v4537
        %v4539 = vmul.f32 %v4534, %v4538
        %vm4540 = vweird.f32 %v4509
        %vm4541 = vweird.f32 %v4534
        %vm4542 = vmor %vm4540, %vm4541
        %v4543 = vsel %vm4542, %v4534, %v4539
        %v4544 = vrsqrt.pop %v4510
        %v4545 = vmul.f32 %v4544, %v4510
        %v4546 = vmul.f32 %v4545, %v4544
        %v4547 = vmul.f32 0.5, %v4546
        %v4548 = vsub.f32 1.5, %v4547
        %v4549 = vmul.f32 %v4544, %v4548
        %vm4550 = vweird.f32 %v4510
        %vm4551 = vweird.f32 %v4544
        %vm4552 = vmor %vm4550, %vm4551
        %v4553 = vsel %vm4552, %v4544, %v4549
        %v4554 = vrsqrt.pop %v4511
        %v4555 = vmul.f32 %v4554, %v4511
        %v4556 = vmul.f32 %v4555, %v4554
        %v4557 = vmul.f32 0.5, %v4556
        %v4558 = vsub.f32 1.5, %v4557
        %v4559 = vmul.f32 %v4554, %v4558
        %vm4560 = vweird.f32 %v4511
        %vm4561 = vweird.f32 %v4554
        %vm4562 = vmor %vm4560, %vm4561
        %v4563 = vsel %vm4562, %v4554, %v4559
        %v4564 = vrsqrt.pop %v4512
        %v4565 = vmul.f32 %v4564, %v4512
        %v4566 = vmul.f32 %v4565, %v4564
        %v4567 = vmul.f32 0.5, %v4566
        %v4568 = vsub.f32 1.5, %v4567
        %v4569 = vmul.f32 %v4564, %v4568
        %vm4570 = vweird.f32 %v4512
        %vm4571 = vweird.f32 %v4564
        %vm4572 = vmor %vm4570, %vm4571
        %v4573 = vsel %vm4572, %v4564, %v4569
        %v4574 = vrsqrt.pop %v4513
        %v4575 = vmul.f32 %v4574, %v4513
        %v4576 = vmul.f32 %v4575, %v4574
        %v4577 = vmul.f32 0.5, %v4576
        %v4578 = vsub.f32 1.5, %v4577
        %v4579 = vmul.f32 %v4574, %v4578
        %vm4580 = vweird.f32 %v4513
        %vm4581 = vweird.f32 %v4574
        %vm4582 = vmor %vm4580, %vm4581
        %v4583 = vsel %vm4582, %v4574, %v4579
        %v4584 = vrsqrt.pop %v4514
        %v4585 = vmul.f32 %v4584, %v4514
        %v4586 = vmul.f32 %v4585, %v4584
        %v4587 = vmul.f32 0.5, %v4586
        %v4588 = vsub.f32 1.5, %v4587
        %v4589 = vmul.f32 %v4584, %v4588
        %vm4590 = vweird.f32 %v4514
        %vm4591 = vweird.f32 %v4584
        %vm4592 = vmor %vm4590, %vm4591
        %v4593 = vsel %vm4592, %v4584, %v4589
        %v4594 = vrsqrt.pop %v4515
        %v4595 = vmul.f32 %v4594, %v4515
        %v4596 = vmul.f32 %v4595, %v4594
        %v4597 = vmul.f32 0.5, %v4596
        %v4598 = vsub.f32 1.5, %v4597
        %v4599 = vmul.f32 %v4594, %v4598
        %vm4600 = vweird.f32 %v4515
        %vm4601 = vweird.f32 %v4594
        %vm4602 = vmor %vm4600, %vm4601
        %v4603 = vsel %vm4602, %v4594, %v4599
        %v4604 = vrsqrt.pop %v4516
        %v4605 = vmul.f32 %v4604, %v4516
        %v4606 = vmul.f32 %v4605, %v4604
        %v4607 = vmul.f32 0.5, %v4606
        %v4608 = vsub.f32 1.5, %v4607
        %v4609 = vmul.f32 %v4604, %v4608
        %vm4610 = vweird.f32 %v4516
        %vm4611 = vweird.f32 %v4604
        %vm4612 = vmor %vm4610, %vm4611
        %v4613 = vsel %vm4612, %v4604, %v4609
        %v4614 = vrsqrt.pop %v4517
        %v4615 = vmul.f32 %v4614, %v4517
        %v4616 = vmul.f32 %v4615, %v4614
        %v4617 = vmul.f32 0.5, %v4616
        %v4618 = vsub.f32 1.5, %v4617
        %v4619 = vmul.f32 %v4614, %v4618
        %vm4620 = vweird.f32 %v4517
        %vm4621 = vweird.f32 %v4614
        %vm4622 = vmor %vm4620, %vm4621
        %v4623 = vsel %vm4622, %v4614, %v4619
        %v4624 = vrsqrt.pop %v4518
        %v4625 = vmul.f32 %v4624, %v4518
        %v4626 = vmul.f32 %v4625, %v4624
        %v4627 = vmul.f32 0.5, %v4626
        %v4628 = vsub.f32 1.5, %v4627
        %v4629 = vmul.f32 %v4624, %v4628
        %vm4630 = vweird.f32 %v4518
        %vm4631 = vweird.f32 %v4624
        %vm4632 = vmor %vm4630, %vm4631
        %v4633 = vsel %vm4632, %v4624, %v4629
        %v4634 = vrsqrt.pop %v4519
        %v4635 = vmul.f32 %v4634, %v4519
        %v4636 = vmul.f32 %v4635, %v4634
        %v4637 = vmul.f32 0.5, %v4636
        %v4638 = vsub.f32 1.5, %v4637
        %v4639 = vmul.f32 %v4634, %v4638
        %vm4640 = vweird.f32 %v4519
        %vm4641 = vweird.f32 %v4634
        %vm4642 = vmor %vm4640, %vm4641
        %v4643 = vsel %vm4642, %v4634, %v4639
        %v4644 = vrsqrt.pop %v4520
        %v4645 = vmul.f32 %v4644, %v4520
        %v4646 = vmul.f32 %v4645, %v4644
        %v4647 = vmul.f32 0.5, %v4646
        %v4648 = vsub.f32 1.5, %v4647
        %v4649 = vmul.f32 %v4644, %v4648
        %vm4650 = vweird.f32 %v4520
        %vm4651 = vweird.f32 %v4644
        %vm4652 = vmor %vm4650, %vm4651
        %v4653 = vsel %vm4652, %v4644, %v4649
        %v4654 = vrsqrt.pop %v4521
        %v4655 = vmul.f32 %v4654, %v4521
        %v4656 = vmul.f32 %v4655, %v4654
        %v4657 = vmul.f32 0.5, %v4656
        %v4658 = vsub.f32 1.5, %v4657
        %v4659 = vmul.f32 %v4654, %v4658
        %vm4660 = vweird.f32 %v4521
        %vm4661 = vweird.f32 %v4654
        %vm4662 = vmor %vm4660, %vm4661
        %v4663 = vsel %vm4662, %v4654, %v4659
        %v4664 = vrsqrt.pop %v4522
        %v4665 = vmul.f32 %v4664, %v4522
        %v4666 = vmul.f32 %v4665, %v4664
        %v4667 = vmul.f32 0.5, %v4666
        %v4668 = vsub.f32 1.5, %v4667
        %v4669 = vmul.f32 %v4664, %v4668
        %vm4670 = vweird.f32 %v4522
        %vm4671 = vweird.f32 %v4664
        %vm4672 = vmor %vm4670, %vm4671
        %v4673 = vsel %vm4672, %v4664, %v4669
        %v4674 = vrsqrt.pop %v4523
        %v4675 = vmul.f32 %v4674, %v4523
        %v4676 = vmul.f32 %v4675, %v4674
        %v4677 = vmul.f32 0.5, %v4676
        %v4678 = vsub.f32 1.5, %v4677
        %v4679 = vmul.f32 %v4674, %v4678
        %vm4680 = vweird.f32 %v4523
        %vm4681 = vweird.f32 %v4674
        %vm4682 = vmor %vm4680, %vm4681
        %v4683 = vsel %vm4682, %v4674, %v4679
        %v4684 = vmul.f32 %v4412, %v4533
        %v4685 = vmul.f32 %v4413, %v4543
        %v4686 = vmul.f32 %v4414, %v4553
        %v4687 = vmul.f32 %v4415, %v4563
        %v4688 = vmul.f32 %v4416, %v4573
        %v4689 = vmul.f32 %v4417, %v4583
        %v4690 = vmul.f32 %v4418, %v4593
        %v4691 = vmul.f32 %v4419, %v4603
        %v4692 = vmul.f32 %v4420, %v4613
        %v4693 = vmul.f32 %v4421, %v4623
        %v4694 = vmul.f32 %v4422, %v4633
        %v4695 = vmul.f32 %v4423, %v4643
        %v4696 = vmul.f32 %v4424, %v4653
        %v4697 = vmul.f32 %v4425, %v4663
        %v4698 = vmul.f32 %v4426, %v4673
        %v4699 = vmul.f32 %v4427, %v4683
        %v4700 = vperm.slane %v372, 0
        %v4701 = vmul.f32 %v4684, %v4700
        %v4702 = vmul.f32 %v4685, %v4700
        %v4703 = vmul.f32 %v4686, %v4700
        %v4704 = vmul.f32 %v4687, %v4700
        %v4705 = vmul.f32 %v4688, %v4700
        %v4706 = vmul.f32 %v4689, %v4700
        %v4707 = vmul.f32 %v4690, %v4700
        %v4708 = vmul.f32 %v4691, %v4700
        %v4709 = vmul.f32 %v4692, %v4700
        %v4710 = vmul.f32 %v4693, %v4700
        %v4711 = vmul.f32 %v4694, %v4700
        %v4712 = vmul.f32 %v4695, %v4700
        %v4713 = vmul.f32 %v4696, %v4700
        %v4714 = vmul.f32 %v4697, %v4700
        %v4715 = vmul.f32 %v4698, %v4700
        %v4716 = vmul.f32 %v4699, %v4700
        %v4717 = vperm.slane %v373, 0
        %v4718 = vadd.f32 %v4701, %v4717
        %v4719 = vadd.f32 %v4702, %v4717
        %v4720 = vadd.f32 %v4703, %v4717
        %v4721 = vadd.f32 %v4704, %v4717
        %v4722 = vadd.f32 %v4705, %v4717
        %v4723 = vadd.f32 %v4706, %v4717
        %v4724 = vadd.f32 %v4707, %v4717
        %v4725 = vadd.f32 %v4708, %v4717
        %v4726 = vadd.f32 %v4709, %v4717
        %v4727 = vadd.f32 %v4710, %v4717
        %v4728 = vadd.f32 %v4711, %v4717
        %v4729 = vadd.f32 %v4712, %v4717
        %v4730 = vadd.f32 %v4713, %v4717
        %v4731 = vadd.f32 %v4714, %v4717
        %v4732 = vadd.f32 %v4715, %v4717
        %v4733 = vadd.f32 %v4716, %v4717
        %v4734 = vld [vmem:[%s1 + $0x60] sm:$0xff]
        %v4735 = vld [vmem:[%s1 + $0x68] sm:$0xff]
        %v4736 = vld [vmem:[%s1 + $0x70] sm:$0xff]
        %v4737 = vld [vmem:[%s1 + $0x78] sm:$0xff]
        %v4738 = vld [vmem:[%s1 + $0x80] sm:$0xff]
        %v4739 = vld [vmem:[%s1 + $0x88] sm:$0xff]
        %v4740 = vld [vmem:[%s1 + $0x90] sm:$0xff]
        %v4741 = vld [vmem:[%s1 + $0x98] sm:$0xff]
        %v4742 = vld [vmem:[%s1 + $0xa0] sm:$0x1]
        %v4743 = vld [vmem:[%s1 + $0xa1] sm:$0x1]
        %v4744 = vld [vmem:[%s1 + $0xa2] sm:$0x1]
        %v4745 = vld [vmem:[%s1 + $0xa3] sm:$0x1]
        %v4746 = vld [vmem:[%s1 + $0xa4] sm:$0x1]
        %v4747 = vld [vmem:[%s1 + $0xa5] sm:$0x1]
        %v4748 = vperm.slane %v4742, 0
        %v4750 = vsel %vm376, %v4718, 0
        %v4753 = vsel %vm376, %v4719, 0
        %v4756 = vsel %vm376, %v4720, 0
        %v4759 = vsel %vm376, %v4721, 0
        %v4762 = vsel %vm376, %v4722, 0
        %v4765 = vsel %vm376, %v4723, 0
        %v4768 = vsel %vm376, %v4724, 0
        %v4771 = vsel %vm376, %v4725, 0
        %v4774 = vsel %vm376, %v4726, 0
        %v4777 = vsel %vm376, %v4727, 0
        %v4780 = vsel %vm376, %v4728, 0
        %v4783 = vsel %vm376, %v4729, 0
        %v4786 = vsel %vm376, %v4730, 0
        %v4789 = vsel %vm376, %v4731, 0
        %v4792 = vsel %vm376, %v4732, 0
        %v4795 = vsel %vm376, %v4733, 0
        %4797 = vmatpush.msra.mxu0 0.0
        %4798 = vmatpush.msra.mxu0 0.0
        %4799 = vmatpush.msra.mxu0 0.0
        %4800 = vmatpush.msra.mxu0 0.0
        %4801 = vmatpush.msra.mxu0 0.0
        %4802 = vmatpush.msra.mxu0 0.0
        %4803 = vmatpush.msra.mxu0 0.0
        %4804 = vmatpush.msra.mxu0 0.0
        %4805 = vmatpush.msra.mxu0 %v4741
        %4806 = vmatpush.msra.mxu0 %v4740
        %4807 = vmatpush.msra.mxu0 %v4739
        %4808 = vmatpush.msra.mxu0 %v4738
        %4809 = vmatpush.msra.mxu0 %v4737
        %4810 = vmatpush.msra.mxu0 %v4736
        %4811 = vmatpush.msra.mxu0 %v4735
        %4812 = vmatpush.msra.mxu0 %v4734
        %4813 = vmatmul.f32.gmra.mxu0 %v4750
        %v4814 = vpop.f32.mrf.mxu0
        %v4815 = vadd.f32 %v4748, %v4814
        %4816 = vmatmul.f32.gmra.mxu0 %v4753
        %v4817 = vpop.f32.mrf.mxu0
        %v4818 = vadd.f32 %v4748, %v4817
        %4819 = vmatmul.f32.gmra.mxu0 %v4756
        %v4820 = vpop.f32.mrf.mxu0
        %v4821 = vadd.f32 %v4748, %v4820
        %4822 = vmatmul.f32.gmra.mxu0 %v4759
        %v4823 = vpop.f32.mrf.mxu0
        %v4824 = vadd.f32 %v4748, %v4823
        %4825 = vmatmul.f32.gmra.mxu0 %v4762
        %v4826 = vpop.f32.mrf.mxu0
        %v4827 = vadd.f32 %v4748, %v4826
        %4828 = vmatmul.f32.gmra.mxu0 %v4765
        %v4829 = vpop.f32.mrf.mxu0
        %v4830 = vadd.f32 %v4748, %v4829
        %4831 = vmatmul.f32.gmra.mxu0 %v4768
        %v4832 = vpop.f32.mrf.mxu0
        %v4833 = vadd.f32 %v4748, %v4832
        %4834 = vmatmul.f32.gmra.mxu0 %v4771
        %v4835 = vpop.f32.mrf.mxu0
        %v4836 = vadd.f32 %v4748, %v4835
        %4837 = vmatmul.f32.gmra.mxu0 %v4774
        %v4838 = vpop.f32.mrf.mxu0
        %v4839 = vadd.f32 %v4748, %v4838
        %4840 = vmatmul.f32.gmra.mxu0 %v4777
        %v4841 = vpop.f32.mrf.mxu0
        %v4842 = vadd.f32 %v4748, %v4841
        %4843 = vmatmul.f32.gmra.mxu0 %v4780
        %v4844 = vpop.f32.mrf.mxu0
        %v4845 = vadd.f32 %v4748, %v4844
        %4846 = vmatmul.f32.gmra.mxu0 %v4783
        %v4847 = vpop.f32.mrf.mxu0
        %v4848 = vadd.f32 %v4748, %v4847
        %4849 = vmatmul.f32.gmra.mxu0 %v4786
        %v4850 = vpop.f32.mrf.mxu0
        %v4851 = vadd.f32 %v4748, %v4850
        %4852 = vmatmul.f32.gmra.mxu0 %v4789
        %v4853 = vpop.f32.mrf.mxu0
        %v4854 = vadd.f32 %v4748, %v4853
        %4855 = vmatmul.f32.gmra.mxu0 %v4792
        %v4856 = vpop.f32.mrf.mxu0
        %v4857 = vadd.f32 %v4748, %v4856
        %4858 = vmatmul.f32.gmra.mxu0 %v4795
        %v4859 = vpop.f32.mrf.mxu0
        %v4860 = vadd.f32 %v4748, %v4859
        %4861 = vdwg.mxu0
        %v4862 = vadd.f32 %v4718, %v4815
        %v4863 = vadd.f32 %v4719, %v4818
        %v4864 = vadd.f32 %v4720, %v4821
        %v4865 = vadd.f32 %v4721, %v4824
        %v4866 = vadd.f32 %v4722, %v4827
        %v4867 = vadd.f32 %v4723, %v4830
        %v4868 = vadd.f32 %v4724, %v4833
        %v4869 = vadd.f32 %v4725, %v4836
        %v4870 = vadd.f32 %v4726, %v4839
        %v4871 = vadd.f32 %v4727, %v4842
        %v4872 = vadd.f32 %v4728, %v4845
        %v4873 = vadd.f32 %v4729, %v4848
        %v4874 = vadd.f32 %v4730, %v4851
        %v4875 = vadd.f32 %v4731, %v4854
        %v4876 = vadd.f32 %v4732, %v4857
        %v4877 = vadd.f32 %v4733, %v4860
        %v4878 = vsel %vm376, %v4862, 0.0
        %4879 = vadd.xlane.f32.xlu0 %v4878
        %v4880 = vpop.xlane.xlu0 %4879
        %v4881 = vsel %vm376, %v4863, 0.0
        %4882 = vadd.xlane.f32.xlu0 %v4881
        %v4883 = vpop.xlane.xlu0 %4882
        %v4884 = vsel %vm376, %v4864, 0.0
        %4885 = vadd.xlane.f32.xlu0 %v4884
        %v4886 = vpop.xlane.xlu0 %4885
        %v4887 = vsel %vm376, %v4865, 0.0
        %4888 = vadd.xlane.f32.xlu0 %v4887
        %v4889 = vpop.xlane.xlu0 %4888
        %v4890 = vsel %vm376, %v4866, 0.0
        %4891 = vadd.xlane.f32.xlu0 %v4890
        %v4892 = vpop.xlane.xlu0 %4891
        %v4893 = vsel %vm376, %v4867, 0.0
        %4894 = vadd.xlane.f32.xlu0 %v4893
        %v4895 = vpop.xlane.xlu0 %4894
        %v4896 = vsel %vm376, %v4868, 0.0
        %4897 = vadd.xlane.f32.xlu0 %v4896
        %v4898 = vpop.xlane.xlu0 %4897
        %v4899 = vsel %vm376, %v4869, 0.0
        %4900 = vadd.xlane.f32.xlu0 %v4899
        %v4901 = vpop.xlane.xlu0 %4900
        %v4902 = vsel %vm376, %v4870, 0.0
        %4903 = vadd.xlane.f32.xlu0 %v4902
        %v4904 = vpop.xlane.xlu0 %4903
        %v4905 = vsel %vm376, %v4871, 0.0
        %4906 = vadd.xlane.f32.xlu0 %v4905
        %v4907 = vpop.xlane.xlu0 %4906
        %v4908 = vsel %vm376, %v4872, 0.0
        %4909 = vadd.xlane.f32.xlu0 %v4908
        %v4910 = vpop.xlane.xlu0 %4909
        %v4911 = vsel %vm376, %v4873, 0.0
        %4912 = vadd.xlane.f32.xlu0 %v4911
        %v4913 = vpop.xlane.xlu0 %4912
        %v4914 = vsel %vm376, %v4874, 0.0
        %4915 = vadd.xlane.f32.xlu0 %v4914
        %v4916 = vpop.xlane.xlu0 %4915
        %v4917 = vsel %vm376, %v4875, 0.0
        %4918 = vadd.xlane.f32.xlu0 %v4917
        %v4919 = vpop.xlane.xlu0 %4918
        %v4920 = vsel %vm376, %v4876, 0.0
        %4921 = vadd.xlane.f32.xlu0 %v4920
        %v4922 = vpop.xlane.xlu0 %4921
        %v4923 = vsel %vm376, %v4877, 0.0
        %4924 = vadd.xlane.f32.xlu0 %v4923
        %v4925 = vpop.xlane.xlu0 %4924
        %v4926 = vmul.f32 %v4880, %v560
        %v4927 = vmul.f32 %v4883, %v560
        %v4928 = vmul.f32 %v4886, %v560
        %v4929 = vmul.f32 %v4889, %v560
        %v4930 = vmul.f32 %v4892, %v560
        %v4931 = vmul.f32 %v4895, %v560
        %v4932 = vmul.f32 %v4898, %v560
        %v4933 = vmul.f32 %v4901, %v560
        %v4934 = vmul.f32 %v4904, %v560
        %v4935 = vmul.f32 %v4907, %v560
        %v4936 = vmul.f32 %v4910, %v560
        %v4937 = vmul.f32 %v4913, %v560
        %v4938 = vmul.f32 %v4916, %v560
        %v4939 = vmul.f32 %v4919, %v560
        %v4940 = vmul.f32 %v4922, %v560
        %v4941 = vmul.f32 %v4925, %v560
        %v4942 = vsub.f32 %v4862, %v4926
        %v4943 = vsub.f32 %v4863, %v4927
        %v4944 = vsub.f32 %v4864, %v4928
        %v4945 = vsub.f32 %v4865, %v4929
        %v4946 = vsub.f32 %v4866, %v4930
        %v4947 = vsub.f32 %v4867, %v4931
        %v4948 = vsub.f32 %v4868, %v4932
        %v4949 = vsub.f32 %v4869, %v4933
        %v4950 = vsub.f32 %v4870, %v4934
        %v4951 = vsub.f32 %v4871, %v4935
        %v4952 = vsub.f32 %v4872, %v4936
        %v4953 = vsub.f32 %v4873, %v4937
        %v4954 = vsub.f32 %v4874, %v4938
        %v4955 = vsub.f32 %v4875, %v4939
        %v4956 = vsub.f32 %v4876, %v4940
        %v4957 = vsub.f32 %v4877, %v4941
        %v4958 = vmul.f32 %v4942, %v4942
        %v4959 = vmul.f32 %v4943, %v4943
        %v4960 = vmul.f32 %v4944, %v4944
        %v4961 = vmul.f32 %v4945, %v4945
        %v4962 = vmul.f32 %v4946, %v4946
        %v4963 = vmul.f32 %v4947, %v4947
        %v4964 = vmul.f32 %v4948, %v4948
        %v4965 = vmul.f32 %v4949, %v4949
        %v4966 = vmul.f32 %v4950, %v4950
        %v4967 = vmul.f32 %v4951, %v4951
        %v4968 = vmul.f32 %v4952, %v4952
        %v4969 = vmul.f32 %v4953, %v4953
        %v4970 = vmul.f32 %v4954, %v4954
        %v4971 = vmul.f32 %v4955, %v4955
        %v4972 = vmul.f32 %v4956, %v4956
        %v4973 = vmul.f32 %v4957, %v4957
        %v4974 = vsel %vm376, %v4958, 0.0
        %4975 = vadd.xlane.f32.xlu0 %v4974
        %v4976 = vpop.xlane.xlu0 %4975
        %v4977 = vsel %vm376, %v4959, 0.0
        %4978 = vadd.xlane.f32.xlu0 %v4977
        %v4979 = vpop.xlane.xlu0 %4978
        %v4980 = vsel %vm376, %v4960, 0.0
        %4981 = vadd.xlane.f32.xlu0 %v4980
        %v4982 = vpop.xlane.xlu0 %4981
        %v4983 = vsel %vm376, %v4961, 0.0
        %4984 = vadd.xlane.f32.xlu0 %v4983
        %v4985 = vpop.xlane.xlu0 %4984
        %v4986 = vsel %vm376, %v4962, 0.0
        %4987 = vadd.xlane.f32.xlu0 %v4986
        %v4988 = vpop.xlane.xlu0 %4987
        %v4989 = vsel %vm376, %v4963, 0.0
        %4990 = vadd.xlane.f32.xlu0 %v4989
        %v4991 = vpop.xlane.xlu0 %4990
        %v4992 = vsel %vm376, %v4964, 0.0
        %4993 = vadd.xlane.f32.xlu0 %v4992
        %v4994 = vpop.xlane.xlu0 %4993
        %v4995 = vsel %vm376, %v4965, 0.0
        %4996 = vadd.xlane.f32.xlu0 %v4995
        %v4997 = vpop.xlane.xlu0 %4996
        %v4998 = vsel %vm376, %v4966, 0.0
        %4999 = vadd.xlane.f32.xlu0 %v4998
        %v5000 = vpop.xlane.xlu0 %4999
        %v5001 = vsel %vm376, %v4967, 0.0
        %5002 = vadd.xlane.f32.xlu0 %v5001
        %v5003 = vpop.xlane.xlu0 %5002
        %v5004 = vsel %vm376, %v4968, 0.0
        %5005 = vadd.xlane.f32.xlu0 %v5004
        %v5006 = vpop.xlane.xlu0 %5005
        %v5007 = vsel %vm376, %v4969, 0.0
        %5008 = vadd.xlane.f32.xlu0 %v5007
        %v5009 = vpop.xlane.xlu0 %5008
        %v5010 = vsel %vm376, %v4970, 0.0
        %5011 = vadd.xlane.f32.xlu0 %v5010
        %v5012 = vpop.xlane.xlu0 %5011
        %v5013 = vsel %vm376, %v4971, 0.0
        %5014 = vadd.xlane.f32.xlu0 %v5013
        %v5015 = vpop.xlane.xlu0 %5014
        %v5016 = vsel %vm376, %v4972, 0.0
        %5017 = vadd.xlane.f32.xlu0 %v5016
        %v5018 = vpop.xlane.xlu0 %5017
        %v5019 = vsel %vm376, %v4973, 0.0
        %5020 = vadd.xlane.f32.xlu0 %v5019
        %v5021 = vpop.xlane.xlu0 %5020
        %v5022 = vmul.f32 %v4976, %v560
        %v5023 = vmul.f32 %v4979, %v560
        %v5024 = vmul.f32 %v4982, %v560
        %v5025 = vmul.f32 %v4985, %v560
        %v5026 = vmul.f32 %v4988, %v560
        %v5027 = vmul.f32 %v4991, %v560
        %v5028 = vmul.f32 %v4994, %v560
        %v5029 = vmul.f32 %v4997, %v560
        %v5030 = vmul.f32 %v5000, %v560
        %v5031 = vmul.f32 %v5003, %v560
        %v5032 = vmul.f32 %v5006, %v560
        %v5033 = vmul.f32 %v5009, %v560
        %v5034 = vmul.f32 %v5012, %v560
        %v5035 = vmul.f32 %v5015, %v560
        %v5036 = vmul.f32 %v5018, %v560
        %v5037 = vmul.f32 %v5021, %v560
        %v5038 = vadd.f32 %v5022, 1e-05
        %v5039 = vadd.f32 %v5023, 1e-05
        %v5040 = vadd.f32 %v5024, 1e-05
        %v5041 = vadd.f32 %v5025, 1e-05
        %v5042 = vadd.f32 %v5026, 1e-05
        %v5043 = vadd.f32 %v5027, 1e-05
        %v5044 = vadd.f32 %v5028, 1e-05
        %v5045 = vadd.f32 %v5029, 1e-05
        %v5046 = vadd.f32 %v5030, 1e-05
        %v5047 = vadd.f32 %v5031, 1e-05
        %v5048 = vadd.f32 %v5032, 1e-05
        %v5049 = vadd.f32 %v5033, 1e-05
        %v5050 = vadd.f32 %v5034, 1e-05
        %v5051 = vadd.f32 %v5035, 1e-05
        %v5052 = vadd.f32 %v5036, 1e-05
        %v5053 = vadd.f32 %v5037, 1e-05
        %v5054 = vrsqrt.pop %v5038
        %v5055 = vmul.f32 %v5054, %v5038
        %v5056 = vmul.f32 %v5055, %v5054
        %v5057 = vmul.f32 0.5, %v5056
        %v5058 = vsub.f32 1.5, %v5057
        %v5059 = vmul.f32 %v5054, %v5058
        %vm5060 = vweird.f32 %v5038
        %vm5061 = vweird.f32 %v5054
        %vm5062 = vmor %vm5060, %vm5061
        %v5063 = vsel %vm5062, %v5054, %v5059
        %v5064 = vrsqrt.pop %v5039
        %v5065 = vmul.f32 %v5064, %v5039
        %v5066 = vmul.f32 %v5065, %v5064
        %v5067 = vmul.f32 0.5, %v5066
        %v5068 = vsub.f32 1.5, %v5067
        %v5069 = vmul.f32 %v5064, %v5068
        %vm5070 = vweird.f32 %v5039
        %vm5071 = vweird.f32 %v5064
        %vm5072 = vmor %vm5070, %vm5071
        %v5073 = vsel %vm5072, %v5064, %v5069
        %v5074 = vrsqrt.pop %v5040
        %v5075 = vmul.f32 %v5074, %v5040
        %v5076 = vmul.f32 %v5075, %v5074
        %v5077 = vmul.f32 0.5, %v5076
        %v5078 = vsub.f32 1.5, %v5077
        %v5079 = vmul.f32 %v5074, %v5078
        %vm5080 = vweird.f32 %v5040
        %vm5081 = vweird.f32 %v5074
        %vm5082 = vmor %vm5080, %vm5081
        %v5083 = vsel %vm5082, %v5074, %v5079
        %v5084 = vrsqrt.pop %v5041
        %v5085 = vmul.f32 %v5084, %v5041
        %v5086 = vmul.f32 %v5085, %v5084
        %v5087 = vmul.f32 0.5, %v5086
        %v5088 = vsub.f32 1.5, %v5087
        %v5089 = vmul.f32 %v5084, %v5088
        %vm5090 = vweird.f32 %v5041
        %vm5091 = vweird.f32 %v5084
        %vm5092 = vmor %vm5090, %vm5091
        %v5093 = vsel %vm5092, %v5084, %v5089
        %v5094 = vrsqrt.pop %v5042
        %v5095 = vmul.f32 %v5094, %v5042
        %v5096 = vmul.f32 %v5095, %v5094
        %v5097 = vmul.f32 0.5, %v5096
        %v5098 = vsub.f32 1.5, %v5097
        %v5099 = vmul.f32 %v5094, %v5098
        %vm5100 = vweird.f32 %v5042
        %vm5101 = vweird.f32 %v5094
        %vm5102 = vmor %vm5100, %vm5101
        %v5103 = vsel %vm5102, %v5094, %v5099
        %v5104 = vrsqrt.pop %v5043
        %v5105 = vmul.f32 %v5104, %v5043
        %v5106 = vmul.f32 %v5105, %v5104
        %v5107 = vmul.f32 0.5, %v5106
        %v5108 = vsub.f32 1.5, %v5107
        %v5109 = vmul.f32 %v5104, %v5108
        %vm5110 = vweird.f32 %v5043
        %vm5111 = vweird.f32 %v5104
        %vm5112 = vmor %vm5110, %vm5111
        %v5113 = vsel %vm5112, %v5104, %v5109
        %v5114 = vrsqrt.pop %v5044
        %v5115 = vmul.f32 %v5114, %v5044
        %v5116 = vmul.f32 %v5115, %v5114
        %v5117 = vmul.f32 0.5, %v5116
        %v5118 = vsub.f32 1.5, %v5117
        %v5119 = vmul.f32 %v5114, %v5118
        %vm5120 = vweird.f32 %v5044
        %vm5121 = vweird.f32 %v5114
        %vm5122 = vmor %vm5120, %vm5121
        %v5123 = vsel %vm5122, %v5114, %v5119
        %v5124 = vrsqrt.pop %v5045
        %v5125 = vmul.f32 %v5124, %v5045
        %v5126 = vmul.f32 %v5125, %v5124
        %v5127 = vmul.f32 0.5, %v5126
        %v5128 = vsub.f32 1.5, %v5127
        %v5129 = vmul.f32 %v5124, %v5128
        %vm5130 = vweird.f32 %v5045
        %vm5131 = vweird.f32 %v5124
        %vm5132 = vmor %vm5130, %vm5131
        %v5133 = vsel %vm5132, %v5124, %v5129
        %v5134 = vrsqrt.pop %v5046
        %v5135 = vmul.f32 %v5134, %v5046
        %v5136 = vmul.f32 %v5135, %v5134
        %v5137 = vmul.f32 0.5, %v5136
        %v5138 = vsub.f32 1.5, %v5137
        %v5139 = vmul.f32 %v5134, %v5138
        %vm5140 = vweird.f32 %v5046
        %vm5141 = vweird.f32 %v5134
        %vm5142 = vmor %vm5140, %vm5141
        %v5143 = vsel %vm5142, %v5134, %v5139
        %v5144 = vrsqrt.pop %v5047
        %v5145 = vmul.f32 %v5144, %v5047
        %v5146 = vmul.f32 %v5145, %v5144
        %v5147 = vmul.f32 0.5, %v5146
        %v5148 = vsub.f32 1.5, %v5147
        %v5149 = vmul.f32 %v5144, %v5148
        %vm5150 = vweird.f32 %v5047
        %vm5151 = vweird.f32 %v5144
        %vm5152 = vmor %vm5150, %vm5151
        %v5153 = vsel %vm5152, %v5144, %v5149
        %v5154 = vrsqrt.pop %v5048
        %v5155 = vmul.f32 %v5154, %v5048
        %v5156 = vmul.f32 %v5155, %v5154
        %v5157 = vmul.f32 0.5, %v5156
        %v5158 = vsub.f32 1.5, %v5157
        %v5159 = vmul.f32 %v5154, %v5158
        %vm5160 = vweird.f32 %v5048
        %vm5161 = vweird.f32 %v5154
        %vm5162 = vmor %vm5160, %vm5161
        %v5163 = vsel %vm5162, %v5154, %v5159
        %v5164 = vrsqrt.pop %v5049
        %v5165 = vmul.f32 %v5164, %v5049
        %v5166 = vmul.f32 %v5165, %v5164
        %v5167 = vmul.f32 0.5, %v5166
        %v5168 = vsub.f32 1.5, %v5167
        %v5169 = vmul.f32 %v5164, %v5168
        %vm5170 = vweird.f32 %v5049
        %vm5171 = vweird.f32 %v5164
        %vm5172 = vmor %vm5170, %vm5171
        %v5173 = vsel %vm5172, %v5164, %v5169
        %v5174 = vrsqrt.pop %v5050
        %v5175 = vmul.f32 %v5174, %v5050
        %v5176 = vmul.f32 %v5175, %v5174
        %v5177 = vmul.f32 0.5, %v5176
        %v5178 = vsub.f32 1.5, %v5177
        %v5179 = vmul.f32 %v5174, %v5178
        %vm5180 = vweird.f32 %v5050
        %vm5181 = vweird.f32 %v5174
        %vm5182 = vmor %vm5180, %vm5181
        %v5183 = vsel %vm5182, %v5174, %v5179
        %v5184 = vrsqrt.pop %v5051
        %v5185 = vmul.f32 %v5184, %v5051
        %v5186 = vmul.f32 %v5185, %v5184
        %v5187 = vmul.f32 0.5, %v5186
        %v5188 = vsub.f32 1.5, %v5187
        %v5189 = vmul.f32 %v5184, %v5188
        %vm5190 = vweird.f32 %v5051
        %vm5191 = vweird.f32 %v5184
        %vm5192 = vmor %vm5190, %vm5191
        %v5193 = vsel %vm5192, %v5184, %v5189
        %v5194 = vrsqrt.pop %v5052
        %v5195 = vmul.f32 %v5194, %v5052
        %v5196 = vmul.f32 %v5195, %v5194
        %v5197 = vmul.f32 0.5, %v5196
        %v5198 = vsub.f32 1.5, %v5197
        %v5199 = vmul.f32 %v5194, %v5198
        %vm5200 = vweird.f32 %v5052
        %vm5201 = vweird.f32 %v5194
        %vm5202 = vmor %vm5200, %vm5201
        %v5203 = vsel %vm5202, %v5194, %v5199
        %v5204 = vrsqrt.pop %v5053
        %v5205 = vmul.f32 %v5204, %v5053
        %v5206 = vmul.f32 %v5205, %v5204
        %v5207 = vmul.f32 0.5, %v5206
        %v5208 = vsub.f32 1.5, %v5207
        %v5209 = vmul.f32 %v5204, %v5208
        %vm5210 = vweird.f32 %v5053
        %vm5211 = vweird.f32 %v5204
        %vm5212 = vmor %vm5210, %vm5211
        %v5213 = vsel %vm5212, %v5204, %v5209
        %v5214 = vmul.f32 %v4942, %v5063
        %v5215 = vmul.f32 %v4943, %v5073
        %v5216 = vmul.f32 %v4944, %v5083
        %v5217 = vmul.f32 %v4945, %v5093
        %v5218 = vmul.f32 %v4946, %v5103
        %v5219 = vmul.f32 %v4947, %v5113
        %v5220 = vmul.f32 %v4948, %v5123
        %v5221 = vmul.f32 %v4949, %v5133
        %v5222 = vmul.f32 %v4950, %v5143
        %v5223 = vmul.f32 %v4951, %v5153
        %v5224 = vmul.f32 %v4952, %v5163
        %v5225 = vmul.f32 %v4953, %v5173
        %v5226 = vmul.f32 %v4954, %v5183
        %v5227 = vmul.f32 %v4955, %v5193
        %v5228 = vmul.f32 %v4956, %v5203
        %v5229 = vmul.f32 %v4957, %v5213
        %v5230 = vperm.slane %v4743, 0
        %v5231 = vmul.f32 %v5214, %v5230
        %v5232 = vmul.f32 %v5215, %v5230
        %v5233 = vmul.f32 %v5216, %v5230
        %v5234 = vmul.f32 %v5217, %v5230
        %v5235 = vmul.f32 %v5218, %v5230
        %v5236 = vmul.f32 %v5219, %v5230
        %v5237 = vmul.f32 %v5220, %v5230
        %v5238 = vmul.f32 %v5221, %v5230
        %v5239 = vmul.f32 %v5222, %v5230
        %v5240 = vmul.f32 %v5223, %v5230
        %v5241 = vmul.f32 %v5224, %v5230
        %v5242 = vmul.f32 %v5225, %v5230
        %v5243 = vmul.f32 %v5226, %v5230
        %v5244 = vmul.f32 %v5227, %v5230
        %v5245 = vmul.f32 %v5228, %v5230
        %v5246 = vmul.f32 %v5229, %v5230
        %v5247 = vperm.slane %v4744, 0
        %v5248 = vadd.f32 %v5231, %v5247
        %v5249 = vadd.f32 %v5232, %v5247
        %v5250 = vadd.f32 %v5233, %v5247
        %v5251 = vadd.f32 %v5234, %v5247
        %v5252 = vadd.f32 %v5235, %v5247
        %v5253 = vadd.f32 %v5236, %v5247
        %v5254 = vadd.f32 %v5237, %v5247
        %v5255 = vadd.f32 %v5238, %v5247
        %v5256 = vadd.f32 %v5239, %v5247
        %v5257 = vadd.f32 %v5240, %v5247
        %v5258 = vadd.f32 %v5241, %v5247
        %v5259 = vadd.f32 %v5242, %v5247
        %v5260 = vadd.f32 %v5243, %v5247
        %v5261 = vadd.f32 %v5244, %v5247
        %v5262 = vadd.f32 %v5245, %v5247
        %v5263 = vadd.f32 %v5246, %v5247
        %s5264 = scalar_lea.vmem %s3, 576
        %v5265 = vld [vmem:[%s5264] sm:$0xff]
        %v5266 = vld [vmem:[%s5264 + $0x8] sm:$0xff]
        %v5267 = vld [vmem:[%s5264 + $0x10] sm:$0xff]
        %v5268 = vld [vmem:[%s5264 + $0x18] sm:$0xff]
        %v5269 = vld [vmem:[%s5264 + $0x20] sm:$0xff]
        %v5270 = vld [vmem:[%s5264 + $0x28] sm:$0xff]
        %v5271 = vld [vmem:[%s5264 + $0x30] sm:$0xff]
        %v5272 = vld [vmem:[%s5264 + $0x38] sm:$0xff]
        %v5273 = vld [vmem:[%s5264 + $0x40] sm:$0xff]
        %v5274 = vld [vmem:[%s5264 + $0x48] sm:$0xff]
        %v5275 = vld [vmem:[%s5264 + $0x50] sm:$0xff]
        %v5276 = vld [vmem:[%s5264 + $0x58] sm:$0xff]
        %v5277 = vld [vmem:[%s5264 + $0x60] sm:$0xff]
        %v5278 = vld [vmem:[%s5264 + $0x68] sm:$0xff]
        %v5279 = vld [vmem:[%s5264 + $0x70] sm:$0xff]
        %v5280 = vld [vmem:[%s5264 + $0x78] sm:$0xff]
        %v5281 = vld [vmem:[%s5264 + $0x80] sm:$0xff]
        %v5282 = vld [vmem:[%s5264 + $0x88] sm:$0xff]
        %v5283 = vld [vmem:[%s5264 + $0x90] sm:$0xff]
        %v5284 = vld [vmem:[%s5264 + $0x98] sm:$0xff]
        %v5285 = vld [vmem:[%s5264 + $0xa0] sm:$0xff]
        %v5286 = vld [vmem:[%s5264 + $0xa8] sm:$0xff]
        %v5287 = vld [vmem:[%s5264 + $0xb0] sm:$0xff]
        %v5288 = vld [vmem:[%s5264 + $0xb8] sm:$0xff]
        %v5289 = vld [vmem:[%s5264 + $0xc0] sm:$0xff]
        %v5290 = vld [vmem:[%s5264 + $0xc8] sm:$0xff]
        %v5291 = vld [vmem:[%s5264 + $0xd0] sm:$0xff]
        %v5292 = vld [vmem:[%s5264 + $0xd8] sm:$0xff]
        %v5293 = vld [vmem:[%s5264 + $0xe0] sm:$0xff]
        %v5294 = vld [vmem:[%s5264 + $0xe8] sm:$0xff]
        %v5295 = vld [vmem:[%s5264 + $0xf0] sm:$0xff]
        %v5296 = vld [vmem:[%s5264 + $0xf8] sm:$0xff]
        %v5297 = vld [vmem:[%s5264 + $0x100] sm:$0xff]
        %v5298 = vld [vmem:[%s5264 + $0x108] sm:$0xff]
        %v5299 = vld [vmem:[%s5264 + $0x110] sm:$0xff]
        %v5300 = vld [vmem:[%s5264 + $0x118] sm:$0xff]
        %v5301 = vld [vmem:[%s5264 + $0x120] sm:$0xff]
        %v5302 = vld [vmem:[%s5264 + $0x128] sm:$0xff]
        %v5303 = vld [vmem:[%s5264 + $0x130] sm:$0xff]
        %v5304 = vld [vmem:[%s5264 + $0x138] sm:$0xff]
        %v5305 = vld [vmem:[%s5264 + $0x140] sm:$0xff]
        %v5306 = vld [vmem:[%s5264 + $0x148] sm:$0xff]
        %v5307 = vld [vmem:[%s5264 + $0x150] sm:$0xff]
        %v5308 = vld [vmem:[%s5264 + $0x158] sm:$0xff]
        %v5309 = vld [vmem:[%s5264 + $0x160] sm:$0xff]
        %v5310 = vld [vmem:[%s5264 + $0x168] sm:$0xff]
        %v5311 = vld [vmem:[%s5264 + $0x170] sm:$0xff]
        %v5312 = vld [vmem:[%s5264 + $0x178] sm:$0xff]
        %v5313 = vld [vmem:[%s5264 + $0x180] sm:$0xff]
        %v5314 = vld [vmem:[%s5264 + $0x188] sm:$0xff]
        %v5315 = vld [vmem:[%s5264 + $0x190] sm:$0xff]
        %v5316 = vld [vmem:[%s5264 + $0x198] sm:$0xff]
        %v5317 = vld [vmem:[%s5264 + $0x1a0] sm:$0xff]
        %v5318 = vld [vmem:[%s5264 + $0x1a8] sm:$0xff]
        %v5319 = vld [vmem:[%s5264 + $0x1b0] sm:$0xff]
        %v5320 = vld [vmem:[%s5264 + $0x1b8] sm:$0xff]
        %v5321 = vld [vmem:[%s5264 + $0x1c0] sm:$0xff]
        %v5322 = vld [vmem:[%s5264 + $0x1c8] sm:$0xff]
        %v5323 = vld [vmem:[%s5264 + $0x1d0] sm:$0xff]
        %v5324 = vld [vmem:[%s5264 + $0x1d8] sm:$0xff]
        %v5325 = vld [vmem:[%s5264 + $0x1e0] sm:$0xff]
        %v5326 = vld [vmem:[%s5264 + $0x1e8] sm:$0xff]
        %v5327 = vld [vmem:[%s5264 + $0x1f0] sm:$0xff]
        %v5328 = vld [vmem:[%s5264 + $0x1f8] sm:$0xff]
        %v5329 = vld [vmem:[%s5264 + $0x200] sm:$0x11]
        %v5330 = vld [vmem:[%s5264 + $0x208] sm:$0x11]
        %v5331 = vld [vmem:[%s5264 + $0x210] sm:$0x11]
        %v5332 = vld [vmem:[%s5264 + $0x218] sm:$0x11]
        %v5333 = vld [vmem:[%s5264 + $0x220] sm:$0x11]
        %v5334 = vld [vmem:[%s5264 + $0x228] sm:$0x11]
        %v5335 = vld [vmem:[%s5264 + $0x230] sm:$0x11]
        %v5336 = vld [vmem:[%s5264 + $0x238] sm:$0x11]
        %s5337 = scalar_lea.vmem %s4, 1024
        %v5338 = vld [vmem:[%s5337] sm:$0xf]
        %v5339 = vld [vmem:[%s5337 + $0x4] sm:$0xf]
        %v5340 = vld [vmem:[%s5337 + $0x8] sm:$0xf]
        %v5341 = vld [vmem:[%s5337 + $0xc] sm:$0xf]
        %v5342 = vld [vmem:[%s5337 + $0x10] sm:$0xf]
        %v5343 = vld [vmem:[%s5337 + $0x14] sm:$0xf]
        %v5344 = vld [vmem:[%s5337 + $0x18] sm:$0xf]
        %v5345 = vld [vmem:[%s5337 + $0x1c] sm:$0xf]
        %v5346 = vld [vmem:[%s5337 + $0x20] sm:$0xf]
        %v5347 = vld [vmem:[%s5337 + $0x24] sm:$0xf]
        %v5348 = vld [vmem:[%s5337 + $0x28] sm:$0xf]
        %v5349 = vld [vmem:[%s5337 + $0x2c] sm:$0xf]
        %v5350 = vld [vmem:[%s5337 + $0x30] sm:$0xf]
        %v5351 = vld [vmem:[%s5337 + $0x34] sm:$0xf]
        %v5352 = vld [vmem:[%s5337 + $0x38] sm:$0xf]
        %v5353 = vld [vmem:[%s5337 + $0x3c] sm:$0xf]
        %v5354 = vld [vmem:[%s5337 + $0x40] sm:$0xf]
        %v5355 = vld [vmem:[%s5337 + $0x44] sm:$0xf]
        %v5356 = vld [vmem:[%s5337 + $0x48] sm:$0xf]
        %v5357 = vld [vmem:[%s5337 + $0x4c] sm:$0xf]
        %v5358 = vld [vmem:[%s5337 + $0x50] sm:$0xf]
        %v5359 = vld [vmem:[%s5337 + $0x54] sm:$0xf]
        %v5360 = vld [vmem:[%s5337 + $0x58] sm:$0xf]
        %v5361 = vld [vmem:[%s5337 + $0x5c] sm:$0xf]
        %v5362 = vld [vmem:[%s5337 + $0x60] sm:$0xf]
        %v5363 = vld [vmem:[%s5337 + $0x64] sm:$0xf]
        %v5364 = vld [vmem:[%s5337 + $0x68] sm:$0xf]
        %v5365 = vld [vmem:[%s5337 + $0x6c] sm:$0xf]
        %v5366 = vld [vmem:[%s5337 + $0x70] sm:$0xf]
        %v5367 = vld [vmem:[%s5337 + $0x74] sm:$0xf]
        %v5368 = vld [vmem:[%s5337 + $0x78] sm:$0xf]
        %v5369 = vld [vmem:[%s5337 + $0x7c] sm:$0xf]
        %v5370 = vld [vmem:[%s5337 + $0x80] sm:$0xf]
        %v5371 = vld [vmem:[%s5337 + $0x84] sm:$0xf]
        %v5372 = vld [vmem:[%s5337 + $0x88] sm:$0xf]
        %v5373 = vld [vmem:[%s5337 + $0x8c] sm:$0xf]
        %v5374 = vld [vmem:[%s5337 + $0x90] sm:$0xf]
        %v5375 = vld [vmem:[%s5337 + $0x94] sm:$0xf]
        %v5376 = vld [vmem:[%s5337 + $0x98] sm:$0xf]
        %v5377 = vld [vmem:[%s5337 + $0x9c] sm:$0xf]
        %v5378 = vld [vmem:[%s5337 + $0xa0] sm:$0xf]
        %v5379 = vld [vmem:[%s5337 + $0xa4] sm:$0xf]
        %v5380 = vld [vmem:[%s5337 + $0xa8] sm:$0xf]
        %v5381 = vld [vmem:[%s5337 + $0xac] sm:$0xf]
        %v5382 = vld [vmem:[%s5337 + $0xb0] sm:$0xf]
        %v5383 = vld [vmem:[%s5337 + $0xb4] sm:$0xf]
        %v5384 = vld [vmem:[%s5337 + $0xb8] sm:$0xf]
        %v5385 = vld [vmem:[%s5337 + $0xbc] sm:$0xf]
        %v5386 = vld [vmem:[%s5337 + $0xc0] sm:$0xf]
        %v5387 = vld [vmem:[%s5337 + $0xc4] sm:$0xf]
        %v5388 = vld [vmem:[%s5337 + $0xc8] sm:$0xf]
        %v5389 = vld [vmem:[%s5337 + $0xcc] sm:$0xf]
        %v5390 = vld [vmem:[%s5337 + $0xd0] sm:$0xf]
        %v5391 = vld [vmem:[%s5337 + $0xd4] sm:$0xf]
        %v5392 = vld [vmem:[%s5337 + $0xd8] sm:$0xf]
        %v5393 = vld [vmem:[%s5337 + $0xdc] sm:$0xf]
        %v5394 = vld [vmem:[%s5337 + $0xe0] sm:$0xf]
        %v5395 = vld [vmem:[%s5337 + $0xe4] sm:$0xf]
        %v5396 = vld [vmem:[%s5337 + $0xe8] sm:$0xf]
        %v5397 = vld [vmem:[%s5337 + $0xec] sm:$0xf]
        %v5398 = vld [vmem:[%s5337 + $0xf0] sm:$0xf]
        %v5399 = vld [vmem:[%s5337 + $0xf4] sm:$0xf]
        %v5400 = vld [vmem:[%s5337 + $0xf8] sm:$0xf]
        %v5401 = vld [vmem:[%s5337 + $0xfc] sm:$0xf]
        %v5402 = vld [vmem:[%s5337 + $0x100] sm:$0xf]
        %v5403 = vld [vmem:[%s5337 + $0x104] sm:$0xf]
        %v5404 = vld [vmem:[%s5337 + $0x108] sm:$0xf]
        %v5405 = vld [vmem:[%s5337 + $0x10c] sm:$0xf]
        %v5406 = vld [vmem:[%s5337 + $0x110] sm:$0xf]
        %v5407 = vld [vmem:[%s5337 + $0x114] sm:$0xf]
        %v5408 = vld [vmem:[%s5337 + $0x118] sm:$0xf]
        %v5409 = vld [vmem:[%s5337 + $0x11c] sm:$0xf]
        %v5410 = vld [vmem:[%s5337 + $0x120] sm:$0xf]
        %v5411 = vld [vmem:[%s5337 + $0x124] sm:$0xf]
        %v5412 = vld [vmem:[%s5337 + $0x128] sm:$0xf]
        %v5413 = vld [vmem:[%s5337 + $0x12c] sm:$0xf]
        %v5414 = vld [vmem:[%s5337 + $0x130] sm:$0xf]
        %v5415 = vld [vmem:[%s5337 + $0x134] sm:$0xf]
        %v5416 = vld [vmem:[%s5337 + $0x138] sm:$0xf]
        %v5417 = vld [vmem:[%s5337 + $0x13c] sm:$0xf]
        %v5418 = vld [vmem:[%s5337 + $0x140] sm:$0xf]
        %v5419 = vld [vmem:[%s5337 + $0x144] sm:$0xf]
        %v5420 = vld [vmem:[%s5337 + $0x148] sm:$0xf]
        %v5421 = vld [vmem:[%s5337 + $0x14c] sm:$0xf]
        %v5422 = vld [vmem:[%s5337 + $0x150] sm:$0xf]
        %v5423 = vld [vmem:[%s5337 + $0x154] sm:$0xf]
        %v5424 = vld [vmem:[%s5337 + $0x158] sm:$0xf]
        %v5425 = vld [vmem:[%s5337 + $0x15c] sm:$0xf]
        %v5426 = vld [vmem:[%s5337 + $0x160] sm:$0xf]
        %v5427 = vld [vmem:[%s5337 + $0x164] sm:$0xf]
        %v5428 = vld [vmem:[%s5337 + $0x168] sm:$0xf]
        %v5429 = vld [vmem:[%s5337 + $0x16c] sm:$0xf]
        %v5430 = vld [vmem:[%s5337 + $0x170] sm:$0xf]
        %v5431 = vld [vmem:[%s5337 + $0x174] sm:$0xf]
        %v5432 = vld [vmem:[%s5337 + $0x178] sm:$0xf]
        %v5433 = vld [vmem:[%s5337 + $0x17c] sm:$0xf]
        %v5434 = vld [vmem:[%s5337 + $0x180] sm:$0xf]
        %v5435 = vld [vmem:[%s5337 + $0x184] sm:$0xf]
        %v5436 = vld [vmem:[%s5337 + $0x188] sm:$0xf]
        %v5437 = vld [vmem:[%s5337 + $0x18c] sm:$0xf]
        %v5438 = vld [vmem:[%s5337 + $0x190] sm:$0xf]
        %v5439 = vld [vmem:[%s5337 + $0x194] sm:$0xf]
        %v5440 = vld [vmem:[%s5337 + $0x198] sm:$0xf]
        %v5441 = vld [vmem:[%s5337 + $0x19c] sm:$0xf]
        %v5442 = vld [vmem:[%s5337 + $0x1a0] sm:$0xf]
        %v5443 = vld [vmem:[%s5337 + $0x1a4] sm:$0xf]
        %v5444 = vld [vmem:[%s5337 + $0x1a8] sm:$0xf]
        %v5445 = vld [vmem:[%s5337 + $0x1ac] sm:$0xf]
        %v5446 = vld [vmem:[%s5337 + $0x1b0] sm:$0xf]
        %v5447 = vld [vmem:[%s5337 + $0x1b4] sm:$0xf]
        %v5448 = vld [vmem:[%s5337 + $0x1b8] sm:$0xf]
        %v5449 = vld [vmem:[%s5337 + $0x1bc] sm:$0xf]
        %v5450 = vld [vmem:[%s5337 + $0x1c0] sm:$0xf]
        %v5451 = vld [vmem:[%s5337 + $0x1c4] sm:$0xf]
        %v5452 = vld [vmem:[%s5337 + $0x1c8] sm:$0xf]
        %v5453 = vld [vmem:[%s5337 + $0x1cc] sm:$0xf]
        %v5454 = vld [vmem:[%s5337 + $0x1d0] sm:$0xf]
        %v5455 = vld [vmem:[%s5337 + $0x1d4] sm:$0xf]
        %v5456 = vld [vmem:[%s5337 + $0x1d8] sm:$0xf]
        %v5457 = vld [vmem:[%s5337 + $0x1dc] sm:$0xf]
        %v5458 = vld [vmem:[%s5337 + $0x1e0] sm:$0xf]
        %v5459 = vld [vmem:[%s5337 + $0x1e4] sm:$0xf]
        %v5460 = vld [vmem:[%s5337 + $0x1e8] sm:$0xf]
        %v5461 = vld [vmem:[%s5337 + $0x1ec] sm:$0xf]
        %v5462 = vld [vmem:[%s5337 + $0x1f0] sm:$0xf]
        %v5463 = vld [vmem:[%s5337 + $0x1f4] sm:$0xf]
        %v5464 = vld [vmem:[%s5337 + $0x1f8] sm:$0xf]
        %v5465 = vld [vmem:[%s5337 + $0x1fc] sm:$0xf]
        %v5466 = vld [vmem:[%s5337 + $0x200] sm:$0xf]
        %v5467 = vld [vmem:[%s5337 + $0x204] sm:$0xf]
        %v5468 = vld [vmem:[%s5337 + $0x208] sm:$0xf]
        %v5469 = vld [vmem:[%s5337 + $0x20c] sm:$0xf]
        %v5470 = vld [vmem:[%s5337 + $0x210] sm:$0xf]
        %v5471 = vld [vmem:[%s5337 + $0x214] sm:$0xf]
        %v5472 = vld [vmem:[%s5337 + $0x218] sm:$0xf]
        %v5473 = vld [vmem:[%s5337 + $0x21c] sm:$0xf]
        %v5474 = vld [vmem:[%s5337 + $0x220] sm:$0xf]
        %v5475 = vld [vmem:[%s5337 + $0x224] sm:$0xf]
        %v5476 = vld [vmem:[%s5337 + $0x228] sm:$0xf]
        %v5477 = vld [vmem:[%s5337 + $0x22c] sm:$0xf]
        %v5478 = vld [vmem:[%s5337 + $0x230] sm:$0xf]
        %v5479 = vld [vmem:[%s5337 + $0x234] sm:$0xf]
        %v5480 = vld [vmem:[%s5337 + $0x238] sm:$0xf]
        %v5481 = vld [vmem:[%s5337 + $0x23c] sm:$0xf]
        %v5482 = vld [vmem:[%s5337 + $0x240] sm:$0xf]
        %v5483 = vld [vmem:[%s5337 + $0x244] sm:$0xf]
        %v5484 = vld [vmem:[%s5337 + $0x248] sm:$0xf]
        %v5485 = vld [vmem:[%s5337 + $0x24c] sm:$0xf]
        %v5486 = vld [vmem:[%s5337 + $0x250] sm:$0xf]
        %v5487 = vld [vmem:[%s5337 + $0x254] sm:$0xf]
        %v5488 = vld [vmem:[%s5337 + $0x258] sm:$0xf]
        %v5489 = vld [vmem:[%s5337 + $0x25c] sm:$0xf]
        %v5490 = vld [vmem:[%s5337 + $0x260] sm:$0xf]
        %v5491 = vld [vmem:[%s5337 + $0x264] sm:$0xf]
        %v5492 = vld [vmem:[%s5337 + $0x268] sm:$0xf]
        %v5493 = vld [vmem:[%s5337 + $0x26c] sm:$0xf]
        %v5494 = vld [vmem:[%s5337 + $0x270] sm:$0xf]
        %v5495 = vld [vmem:[%s5337 + $0x274] sm:$0xf]
        %v5496 = vld [vmem:[%s5337 + $0x278] sm:$0xf]
        %v5497 = vld [vmem:[%s5337 + $0x27c] sm:$0xf]
        %v5498 = vld [vmem:[%s5337 + $0x280] sm:$0xf]
        %v5499 = vld [vmem:[%s5337 + $0x284] sm:$0xf]
        %v5500 = vld [vmem:[%s5337 + $0x288] sm:$0xf]
        %v5501 = vld [vmem:[%s5337 + $0x28c] sm:$0xf]
        %v5502 = vld [vmem:[%s5337 + $0x290] sm:$0xf]
        %v5503 = vld [vmem:[%s5337 + $0x294] sm:$0xf]
        %v5504 = vld [vmem:[%s5337 + $0x298] sm:$0xf]
        %v5505 = vld [vmem:[%s5337 + $0x29c] sm:$0xf]
        %v5506 = vld [vmem:[%s5337 + $0x2a0] sm:$0xf]
        %v5507 = vld [vmem:[%s5337 + $0x2a4] sm:$0xf]
        %v5508 = vld [vmem:[%s5337 + $0x2a8] sm:$0xf]
        %v5509 = vld [vmem:[%s5337 + $0x2ac] sm:$0xf]
        %v5510 = vld [vmem:[%s5337 + $0x2b0] sm:$0xf]
        %v5511 = vld [vmem:[%s5337 + $0x2b4] sm:$0xf]
        %v5512 = vld [vmem:[%s5337 + $0x2b8] sm:$0xf]
        %v5513 = vld [vmem:[%s5337 + $0x2bc] sm:$0xf]
        %v5514 = vld [vmem:[%s5337 + $0x2c0] sm:$0xf]
        %v5515 = vld [vmem:[%s5337 + $0x2c4] sm:$0xf]
        %v5516 = vld [vmem:[%s5337 + $0x2c8] sm:$0xf]
        %v5517 = vld [vmem:[%s5337 + $0x2cc] sm:$0xf]
        %v5518 = vld [vmem:[%s5337 + $0x2d0] sm:$0xf]
        %v5519 = vld [vmem:[%s5337 + $0x2d4] sm:$0xf]
        %v5520 = vld [vmem:[%s5337 + $0x2d8] sm:$0xf]
        %v5521 = vld [vmem:[%s5337 + $0x2dc] sm:$0xf]
        %v5522 = vld [vmem:[%s5337 + $0x2e0] sm:$0xf]
        %v5523 = vld [vmem:[%s5337 + $0x2e4] sm:$0xf]
        %v5524 = vld [vmem:[%s5337 + $0x2e8] sm:$0xf]
        %v5525 = vld [vmem:[%s5337 + $0x2ec] sm:$0xf]
        %v5526 = vld [vmem:[%s5337 + $0x2f0] sm:$0xf]
        %v5527 = vld [vmem:[%s5337 + $0x2f4] sm:$0xf]
        %v5528 = vld [vmem:[%s5337 + $0x2f8] sm:$0xf]
        %v5529 = vld [vmem:[%s5337 + $0x2fc] sm:$0xf]
        %v5530 = vld [vmem:[%s5337 + $0x300] sm:$0xf]
        %v5531 = vld [vmem:[%s5337 + $0x304] sm:$0xf]
        %v5532 = vld [vmem:[%s5337 + $0x308] sm:$0xf]
        %v5533 = vld [vmem:[%s5337 + $0x30c] sm:$0xf]
        %v5534 = vld [vmem:[%s5337 + $0x310] sm:$0xf]
        %v5535 = vld [vmem:[%s5337 + $0x314] sm:$0xf]
        %v5536 = vld [vmem:[%s5337 + $0x318] sm:$0xf]
        %v5537 = vld [vmem:[%s5337 + $0x31c] sm:$0xf]
        %v5538 = vld [vmem:[%s5337 + $0x320] sm:$0xf]
        %v5539 = vld [vmem:[%s5337 + $0x324] sm:$0xf]
        %v5540 = vld [vmem:[%s5337 + $0x328] sm:$0xf]
        %v5541 = vld [vmem:[%s5337 + $0x32c] sm:$0xf]
        %v5542 = vld [vmem:[%s5337 + $0x330] sm:$0xf]
        %v5543 = vld [vmem:[%s5337 + $0x334] sm:$0xf]
        %v5544 = vld [vmem:[%s5337 + $0x338] sm:$0xf]
        %v5545 = vld [vmem:[%s5337 + $0x33c] sm:$0xf]
        %v5546 = vld [vmem:[%s5337 + $0x340] sm:$0xf]
        %v5547 = vld [vmem:[%s5337 + $0x344] sm:$0xf]
        %v5548 = vld [vmem:[%s5337 + $0x348] sm:$0xf]
        %v5549 = vld [vmem:[%s5337 + $0x34c] sm:$0xf]
        %v5550 = vld [vmem:[%s5337 + $0x350] sm:$0xf]
        %v5551 = vld [vmem:[%s5337 + $0x354] sm:$0xf]
        %v5552 = vld [vmem:[%s5337 + $0x358] sm:$0xf]
        %v5553 = vld [vmem:[%s5337 + $0x35c] sm:$0xf]
        %v5554 = vld [vmem:[%s5337 + $0x360] sm:$0xf]
        %v5555 = vld [vmem:[%s5337 + $0x364] sm:$0xf]
        %v5556 = vld [vmem:[%s5337 + $0x368] sm:$0xf]
        %v5557 = vld [vmem:[%s5337 + $0x36c] sm:$0xf]
        %v5558 = vld [vmem:[%s5337 + $0x370] sm:$0xf]
        %v5559 = vld [vmem:[%s5337 + $0x374] sm:$0xf]
        %v5560 = vld [vmem:[%s5337 + $0x378] sm:$0xf]
        %v5561 = vld [vmem:[%s5337 + $0x37c] sm:$0xf]
        %v5562 = vld [vmem:[%s5337 + $0x380] sm:$0xf]
        %v5563 = vld [vmem:[%s5337 + $0x384] sm:$0xf]
        %v5564 = vld [vmem:[%s5337 + $0x388] sm:$0xf]
        %v5565 = vld [vmem:[%s5337 + $0x38c] sm:$0xf]
        %v5566 = vld [vmem:[%s5337 + $0x390] sm:$0xf]
        %v5567 = vld [vmem:[%s5337 + $0x394] sm:$0xf]
        %v5568 = vld [vmem:[%s5337 + $0x398] sm:$0xf]
        %v5569 = vld [vmem:[%s5337 + $0x39c] sm:$0xf]
        %v5570 = vld [vmem:[%s5337 + $0x3a0] sm:$0xf]
        %v5571 = vld [vmem:[%s5337 + $0x3a4] sm:$0xf]
        %v5572 = vld [vmem:[%s5337 + $0x3a8] sm:$0xf]
        %v5573 = vld [vmem:[%s5337 + $0x3ac] sm:$0xf]
        %v5574 = vld [vmem:[%s5337 + $0x3b0] sm:$0xf]
        %v5575 = vld [vmem:[%s5337 + $0x3b4] sm:$0xf]
        %v5576 = vld [vmem:[%s5337 + $0x3b8] sm:$0xf]
        %v5577 = vld [vmem:[%s5337 + $0x3bc] sm:$0xf]
        %v5578 = vld [vmem:[%s5337 + $0x3c0] sm:$0xf]
        %v5579 = vld [vmem:[%s5337 + $0x3c4] sm:$0xf]
        %v5580 = vld [vmem:[%s5337 + $0x3c8] sm:$0xf]
        %v5581 = vld [vmem:[%s5337 + $0x3cc] sm:$0xf]
        %v5582 = vld [vmem:[%s5337 + $0x3d0] sm:$0xf]
        %v5583 = vld [vmem:[%s5337 + $0x3d4] sm:$0xf]
        %v5584 = vld [vmem:[%s5337 + $0x3d8] sm:$0xf]
        %v5585 = vld [vmem:[%s5337 + $0x3dc] sm:$0xf]
        %v5586 = vld [vmem:[%s5337 + $0x3e0] sm:$0xf]
        %v5587 = vld [vmem:[%s5337 + $0x3e4] sm:$0xf]
        %v5588 = vld [vmem:[%s5337 + $0x3e8] sm:$0xf]
        %v5589 = vld [vmem:[%s5337 + $0x3ec] sm:$0xf]
        %v5590 = vld [vmem:[%s5337 + $0x3f0] sm:$0xf]
        %v5591 = vld [vmem:[%s5337 + $0x3f4] sm:$0xf]
        %v5592 = vld [vmem:[%s5337 + $0x3f8] sm:$0xf]
        %v5593 = vld [vmem:[%s5337 + $0x3fc] sm:$0xf]
        %v5594 = vpack.c.bf16 %v5249, %v5248
        %v5595 = vpack.c.bf16 %v5251, %v5250
        %v5596 = vpack.c.bf16 %v5253, %v5252
        %v5597 = vpack.c.bf16 %v5255, %v5254
        %v5598 = vpack.c.bf16 %v5257, %v5256
        %v5599 = vpack.c.bf16 %v5259, %v5258
        %v5600 = vpack.c.bf16 %v5261, %v5260
        %v5601 = vpack.c.bf16 %v5263, %v5262
        %v5602 = vunpack.c.l.bf16 %v5329
        %v5603 = vunpack.c.h.bf16 %v5329
        %v5604 = vunpack.c.l.bf16 %v5330
        %v5605 = vunpack.c.h.bf16 %v5330
        %v5606 = vunpack.c.l.bf16 %v5331
        %v5607 = vunpack.c.h.bf16 %v5331
        %v5608 = vunpack.c.l.bf16 %v5332
        %v5609 = vunpack.c.h.bf16 %v5332
        %v5610 = vunpack.c.l.bf16 %v5333
        %v5611 = vunpack.c.h.bf16 %v5333
        %v5612 = vunpack.c.l.bf16 %v5334
        %v5613 = vunpack.c.h.bf16 %v5334
        %v5614 = vunpack.c.l.bf16 %v5335
        %v5615 = vunpack.c.h.bf16 %v5335
        %v5616 = vunpack.c.l.bf16 %v5336
        %v5617 = vunpack.c.h.bf16 %v5336
        %v5618 = vperm.slane %v5602, 0
        %v5619 = vperm.slane %v5603, 0
        %v5620 = vperm.slane %v5604, 0
        %v5621 = vperm.slane %v5605, 0
        %v5622 = vperm.slane %v5606, 0
        %v5623 = vperm.slane %v5607, 0
        %v5624 = vperm.slane %v5608, 0
        %v5625 = vperm.slane %v5609, 0
        %v5626 = vperm.slane %v5610, 0
        %v5627 = vperm.slane %v5611, 0
        %v5628 = vperm.slane %v5612, 0
        %v5629 = vperm.slane %v5613, 0
        %v5630 = vperm.slane %v5614, 0
        %v5631 = vperm.slane %v5615, 0
        %v5632 = vperm.slane %v5616, 0
        %v5633 = vperm.slane %v5617, 0
        %v5698 = vunpack.c.l.b16 %v5265
        %v5699 = vunpack.c.h.b16 %v5265
        %v5700 = vunpack.c.l.b16 %v5266
        %v5701 = vunpack.c.h.b16 %v5266
        %v5702 = vunpack.c.l.b16 %v5267
        %v5703 = vunpack.c.h.b16 %v5267
        %v5704 = vunpack.c.l.b16 %v5268
        %v5705 = vunpack.c.h.b16 %v5268
        %v5706 = vunpack.c.l.b16 %v5269
        %v5707 = vunpack.c.h.b16 %v5269
        %v5708 = vunpack.c.l.b16 %v5270
        %v5709 = vunpack.c.h.b16 %v5270
        %v5710 = vunpack.c.l.b16 %v5271
        %v5711 = vunpack.c.h.b16 %v5271
        %v5712 = vunpack.c.l.b16 %v5272
        %v5713 = vunpack.c.h.b16 %v5272
        %v5714 = vunpack.c.l.b16 %v5273
        %v5715 = vunpack.c.h.b16 %v5273
        %v5716 = vunpack.c.l.b16 %v5274
        %v5717 = vunpack.c.h.b16 %v5274
        %v5718 = vunpack.c.l.b16 %v5275
        %v5719 = vunpack.c.h.b16 %v5275
        %v5720 = vunpack.c.l.b16 %v5276
        %v5721 = vunpack.c.h.b16 %v5276
        %v5722 = vunpack.c.l.b16 %v5277
        %v5723 = vunpack.c.h.b16 %v5277
        %v5724 = vunpack.c.l.b16 %v5278
        %v5725 = vunpack.c.h.b16 %v5278
        %v5726 = vunpack.c.l.b16 %v5279
        %v5727 = vunpack.c.h.b16 %v5279
        %v5728 = vunpack.c.l.b16 %v5280
        %v5729 = vunpack.c.h.b16 %v5280
        %v5730 = vunpack.c.l.b16 %v5281
        %v5731 = vunpack.c.h.b16 %v5281
        %v5732 = vunpack.c.l.b16 %v5282
        %v5733 = vunpack.c.h.b16 %v5282
        %v5734 = vunpack.c.l.b16 %v5283
        %v5735 = vunpack.c.h.b16 %v5283
        %v5736 = vunpack.c.l.b16 %v5284
        %v5737 = vunpack.c.h.b16 %v5284
        %v5738 = vunpack.c.l.b16 %v5285
        %v5739 = vunpack.c.h.b16 %v5285
        %v5740 = vunpack.c.l.b16 %v5286
        %v5741 = vunpack.c.h.b16 %v5286
        %v5742 = vunpack.c.l.b16 %v5287
        %v5743 = vunpack.c.h.b16 %v5287
        %v5744 = vunpack.c.l.b16 %v5288
        %v5745 = vunpack.c.h.b16 %v5288
        %v5746 = vunpack.c.l.b16 %v5289
        %v5747 = vunpack.c.h.b16 %v5289
        %v5748 = vunpack.c.l.b16 %v5290
        %v5749 = vunpack.c.h.b16 %v5290
        %v5750 = vunpack.c.l.b16 %v5291
        %v5751 = vunpack.c.h.b16 %v5291
        %v5752 = vunpack.c.l.b16 %v5292
        %v5753 = vunpack.c.h.b16 %v5292
        %v5754 = vunpack.c.l.b16 %v5293
        %v5755 = vunpack.c.h.b16 %v5293
        %v5756 = vunpack.c.l.b16 %v5294
        %v5757 = vunpack.c.h.b16 %v5294
        %v5758 = vunpack.c.l.b16 %v5295
        %v5759 = vunpack.c.h.b16 %v5295
        %v5760 = vunpack.c.l.b16 %v5296
        %v5761 = vunpack.c.h.b16 %v5296
        %v5762 = vunpack.c.l.b16 %v5297
        %v5763 = vunpack.c.h.b16 %v5297
        %v5764 = vunpack.c.l.b16 %v5298
        %v5765 = vunpack.c.h.b16 %v5298
        %v5766 = vunpack.c.l.b16 %v5299
        %v5767 = vunpack.c.h.b16 %v5299
        %v5768 = vunpack.c.l.b16 %v5300
        %v5769 = vunpack.c.h.b16 %v5300
        %v5770 = vunpack.c.l.b16 %v5301
        %v5771 = vunpack.c.h.b16 %v5301
        %v5772 = vunpack.c.l.b16 %v5302
        %v5773 = vunpack.c.h.b16 %v5302
        %v5774 = vunpack.c.l.b16 %v5303
        %v5775 = vunpack.c.h.b16 %v5303
        %v5776 = vunpack.c.l.b16 %v5304
        %v5777 = vunpack.c.h.b16 %v5304
        %v5778 = vunpack.c.l.b16 %v5305
        %v5779 = vunpack.c.h.b16 %v5305
        %v5780 = vunpack.c.l.b16 %v5306
        %v5781 = vunpack.c.h.b16 %v5306
        %v5782 = vunpack.c.l.b16 %v5307
        %v5783 = vunpack.c.h.b16 %v5307
        %v5784 = vunpack.c.l.b16 %v5308
        %v5785 = vunpack.c.h.b16 %v5308
        %v5786 = vunpack.c.l.b16 %v5309
        %v5787 = vunpack.c.h.b16 %v5309
        %v5788 = vunpack.c.l.b16 %v5310
        %v5789 = vunpack.c.h.b16 %v5310
        %v5790 = vunpack.c.l.b16 %v5311
        %v5791 = vunpack.c.h.b16 %v5311
        %v5792 = vunpack.c.l.b16 %v5312
        %v5793 = vunpack.c.h.b16 %v5312
        %v5794 = vunpack.c.l.b16 %v5313
        %v5795 = vunpack.c.h.b16 %v5313
        %v5796 = vunpack.c.l.b16 %v5314
        %v5797 = vunpack.c.h.b16 %v5314
        %v5798 = vunpack.c.l.b16 %v5315
        %v5799 = vunpack.c.h.b16 %v5315
        %v5800 = vunpack.c.l.b16 %v5316
        %v5801 = vunpack.c.h.b16 %v5316
        %v5802 = vunpack.c.l.b16 %v5317
        %v5803 = vunpack.c.h.b16 %v5317
        %v5804 = vunpack.c.l.b16 %v5318
        %v5805 = vunpack.c.h.b16 %v5318
        %v5806 = vunpack.c.l.b16 %v5319
        %v5807 = vunpack.c.h.b16 %v5319
        %v5808 = vunpack.c.l.b16 %v5320
        %v5809 = vunpack.c.h.b16 %v5320
        %v5810 = vunpack.c.l.b16 %v5321
        %v5811 = vunpack.c.h.b16 %v5321
        %v5812 = vunpack.c.l.b16 %v5322
        %v5813 = vunpack.c.h.b16 %v5322
        %v5814 = vunpack.c.l.b16 %v5323
        %v5815 = vunpack.c.h.b16 %v5323
        %v5816 = vunpack.c.l.b16 %v5324
        %v5817 = vunpack.c.h.b16 %v5324
        %v5818 = vunpack.c.l.b16 %v5325
        %v5819 = vunpack.c.h.b16 %v5325
        %v5820 = vunpack.c.l.b16 %v5326
        %v5821 = vunpack.c.h.b16 %v5326
        %v5822 = vunpack.c.l.b16 %v5327
        %v5823 = vunpack.c.h.b16 %v5327
        %v5824 = vunpack.c.l.b16 %v5328
        %v5825 = vunpack.c.h.b16 %v5328
        %v5826 = vpack.c.b16 %v5714, %v5698
        %v5827 = vpack.c.b16 %v5715, %v5699
        %v5828 = vpack.c.b16 %v5716, %v5700
        %v5829 = vpack.c.b16 %v5717, %v5701
        %v5830 = vpack.c.b16 %v5718, %v5702
        %v5831 = vpack.c.b16 %v5719, %v5703
        %v5832 = vpack.c.b16 %v5720, %v5704
        %v5833 = vpack.c.b16 %v5721, %v5705
        %v5834 = vpack.c.b16 %v5722, %v5706
        %v5835 = vpack.c.b16 %v5723, %v5707
        %v5836 = vpack.c.b16 %v5724, %v5708
        %v5837 = vpack.c.b16 %v5725, %v5709
        %v5838 = vpack.c.b16 %v5726, %v5710
        %v5839 = vpack.c.b16 %v5727, %v5711
        %v5840 = vpack.c.b16 %v5728, %v5712
        %v5841 = vpack.c.b16 %v5729, %v5713
        %v5842 = vpack.c.b16 %v5746, %v5730
        %v5843 = vpack.c.b16 %v5747, %v5731
        %v5844 = vpack.c.b16 %v5748, %v5732
        %v5845 = vpack.c.b16 %v5749, %v5733
        %v5846 = vpack.c.b16 %v5750, %v5734
        %v5847 = vpack.c.b16 %v5751, %v5735
        %v5848 = vpack.c.b16 %v5752, %v5736
        %v5849 = vpack.c.b16 %v5753, %v5737
        %v5850 = vpack.c.b16 %v5754, %v5738
        %v5851 = vpack.c.b16 %v5755, %v5739
        %v5852 = vpack.c.b16 %v5756, %v5740
        %v5853 = vpack.c.b16 %v5757, %v5741
        %v5854 = vpack.c.b16 %v5758, %v5742
        %v5855 = vpack.c.b16 %v5759, %v5743
        %v5856 = vpack.c.b16 %v5760, %v5744
        %v5857 = vpack.c.b16 %v5761, %v5745
        %v5858 = vpack.c.b16 %v5778, %v5762
        %v5859 = vpack.c.b16 %v5779, %v5763
        %v5860 = vpack.c.b16 %v5780, %v5764
        %v5861 = vpack.c.b16 %v5781, %v5765
        %v5862 = vpack.c.b16 %v5782, %v5766
        %v5863 = vpack.c.b16 %v5783, %v5767
        %v5864 = vpack.c.b16 %v5784, %v5768
        %v5865 = vpack.c.b16 %v5785, %v5769
        %v5866 = vpack.c.b16 %v5786, %v5770
        %v5867 = vpack.c.b16 %v5787, %v5771
        %v5868 = vpack.c.b16 %v5788, %v5772
        %v5869 = vpack.c.b16 %v5789, %v5773
        %v5870 = vpack.c.b16 %v5790, %v5774
        %v5871 = vpack.c.b16 %v5791, %v5775
        %v5872 = vpack.c.b16 %v5792, %v5776
        %v5873 = vpack.c.b16 %v5793, %v5777
        %v5874 = vpack.c.b16 %v5810, %v5794
        %v5875 = vpack.c.b16 %v5811, %v5795
        %v5876 = vpack.c.b16 %v5812, %v5796
        %v5877 = vpack.c.b16 %v5813, %v5797
        %v5878 = vpack.c.b16 %v5814, %v5798
        %v5879 = vpack.c.b16 %v5815, %v5799
        %v5880 = vpack.c.b16 %v5816, %v5800
        %v5881 = vpack.c.b16 %v5817, %v5801
        %v5882 = vpack.c.b16 %v5818, %v5802
        %v5883 = vpack.c.b16 %v5819, %v5803
        %v5884 = vpack.c.b16 %v5820, %v5804
        %v5885 = vpack.c.b16 %v5821, %v5805
        %v5886 = vpack.c.b16 %v5822, %v5806
        %v5887 = vpack.c.b16 %v5823, %v5807
        %v5888 = vpack.c.b16 %v5824, %v5808
        %v5889 = vpack.c.b16 %v5825, %v5809
        %v5955 = vsel %vm376, %v5594, 0
        %v5958 = vsel %vm376, %v5595, 0
        %v5961 = vsel %vm376, %v5596, 0
        %v5964 = vsel %vm376, %v5597, 0
        %v5967 = vsel %vm376, %v5598, 0
        %v5970 = vsel %vm376, %v5599, 0
        %v5973 = vsel %vm376, %v5600, 0
        %v5976 = vsel %vm376, %v5601, 0
        %5978 = vmatpush.bf16.msra.mxu0 0
        %5979 = vmatpush.bf16.msra.mxu0 0
        %5980 = vmatpush.bf16.msra.mxu0 0
        %5981 = vmatpush.bf16.msra.mxu0 0
        %5982 = vmatpush.bf16.msra.mxu0 %v5874
        %5983 = vmatpush.bf16.msra.mxu0 %v5858
        %5984 = vmatpush.bf16.msra.mxu0 %v5842
        %5985 = vmatpush.bf16.msra.mxu0 %v5826
        %5986 = vmatmul.bf16.gmra.mxu0 %v5955
        %v5987 = vpop.f32.mrf.mxu0
        %v5988 = vadd.f32 %v5618, %v5987
        %v5989 = vpop.f32.mrf.mxu0
        %v5990 = vadd.f32 %v5618, %v5989
        %5991 = vmatmul.bf16.gmra.mxu0 %v5958
        %v5992 = vpop.f32.mrf.mxu0
        %v5993 = vadd.f32 %v5618, %v5992
        %v5994 = vpop.f32.mrf.mxu0
        %v5995 = vadd.f32 %v5618, %v5994
        %5996 = vmatmul.bf16.gmra.mxu0 %v5961
        %v5997 = vpop.f32.mrf.mxu0
        %v5998 = vadd.f32 %v5618, %v5997
        %v5999 = vpop.f32.mrf.mxu0
        %v6000 = vadd.f32 %v5618, %v5999
        %6001 = vmatmul.bf16.gmra.mxu0 %v5964
        %v6002 = vpop.f32.mrf.mxu0
        %v6003 = vadd.f32 %v5618, %v6002
        %v6004 = vpop.f32.mrf.mxu0
        %v6005 = vadd.f32 %v5618, %v6004
        %6006 = vmatmul.bf16.gmra.mxu0 %v5967
        %v6007 = vpop.f32.mrf.mxu0
        %v6008 = vadd.f32 %v5618, %v6007
        %v6009 = vpop.f32.mrf.mxu0
        %v6010 = vadd.f32 %v5618, %v6009
        %6011 = vmatmul.bf16.gmra.mxu0 %v5970
        %v6012 = vpop.f32.mrf.mxu0
        %v6013 = vadd.f32 %v5618, %v6012
        %v6014 = vpop.f32.mrf.mxu0
        %v6015 = vadd.f32 %v5618, %v6014
        %6016 = vmatmul.bf16.gmra.mxu0 %v5973
        %v6017 = vpop.f32.mrf.mxu0
        %v6018 = vadd.f32 %v5618, %v6017
        %v6019 = vpop.f32.mrf.mxu0
        %v6020 = vadd.f32 %v5618, %v6019
        %6021 = vmatmul.bf16.gmra.mxu0 %v5976
        %v6022 = vpop.f32.mrf.mxu0
        %v6023 = vadd.f32 %v5618, %v6022
        %v6024 = vpop.f32.mrf.mxu0
        %v6025 = vadd.f32 %v5618, %v6024
        %6026 = vdwg.mxu0
        %6027 = vmatpush.bf16.msra.mxu0 0
        %6028 = vmatpush.bf16.msra.mxu0 0
        %6029 = vmatpush.bf16.msra.mxu0 0
        %6030 = vmatpush.bf16.msra.mxu0 0
        %6031 = vmatpush.bf16.msra.mxu0 %v5875
        %6032 = vmatpush.bf16.msra.mxu0 %v5859
        %6033 = vmatpush.bf16.msra.mxu0 %v5843
        %6034 = vmatpush.bf16.msra.mxu0 %v5827
        %6035 = vmatmul.bf16.gmra.mxu0 %v5955
        %v6036 = vpop.f32.mrf.mxu0
        %v6037 = vadd.f32 %v5619, %v6036
        %v6038 = vpop.f32.mrf.mxu0
        %v6039 = vadd.f32 %v5619, %v6038
        %6040 = vmatmul.bf16.gmra.mxu0 %v5958
        %v6041 = vpop.f32.mrf.mxu0
        %v6042 = vadd.f32 %v5619, %v6041
        %v6043 = vpop.f32.mrf.mxu0
        %v6044 = vadd.f32 %v5619, %v6043
        %6045 = vmatmul.bf16.gmra.mxu0 %v5961
        %v6046 = vpop.f32.mrf.mxu0
        %v6047 = vadd.f32 %v5619, %v6046
        %v6048 = vpop.f32.mrf.mxu0
        %v6049 = vadd.f32 %v5619, %v6048
        %6050 = vmatmul.bf16.gmra.mxu0 %v5964
        %v6051 = vpop.f32.mrf.mxu0
        %v6052 = vadd.f32 %v5619, %v6051
        %v6053 = vpop.f32.mrf.mxu0
        %v6054 = vadd.f32 %v5619, %v6053
        %6055 = vmatmul.bf16.gmra.mxu0 %v5967
        %v6056 = vpop.f32.mrf.mxu0
        %v6057 = vadd.f32 %v5619, %v6056
        %v6058 = vpop.f32.mrf.mxu0
        %v6059 = vadd.f32 %v5619, %v6058
        %6060 = vmatmul.bf16.gmra.mxu0 %v5970
        %v6061 = vpop.f32.mrf.mxu0
        %v6062 = vadd.f32 %v5619, %v6061
        %v6063 = vpop.f32.mrf.mxu0
        %v6064 = vadd.f32 %v5619, %v6063
        %6065 = vmatmul.bf16.gmra.mxu0 %v5973
        %v6066 = vpop.f32.mrf.mxu0
        %v6067 = vadd.f32 %v5619, %v6066
        %v6068 = vpop.f32.mrf.mxu0
        %v6069 = vadd.f32 %v5619, %v6068
        %6070 = vmatmul.bf16.gmra.mxu0 %v5976
        %v6071 = vpop.f32.mrf.mxu0
        %v6072 = vadd.f32 %v5619, %v6071
        %v6073 = vpop.f32.mrf.mxu0
        %v6074 = vadd.f32 %v5619, %v6073
        %6075 = vdwg.mxu0
        %6076 = vmatpush.bf16.msra.mxu0 0
        %6077 = vmatpush.bf16.msra.mxu0 0
        %6078 = vmatpush.bf16.msra.mxu0 0
        %6079 = vmatpush.bf16.msra.mxu0 0
        %6080 = vmatpush.bf16.msra.mxu0 %v5876
        %6081 = vmatpush.bf16.msra.mxu0 %v5860
        %6082 = vmatpush.bf16.msra.mxu0 %v5844
        %6083 = vmatpush.bf16.msra.mxu0 %v5828
        %6084 = vmatmul.bf16.gmra.mxu0 %v5955
        %v6085 = vpop.f32.mrf.mxu0
        %v6086 = vadd.f32 %v5620, %v6085
        %v6087 = vpop.f32.mrf.mxu0
        %v6088 = vadd.f32 %v5620, %v6087
        %6089 = vmatmul.bf16.gmra.mxu0 %v5958
        %v6090 = vpop.f32.mrf.mxu0
        %v6091 = vadd.f32 %v5620, %v6090
        %v6092 = vpop.f32.mrf.mxu0
        %v6093 = vadd.f32 %v5620, %v6092
        %6094 = vmatmul.bf16.gmra.mxu0 %v5961
        %v6095 = vpop.f32.mrf.mxu0
        %v6096 = vadd.f32 %v5620, %v6095
        %v6097 = vpop.f32.mrf.mxu0
        %v6098 = vadd.f32 %v5620, %v6097
        %6099 = vmatmul.bf16.gmra.mxu0 %v5964
        %v6100 = vpop.f32.mrf.mxu0
        %v6101 = vadd.f32 %v5620, %v6100
        %v6102 = vpop.f32.mrf.mxu0
        %v6103 = vadd.f32 %v5620, %v6102
        %6104 = vmatmul.bf16.gmra.mxu0 %v5967
        %v6105 = vpop.f32.mrf.mxu0
        %v6106 = vadd.f32 %v5620, %v6105
        %v6107 = vpop.f32.mrf.mxu0
        %v6108 = vadd.f32 %v5620, %v6107
        %6109 = vmatmul.bf16.gmra.mxu0 %v5970
        %v6110 = vpop.f32.mrf.mxu0
        %v6111 = vadd.f32 %v5620, %v6110
        %v6112 = vpop.f32.mrf.mxu0
        %v6113 = vadd.f32 %v5620, %v6112
        %6114 = vmatmul.bf16.gmra.mxu0 %v5973
        %v6115 = vpop.f32.mrf.mxu0
        %v6116 = vadd.f32 %v5620, %v6115
        %v6117 = vpop.f32.mrf.mxu0
        %v6118 = vadd.f32 %v5620, %v6117
        %6119 = vmatmul.bf16.gmra.mxu0 %v5976
        %v6120 = vpop.f32.mrf.mxu0
        %v6121 = vadd.f32 %v5620, %v6120
        %v6122 = vpop.f32.mrf.mxu0
        %v6123 = vadd.f32 %v5620, %v6122
        %6124 = vdwg.mxu0
        %6125 = vmatpush.bf16.msra.mxu0 0
        %6126 = vmatpush.bf16.msra.mxu0 0
        %6127 = vmatpush.bf16.msra.mxu0 0
        %6128 = vmatpush.bf16.msra.mxu0 0
        %6129 = vmatpush.bf16.msra.mxu0 %v5877
        %6130 = vmatpush.bf16.msra.mxu0 %v5861
        %6131 = vmatpush.bf16.msra.mxu0 %v5845
        %6132 = vmatpush.bf16.msra.mxu0 %v5829
        %6133 = vmatmul.bf16.gmra.mxu0 %v5955
        %v6134 = vpop.f32.mrf.mxu0
        %v6135 = vadd.f32 %v5621, %v6134
        %v6136 = vpop.f32.mrf.mxu0
        %v6137 = vadd.f32 %v5621, %v6136
        %6138 = vmatmul.bf16.gmra.mxu0 %v5958
        %v6139 = vpop.f32.mrf.mxu0
        %v6140 = vadd.f32 %v5621, %v6139
        %v6141 = vpop.f32.mrf.mxu0
        %v6142 = vadd.f32 %v5621, %v6141
        %6143 = vmatmul.bf16.gmra.mxu0 %v5961
        %v6144 = vpop.f32.mrf.mxu0
        %v6145 = vadd.f32 %v5621, %v6144
        %v6146 = vpop.f32.mrf.mxu0
        %v6147 = vadd.f32 %v5621, %v6146
        %6148 = vmatmul.bf16.gmra.mxu0 %v5964
        %v6149 = vpop.f32.mrf.mxu0
        %v6150 = vadd.f32 %v5621, %v6149
        %v6151 = vpop.f32.mrf.mxu0
        %v6152 = vadd.f32 %v5621, %v6151
        %6153 = vmatmul.bf16.gmra.mxu0 %v5967
        %v6154 = vpop.f32.mrf.mxu0
        %v6155 = vadd.f32 %v5621, %v6154
        %v6156 = vpop.f32.mrf.mxu0
        %v6157 = vadd.f32 %v5621, %v6156
        %6158 = vmatmul.bf16.gmra.mxu0 %v5970
        %v6159 = vpop.f32.mrf.mxu0
        %v6160 = vadd.f32 %v5621, %v6159
        %v6161 = vpop.f32.mrf.mxu0
        %v6162 = vadd.f32 %v5621, %v6161
        %6163 = vmatmul.bf16.gmra.mxu0 %v5973
        %v6164 = vpop.f32.mrf.mxu0
        %v6165 = vadd.f32 %v5621, %v6164
        %v6166 = vpop.f32.mrf.mxu0
        %v6167 = vadd.f32 %v5621, %v6166
        %6168 = vmatmul.bf16.gmra.mxu0 %v5976
        %v6169 = vpop.f32.mrf.mxu0
        %v6170 = vadd.f32 %v5621, %v6169
        %v6171 = vpop.f32.mrf.mxu0
        %v6172 = vadd.f32 %v5621, %v6171
        %6173 = vdwg.mxu0
        %6174 = vmatpush.bf16.msra.mxu0 0
        %6175 = vmatpush.bf16.msra.mxu0 0
        %6176 = vmatpush.bf16.msra.mxu0 0
        %6177 = vmatpush.bf16.msra.mxu0 0
        %6178 = vmatpush.bf16.msra.mxu0 %v5878
        %6179 = vmatpush.bf16.msra.mxu0 %v5862
        %6180 = vmatpush.bf16.msra.mxu0 %v5846
        %6181 = vmatpush.bf16.msra.mxu0 %v5830
        %6182 = vmatmul.bf16.gmra.mxu0 %v5955
        %v6183 = vpop.f32.mrf.mxu0
        %v6184 = vadd.f32 %v5622, %v6183
        %v6185 = vpop.f32.mrf.mxu0
        %v6186 = vadd.f32 %v5622, %v6185
        %6187 = vmatmul.bf16.gmra.mxu0 %v5958
        %v6188 = vpop.f32.mrf.mxu0
        %v6189 = vadd.f32 %v5622, %v6188
        %v6190 = vpop.f32.mrf.mxu0
        %v6191 = vadd.f32 %v5622, %v6190
        %6192 = vmatmul.bf16.gmra.mxu0 %v5961
        %v6193 = vpop.f32.mrf.mxu0
        %v6194 = vadd.f32 %v5622, %v6193
        %v6195 = vpop.f32.mrf.mxu0
        %v6196 = vadd.f32 %v5622, %v6195
        %6197 = vmatmul.bf16.gmra.mxu0 %v5964
        %v6198 = vpop.f32.mrf.mxu0
        %v6199 = vadd.f32 %v5622, %v6198
        %v6200 = vpop.f32.mrf.mxu0
        %v6201 = vadd.f32 %v5622, %v6200
        %6202 = vmatmul.bf16.gmra.mxu0 %v5967
        %v6203 = vpop.f32.mrf.mxu0
        %v6204 = vadd.f32 %v5622, %v6203
        %v6205 = vpop.f32.mrf.mxu0
        %v6206 = vadd.f32 %v5622, %v6205
        %6207 = vmatmul.bf16.gmra.mxu0 %v5970
        %v6208 = vpop.f32.mrf.mxu0
        %v6209 = vadd.f32 %v5622, %v6208
        %v6210 = vpop.f32.mrf.mxu0
        %v6211 = vadd.f32 %v5622, %v6210
        %6212 = vmatmul.bf16.gmra.mxu0 %v5973
        %v6213 = vpop.f32.mrf.mxu0
        %v6214 = vadd.f32 %v5622, %v6213
        %v6215 = vpop.f32.mrf.mxu0
        %v6216 = vadd.f32 %v5622, %v6215
        %6217 = vmatmul.bf16.gmra.mxu0 %v5976
        %v6218 = vpop.f32.mrf.mxu0
        %v6219 = vadd.f32 %v5622, %v6218
        %v6220 = vpop.f32.mrf.mxu0
        %v6221 = vadd.f32 %v5622, %v6220
        %6222 = vdwg.mxu0
        %6223 = vmatpush.bf16.msra.mxu0 0
        %6224 = vmatpush.bf16.msra.mxu0 0
        %6225 = vmatpush.bf16.msra.mxu0 0
        %6226 = vmatpush.bf16.msra.mxu0 0
        %6227 = vmatpush.bf16.msra.mxu0 %v5879
        %6228 = vmatpush.bf16.msra.mxu0 %v5863
        %6229 = vmatpush.bf16.msra.mxu0 %v5847
        %6230 = vmatpush.bf16.msra.mxu0 %v5831
        %6231 = vmatmul.bf16.gmra.mxu0 %v5955
        %v6232 = vpop.f32.mrf.mxu0
        %v6233 = vadd.f32 %v5623, %v6232
        %v6234 = vpop.f32.mrf.mxu0
        %v6235 = vadd.f32 %v5623, %v6234
        %6236 = vmatmul.bf16.gmra.mxu0 %v5958
        %v6237 = vpop.f32.mrf.mxu0
        %v6238 = vadd.f32 %v5623, %v6237
        %v6239 = vpop.f32.mrf.mxu0
        %v6240 = vadd.f32 %v5623, %v6239
        %6241 = vmatmul.bf16.gmra.mxu0 %v5961
        %v6242 = vpop.f32.mrf.mxu0
        %v6243 = vadd.f32 %v5623, %v6242
        %v6244 = vpop.f32.mrf.mxu0
        %v6245 = vadd.f32 %v5623, %v6244
        %6246 = vmatmul.bf16.gmra.mxu0 %v5964
        %v6247 = vpop.f32.mrf.mxu0
        %v6248 = vadd.f32 %v5623, %v6247
        %v6249 = vpop.f32.mrf.mxu0
        %v6250 = vadd.f32 %v5623, %v6249
        %6251 = vmatmul.bf16.gmra.mxu0 %v5967
        %v6252 = vpop.f32.mrf.mxu0
        %v6253 = vadd.f32 %v5623, %v6252
        %v6254 = vpop.f32.mrf.mxu0
        %v6255 = vadd.f32 %v5623, %v6254
        %6256 = vmatmul.bf16.gmra.mxu0 %v5970
        %v6257 = vpop.f32.mrf.mxu0
        %v6258 = vadd.f32 %v5623, %v6257
        %v6259 = vpop.f32.mrf.mxu0
        %v6260 = vadd.f32 %v5623, %v6259
        %6261 = vmatmul.bf16.gmra.mxu0 %v5973
        %v6262 = vpop.f32.mrf.mxu0
        %v6263 = vadd.f32 %v5623, %v6262
        %v6264 = vpop.f32.mrf.mxu0
        %v6265 = vadd.f32 %v5623, %v6264
        %6266 = vmatmul.bf16.gmra.mxu0 %v5976
        %v6267 = vpop.f32.mrf.mxu0
        %v6268 = vadd.f32 %v5623, %v6267
        %v6269 = vpop.f32.mrf.mxu0
        %v6270 = vadd.f32 %v5623, %v6269
        %6271 = vdwg.mxu0
        %6272 = vmatpush.bf16.msra.mxu0 0
        %6273 = vmatpush.bf16.msra.mxu0 0
        %6274 = vmatpush.bf16.msra.mxu0 0
        %6275 = vmatpush.bf16.msra.mxu0 0
        %6276 = vmatpush.bf16.msra.mxu0 %v5880
        %6277 = vmatpush.bf16.msra.mxu0 %v5864
        %6278 = vmatpush.bf16.msra.mxu0 %v5848
        %6279 = vmatpush.bf16.msra.mxu0 %v5832
        %6280 = vmatmul.bf16.gmra.mxu0 %v5955
        %v6281 = vpop.f32.mrf.mxu0
        %v6282 = vadd.f32 %v5624, %v6281
        %v6283 = vpop.f32.mrf.mxu0
        %v6284 = vadd.f32 %v5624, %v6283
        %6285 = vmatmul.bf16.gmra.mxu0 %v5958
        %v6286 = vpop.f32.mrf.mxu0
        %v6287 = vadd.f32 %v5624, %v6286
        %v6288 = vpop.f32.mrf.mxu0
        %v6289 = vadd.f32 %v5624, %v6288
        %6290 = vmatmul.bf16.gmra.mxu0 %v5961
        %v6291 = vpop.f32.mrf.mxu0
        %v6292 = vadd.f32 %v5624, %v6291
        %v6293 = vpop.f32.mrf.mxu0
        %v6294 = vadd.f32 %v5624, %v6293
        %6295 = vmatmul.bf16.gmra.mxu0 %v5964
        %v6296 = vpop.f32.mrf.mxu0
        %v6297 = vadd.f32 %v5624, %v6296
        %v6298 = vpop.f32.mrf.mxu0
        %v6299 = vadd.f32 %v5624, %v6298
        %6300 = vmatmul.bf16.gmra.mxu0 %v5967
        %v6301 = vpop.f32.mrf.mxu0
        %v6302 = vadd.f32 %v5624, %v6301
        %v6303 = vpop.f32.mrf.mxu0
        %v6304 = vadd.f32 %v5624, %v6303
        %6305 = vmatmul.bf16.gmra.mxu0 %v5970
        %v6306 = vpop.f32.mrf.mxu0
        %v6307 = vadd.f32 %v5624, %v6306
        %v6308 = vpop.f32.mrf.mxu0
        %v6309 = vadd.f32 %v5624, %v6308
        %6310 = vmatmul.bf16.gmra.mxu0 %v5973
        %v6311 = vpop.f32.mrf.mxu0
        %v6312 = vadd.f32 %v5624, %v6311
        %v6313 = vpop.f32.mrf.mxu0
        %v6314 = vadd.f32 %v5624, %v6313
        %6315 = vmatmul.bf16.gmra.mxu0 %v5976
        %v6316 = vpop.f32.mrf.mxu0
        %v6317 = vadd.f32 %v5624, %v6316
        %v6318 = vpop.f32.mrf.mxu0
        %v6319 = vadd.f32 %v5624, %v6318
        %6320 = vdwg.mxu0
        %6321 = vmatpush.bf16.msra.mxu0 0
        %6322 = vmatpush.bf16.msra.mxu0 0
        %6323 = vmatpush.bf16.msra.mxu0 0
        %6324 = vmatpush.bf16.msra.mxu0 0
        %6325 = vmatpush.bf16.msra.mxu0 %v5881
        %6326 = vmatpush.bf16.msra.mxu0 %v5865
        %6327 = vmatpush.bf16.msra.mxu0 %v5849
        %6328 = vmatpush.bf16.msra.mxu0 %v5833
        %6329 = vmatmul.bf16.gmra.mxu0 %v5955
        %v6330 = vpop.f32.mrf.mxu0
        %v6331 = vadd.f32 %v5625, %v6330
        %v6332 = vpop.f32.mrf.mxu0
        %v6333 = vadd.f32 %v5625, %v6332
        %6334 = vmatmul.bf16.gmra.mxu0 %v5958
        %v6335 = vpop.f32.mrf.mxu0
        %v6336 = vadd.f32 %v5625, %v6335
        %v6337 = vpop.f32.mrf.mxu0
        %v6338 = vadd.f32 %v5625, %v6337
        %6339 = vmatmul.bf16.gmra.mxu0 %v5961
        %v6340 = vpop.f32.mrf.mxu0
        %v6341 = vadd.f32 %v5625, %v6340
        %v6342 = vpop.f32.mrf.mxu0
        %v6343 = vadd.f32 %v5625, %v6342
        %6344 = vmatmul.bf16.gmra.mxu0 %v5964
        %v6345 = vpop.f32.mrf.mxu0
        %v6346 = vadd.f32 %v5625, %v6345
        %v6347 = vpop.f32.mrf.mxu0
        %v6348 = vadd.f32 %v5625, %v6347
        %6349 = vmatmul.bf16.gmra.mxu0 %v5967
        %v6350 = vpop.f32.mrf.mxu0
        %v6351 = vadd.f32 %v5625, %v6350
        %v6352 = vpop.f32.mrf.mxu0
        %v6353 = vadd.f32 %v5625, %v6352
        %6354 = vmatmul.bf16.gmra.mxu0 %v5970
        %v6355 = vpop.f32.mrf.mxu0
        %v6356 = vadd.f32 %v5625, %v6355
        %v6357 = vpop.f32.mrf.mxu0
        %v6358 = vadd.f32 %v5625, %v6357
        %6359 = vmatmul.bf16.gmra.mxu0 %v5973
        %v6360 = vpop.f32.mrf.mxu0
        %v6361 = vadd.f32 %v5625, %v6360
        %v6362 = vpop.f32.mrf.mxu0
        %v6363 = vadd.f32 %v5625, %v6362
        %6364 = vmatmul.bf16.gmra.mxu0 %v5976
        %v6365 = vpop.f32.mrf.mxu0
        %v6366 = vadd.f32 %v5625, %v6365
        %v6367 = vpop.f32.mrf.mxu0
        %v6368 = vadd.f32 %v5625, %v6367
        %6369 = vdwg.mxu0
        %6370 = vmatpush.bf16.msra.mxu0 0
        %6371 = vmatpush.bf16.msra.mxu0 0
        %6372 = vmatpush.bf16.msra.mxu0 0
        %6373 = vmatpush.bf16.msra.mxu0 0
        %6374 = vmatpush.bf16.msra.mxu0 %v5882
        %6375 = vmatpush.bf16.msra.mxu0 %v5866
        %6376 = vmatpush.bf16.msra.mxu0 %v5850
        %6377 = vmatpush.bf16.msra.mxu0 %v5834
        %6378 = vmatmul.bf16.gmra.mxu0 %v5955
        %v6379 = vpop.f32.mrf.mxu0
        %v6380 = vadd.f32 %v5626, %v6379
        %v6381 = vpop.f32.mrf.mxu0
        %v6382 = vadd.f32 %v5626, %v6381
        %6383 = vmatmul.bf16.gmra.mxu0 %v5958
        %v6384 = vpop.f32.mrf.mxu0
        %v6385 = vadd.f32 %v5626, %v6384
        %v6386 = vpop.f32.mrf.mxu0
        %v6387 = vadd.f32 %v5626, %v6386
        %6388 = vmatmul.bf16.gmra.mxu0 %v5961
        %v6389 = vpop.f32.mrf.mxu0
        %v6390 = vadd.f32 %v5626, %v6389
        %v6391 = vpop.f32.mrf.mxu0
        %v6392 = vadd.f32 %v5626, %v6391
        %6393 = vmatmul.bf16.gmra.mxu0 %v5964
        %v6394 = vpop.f32.mrf.mxu0
        %v6395 = vadd.f32 %v5626, %v6394
        %v6396 = vpop.f32.mrf.mxu0
        %v6397 = vadd.f32 %v5626, %v6396
        %6398 = vmatmul.bf16.gmra.mxu0 %v5967
        %v6399 = vpop.f32.mrf.mxu0
        %v6400 = vadd.f32 %v5626, %v6399
        %v6401 = vpop.f32.mrf.mxu0
        %v6402 = vadd.f32 %v5626, %v6401
        %6403 = vmatmul.bf16.gmra.mxu0 %v5970
        %v6404 = vpop.f32.mrf.mxu0
        %v6405 = vadd.f32 %v5626, %v6404
        %v6406 = vpop.f32.mrf.mxu0
        %v6407 = vadd.f32 %v5626, %v6406
        %6408 = vmatmul.bf16.gmra.mxu0 %v5973
        %v6409 = vpop.f32.mrf.mxu0
        %v6410 = vadd.f32 %v5626, %v6409
        %v6411 = vpop.f32.mrf.mxu0
        %v6412 = vadd.f32 %v5626, %v6411
        %6413 = vmatmul.bf16.gmra.mxu0 %v5976
        %v6414 = vpop.f32.mrf.mxu0
        %v6415 = vadd.f32 %v5626, %v6414
        %v6416 = vpop.f32.mrf.mxu0
        %v6417 = vadd.f32 %v5626, %v6416
        %6418 = vdwg.mxu0
        %6419 = vmatpush.bf16.msra.mxu0 0
        %6420 = vmatpush.bf16.msra.mxu0 0
        %6421 = vmatpush.bf16.msra.mxu0 0
        %6422 = vmatpush.bf16.msra.mxu0 0
        %6423 = vmatpush.bf16.msra.mxu0 %v5883
        %6424 = vmatpush.bf16.msra.mxu0 %v5867
        %6425 = vmatpush.bf16.msra.mxu0 %v5851
        %6426 = vmatpush.bf16.msra.mxu0 %v5835
        %6427 = vmatmul.bf16.gmra.mxu0 %v5955
        %v6428 = vpop.f32.mrf.mxu0
        %v6429 = vadd.f32 %v5627, %v6428
        %v6430 = vpop.f32.mrf.mxu0
        %v6431 = vadd.f32 %v5627, %v6430
        %6432 = vmatmul.bf16.gmra.mxu0 %v5958
        %v6433 = vpop.f32.mrf.mxu0
        %v6434 = vadd.f32 %v5627, %v6433
        %v6435 = vpop.f32.mrf.mxu0
        %v6436 = vadd.f32 %v5627, %v6435
        %6437 = vmatmul.bf16.gmra.mxu0 %v5961
        %v6438 = vpop.f32.mrf.mxu0
        %v6439 = vadd.f32 %v5627, %v6438
        %v6440 = vpop.f32.mrf.mxu0
        %v6441 = vadd.f32 %v5627, %v6440
        %6442 = vmatmul.bf16.gmra.mxu0 %v5964
        %v6443 = vpop.f32.mrf.mxu0
        %v6444 = vadd.f32 %v5627, %v6443
        %v6445 = vpop.f32.mrf.mxu0
        %v6446 = vadd.f32 %v5627, %v6445
        %6447 = vmatmul.bf16.gmra.mxu0 %v5967
        %v6448 = vpop.f32.mrf.mxu0
        %v6449 = vadd.f32 %v5627, %v6448
        %v6450 = vpop.f32.mrf.mxu0
        %v6451 = vadd.f32 %v5627, %v6450
        %6452 = vmatmul.bf16.gmra.mxu0 %v5970
        %v6453 = vpop.f32.mrf.mxu0
        %v6454 = vadd.f32 %v5627, %v6453
        %v6455 = vpop.f32.mrf.mxu0
        %v6456 = vadd.f32 %v5627, %v6455
        %6457 = vmatmul.bf16.gmra.mxu0 %v5973
        %v6458 = vpop.f32.mrf.mxu0
        %v6459 = vadd.f32 %v5627, %v6458
        %v6460 = vpop.f32.mrf.mxu0
        %v6461 = vadd.f32 %v5627, %v6460
        %6462 = vmatmul.bf16.gmra.mxu0 %v5976
        %v6463 = vpop.f32.mrf.mxu0
        %v6464 = vadd.f32 %v5627, %v6463
        %v6465 = vpop.f32.mrf.mxu0
        %v6466 = vadd.f32 %v5627, %v6465
        %6467 = vdwg.mxu0
        %6468 = vmatpush.bf16.msra.mxu0 0
        %6469 = vmatpush.bf16.msra.mxu0 0
        %6470 = vmatpush.bf16.msra.mxu0 0
        %6471 = vmatpush.bf16.msra.mxu0 0
        %6472 = vmatpush.bf16.msra.mxu0 %v5884
        %6473 = vmatpush.bf16.msra.mxu0 %v5868
        %6474 = vmatpush.bf16.msra.mxu0 %v5852
        %6475 = vmatpush.bf16.msra.mxu0 %v5836
        %6476 = vmatmul.bf16.gmra.mxu0 %v5955
        %v6477 = vpop.f32.mrf.mxu0
        %v6478 = vadd.f32 %v5628, %v6477
        %v6479 = vpop.f32.mrf.mxu0
        %v6480 = vadd.f32 %v5628, %v6479
        %6481 = vmatmul.bf16.gmra.mxu0 %v5958
        %v6482 = vpop.f32.mrf.mxu0
        %v6483 = vadd.f32 %v5628, %v6482
        %v6484 = vpop.f32.mrf.mxu0
        %v6485 = vadd.f32 %v5628, %v6484
        %6486 = vmatmul.bf16.gmra.mxu0 %v5961
        %v6487 = vpop.f32.mrf.mxu0
        %v6488 = vadd.f32 %v5628, %v6487
        %v6489 = vpop.f32.mrf.mxu0
        %v6490 = vadd.f32 %v5628, %v6489
        %6491 = vmatmul.bf16.gmra.mxu0 %v5964
        %v6492 = vpop.f32.mrf.mxu0
        %v6493 = vadd.f32 %v5628, %v6492
        %v6494 = vpop.f32.mrf.mxu0
        %v6495 = vadd.f32 %v5628, %v6494
        %6496 = vmatmul.bf16.gmra.mxu0 %v5967
        %v6497 = vpop.f32.mrf.mxu0
        %v6498 = vadd.f32 %v5628, %v6497
        %v6499 = vpop.f32.mrf.mxu0
        %v6500 = vadd.f32 %v5628, %v6499
        %6501 = vmatmul.bf16.gmra.mxu0 %v5970
        %v6502 = vpop.f32.mrf.mxu0
        %v6503 = vadd.f32 %v5628, %v6502
        %v6504 = vpop.f32.mrf.mxu0
        %v6505 = vadd.f32 %v5628, %v6504
        %6506 = vmatmul.bf16.gmra.mxu0 %v5973
        %v6507 = vpop.f32.mrf.mxu0
        %v6508 = vadd.f32 %v5628, %v6507
        %v6509 = vpop.f32.mrf.mxu0
        %v6510 = vadd.f32 %v5628, %v6509
        %6511 = vmatmul.bf16.gmra.mxu0 %v5976
        %v6512 = vpop.f32.mrf.mxu0
        %v6513 = vadd.f32 %v5628, %v6512
        %v6514 = vpop.f32.mrf.mxu0
        %v6515 = vadd.f32 %v5628, %v6514
        %6516 = vdwg.mxu0
        %6517 = vmatpush.bf16.msra.mxu0 0
        %6518 = vmatpush.bf16.msra.mxu0 0
        %6519 = vmatpush.bf16.msra.mxu0 0
        %6520 = vmatpush.bf16.msra.mxu0 0
        %6521 = vmatpush.bf16.msra.mxu0 %v5885
        %6522 = vmatpush.bf16.msra.mxu0 %v5869
        %6523 = vmatpush.bf16.msra.mxu0 %v5853
        %6524 = vmatpush.bf16.msra.mxu0 %v5837
        %6525 = vmatmul.bf16.gmra.mxu0 %v5955
        %v6526 = vpop.f32.mrf.mxu0
        %v6527 = vadd.f32 %v5629, %v6526
        %v6528 = vpop.f32.mrf.mxu0
        %v6529 = vadd.f32 %v5629, %v6528
        %6530 = vmatmul.bf16.gmra.mxu0 %v5958
        %v6531 = vpop.f32.mrf.mxu0
        %v6532 = vadd.f32 %v5629, %v6531
        %v6533 = vpop.f32.mrf.mxu0
        %v6534 = vadd.f32 %v5629, %v6533
        %6535 = vmatmul.bf16.gmra.mxu0 %v5961
        %v6536 = vpop.f32.mrf.mxu0
        %v6537 = vadd.f32 %v5629, %v6536
        %v6538 = vpop.f32.mrf.mxu0
        %v6539 = vadd.f32 %v5629, %v6538
        %6540 = vmatmul.bf16.gmra.mxu0 %v5964
        %v6541 = vpop.f32.mrf.mxu0
        %v6542 = vadd.f32 %v5629, %v6541
        %v6543 = vpop.f32.mrf.mxu0
        %v6544 = vadd.f32 %v5629, %v6543
        %6545 = vmatmul.bf16.gmra.mxu0 %v5967
        %v6546 = vpop.f32.mrf.mxu0
        %v6547 = vadd.f32 %v5629, %v6546
        %v6548 = vpop.f32.mrf.mxu0
        %v6549 = vadd.f32 %v5629, %v6548
        %6550 = vmatmul.bf16.gmra.mxu0 %v5970
        %v6551 = vpop.f32.mrf.mxu0
        %v6552 = vadd.f32 %v5629, %v6551
        %v6553 = vpop.f32.mrf.mxu0
        %v6554 = vadd.f32 %v5629, %v6553
        %6555 = vmatmul.bf16.gmra.mxu0 %v5973
        %v6556 = vpop.f32.mrf.mxu0
        %v6557 = vadd.f32 %v5629, %v6556
        %v6558 = vpop.f32.mrf.mxu0
        %v6559 = vadd.f32 %v5629, %v6558
        %6560 = vmatmul.bf16.gmra.mxu0 %v5976
        %v6561 = vpop.f32.mrf.mxu0
        %v6562 = vadd.f32 %v5629, %v6561
        %v6563 = vpop.f32.mrf.mxu0
        %v6564 = vadd.f32 %v5629, %v6563
        %6565 = vdwg.mxu0
        %6566 = vmatpush.bf16.msra.mxu0 0
        %6567 = vmatpush.bf16.msra.mxu0 0
        %6568 = vmatpush.bf16.msra.mxu0 0
        %6569 = vmatpush.bf16.msra.mxu0 0
        %6570 = vmatpush.bf16.msra.mxu0 %v5886
        %6571 = vmatpush.bf16.msra.mxu0 %v5870
        %6572 = vmatpush.bf16.msra.mxu0 %v5854
        %6573 = vmatpush.bf16.msra.mxu0 %v5838
        %6574 = vmatmul.bf16.gmra.mxu0 %v5955
        %v6575 = vpop.f32.mrf.mxu0
        %v6576 = vadd.f32 %v5630, %v6575
        %v6577 = vpop.f32.mrf.mxu0
        %v6578 = vadd.f32 %v5630, %v6577
        %6579 = vmatmul.bf16.gmra.mxu0 %v5958
        %v6580 = vpop.f32.mrf.mxu0
        %v6581 = vadd.f32 %v5630, %v6580
        %v6582 = vpop.f32.mrf.mxu0
        %v6583 = vadd.f32 %v5630, %v6582
        %6584 = vmatmul.bf16.gmra.mxu0 %v5961
        %v6585 = vpop.f32.mrf.mxu0
        %v6586 = vadd.f32 %v5630, %v6585
        %v6587 = vpop.f32.mrf.mxu0
        %v6588 = vadd.f32 %v5630, %v6587
        %6589 = vmatmul.bf16.gmra.mxu0 %v5964
        %v6590 = vpop.f32.mrf.mxu0
        %v6591 = vadd.f32 %v5630, %v6590
        %v6592 = vpop.f32.mrf.mxu0
        %v6593 = vadd.f32 %v5630, %v6592
        %6594 = vmatmul.bf16.gmra.mxu0 %v5967
        %v6595 = vpop.f32.mrf.mxu0
        %v6596 = vadd.f32 %v5630, %v6595
        %v6597 = vpop.f32.mrf.mxu0
        %v6598 = vadd.f32 %v5630, %v6597
        %6599 = vmatmul.bf16.gmra.mxu0 %v5970
        %v6600 = vpop.f32.mrf.mxu0
        %v6601 = vadd.f32 %v5630, %v6600
        %v6602 = vpop.f32.mrf.mxu0
        %v6603 = vadd.f32 %v5630, %v6602
        %6604 = vmatmul.bf16.gmra.mxu0 %v5973
        %v6605 = vpop.f32.mrf.mxu0
        %v6606 = vadd.f32 %v5630, %v6605
        %v6607 = vpop.f32.mrf.mxu0
        %v6608 = vadd.f32 %v5630, %v6607
        %6609 = vmatmul.bf16.gmra.mxu0 %v5976
        %v6610 = vpop.f32.mrf.mxu0
        %v6611 = vadd.f32 %v5630, %v6610
        %v6612 = vpop.f32.mrf.mxu0
        %v6613 = vadd.f32 %v5630, %v6612
        %6614 = vdwg.mxu0
        %6615 = vmatpush.bf16.msra.mxu0 0
        %6616 = vmatpush.bf16.msra.mxu0 0
        %6617 = vmatpush.bf16.msra.mxu0 0
        %6618 = vmatpush.bf16.msra.mxu0 0
        %6619 = vmatpush.bf16.msra.mxu0 %v5887
        %6620 = vmatpush.bf16.msra.mxu0 %v5871
        %6621 = vmatpush.bf16.msra.mxu0 %v5855
        %6622 = vmatpush.bf16.msra.mxu0 %v5839
        %6623 = vmatmul.bf16.gmra.mxu0 %v5955
        %v6624 = vpop.f32.mrf.mxu0
        %v6625 = vadd.f32 %v5631, %v6624
        %v6626 = vpop.f32.mrf.mxu0
        %v6627 = vadd.f32 %v5631, %v6626
        %6628 = vmatmul.bf16.gmra.mxu0 %v5958
        %v6629 = vpop.f32.mrf.mxu0
        %v6630 = vadd.f32 %v5631, %v6629
        %v6631 = vpop.f32.mrf.mxu0
        %v6632 = vadd.f32 %v5631, %v6631
        %6633 = vmatmul.bf16.gmra.mxu0 %v5961
        %v6634 = vpop.f32.mrf.mxu0
        %v6635 = vadd.f32 %v5631, %v6634
        %v6636 = vpop.f32.mrf.mxu0
        %v6637 = vadd.f32 %v5631, %v6636
        %6638 = vmatmul.bf16.gmra.mxu0 %v5964
        %v6639 = vpop.f32.mrf.mxu0
        %v6640 = vadd.f32 %v5631, %v6639
        %v6641 = vpop.f32.mrf.mxu0
        %v6642 = vadd.f32 %v5631, %v6641
        %6643 = vmatmul.bf16.gmra.mxu0 %v5967
        %v6644 = vpop.f32.mrf.mxu0
        %v6645 = vadd.f32 %v5631, %v6644
        %v6646 = vpop.f32.mrf.mxu0
        %v6647 = vadd.f32 %v5631, %v6646
        %6648 = vmatmul.bf16.gmra.mxu0 %v5970
        %v6649 = vpop.f32.mrf.mxu0
        %v6650 = vadd.f32 %v5631, %v6649
        %v6651 = vpop.f32.mrf.mxu0
        %v6652 = vadd.f32 %v5631, %v6651
        %6653 = vmatmul.bf16.gmra.mxu0 %v5973
        %v6654 = vpop.f32.mrf.mxu0
        %v6655 = vadd.f32 %v5631, %v6654
        %v6656 = vpop.f32.mrf.mxu0
        %v6657 = vadd.f32 %v5631, %v6656
        %6658 = vmatmul.bf16.gmra.mxu0 %v5976
        %v6659 = vpop.f32.mrf.mxu0
        %v6660 = vadd.f32 %v5631, %v6659
        %v6661 = vpop.f32.mrf.mxu0
        %v6662 = vadd.f32 %v5631, %v6661
        %6663 = vdwg.mxu0
        %6664 = vmatpush.bf16.msra.mxu0 0
        %6665 = vmatpush.bf16.msra.mxu0 0
        %6666 = vmatpush.bf16.msra.mxu0 0
        %6667 = vmatpush.bf16.msra.mxu0 0
        %6668 = vmatpush.bf16.msra.mxu0 %v5888
        %6669 = vmatpush.bf16.msra.mxu0 %v5872
        %6670 = vmatpush.bf16.msra.mxu0 %v5856
        %6671 = vmatpush.bf16.msra.mxu0 %v5840
        %6672 = vmatmul.bf16.gmra.mxu0 %v5955
        %v6673 = vpop.f32.mrf.mxu0
        %v6674 = vadd.f32 %v5632, %v6673
        %v6675 = vpop.f32.mrf.mxu0
        %v6676 = vadd.f32 %v5632, %v6675
        %6677 = vmatmul.bf16.gmra.mxu0 %v5958
        %v6678 = vpop.f32.mrf.mxu0
        %v6679 = vadd.f32 %v5632, %v6678
        %v6680 = vpop.f32.mrf.mxu0
        %v6681 = vadd.f32 %v5632, %v6680
        %6682 = vmatmul.bf16.gmra.mxu0 %v5961
        %v6683 = vpop.f32.mrf.mxu0
        %v6684 = vadd.f32 %v5632, %v6683
        %v6685 = vpop.f32.mrf.mxu0
        %v6686 = vadd.f32 %v5632, %v6685
        %6687 = vmatmul.bf16.gmra.mxu0 %v5964
        %v6688 = vpop.f32.mrf.mxu0
        %v6689 = vadd.f32 %v5632, %v6688
        %v6690 = vpop.f32.mrf.mxu0
        %v6691 = vadd.f32 %v5632, %v6690
        %6692 = vmatmul.bf16.gmra.mxu0 %v5967
        %v6693 = vpop.f32.mrf.mxu0
        %v6694 = vadd.f32 %v5632, %v6693
        %v6695 = vpop.f32.mrf.mxu0
        %v6696 = vadd.f32 %v5632, %v6695
        %6697 = vmatmul.bf16.gmra.mxu0 %v5970
        %v6698 = vpop.f32.mrf.mxu0
        %v6699 = vadd.f32 %v5632, %v6698
        %v6700 = vpop.f32.mrf.mxu0
        %v6701 = vadd.f32 %v5632, %v6700
        %6702 = vmatmul.bf16.gmra.mxu0 %v5973
        %v6703 = vpop.f32.mrf.mxu0
        %v6704 = vadd.f32 %v5632, %v6703
        %v6705 = vpop.f32.mrf.mxu0
        %v6706 = vadd.f32 %v5632, %v6705
        %6707 = vmatmul.bf16.gmra.mxu0 %v5976
        %v6708 = vpop.f32.mrf.mxu0
        %v6709 = vadd.f32 %v5632, %v6708
        %v6710 = vpop.f32.mrf.mxu0
        %v6711 = vadd.f32 %v5632, %v6710
        %6712 = vdwg.mxu0
        %6713 = vmatpush.bf16.msra.mxu0 0
        %6714 = vmatpush.bf16.msra.mxu0 0
        %6715 = vmatpush.bf16.msra.mxu0 0
        %6716 = vmatpush.bf16.msra.mxu0 0
        %6717 = vmatpush.bf16.msra.mxu0 %v5889
        %6718 = vmatpush.bf16.msra.mxu0 %v5873
        %6719 = vmatpush.bf16.msra.mxu0 %v5857
        %6720 = vmatpush.bf16.msra.mxu0 %v5841
        %6721 = vmatmul.bf16.gmra.mxu0 %v5955
        %v6722 = vpop.f32.mrf.mxu0
        %v6723 = vadd.f32 %v5633, %v6722
        %v6724 = vpop.f32.mrf.mxu0
        %v6725 = vadd.f32 %v5633, %v6724
        %6726 = vmatmul.bf16.gmra.mxu0 %v5958
        %v6727 = vpop.f32.mrf.mxu0
        %v6728 = vadd.f32 %v5633, %v6727
        %v6729 = vpop.f32.mrf.mxu0
        %v6730 = vadd.f32 %v5633, %v6729
        %6731 = vmatmul.bf16.gmra.mxu0 %v5961
        %v6732 = vpop.f32.mrf.mxu0
        %v6733 = vadd.f32 %v5633, %v6732
        %v6734 = vpop.f32.mrf.mxu0
        %v6735 = vadd.f32 %v5633, %v6734
        %6736 = vmatmul.bf16.gmra.mxu0 %v5964
        %v6737 = vpop.f32.mrf.mxu0
        %v6738 = vadd.f32 %v5633, %v6737
        %v6739 = vpop.f32.mrf.mxu0
        %v6740 = vadd.f32 %v5633, %v6739
        %6741 = vmatmul.bf16.gmra.mxu0 %v5967
        %v6742 = vpop.f32.mrf.mxu0
        %v6743 = vadd.f32 %v5633, %v6742
        %v6744 = vpop.f32.mrf.mxu0
        %v6745 = vadd.f32 %v5633, %v6744
        %6746 = vmatmul.bf16.gmra.mxu0 %v5970
        %v6747 = vpop.f32.mrf.mxu0
        %v6748 = vadd.f32 %v5633, %v6747
        %v6749 = vpop.f32.mrf.mxu0
        %v6750 = vadd.f32 %v5633, %v6749
        %6751 = vmatmul.bf16.gmra.mxu0 %v5973
        %v6752 = vpop.f32.mrf.mxu0
        %v6753 = vadd.f32 %v5633, %v6752
        %v6754 = vpop.f32.mrf.mxu0
        %v6755 = vadd.f32 %v5633, %v6754
        %6756 = vmatmul.bf16.gmra.mxu0 %v5976
        %v6757 = vpop.f32.mrf.mxu0
        %v6758 = vadd.f32 %v5633, %v6757
        %v6759 = vpop.f32.mrf.mxu0
        %v6760 = vadd.f32 %v5633, %v6759
        %6761 = vdwg.mxu0
        %v6762 = vmax.f32 %v5988, 0.0
        %v6763 = vmax.f32 %v6037, 0.0
        %v6764 = vmax.f32 %v6086, 0.0
        %v6765 = vmax.f32 %v6135, 0.0
        %v6766 = vmax.f32 %v6184, 0.0
        %v6767 = vmax.f32 %v6233, 0.0
        %v6768 = vmax.f32 %v6282, 0.0
        %v6769 = vmax.f32 %v6331, 0.0
        %v6770 = vmax.f32 %v6380, 0.0
        %v6771 = vmax.f32 %v6429, 0.0
        %v6772 = vmax.f32 %v6478, 0.0
        %v6773 = vmax.f32 %v6527, 0.0
        %v6774 = vmax.f32 %v6576, 0.0
        %v6775 = vmax.f32 %v6625, 0.0
        %v6776 = vmax.f32 %v6674, 0.0
        %v6777 = vmax.f32 %v6723, 0.0
        %v6778 = vmax.f32 %v5990, 0.0
        %v6779 = vmax.f32 %v6039, 0.0
        %v6780 = vmax.f32 %v6088, 0.0
        %v6781 = vmax.f32 %v6137, 0.0
        %v6782 = vmax.f32 %v6186, 0.0
        %v6783 = vmax.f32 %v6235, 0.0
        %v6784 = vmax.f32 %v6284, 0.0
        %v6785 = vmax.f32 %v6333, 0.0
        %v6786 = vmax.f32 %v6382, 0.0
        %v6787 = vmax.f32 %v6431, 0.0
        %v6788 = vmax.f32 %v6480, 0.0
        %v6789 = vmax.f32 %v6529, 0.0
        %v6790 = vmax.f32 %v6578, 0.0
        %v6791 = vmax.f32 %v6627, 0.0
        %v6792 = vmax.f32 %v6676, 0.0
        %v6793 = vmax.f32 %v6725, 0.0
        %v6794 = vmax.f32 %v5993, 0.0
        %v6795 = vmax.f32 %v6042, 0.0
        %v6796 = vmax.f32 %v6091, 0.0
        %v6797 = vmax.f32 %v6140, 0.0
        %v6798 = vmax.f32 %v6189, 0.0
        %v6799 = vmax.f32 %v6238, 0.0
        %v6800 = vmax.f32 %v6287, 0.0
        %v6801 = vmax.f32 %v6336, 0.0
        %v6802 = vmax.f32 %v6385, 0.0
        %v6803 = vmax.f32 %v6434, 0.0
        %v6804 = vmax.f32 %v6483, 0.0
        %v6805 = vmax.f32 %v6532, 0.0
        %v6806 = vmax.f32 %v6581, 0.0
        %v6807 = vmax.f32 %v6630, 0.0
        %v6808 = vmax.f32 %v6679, 0.0
        %v6809 = vmax.f32 %v6728, 0.0
        %v6810 = vmax.f32 %v5995, 0.0
        %v6811 = vmax.f32 %v6044, 0.0
        %v6812 = vmax.f32 %v6093, 0.0
        %v6813 = vmax.f32 %v6142, 0.0
        %v6814 = vmax.f32 %v6191, 0.0
        %v6815 = vmax.f32 %v6240, 0.0
        %v6816 = vmax.f32 %v6289, 0.0
        %v6817 = vmax.f32 %v6338, 0.0
        %v6818 = vmax.f32 %v6387, 0.0
        %v6819 = vmax.f32 %v6436, 0.0
        %v6820 = vmax.f32 %v6485, 0.0
        %v6821 = vmax.f32 %v6534, 0.0
        %v6822 = vmax.f32 %v6583, 0.0
        %v6823 = vmax.f32 %v6632, 0.0
        %v6824 = vmax.f32 %v6681, 0.0
        %v6825 = vmax.f32 %v6730, 0.0
        %v6826 = vmax.f32 %v5998, 0.0
        %v6827 = vmax.f32 %v6047, 0.0
        %v6828 = vmax.f32 %v6096, 0.0
        %v6829 = vmax.f32 %v6145, 0.0
        %v6830 = vmax.f32 %v6194, 0.0
        %v6831 = vmax.f32 %v6243, 0.0
        %v6832 = vmax.f32 %v6292, 0.0
        %v6833 = vmax.f32 %v6341, 0.0
        %v6834 = vmax.f32 %v6390, 0.0
        %v6835 = vmax.f32 %v6439, 0.0
        %v6836 = vmax.f32 %v6488, 0.0
        %v6837 = vmax.f32 %v6537, 0.0
        %v6838 = vmax.f32 %v6586, 0.0
        %v6839 = vmax.f32 %v6635, 0.0
        %v6840 = vmax.f32 %v6684, 0.0
        %v6841 = vmax.f32 %v6733, 0.0
        %v6842 = vmax.f32 %v6000, 0.0
        %v6843 = vmax.f32 %v6049, 0.0
        %v6844 = vmax.f32 %v6098, 0.0
        %v6845 = vmax.f32 %v6147, 0.0
        %v6846 = vmax.f32 %v6196, 0.0
        %v6847 = vmax.f32 %v6245, 0.0
        %v6848 = vmax.f32 %v6294, 0.0
        %v6849 = vmax.f32 %v6343, 0.0
        %v6850 = vmax.f32 %v6392, 0.0
        %v6851 = vmax.f32 %v6441, 0.0
        %v6852 = vmax.f32 %v6490, 0.0
        %v6853 = vmax.f32 %v6539, 0.0
        %v6854 = vmax.f32 %v6588, 0.0
        %v6855 = vmax.f32 %v6637, 0.0
        %v6856 = vmax.f32 %v6686, 0.0
        %v6857 = vmax.f32 %v6735, 0.0
        %v6858 = vmax.f32 %v6003, 0.0
        %v6859 = vmax.f32 %v6052, 0.0
        %v6860 = vmax.f32 %v6101, 0.0
        %v6861 = vmax.f32 %v6150, 0.0
        %v6862 = vmax.f32 %v6199, 0.0
        %v6863 = vmax.f32 %v6248, 0.0
        %v6864 = vmax.f32 %v6297, 0.0
        %v6865 = vmax.f32 %v6346, 0.0
        %v6866 = vmax.f32 %v6395, 0.0
        %v6867 = vmax.f32 %v6444, 0.0
        %v6868 = vmax.f32 %v6493, 0.0
        %v6869 = vmax.f32 %v6542, 0.0
        %v6870 = vmax.f32 %v6591, 0.0
        %v6871 = vmax.f32 %v6640, 0.0
        %v6872 = vmax.f32 %v6689, 0.0
        %v6873 = vmax.f32 %v6738, 0.0
        %v6874 = vmax.f32 %v6005, 0.0
        %v6875 = vmax.f32 %v6054, 0.0
        %v6876 = vmax.f32 %v6103, 0.0
        %v6877 = vmax.f32 %v6152, 0.0
        %v6878 = vmax.f32 %v6201, 0.0
        %v6879 = vmax.f32 %v6250, 0.0
        %v6880 = vmax.f32 %v6299, 0.0
        %v6881 = vmax.f32 %v6348, 0.0
        %v6882 = vmax.f32 %v6397, 0.0
        %v6883 = vmax.f32 %v6446, 0.0
        %v6884 = vmax.f32 %v6495, 0.0
        %v6885 = vmax.f32 %v6544, 0.0
        %v6886 = vmax.f32 %v6593, 0.0
        %v6887 = vmax.f32 %v6642, 0.0
        %v6888 = vmax.f32 %v6691, 0.0
        %v6889 = vmax.f32 %v6740, 0.0
        %v6890 = vmax.f32 %v6008, 0.0
        %v6891 = vmax.f32 %v6057, 0.0
        %v6892 = vmax.f32 %v6106, 0.0
        %v6893 = vmax.f32 %v6155, 0.0
        %v6894 = vmax.f32 %v6204, 0.0
        %v6895 = vmax.f32 %v6253, 0.0
        %v6896 = vmax.f32 %v6302, 0.0
        %v6897 = vmax.f32 %v6351, 0.0
        %v6898 = vmax.f32 %v6400, 0.0
        %v6899 = vmax.f32 %v6449, 0.0
        %v6900 = vmax.f32 %v6498, 0.0
        %v6901 = vmax.f32 %v6547, 0.0
        %v6902 = vmax.f32 %v6596, 0.0
        %v6903 = vmax.f32 %v6645, 0.0
        %v6904 = vmax.f32 %v6694, 0.0
        %v6905 = vmax.f32 %v6743, 0.0
        %v6906 = vmax.f32 %v6010, 0.0
        %v6907 = vmax.f32 %v6059, 0.0
        %v6908 = vmax.f32 %v6108, 0.0
        %v6909 = vmax.f32 %v6157, 0.0
        %v6910 = vmax.f32 %v6206, 0.0
        %v6911 = vmax.f32 %v6255, 0.0
        %v6912 = vmax.f32 %v6304, 0.0
        %v6913 = vmax.f32 %v6353, 0.0
        %v6914 = vmax.f32 %v6402, 0.0
        %v6915 = vmax.f32 %v6451, 0.0
        %v6916 = vmax.f32 %v6500, 0.0
        %v6917 = vmax.f32 %v6549, 0.0
        %v6918 = vmax.f32 %v6598, 0.0
        %v6919 = vmax.f32 %v6647, 0.0
        %v6920 = vmax.f32 %v6696, 0.0
        %v6921 = vmax.f32 %v6745, 0.0
        %v6922 = vmax.f32 %v6013, 0.0
        %v6923 = vmax.f32 %v6062, 0.0
        %v6924 = vmax.f32 %v6111, 0.0
        %v6925 = vmax.f32 %v6160, 0.0
        %v6926 = vmax.f32 %v6209, 0.0
        %v6927 = vmax.f32 %v6258, 0.0
        %v6928 = vmax.f32 %v6307, 0.0
        %v6929 = vmax.f32 %v6356, 0.0
        %v6930 = vmax.f32 %v6405, 0.0
        %v6931 = vmax.f32 %v6454, 0.0
        %v6932 = vmax.f32 %v6503, 0.0
        %v6933 = vmax.f32 %v6552, 0.0
        %v6934 = vmax.f32 %v6601, 0.0
        %v6935 = vmax.f32 %v6650, 0.0
        %v6936 = vmax.f32 %v6699, 0.0
        %v6937 = vmax.f32 %v6748, 0.0
        %v6938 = vmax.f32 %v6015, 0.0
        %v6939 = vmax.f32 %v6064, 0.0
        %v6940 = vmax.f32 %v6113, 0.0
        %v6941 = vmax.f32 %v6162, 0.0
        %v6942 = vmax.f32 %v6211, 0.0
        %v6943 = vmax.f32 %v6260, 0.0
        %v6944 = vmax.f32 %v6309, 0.0
        %v6945 = vmax.f32 %v6358, 0.0
        %v6946 = vmax.f32 %v6407, 0.0
        %v6947 = vmax.f32 %v6456, 0.0
        %v6948 = vmax.f32 %v6505, 0.0
        %v6949 = vmax.f32 %v6554, 0.0
        %v6950 = vmax.f32 %v6603, 0.0
        %v6951 = vmax.f32 %v6652, 0.0
        %v6952 = vmax.f32 %v6701, 0.0
        %v6953 = vmax.f32 %v6750, 0.0
        %v6954 = vmax.f32 %v6018, 0.0
        %v6955 = vmax.f32 %v6067, 0.0
        %v6956 = vmax.f32 %v6116, 0.0
        %v6957 = vmax.f32 %v6165, 0.0
        %v6958 = vmax.f32 %v6214, 0.0
        %v6959 = vmax.f32 %v6263, 0.0
        %v6960 = vmax.f32 %v6312, 0.0
        %v6961 = vmax.f32 %v6361, 0.0
        %v6962 = vmax.f32 %v6410, 0.0
        %v6963 = vmax.f32 %v6459, 0.0
        %v6964 = vmax.f32 %v6508, 0.0
        %v6965 = vmax.f32 %v6557, 0.0
        %v6966 = vmax.f32 %v6606, 0.0
        %v6967 = vmax.f32 %v6655, 0.0
        %v6968 = vmax.f32 %v6704, 0.0
        %v6969 = vmax.f32 %v6753, 0.0
        %v6970 = vmax.f32 %v6020, 0.0
        %v6971 = vmax.f32 %v6069, 0.0
        %v6972 = vmax.f32 %v6118, 0.0
        %v6973 = vmax.f32 %v6167, 0.0
        %v6974 = vmax.f32 %v6216, 0.0
        %v6975 = vmax.f32 %v6265, 0.0
        %v6976 = vmax.f32 %v6314, 0.0
        %v6977 = vmax.f32 %v6363, 0.0
        %v6978 = vmax.f32 %v6412, 0.0
        %v6979 = vmax.f32 %v6461, 0.0
        %v6980 = vmax.f32 %v6510, 0.0
        %v6981 = vmax.f32 %v6559, 0.0
        %v6982 = vmax.f32 %v6608, 0.0
        %v6983 = vmax.f32 %v6657, 0.0
        %v6984 = vmax.f32 %v6706, 0.0
        %v6985 = vmax.f32 %v6755, 0.0
        %v6986 = vmax.f32 %v6023, 0.0
        %v6987 = vmax.f32 %v6072, 0.0
        %v6988 = vmax.f32 %v6121, 0.0
        %v6989 = vmax.f32 %v6170, 0.0
        %v6990 = vmax.f32 %v6219, 0.0
        %v6991 = vmax.f32 %v6268, 0.0
        %v6992 = vmax.f32 %v6317, 0.0
        %v6993 = vmax.f32 %v6366, 0.0
        %v6994 = vmax.f32 %v6415, 0.0
        %v6995 = vmax.f32 %v6464, 0.0
        %v6996 = vmax.f32 %v6513, 0.0
        %v6997 = vmax.f32 %v6562, 0.0
        %v6998 = vmax.f32 %v6611, 0.0
        %v6999 = vmax.f32 %v6660, 0.0
        %v7000 = vmax.f32 %v6709, 0.0
        %v7001 = vmax.f32 %v6758, 0.0
        %v7002 = vmax.f32 %v6025, 0.0
        %v7003 = vmax.f32 %v6074, 0.0
        %v7004 = vmax.f32 %v6123, 0.0
        %v7005 = vmax.f32 %v6172, 0.0
        %v7006 = vmax.f32 %v6221, 0.0
        %v7007 = vmax.f32 %v6270, 0.0
        %v7008 = vmax.f32 %v6319, 0.0
        %v7009 = vmax.f32 %v6368, 0.0
        %v7010 = vmax.f32 %v6417, 0.0
        %v7011 = vmax.f32 %v6466, 0.0
        %v7012 = vmax.f32 %v6515, 0.0
        %v7013 = vmax.f32 %v6564, 0.0
        %v7014 = vmax.f32 %v6613, 0.0
        %v7015 = vmax.f32 %v6662, 0.0
        %v7016 = vmax.f32 %v6711, 0.0
        %v7017 = vmax.f32 %v6760, 0.0
        %v7018 = vpack.c.bf16 %v6778, %v6762
        %v7019 = vpack.c.bf16 %v6779, %v6763
        %v7020 = vpack.c.bf16 %v6780, %v6764
        %v7021 = vpack.c.bf16 %v6781, %v6765
        %v7022 = vpack.c.bf16 %v6782, %v6766
        %v7023 = vpack.c.bf16 %v6783, %v6767
        %v7024 = vpack.c.bf16 %v6784, %v6768
        %v7025 = vpack.c.bf16 %v6785, %v6769
        %v7026 = vpack.c.bf16 %v6786, %v6770
        %v7027 = vpack.c.bf16 %v6787, %v6771
        %v7028 = vpack.c.bf16 %v6788, %v6772
        %v7029 = vpack.c.bf16 %v6789, %v6773
        %v7030 = vpack.c.bf16 %v6790, %v6774
        %v7031 = vpack.c.bf16 %v6791, %v6775
        %v7032 = vpack.c.bf16 %v6792, %v6776
        %v7033 = vpack.c.bf16 %v6793, %v6777
        %v7034 = vpack.c.bf16 %v6810, %v6794
        %v7035 = vpack.c.bf16 %v6811, %v6795
        %v7036 = vpack.c.bf16 %v6812, %v6796
        %v7037 = vpack.c.bf16 %v6813, %v6797
        %v7038 = vpack.c.bf16 %v6814, %v6798
        %v7039 = vpack.c.bf16 %v6815, %v6799
        %v7040 = vpack.c.bf16 %v6816, %v6800
        %v7041 = vpack.c.bf16 %v6817, %v6801
        %v7042 = vpack.c.bf16 %v6818, %v6802
        %v7043 = vpack.c.bf16 %v6819, %v6803
        %v7044 = vpack.c.bf16 %v6820, %v6804
        %v7045 = vpack.c.bf16 %v6821, %v6805
        %v7046 = vpack.c.bf16 %v6822, %v6806
        %v7047 = vpack.c.bf16 %v6823, %v6807
        %v7048 = vpack.c.bf16 %v6824, %v6808
        %v7049 = vpack.c.bf16 %v6825, %v6809
        %v7050 = vpack.c.bf16 %v6842, %v6826
        %v7051 = vpack.c.bf16 %v6843, %v6827
        %v7052 = vpack.c.bf16 %v6844, %v6828
        %v7053 = vpack.c.bf16 %v6845, %v6829
        %v7054 = vpack.c.bf16 %v6846, %v6830
        %v7055 = vpack.c.bf16 %v6847, %v6831
        %v7056 = vpack.c.bf16 %v6848, %v6832
        %v7057 = vpack.c.bf16 %v6849, %v6833
        %v7058 = vpack.c.bf16 %v6850, %v6834
        %v7059 = vpack.c.bf16 %v6851, %v6835
        %v7060 = vpack.c.bf16 %v6852, %v6836
        %v7061 = vpack.c.bf16 %v6853, %v6837
        %v7062 = vpack.c.bf16 %v6854, %v6838
        %v7063 = vpack.c.bf16 %v6855, %v6839
        %v7064 = vpack.c.bf16 %v6856, %v6840
        %v7065 = vpack.c.bf16 %v6857, %v6841
        %v7066 = vpack.c.bf16 %v6874, %v6858
        %v7067 = vpack.c.bf16 %v6875, %v6859
        %v7068 = vpack.c.bf16 %v6876, %v6860
        %v7069 = vpack.c.bf16 %v6877, %v6861
        %v7070 = vpack.c.bf16 %v6878, %v6862
        %v7071 = vpack.c.bf16 %v6879, %v6863
        %v7072 = vpack.c.bf16 %v6880, %v6864
        %v7073 = vpack.c.bf16 %v6881, %v6865
        %v7074 = vpack.c.bf16 %v6882, %v6866
        %v7075 = vpack.c.bf16 %v6883, %v6867
        %v7076 = vpack.c.bf16 %v6884, %v6868
        %v7077 = vpack.c.bf16 %v6885, %v6869
        %v7078 = vpack.c.bf16 %v6886, %v6870
        %v7079 = vpack.c.bf16 %v6887, %v6871
        %v7080 = vpack.c.bf16 %v6888, %v6872
        %v7081 = vpack.c.bf16 %v6889, %v6873
        %v7082 = vpack.c.bf16 %v6906, %v6890
        %v7083 = vpack.c.bf16 %v6907, %v6891
        %v7084 = vpack.c.bf16 %v6908, %v6892
        %v7085 = vpack.c.bf16 %v6909, %v6893
        %v7086 = vpack.c.bf16 %v6910, %v6894
        %v7087 = vpack.c.bf16 %v6911, %v6895
        %v7088 = vpack.c.bf16 %v6912, %v6896
        %v7089 = vpack.c.bf16 %v6913, %v6897
        %v7090 = vpack.c.bf16 %v6914, %v6898
        %v7091 = vpack.c.bf16 %v6915, %v6899
        %v7092 = vpack.c.bf16 %v6916, %v6900
        %v7093 = vpack.c.bf16 %v6917, %v6901
        %v7094 = vpack.c.bf16 %v6918, %v6902
        %v7095 = vpack.c.bf16 %v6919, %v6903
        %v7096 = vpack.c.bf16 %v6920, %v6904
        %v7097 = vpack.c.bf16 %v6921, %v6905
        %v7098 = vpack.c.bf16 %v6938, %v6922
        %v7099 = vpack.c.bf16 %v6939, %v6923
        %v7100 = vpack.c.bf16 %v6940, %v6924
        %v7101 = vpack.c.bf16 %v6941, %v6925
        %v7102 = vpack.c.bf16 %v6942, %v6926
        %v7103 = vpack.c.bf16 %v6943, %v6927
        %v7104 = vpack.c.bf16 %v6944, %v6928
        %v7105 = vpack.c.bf16 %v6945, %v6929
        %v7106 = vpack.c.bf16 %v6946, %v6930
        %v7107 = vpack.c.bf16 %v6947, %v6931
        %v7108 = vpack.c.bf16 %v6948, %v6932
        %v7109 = vpack.c.bf16 %v6949, %v6933
        %v7110 = vpack.c.bf16 %v6950, %v6934
        %v7111 = vpack.c.bf16 %v6951, %v6935
        %v7112 = vpack.c.bf16 %v6952, %v6936
        %v7113 = vpack.c.bf16 %v6953, %v6937
        %v7114 = vpack.c.bf16 %v6970, %v6954
        %v7115 = vpack.c.bf16 %v6971, %v6955
        %v7116 = vpack.c.bf16 %v6972, %v6956
        %v7117 = vpack.c.bf16 %v6973, %v6957
        %v7118 = vpack.c.bf16 %v6974, %v6958
        %v7119 = vpack.c.bf16 %v6975, %v6959
        %v7120 = vpack.c.bf16 %v6976, %v6960
        %v7121 = vpack.c.bf16 %v6977, %v6961
        %v7122 = vpack.c.bf16 %v6978, %v6962
        %v7123 = vpack.c.bf16 %v6979, %v6963
        %v7124 = vpack.c.bf16 %v6980, %v6964
        %v7125 = vpack.c.bf16 %v6981, %v6965
        %v7126 = vpack.c.bf16 %v6982, %v6966
        %v7127 = vpack.c.bf16 %v6983, %v6967
        %v7128 = vpack.c.bf16 %v6984, %v6968
        %v7129 = vpack.c.bf16 %v6985, %v6969
        %v7130 = vpack.c.bf16 %v7002, %v6986
        %v7131 = vpack.c.bf16 %v7003, %v6987
        %v7132 = vpack.c.bf16 %v7004, %v6988
        %v7133 = vpack.c.bf16 %v7005, %v6989
        %v7134 = vpack.c.bf16 %v7006, %v6990
        %v7135 = vpack.c.bf16 %v7007, %v6991
        %v7136 = vpack.c.bf16 %v7008, %v6992
        %v7137 = vpack.c.bf16 %v7009, %v6993
        %v7138 = vpack.c.bf16 %v7010, %v6994
        %v7139 = vpack.c.bf16 %v7011, %v6995
        %v7140 = vpack.c.bf16 %v7012, %v6996
        %v7141 = vpack.c.bf16 %v7013, %v6997
        %v7142 = vpack.c.bf16 %v7014, %v6998
        %v7143 = vpack.c.bf16 %v7015, %v6999
        %v7144 = vpack.c.bf16 %v7016, %v7000
        %v7145 = vpack.c.bf16 %v7017, %v7001
        %v7146 = vperm.slane %v4747, 0
        %v7403 = vunpack.c.l.b16 %v5338
        %v7404 = vunpack.c.l.b16 %v5339
        %v7405 = vunpack.c.l.b16 %v5340
        %v7406 = vunpack.c.l.b16 %v5341
        %v7407 = vunpack.c.l.b16 %v5342
        %v7408 = vunpack.c.l.b16 %v5343
        %v7409 = vunpack.c.l.b16 %v5344
        %v7410 = vunpack.c.l.b16 %v5345
        %v7411 = vunpack.c.l.b16 %v5346
        %v7412 = vunpack.c.l.b16 %v5347
        %v7413 = vunpack.c.l.b16 %v5348
        %v7414 = vunpack.c.l.b16 %v5349
        %v7415 = vunpack.c.l.b16 %v5350
        %v7416 = vunpack.c.l.b16 %v5351
        %v7417 = vunpack.c.l.b16 %v5352
        %v7418 = vunpack.c.l.b16 %v5353
        %v7419 = vunpack.c.l.b16 %v5354
        %v7420 = vunpack.c.l.b16 %v5355
        %v7421 = vunpack.c.l.b16 %v5356
        %v7422 = vunpack.c.l.b16 %v5357
        %v7423 = vunpack.c.l.b16 %v5358
        %v7424 = vunpack.c.l.b16 %v5359
        %v7425 = vunpack.c.l.b16 %v5360
        %v7426 = vunpack.c.l.b16 %v5361
        %v7427 = vunpack.c.l.b16 %v5362
        %v7428 = vunpack.c.l.b16 %v5363
        %v7429 = vunpack.c.l.b16 %v5364
        %v7430 = vunpack.c.l.b16 %v5365
        %v7431 = vunpack.c.l.b16 %v5366
        %v7432 = vunpack.c.l.b16 %v5367
        %v7433 = vunpack.c.l.b16 %v5368
        %v7434 = vunpack.c.l.b16 %v5369
        %v7435 = vunpack.c.l.b16 %v5370
        %v7436 = vunpack.c.l.b16 %v5371
        %v7437 = vunpack.c.l.b16 %v5372
        %v7438 = vunpack.c.l.b16 %v5373
        %v7439 = vunpack.c.l.b16 %v5374
        %v7440 = vunpack.c.l.b16 %v5375
        %v7441 = vunpack.c.l.b16 %v5376
        %v7442 = vunpack.c.l.b16 %v5377
        %v7443 = vunpack.c.l.b16 %v5378
        %v7444 = vunpack.c.l.b16 %v5379
        %v7445 = vunpack.c.l.b16 %v5380
        %v7446 = vunpack.c.l.b16 %v5381
        %v7447 = vunpack.c.l.b16 %v5382
        %v7448 = vunpack.c.l.b16 %v5383
        %v7449 = vunpack.c.l.b16 %v5384
        %v7450 = vunpack.c.l.b16 %v5385
        %v7451 = vunpack.c.l.b16 %v5386
        %v7452 = vunpack.c.l.b16 %v5387
        %v7453 = vunpack.c.l.b16 %v5388
        %v7454 = vunpack.c.l.b16 %v5389
        %v7455 = vunpack.c.l.b16 %v5390
        %v7456 = vunpack.c.l.b16 %v5391
        %v7457 = vunpack.c.l.b16 %v5392
        %v7458 = vunpack.c.l.b16 %v5393
        %v7459 = vunpack.c.l.b16 %v5394
        %v7460 = vunpack.c.l.b16 %v5395
        %v7461 = vunpack.c.l.b16 %v5396
        %v7462 = vunpack.c.l.b16 %v5397
        %v7463 = vunpack.c.l.b16 %v5398
        %v7464 = vunpack.c.l.b16 %v5399
        %v7465 = vunpack.c.l.b16 %v5400
        %v7466 = vunpack.c.l.b16 %v5401
        %v7467 = vunpack.c.l.b16 %v5402
        %v7468 = vunpack.c.l.b16 %v5403
        %v7469 = vunpack.c.l.b16 %v5404
        %v7470 = vunpack.c.l.b16 %v5405
        %v7471 = vunpack.c.l.b16 %v5406
        %v7472 = vunpack.c.l.b16 %v5407
        %v7473 = vunpack.c.l.b16 %v5408
        %v7474 = vunpack.c.l.b16 %v5409
        %v7475 = vunpack.c.l.b16 %v5410
        %v7476 = vunpack.c.l.b16 %v5411
        %v7477 = vunpack.c.l.b16 %v5412
        %v7478 = vunpack.c.l.b16 %v5413
        %v7479 = vunpack.c.l.b16 %v5414
        %v7480 = vunpack.c.l.b16 %v5415
        %v7481 = vunpack.c.l.b16 %v5416
        %v7482 = vunpack.c.l.b16 %v5417
        %v7483 = vunpack.c.l.b16 %v5418
        %v7484 = vunpack.c.l.b16 %v5419
        %v7485 = vunpack.c.l.b16 %v5420
        %v7486 = vunpack.c.l.b16 %v5421
        %v7487 = vunpack.c.l.b16 %v5422
        %v7488 = vunpack.c.l.b16 %v5423
        %v7489 = vunpack.c.l.b16 %v5424
        %v7490 = vunpack.c.l.b16 %v5425
        %v7491 = vunpack.c.l.b16 %v5426
        %v7492 = vunpack.c.l.b16 %v5427
        %v7493 = vunpack.c.l.b16 %v5428
        %v7494 = vunpack.c.l.b16 %v5429
        %v7495 = vunpack.c.l.b16 %v5430
        %v7496 = vunpack.c.l.b16 %v5431
        %v7497 = vunpack.c.l.b16 %v5432
        %v7498 = vunpack.c.l.b16 %v5433
        %v7499 = vunpack.c.l.b16 %v5434
        %v7500 = vunpack.c.l.b16 %v5435
        %v7501 = vunpack.c.l.b16 %v5436
        %v7502 = vunpack.c.l.b16 %v5437
        %v7503 = vunpack.c.l.b16 %v5438
        %v7504 = vunpack.c.l.b16 %v5439
        %v7505 = vunpack.c.l.b16 %v5440
        %v7506 = vunpack.c.l.b16 %v5441
        %v7507 = vunpack.c.l.b16 %v5442
        %v7508 = vunpack.c.l.b16 %v5443
        %v7509 = vunpack.c.l.b16 %v5444
        %v7510 = vunpack.c.l.b16 %v5445
        %v7511 = vunpack.c.l.b16 %v5446
        %v7512 = vunpack.c.l.b16 %v5447
        %v7513 = vunpack.c.l.b16 %v5448
        %v7514 = vunpack.c.l.b16 %v5449
        %v7515 = vunpack.c.l.b16 %v5450
        %v7516 = vunpack.c.l.b16 %v5451
        %v7517 = vunpack.c.l.b16 %v5452
        %v7518 = vunpack.c.l.b16 %v5453
        %v7519 = vunpack.c.l.b16 %v5454
        %v7520 = vunpack.c.l.b16 %v5455
        %v7521 = vunpack.c.l.b16 %v5456
        %v7522 = vunpack.c.l.b16 %v5457
        %v7523 = vunpack.c.l.b16 %v5458
        %v7524 = vunpack.c.l.b16 %v5459
        %v7525 = vunpack.c.l.b16 %v5460
        %v7526 = vunpack.c.l.b16 %v5461
        %v7527 = vunpack.c.l.b16 %v5462
        %v7528 = vunpack.c.l.b16 %v5463
        %v7529 = vunpack.c.l.b16 %v5464
        %v7530 = vunpack.c.l.b16 %v5465
        %v7531 = vunpack.c.l.b16 %v5466
        %v7532 = vunpack.c.l.b16 %v5467
        %v7533 = vunpack.c.l.b16 %v5468
        %v7534 = vunpack.c.l.b16 %v5469
        %v7535 = vunpack.c.l.b16 %v5470
        %v7536 = vunpack.c.l.b16 %v5471
        %v7537 = vunpack.c.l.b16 %v5472
        %v7538 = vunpack.c.l.b16 %v5473
        %v7539 = vunpack.c.l.b16 %v5474
        %v7540 = vunpack.c.l.b16 %v5475
        %v7541 = vunpack.c.l.b16 %v5476
        %v7542 = vunpack.c.l.b16 %v5477
        %v7543 = vunpack.c.l.b16 %v5478
        %v7544 = vunpack.c.l.b16 %v5479
        %v7545 = vunpack.c.l.b16 %v5480
        %v7546 = vunpack.c.l.b16 %v5481
        %v7547 = vunpack.c.l.b16 %v5482
        %v7548 = vunpack.c.l.b16 %v5483
        %v7549 = vunpack.c.l.b16 %v5484
        %v7550 = vunpack.c.l.b16 %v5485
        %v7551 = vunpack.c.l.b16 %v5486
        %v7552 = vunpack.c.l.b16 %v5487
        %v7553 = vunpack.c.l.b16 %v5488
        %v7554 = vunpack.c.l.b16 %v5489
        %v7555 = vunpack.c.l.b16 %v5490
        %v7556 = vunpack.c.l.b16 %v5491
        %v7557 = vunpack.c.l.b16 %v5492
        %v7558 = vunpack.c.l.b16 %v5493
        %v7559 = vunpack.c.l.b16 %v5494
        %v7560 = vunpack.c.l.b16 %v5495
        %v7561 = vunpack.c.l.b16 %v5496
        %v7562 = vunpack.c.l.b16 %v5497
        %v7563 = vunpack.c.l.b16 %v5498
        %v7564 = vunpack.c.l.b16 %v5499
        %v7565 = vunpack.c.l.b16 %v5500
        %v7566 = vunpack.c.l.b16 %v5501
        %v7567 = vunpack.c.l.b16 %v5502
        %v7568 = vunpack.c.l.b16 %v5503
        %v7569 = vunpack.c.l.b16 %v5504
        %v7570 = vunpack.c.l.b16 %v5505
        %v7571 = vunpack.c.l.b16 %v5506
        %v7572 = vunpack.c.l.b16 %v5507
        %v7573 = vunpack.c.l.b16 %v5508
        %v7574 = vunpack.c.l.b16 %v5509
        %v7575 = vunpack.c.l.b16 %v5510
        %v7576 = vunpack.c.l.b16 %v5511
        %v7577 = vunpack.c.l.b16 %v5512
        %v7578 = vunpack.c.l.b16 %v5513
        %v7579 = vunpack.c.l.b16 %v5514
        %v7580 = vunpack.c.l.b16 %v5515
        %v7581 = vunpack.c.l.b16 %v5516
        %v7582 = vunpack.c.l.b16 %v5517
        %v7583 = vunpack.c.l.b16 %v5518
        %v7584 = vunpack.c.l.b16 %v5519
        %v7585 = vunpack.c.l.b16 %v5520
        %v7586 = vunpack.c.l.b16 %v5521
        %v7587 = vunpack.c.l.b16 %v5522
        %v7588 = vunpack.c.l.b16 %v5523
        %v7589 = vunpack.c.l.b16 %v5524
        %v7590 = vunpack.c.l.b16 %v5525
        %v7591 = vunpack.c.l.b16 %v5526
        %v7592 = vunpack.c.l.b16 %v5527
        %v7593 = vunpack.c.l.b16 %v5528
        %v7594 = vunpack.c.l.b16 %v5529
        %v7595 = vunpack.c.l.b16 %v5530
        %v7596 = vunpack.c.l.b16 %v5531
        %v7597 = vunpack.c.l.b16 %v5532
        %v7598 = vunpack.c.l.b16 %v5533
        %v7599 = vunpack.c.l.b16 %v5534
        %v7600 = vunpack.c.l.b16 %v5535
        %v7601 = vunpack.c.l.b16 %v5536
        %v7602 = vunpack.c.l.b16 %v5537
        %v7603 = vunpack.c.l.b16 %v5538
        %v7604 = vunpack.c.l.b16 %v5539
        %v7605 = vunpack.c.l.b16 %v5540
        %v7606 = vunpack.c.l.b16 %v5541
        %v7607 = vunpack.c.l.b16 %v5542
        %v7608 = vunpack.c.l.b16 %v5543
        %v7609 = vunpack.c.l.b16 %v5544
        %v7610 = vunpack.c.l.b16 %v5545
        %v7611 = vunpack.c.l.b16 %v5546
        %v7612 = vunpack.c.l.b16 %v5547
        %v7613 = vunpack.c.l.b16 %v5548
        %v7614 = vunpack.c.l.b16 %v5549
        %v7615 = vunpack.c.l.b16 %v5550
        %v7616 = vunpack.c.l.b16 %v5551
        %v7617 = vunpack.c.l.b16 %v5552
        %v7618 = vunpack.c.l.b16 %v5553
        %v7619 = vunpack.c.l.b16 %v5554
        %v7620 = vunpack.c.l.b16 %v5555
        %v7621 = vunpack.c.l.b16 %v5556
        %v7622 = vunpack.c.l.b16 %v5557
        %v7623 = vunpack.c.l.b16 %v5558
        %v7624 = vunpack.c.l.b16 %v5559
        %v7625 = vunpack.c.l.b16 %v5560
        %v7626 = vunpack.c.l.b16 %v5561
        %v7627 = vunpack.c.l.b16 %v5562
        %v7628 = vunpack.c.l.b16 %v5563
        %v7629 = vunpack.c.l.b16 %v5564
        %v7630 = vunpack.c.l.b16 %v5565
        %v7631 = vunpack.c.l.b16 %v5566
        %v7632 = vunpack.c.l.b16 %v5567
        %v7633 = vunpack.c.l.b16 %v5568
        %v7634 = vunpack.c.l.b16 %v5569
        %v7635 = vunpack.c.l.b16 %v5570
        %v7636 = vunpack.c.l.b16 %v5571
        %v7637 = vunpack.c.l.b16 %v5572
        %v7638 = vunpack.c.l.b16 %v5573
        %v7639 = vunpack.c.l.b16 %v5574
        %v7640 = vunpack.c.l.b16 %v5575
        %v7641 = vunpack.c.l.b16 %v5576
        %v7642 = vunpack.c.l.b16 %v5577
        %v7643 = vunpack.c.l.b16 %v5578
        %v7644 = vunpack.c.l.b16 %v5579
        %v7645 = vunpack.c.l.b16 %v5580
        %v7646 = vunpack.c.l.b16 %v5581
        %v7647 = vunpack.c.l.b16 %v5582
        %v7648 = vunpack.c.l.b16 %v5583
        %v7649 = vunpack.c.l.b16 %v5584
        %v7650 = vunpack.c.l.b16 %v5585
        %v7651 = vunpack.c.l.b16 %v5586
        %v7652 = vunpack.c.l.b16 %v5587
        %v7653 = vunpack.c.l.b16 %v5588
        %v7654 = vunpack.c.l.b16 %v5589
        %v7655 = vunpack.c.l.b16 %v5590
        %v7656 = vunpack.c.l.b16 %v5591
        %v7657 = vunpack.c.l.b16 %v5592
        %v7658 = vunpack.c.l.b16 %v5593
        %v7659 = vpack.c.b16 %v7404, %v7403
        %v7660 = vpack.c.b16 %v7406, %v7405
        %v7661 = vpack.c.b16 %v7408, %v7407
        %v7662 = vpack.c.b16 %v7410, %v7409
        %v7663 = vpack.c.b16 %v7412, %v7411
        %v7664 = vpack.c.b16 %v7414, %v7413
        %v7665 = vpack.c.b16 %v7416, %v7415
        %v7666 = vpack.c.b16 %v7418, %v7417
        %v7667 = vpack.c.b16 %v7420, %v7419
        %v7668 = vpack.c.b16 %v7422, %v7421
        %v7669 = vpack.c.b16 %v7424, %v7423
        %v7670 = vpack.c.b16 %v7426, %v7425
        %v7671 = vpack.c.b16 %v7428, %v7427
        %v7672 = vpack.c.b16 %v7430, %v7429
        %v7673 = vpack.c.b16 %v7432, %v7431
        %v7674 = vpack.c.b16 %v7434, %v7433
        %v7675 = vpack.c.b16 %v7436, %v7435
        %v7676 = vpack.c.b16 %v7438, %v7437
        %v7677 = vpack.c.b16 %v7440, %v7439
        %v7678 = vpack.c.b16 %v7442, %v7441
        %v7679 = vpack.c.b16 %v7444, %v7443
        %v7680 = vpack.c.b16 %v7446, %v7445
        %v7681 = vpack.c.b16 %v7448, %v7447
        %v7682 = vpack.c.b16 %v7450, %v7449
        %v7683 = vpack.c.b16 %v7452, %v7451
        %v7684 = vpack.c.b16 %v7454, %v7453
        %v7685 = vpack.c.b16 %v7456, %v7455
        %v7686 = vpack.c.b16 %v7458, %v7457
        %v7687 = vpack.c.b16 %v7460, %v7459
        %v7688 = vpack.c.b16 %v7462, %v7461
        %v7689 = vpack.c.b16 %v7464, %v7463
        %v7690 = vpack.c.b16 %v7466, %v7465
        %v7691 = vpack.c.b16 %v7468, %v7467
        %v7692 = vpack.c.b16 %v7470, %v7469
        %v7693 = vpack.c.b16 %v7472, %v7471
        %v7694 = vpack.c.b16 %v7474, %v7473
        %v7695 = vpack.c.b16 %v7476, %v7475
        %v7696 = vpack.c.b16 %v7478, %v7477
        %v7697 = vpack.c.b16 %v7480, %v7479
        %v7698 = vpack.c.b16 %v7482, %v7481
        %v7699 = vpack.c.b16 %v7484, %v7483
        %v7700 = vpack.c.b16 %v7486, %v7485
        %v7701 = vpack.c.b16 %v7488, %v7487
        %v7702 = vpack.c.b16 %v7490, %v7489
        %v7703 = vpack.c.b16 %v7492, %v7491
        %v7704 = vpack.c.b16 %v7494, %v7493
        %v7705 = vpack.c.b16 %v7496, %v7495
        %v7706 = vpack.c.b16 %v7498, %v7497
        %v7707 = vpack.c.b16 %v7500, %v7499
        %v7708 = vpack.c.b16 %v7502, %v7501
        %v7709 = vpack.c.b16 %v7504, %v7503
        %v7710 = vpack.c.b16 %v7506, %v7505
        %v7711 = vpack.c.b16 %v7508, %v7507
        %v7712 = vpack.c.b16 %v7510, %v7509
        %v7713 = vpack.c.b16 %v7512, %v7511
        %v7714 = vpack.c.b16 %v7514, %v7513
        %v7715 = vpack.c.b16 %v7516, %v7515
        %v7716 = vpack.c.b16 %v7518, %v7517
        %v7717 = vpack.c.b16 %v7520, %v7519
        %v7718 = vpack.c.b16 %v7522, %v7521
        %v7719 = vpack.c.b16 %v7524, %v7523
        %v7720 = vpack.c.b16 %v7526, %v7525
        %v7721 = vpack.c.b16 %v7528, %v7527
        %v7722 = vpack.c.b16 %v7530, %v7529
        %v7723 = vpack.c.b16 %v7532, %v7531
        %v7724 = vpack.c.b16 %v7534, %v7533
        %v7725 = vpack.c.b16 %v7536, %v7535
        %v7726 = vpack.c.b16 %v7538, %v7537
        %v7727 = vpack.c.b16 %v7540, %v7539
        %v7728 = vpack.c.b16 %v7542, %v7541
        %v7729 = vpack.c.b16 %v7544, %v7543
        %v7730 = vpack.c.b16 %v7546, %v7545
        %v7731 = vpack.c.b16 %v7548, %v7547
        %v7732 = vpack.c.b16 %v7550, %v7549
        %v7733 = vpack.c.b16 %v7552, %v7551
        %v7734 = vpack.c.b16 %v7554, %v7553
        %v7735 = vpack.c.b16 %v7556, %v7555
        %v7736 = vpack.c.b16 %v7558, %v7557
        %v7737 = vpack.c.b16 %v7560, %v7559
        %v7738 = vpack.c.b16 %v7562, %v7561
        %v7739 = vpack.c.b16 %v7564, %v7563
        %v7740 = vpack.c.b16 %v7566, %v7565
        %v7741 = vpack.c.b16 %v7568, %v7567
        %v7742 = vpack.c.b16 %v7570, %v7569
        %v7743 = vpack.c.b16 %v7572, %v7571
        %v7744 = vpack.c.b16 %v7574, %v7573
        %v7745 = vpack.c.b16 %v7576, %v7575
        %v7746 = vpack.c.b16 %v7578, %v7577
        %v7747 = vpack.c.b16 %v7580, %v7579
        %v7748 = vpack.c.b16 %v7582, %v7581
        %v7749 = vpack.c.b16 %v7584, %v7583
        %v7750 = vpack.c.b16 %v7586, %v7585
        %v7751 = vpack.c.b16 %v7588, %v7587
        %v7752 = vpack.c.b16 %v7590, %v7589
        %v7753 = vpack.c.b16 %v7592, %v7591
        %v7754 = vpack.c.b16 %v7594, %v7593
        %v7755 = vpack.c.b16 %v7596, %v7595
        %v7756 = vpack.c.b16 %v7598, %v7597
        %v7757 = vpack.c.b16 %v7600, %v7599
        %v7758 = vpack.c.b16 %v7602, %v7601
        %v7759 = vpack.c.b16 %v7604, %v7603
        %v7760 = vpack.c.b16 %v7606, %v7605
        %v7761 = vpack.c.b16 %v7608, %v7607
        %v7762 = vpack.c.b16 %v7610, %v7609
        %v7763 = vpack.c.b16 %v7612, %v7611
        %v7764 = vpack.c.b16 %v7614, %v7613
        %v7765 = vpack.c.b16 %v7616, %v7615
        %v7766 = vpack.c.b16 %v7618, %v7617
        %v7767 = vpack.c.b16 %v7620, %v7619
        %v7768 = vpack.c.b16 %v7622, %v7621
        %v7769 = vpack.c.b16 %v7624, %v7623
        %v7770 = vpack.c.b16 %v7626, %v7625
        %v7771 = vpack.c.b16 %v7628, %v7627
        %v7772 = vpack.c.b16 %v7630, %v7629
        %v7773 = vpack.c.b16 %v7632, %v7631
        %v7774 = vpack.c.b16 %v7634, %v7633
        %v7775 = vpack.c.b16 %v7636, %v7635
        %v7776 = vpack.c.b16 %v7638, %v7637
        %v7777 = vpack.c.b16 %v7640, %v7639
        %v7778 = vpack.c.b16 %v7642, %v7641
        %v7779 = vpack.c.b16 %v7644, %v7643
        %v7780 = vpack.c.b16 %v7646, %v7645
        %v7781 = vpack.c.b16 %v7648, %v7647
        %v7782 = vpack.c.b16 %v7650, %v7649
        %v7783 = vpack.c.b16 %v7652, %v7651
        %v7784 = vpack.c.b16 %v7654, %v7653
        %v7785 = vpack.c.b16 %v7656, %v7655
        %v7786 = vpack.c.b16 %v7658, %v7657
        %7915 = vmatpush.bf16.msra.mxu0 %v7666
        %7916 = vmatpush.bf16.msra.mxu0 %v7665
        %7917 = vmatpush.bf16.msra.mxu0 %v7664
        %7918 = vmatpush.bf16.msra.mxu0 %v7663
        %7919 = vmatpush.bf16.msra.mxu0 %v7662
        %7920 = vmatpush.bf16.msra.mxu0 %v7661
        %7921 = vmatpush.bf16.msra.mxu0 %v7660
        %7922 = vmatpush.bf16.msra.mxu0 %v7659
        %7923 = vmatmul.bf16.gmra.mxu0 %v7018
        %v7924 = vpop.f32.mrf.mxu0
        %v7925 = vadd.f32 %v7146, %v7924
        %v7926 = vpop.f32.mrf.mxu0
        %v7927 = vadd.f32 %v7146, %v7926
        %7928 = vmatmul.bf16.gmra.mxu0 %v7034
        %v7929 = vpop.f32.mrf.mxu0
        %v7930 = vadd.f32 %v7146, %v7929
        %v7931 = vpop.f32.mrf.mxu0
        %v7932 = vadd.f32 %v7146, %v7931
        %7933 = vmatmul.bf16.gmra.mxu0 %v7050
        %v7934 = vpop.f32.mrf.mxu0
        %v7935 = vadd.f32 %v7146, %v7934
        %v7936 = vpop.f32.mrf.mxu0
        %v7937 = vadd.f32 %v7146, %v7936
        %7938 = vmatmul.bf16.gmra.mxu0 %v7066
        %v7939 = vpop.f32.mrf.mxu0
        %v7940 = vadd.f32 %v7146, %v7939
        %v7941 = vpop.f32.mrf.mxu0
        %v7942 = vadd.f32 %v7146, %v7941
        %7943 = vmatmul.bf16.gmra.mxu0 %v7082
        %v7944 = vpop.f32.mrf.mxu0
        %v7945 = vadd.f32 %v7146, %v7944
        %v7946 = vpop.f32.mrf.mxu0
        %v7947 = vadd.f32 %v7146, %v7946
        %7948 = vmatmul.bf16.gmra.mxu0 %v7098
        %v7949 = vpop.f32.mrf.mxu0
        %v7950 = vadd.f32 %v7146, %v7949
        %v7951 = vpop.f32.mrf.mxu0
        %v7952 = vadd.f32 %v7146, %v7951
        %7953 = vmatmul.bf16.gmra.mxu0 %v7114
        %v7954 = vpop.f32.mrf.mxu0
        %v7955 = vadd.f32 %v7146, %v7954
        %v7956 = vpop.f32.mrf.mxu0
        %v7957 = vadd.f32 %v7146, %v7956
        %7958 = vmatmul.bf16.gmra.mxu0 %v7130
        %v7959 = vpop.f32.mrf.mxu0
        %v7960 = vadd.f32 %v7146, %v7959
        %v7961 = vpop.f32.mrf.mxu0
        %v7962 = vadd.f32 %v7146, %v7961
        %7963 = vdwg.mxu0
        %7964 = vmatpush.bf16.msra.mxu0 %v7674
        %7965 = vmatpush.bf16.msra.mxu0 %v7673
        %7966 = vmatpush.bf16.msra.mxu0 %v7672
        %7967 = vmatpush.bf16.msra.mxu0 %v7671
        %7968 = vmatpush.bf16.msra.mxu0 %v7670
        %7969 = vmatpush.bf16.msra.mxu0 %v7669
        %7970 = vmatpush.bf16.msra.mxu0 %v7668
        %7971 = vmatpush.bf16.msra.mxu0 %v7667
        %7972 = vmatmul.bf16.gmra.mxu0 %v7019
        %v7973 = vpop.f32.mrf.mxu0
        %v7974 = vadd.f32 %v7925, %v7973
        %v7975 = vpop.f32.mrf.mxu0
        %v7976 = vadd.f32 %v7927, %v7975
        %7977 = vmatmul.bf16.gmra.mxu0 %v7035
        %v7978 = vpop.f32.mrf.mxu0
        %v7979 = vadd.f32 %v7930, %v7978
        %v7980 = vpop.f32.mrf.mxu0
        %v7981 = vadd.f32 %v7932, %v7980
        %7982 = vmatmul.bf16.gmra.mxu0 %v7051
        %v7983 = vpop.f32.mrf.mxu0
        %v7984 = vadd.f32 %v7935, %v7983
        %v7985 = vpop.f32.mrf.mxu0
        %v7986 = vadd.f32 %v7937, %v7985
        %7987 = vmatmul.bf16.gmra.mxu0 %v7067
        %v7988 = vpop.f32.mrf.mxu0
        %v7989 = vadd.f32 %v7940, %v7988
        %v7990 = vpop.f32.mrf.mxu0
        %v7991 = vadd.f32 %v7942, %v7990
        %7992 = vmatmul.bf16.gmra.mxu0 %v7083
        %v7993 = vpop.f32.mrf.mxu0
        %v7994 = vadd.f32 %v7945, %v7993
        %v7995 = vpop.f32.mrf.mxu0
        %v7996 = vadd.f32 %v7947, %v7995
        %7997 = vmatmul.bf16.gmra.mxu0 %v7099
        %v7998 = vpop.f32.mrf.mxu0
        %v7999 = vadd.f32 %v7950, %v7998
        %v8000 = vpop.f32.mrf.mxu0
        %v8001 = vadd.f32 %v7952, %v8000
        %8002 = vmatmul.bf16.gmra.mxu0 %v7115
        %v8003 = vpop.f32.mrf.mxu0
        %v8004 = vadd.f32 %v7955, %v8003
        %v8005 = vpop.f32.mrf.mxu0
        %v8006 = vadd.f32 %v7957, %v8005
        %8007 = vmatmul.bf16.gmra.mxu0 %v7131
        %v8008 = vpop.f32.mrf.mxu0
        %v8009 = vadd.f32 %v7960, %v8008
        %v8010 = vpop.f32.mrf.mxu0
        %v8011 = vadd.f32 %v7962, %v8010
        %8012 = vdwg.mxu0
        %8013 = vmatpush.bf16.msra.mxu0 %v7682
        %8014 = vmatpush.bf16.msra.mxu0 %v7681
        %8015 = vmatpush.bf16.msra.mxu0 %v7680
        %8016 = vmatpush.bf16.msra.mxu0 %v7679
        %8017 = vmatpush.bf16.msra.mxu0 %v7678
        %8018 = vmatpush.bf16.msra.mxu0 %v7677
        %8019 = vmatpush.bf16.msra.mxu0 %v7676
        %8020 = vmatpush.bf16.msra.mxu0 %v7675
        %8021 = vmatmul.bf16.gmra.mxu0 %v7020
        %v8022 = vpop.f32.mrf.mxu0
        %v8023 = vadd.f32 %v7974, %v8022
        %v8024 = vpop.f32.mrf.mxu0
        %v8025 = vadd.f32 %v7976, %v8024
        %8026 = vmatmul.bf16.gmra.mxu0 %v7036
        %v8027 = vpop.f32.mrf.mxu0
        %v8028 = vadd.f32 %v7979, %v8027
        %v8029 = vpop.f32.mrf.mxu0
        %v8030 = vadd.f32 %v7981, %v8029
        %8031 = vmatmul.bf16.gmra.mxu0 %v7052
        %v8032 = vpop.f32.mrf.mxu0
        %v8033 = vadd.f32 %v7984, %v8032
        %v8034 = vpop.f32.mrf.mxu0
        %v8035 = vadd.f32 %v7986, %v8034
        %8036 = vmatmul.bf16.gmra.mxu0 %v7068
        %v8037 = vpop.f32.mrf.mxu0
        %v8038 = vadd.f32 %v7989, %v8037
        %v8039 = vpop.f32.mrf.mxu0
        %v8040 = vadd.f32 %v7991, %v8039
        %8041 = vmatmul.bf16.gmra.mxu0 %v7084
        %v8042 = vpop.f32.mrf.mxu0
        %v8043 = vadd.f32 %v7994, %v8042
        %v8044 = vpop.f32.mrf.mxu0
        %v8045 = vadd.f32 %v7996, %v8044
        %8046 = vmatmul.bf16.gmra.mxu0 %v7100
        %v8047 = vpop.f32.mrf.mxu0
        %v8048 = vadd.f32 %v7999, %v8047
        %v8049 = vpop.f32.mrf.mxu0
        %v8050 = vadd.f32 %v8001, %v8049
        %8051 = vmatmul.bf16.gmra.mxu0 %v7116
        %v8052 = vpop.f32.mrf.mxu0
        %v8053 = vadd.f32 %v8004, %v8052
        %v8054 = vpop.f32.mrf.mxu0
        %v8055 = vadd.f32 %v8006, %v8054
        %8056 = vmatmul.bf16.gmra.mxu0 %v7132
        %v8057 = vpop.f32.mrf.mxu0
        %v8058 = vadd.f32 %v8009, %v8057
        %v8059 = vpop.f32.mrf.mxu0
        %v8060 = vadd.f32 %v8011, %v8059
        %8061 = vdwg.mxu0
        %8062 = vmatpush.bf16.msra.mxu0 %v7690
        %8063 = vmatpush.bf16.msra.mxu0 %v7689
        %8064 = vmatpush.bf16.msra.mxu0 %v7688
        %8065 = vmatpush.bf16.msra.mxu0 %v7687
        %8066 = vmatpush.bf16.msra.mxu0 %v7686
        %8067 = vmatpush.bf16.msra.mxu0 %v7685
        %8068 = vmatpush.bf16.msra.mxu0 %v7684
        %8069 = vmatpush.bf16.msra.mxu0 %v7683
        %8070 = vmatmul.bf16.gmra.mxu0 %v7021
        %v8071 = vpop.f32.mrf.mxu0
        %v8072 = vadd.f32 %v8023, %v8071
        %v8073 = vpop.f32.mrf.mxu0
        %v8074 = vadd.f32 %v8025, %v8073
        %8075 = vmatmul.bf16.gmra.mxu0 %v7037
        %v8076 = vpop.f32.mrf.mxu0
        %v8077 = vadd.f32 %v8028, %v8076
        %v8078 = vpop.f32.mrf.mxu0
        %v8079 = vadd.f32 %v8030, %v8078
        %8080 = vmatmul.bf16.gmra.mxu0 %v7053
        %v8081 = vpop.f32.mrf.mxu0
        %v8082 = vadd.f32 %v8033, %v8081
        %v8083 = vpop.f32.mrf.mxu0
        %v8084 = vadd.f32 %v8035, %v8083
        %8085 = vmatmul.bf16.gmra.mxu0 %v7069
        %v8086 = vpop.f32.mrf.mxu0
        %v8087 = vadd.f32 %v8038, %v8086
        %v8088 = vpop.f32.mrf.mxu0
        %v8089 = vadd.f32 %v8040, %v8088
        %8090 = vmatmul.bf16.gmra.mxu0 %v7085
        %v8091 = vpop.f32.mrf.mxu0
        %v8092 = vadd.f32 %v8043, %v8091
        %v8093 = vpop.f32.mrf.mxu0
        %v8094 = vadd.f32 %v8045, %v8093
        %8095 = vmatmul.bf16.gmra.mxu0 %v7101
        %v8096 = vpop.f32.mrf.mxu0
        %v8097 = vadd.f32 %v8048, %v8096
        %v8098 = vpop.f32.mrf.mxu0
        %v8099 = vadd.f32 %v8050, %v8098
        %8100 = vmatmul.bf16.gmra.mxu0 %v7117
        %v8101 = vpop.f32.mrf.mxu0
        %v8102 = vadd.f32 %v8053, %v8101
        %v8103 = vpop.f32.mrf.mxu0
        %v8104 = vadd.f32 %v8055, %v8103
        %8105 = vmatmul.bf16.gmra.mxu0 %v7133
        %v8106 = vpop.f32.mrf.mxu0
        %v8107 = vadd.f32 %v8058, %v8106
        %v8108 = vpop.f32.mrf.mxu0
        %v8109 = vadd.f32 %v8060, %v8108
        %8110 = vdwg.mxu0
        %8111 = vmatpush.bf16.msra.mxu0 %v7698
        %8112 = vmatpush.bf16.msra.mxu0 %v7697
        %8113 = vmatpush.bf16.msra.mxu0 %v7696
        %8114 = vmatpush.bf16.msra.mxu0 %v7695
        %8115 = vmatpush.bf16.msra.mxu0 %v7694
        %8116 = vmatpush.bf16.msra.mxu0 %v7693
        %8117 = vmatpush.bf16.msra.mxu0 %v7692
        %8118 = vmatpush.bf16.msra.mxu0 %v7691
        %8119 = vmatmul.bf16.gmra.mxu0 %v7022
        %v8120 = vpop.f32.mrf.mxu0
        %v8121 = vadd.f32 %v8072, %v8120
        %v8122 = vpop.f32.mrf.mxu0
        %v8123 = vadd.f32 %v8074, %v8122
        %8124 = vmatmul.bf16.gmra.mxu0 %v7038
        %v8125 = vpop.f32.mrf.mxu0
        %v8126 = vadd.f32 %v8077, %v8125
        %v8127 = vpop.f32.mrf.mxu0
        %v8128 = vadd.f32 %v8079, %v8127
        %8129 = vmatmul.bf16.gmra.mxu0 %v7054
        %v8130 = vpop.f32.mrf.mxu0
        %v8131 = vadd.f32 %v8082, %v8130
        %v8132 = vpop.f32.mrf.mxu0
        %v8133 = vadd.f32 %v8084, %v8132
        %8134 = vmatmul.bf16.gmra.mxu0 %v7070
        %v8135 = vpop.f32.mrf.mxu0
        %v8136 = vadd.f32 %v8087, %v8135
        %v8137 = vpop.f32.mrf.mxu0
        %v8138 = vadd.f32 %v8089, %v8137
        %8139 = vmatmul.bf16.gmra.mxu0 %v7086
        %v8140 = vpop.f32.mrf.mxu0
        %v8141 = vadd.f32 %v8092, %v8140
        %v8142 = vpop.f32.mrf.mxu0
        %v8143 = vadd.f32 %v8094, %v8142
        %8144 = vmatmul.bf16.gmra.mxu0 %v7102
        %v8145 = vpop.f32.mrf.mxu0
        %v8146 = vadd.f32 %v8097, %v8145
        %v8147 = vpop.f32.mrf.mxu0
        %v8148 = vadd.f32 %v8099, %v8147
        %8149 = vmatmul.bf16.gmra.mxu0 %v7118
        %v8150 = vpop.f32.mrf.mxu0
        %v8151 = vadd.f32 %v8102, %v8150
        %v8152 = vpop.f32.mrf.mxu0
        %v8153 = vadd.f32 %v8104, %v8152
        %8154 = vmatmul.bf16.gmra.mxu0 %v7134
        %v8155 = vpop.f32.mrf.mxu0
        %v8156 = vadd.f32 %v8107, %v8155
        %v8157 = vpop.f32.mrf.mxu0
        %v8158 = vadd.f32 %v8109, %v8157
        %8159 = vdwg.mxu0
        %8160 = vmatpush.bf16.msra.mxu0 %v7706
        %8161 = vmatpush.bf16.msra.mxu0 %v7705
        %8162 = vmatpush.bf16.msra.mxu0 %v7704
        %8163 = vmatpush.bf16.msra.mxu0 %v7703
        %8164 = vmatpush.bf16.msra.mxu0 %v7702
        %8165 = vmatpush.bf16.msra.mxu0 %v7701
        %8166 = vmatpush.bf16.msra.mxu0 %v7700
        %8167 = vmatpush.bf16.msra.mxu0 %v7699
        %8168 = vmatmul.bf16.gmra.mxu0 %v7023
        %v8169 = vpop.f32.mrf.mxu0
        %v8170 = vadd.f32 %v8121, %v8169
        %v8171 = vpop.f32.mrf.mxu0
        %v8172 = vadd.f32 %v8123, %v8171
        %8173 = vmatmul.bf16.gmra.mxu0 %v7039
        %v8174 = vpop.f32.mrf.mxu0
        %v8175 = vadd.f32 %v8126, %v8174
        %v8176 = vpop.f32.mrf.mxu0
        %v8177 = vadd.f32 %v8128, %v8176
        %8178 = vmatmul.bf16.gmra.mxu0 %v7055
        %v8179 = vpop.f32.mrf.mxu0
        %v8180 = vadd.f32 %v8131, %v8179
        %v8181 = vpop.f32.mrf.mxu0
        %v8182 = vadd.f32 %v8133, %v8181
        %8183 = vmatmul.bf16.gmra.mxu0 %v7071
        %v8184 = vpop.f32.mrf.mxu0
        %v8185 = vadd.f32 %v8136, %v8184
        %v8186 = vpop.f32.mrf.mxu0
        %v8187 = vadd.f32 %v8138, %v8186
        %8188 = vmatmul.bf16.gmra.mxu0 %v7087
        %v8189 = vpop.f32.mrf.mxu0
        %v8190 = vadd.f32 %v8141, %v8189
        %v8191 = vpop.f32.mrf.mxu0
        %v8192 = vadd.f32 %v8143, %v8191
        %8193 = vmatmul.bf16.gmra.mxu0 %v7103
        %v8194 = vpop.f32.mrf.mxu0
        %v8195 = vadd.f32 %v8146, %v8194
        %v8196 = vpop.f32.mrf.mxu0
        %v8197 = vadd.f32 %v8148, %v8196
        %8198 = vmatmul.bf16.gmra.mxu0 %v7119
        %v8199 = vpop.f32.mrf.mxu0
        %v8200 = vadd.f32 %v8151, %v8199
        %v8201 = vpop.f32.mrf.mxu0
        %v8202 = vadd.f32 %v8153, %v8201
        %8203 = vmatmul.bf16.gmra.mxu0 %v7135
        %v8204 = vpop.f32.mrf.mxu0
        %v8205 = vadd.f32 %v8156, %v8204
        %v8206 = vpop.f32.mrf.mxu0
        %v8207 = vadd.f32 %v8158, %v8206
        %8208 = vdwg.mxu0
        %8209 = vmatpush.bf16.msra.mxu0 %v7714
        %8210 = vmatpush.bf16.msra.mxu0 %v7713
        %8211 = vmatpush.bf16.msra.mxu0 %v7712
        %8212 = vmatpush.bf16.msra.mxu0 %v7711
        %8213 = vmatpush.bf16.msra.mxu0 %v7710
        %8214 = vmatpush.bf16.msra.mxu0 %v7709
        %8215 = vmatpush.bf16.msra.mxu0 %v7708
        %8216 = vmatpush.bf16.msra.mxu0 %v7707
        %8217 = vmatmul.bf16.gmra.mxu0 %v7024
        %v8218 = vpop.f32.mrf.mxu0
        %v8219 = vadd.f32 %v8170, %v8218
        %v8220 = vpop.f32.mrf.mxu0
        %v8221 = vadd.f32 %v8172, %v8220
        %8222 = vmatmul.bf16.gmra.mxu0 %v7040
        %v8223 = vpop.f32.mrf.mxu0
        %v8224 = vadd.f32 %v8175, %v8223
        %v8225 = vpop.f32.mrf.mxu0
        %v8226 = vadd.f32 %v8177, %v8225
        %8227 = vmatmul.bf16.gmra.mxu0 %v7056
        %v8228 = vpop.f32.mrf.mxu0
        %v8229 = vadd.f32 %v8180, %v8228
        %v8230 = vpop.f32.mrf.mxu0
        %v8231 = vadd.f32 %v8182, %v8230
        %8232 = vmatmul.bf16.gmra.mxu0 %v7072
        %v8233 = vpop.f32.mrf.mxu0
        %v8234 = vadd.f32 %v8185, %v8233
        %v8235 = vpop.f32.mrf.mxu0
        %v8236 = vadd.f32 %v8187, %v8235
        %8237 = vmatmul.bf16.gmra.mxu0 %v7088
        %v8238 = vpop.f32.mrf.mxu0
        %v8239 = vadd.f32 %v8190, %v8238
        %v8240 = vpop.f32.mrf.mxu0
        %v8241 = vadd.f32 %v8192, %v8240
        %8242 = vmatmul.bf16.gmra.mxu0 %v7104
        %v8243 = vpop.f32.mrf.mxu0
        %v8244 = vadd.f32 %v8195, %v8243
        %v8245 = vpop.f32.mrf.mxu0
        %v8246 = vadd.f32 %v8197, %v8245
        %8247 = vmatmul.bf16.gmra.mxu0 %v7120
        %v8248 = vpop.f32.mrf.mxu0
        %v8249 = vadd.f32 %v8200, %v8248
        %v8250 = vpop.f32.mrf.mxu0
        %v8251 = vadd.f32 %v8202, %v8250
        %8252 = vmatmul.bf16.gmra.mxu0 %v7136
        %v8253 = vpop.f32.mrf.mxu0
        %v8254 = vadd.f32 %v8205, %v8253
        %v8255 = vpop.f32.mrf.mxu0
        %v8256 = vadd.f32 %v8207, %v8255
        %8257 = vdwg.mxu0
        %8258 = vmatpush.bf16.msra.mxu0 %v7722
        %8259 = vmatpush.bf16.msra.mxu0 %v7721
        %8260 = vmatpush.bf16.msra.mxu0 %v7720
        %8261 = vmatpush.bf16.msra.mxu0 %v7719
        %8262 = vmatpush.bf16.msra.mxu0 %v7718
        %8263 = vmatpush.bf16.msra.mxu0 %v7717
        %8264 = vmatpush.bf16.msra.mxu0 %v7716
        %8265 = vmatpush.bf16.msra.mxu0 %v7715
        %8266 = vmatmul.bf16.gmra.mxu0 %v7025
        %v8267 = vpop.f32.mrf.mxu0
        %v8268 = vadd.f32 %v8219, %v8267
        %v8269 = vpop.f32.mrf.mxu0
        %v8270 = vadd.f32 %v8221, %v8269
        %8271 = vmatmul.bf16.gmra.mxu0 %v7041
        %v8272 = vpop.f32.mrf.mxu0
        %v8273 = vadd.f32 %v8224, %v8272
        %v8274 = vpop.f32.mrf.mxu0
        %v8275 = vadd.f32 %v8226, %v8274
        %8276 = vmatmul.bf16.gmra.mxu0 %v7057
        %v8277 = vpop.f32.mrf.mxu0
        %v8278 = vadd.f32 %v8229, %v8277
        %v8279 = vpop.f32.mrf.mxu0
        %v8280 = vadd.f32 %v8231, %v8279
        %8281 = vmatmul.bf16.gmra.mxu0 %v7073
        %v8282 = vpop.f32.mrf.mxu0
        %v8283 = vadd.f32 %v8234, %v8282
        %v8284 = vpop.f32.mrf.mxu0
        %v8285 = vadd.f32 %v8236, %v8284
        %8286 = vmatmul.bf16.gmra.mxu0 %v7089
        %v8287 = vpop.f32.mrf.mxu0
        %v8288 = vadd.f32 %v8239, %v8287
        %v8289 = vpop.f32.mrf.mxu0
        %v8290 = vadd.f32 %v8241, %v8289
        %8291 = vmatmul.bf16.gmra.mxu0 %v7105
        %v8292 = vpop.f32.mrf.mxu0
        %v8293 = vadd.f32 %v8244, %v8292
        %v8294 = vpop.f32.mrf.mxu0
        %v8295 = vadd.f32 %v8246, %v8294
        %8296 = vmatmul.bf16.gmra.mxu0 %v7121
        %v8297 = vpop.f32.mrf.mxu0
        %v8298 = vadd.f32 %v8249, %v8297
        %v8299 = vpop.f32.mrf.mxu0
        %v8300 = vadd.f32 %v8251, %v8299
        %8301 = vmatmul.bf16.gmra.mxu0 %v7137
        %v8302 = vpop.f32.mrf.mxu0
        %v8303 = vadd.f32 %v8254, %v8302
        %v8304 = vpop.f32.mrf.mxu0
        %v8305 = vadd.f32 %v8256, %v8304
        %8306 = vdwg.mxu0
        %8307 = vmatpush.bf16.msra.mxu0 %v7730
        %8308 = vmatpush.bf16.msra.mxu0 %v7729
        %8309 = vmatpush.bf16.msra.mxu0 %v7728
        %8310 = vmatpush.bf16.msra.mxu0 %v7727
        %8311 = vmatpush.bf16.msra.mxu0 %v7726
        %8312 = vmatpush.bf16.msra.mxu0 %v7725
        %8313 = vmatpush.bf16.msra.mxu0 %v7724
        %8314 = vmatpush.bf16.msra.mxu0 %v7723
        %8315 = vmatmul.bf16.gmra.mxu0 %v7026
        %v8316 = vpop.f32.mrf.mxu0
        %v8317 = vadd.f32 %v8268, %v8316
        %v8318 = vpop.f32.mrf.mxu0
        %v8319 = vadd.f32 %v8270, %v8318
        %8320 = vmatmul.bf16.gmra.mxu0 %v7042
        %v8321 = vpop.f32.mrf.mxu0
        %v8322 = vadd.f32 %v8273, %v8321
        %v8323 = vpop.f32.mrf.mxu0
        %v8324 = vadd.f32 %v8275, %v8323
        %8325 = vmatmul.bf16.gmra.mxu0 %v7058
        %v8326 = vpop.f32.mrf.mxu0
        %v8327 = vadd.f32 %v8278, %v8326
        %v8328 = vpop.f32.mrf.mxu0
        %v8329 = vadd.f32 %v8280, %v8328
        %8330 = vmatmul.bf16.gmra.mxu0 %v7074
        %v8331 = vpop.f32.mrf.mxu0
        %v8332 = vadd.f32 %v8283, %v8331
        %v8333 = vpop.f32.mrf.mxu0
        %v8334 = vadd.f32 %v8285, %v8333
        %8335 = vmatmul.bf16.gmra.mxu0 %v7090
        %v8336 = vpop.f32.mrf.mxu0
        %v8337 = vadd.f32 %v8288, %v8336
        %v8338 = vpop.f32.mrf.mxu0
        %v8339 = vadd.f32 %v8290, %v8338
        %8340 = vmatmul.bf16.gmra.mxu0 %v7106
        %v8341 = vpop.f32.mrf.mxu0
        %v8342 = vadd.f32 %v8293, %v8341
        %v8343 = vpop.f32.mrf.mxu0
        %v8344 = vadd.f32 %v8295, %v8343
        %8345 = vmatmul.bf16.gmra.mxu0 %v7122
        %v8346 = vpop.f32.mrf.mxu0
        %v8347 = vadd.f32 %v8298, %v8346
        %v8348 = vpop.f32.mrf.mxu0
        %v8349 = vadd.f32 %v8300, %v8348
        %8350 = vmatmul.bf16.gmra.mxu0 %v7138
        %v8351 = vpop.f32.mrf.mxu0
        %v8352 = vadd.f32 %v8303, %v8351
        %v8353 = vpop.f32.mrf.mxu0
        %v8354 = vadd.f32 %v8305, %v8353
        %8355 = vdwg.mxu0
        %8356 = vmatpush.bf16.msra.mxu0 %v7738
        %8357 = vmatpush.bf16.msra.mxu0 %v7737
        %8358 = vmatpush.bf16.msra.mxu0 %v7736
        %8359 = vmatpush.bf16.msra.mxu0 %v7735
        %8360 = vmatpush.bf16.msra.mxu0 %v7734
        %8361 = vmatpush.bf16.msra.mxu0 %v7733
        %8362 = vmatpush.bf16.msra.mxu0 %v7732
        %8363 = vmatpush.bf16.msra.mxu0 %v7731
        %8364 = vmatmul.bf16.gmra.mxu0 %v7027
        %v8365 = vpop.f32.mrf.mxu0
        %v8366 = vadd.f32 %v8317, %v8365
        %v8367 = vpop.f32.mrf.mxu0
        %v8368 = vadd.f32 %v8319, %v8367
        %8369 = vmatmul.bf16.gmra.mxu0 %v7043
        %v8370 = vpop.f32.mrf.mxu0
        %v8371 = vadd.f32 %v8322, %v8370
        %v8372 = vpop.f32.mrf.mxu0
        %v8373 = vadd.f32 %v8324, %v8372
        %8374 = vmatmul.bf16.gmra.mxu0 %v7059
        %v8375 = vpop.f32.mrf.mxu0
        %v8376 = vadd.f32 %v8327, %v8375
        %v8377 = vpop.f32.mrf.mxu0
        %v8378 = vadd.f32 %v8329, %v8377
        %8379 = vmatmul.bf16.gmra.mxu0 %v7075
        %v8380 = vpop.f32.mrf.mxu0
        %v8381 = vadd.f32 %v8332, %v8380
        %v8382 = vpop.f32.mrf.mxu0
        %v8383 = vadd.f32 %v8334, %v8382
        %8384 = vmatmul.bf16.gmra.mxu0 %v7091
        %v8385 = vpop.f32.mrf.mxu0
        %v8386 = vadd.f32 %v8337, %v8385
        %v8387 = vpop.f32.mrf.mxu0
        %v8388 = vadd.f32 %v8339, %v8387
        %8389 = vmatmul.bf16.gmra.mxu0 %v7107
        %v8390 = vpop.f32.mrf.mxu0
        %v8391 = vadd.f32 %v8342, %v8390
        %v8392 = vpop.f32.mrf.mxu0
        %v8393 = vadd.f32 %v8344, %v8392
        %8394 = vmatmul.bf16.gmra.mxu0 %v7123
        %v8395 = vpop.f32.mrf.mxu0
        %v8396 = vadd.f32 %v8347, %v8395
        %v8397 = vpop.f32.mrf.mxu0
        %v8398 = vadd.f32 %v8349, %v8397
        %8399 = vmatmul.bf16.gmra.mxu0 %v7139
        %v8400 = vpop.f32.mrf.mxu0
        %v8401 = vadd.f32 %v8352, %v8400
        %v8402 = vpop.f32.mrf.mxu0
        %v8403 = vadd.f32 %v8354, %v8402
        %8404 = vdwg.mxu0
        %8405 = vmatpush.bf16.msra.mxu0 %v7746
        %8406 = vmatpush.bf16.msra.mxu0 %v7745
        %8407 = vmatpush.bf16.msra.mxu0 %v7744
        %8408 = vmatpush.bf16.msra.mxu0 %v7743
        %8409 = vmatpush.bf16.msra.mxu0 %v7742
        %8410 = vmatpush.bf16.msra.mxu0 %v7741
        %8411 = vmatpush.bf16.msra.mxu0 %v7740
        %8412 = vmatpush.bf16.msra.mxu0 %v7739
        %8413 = vmatmul.bf16.gmra.mxu0 %v7028
        %v8414 = vpop.f32.mrf.mxu0
        %v8415 = vadd.f32 %v8366, %v8414
        %v8416 = vpop.f32.mrf.mxu0
        %v8417 = vadd.f32 %v8368, %v8416
        %8418 = vmatmul.bf16.gmra.mxu0 %v7044
        %v8419 = vpop.f32.mrf.mxu0
        %v8420 = vadd.f32 %v8371, %v8419
        %v8421 = vpop.f32.mrf.mxu0
        %v8422 = vadd.f32 %v8373, %v8421
        %8423 = vmatmul.bf16.gmra.mxu0 %v7060
        %v8424 = vpop.f32.mrf.mxu0
        %v8425 = vadd.f32 %v8376, %v8424
        %v8426 = vpop.f32.mrf.mxu0
        %v8427 = vadd.f32 %v8378, %v8426
        %8428 = vmatmul.bf16.gmra.mxu0 %v7076
        %v8429 = vpop.f32.mrf.mxu0
        %v8430 = vadd.f32 %v8381, %v8429
        %v8431 = vpop.f32.mrf.mxu0
        %v8432 = vadd.f32 %v8383, %v8431
        %8433 = vmatmul.bf16.gmra.mxu0 %v7092
        %v8434 = vpop.f32.mrf.mxu0
        %v8435 = vadd.f32 %v8386, %v8434
        %v8436 = vpop.f32.mrf.mxu0
        %v8437 = vadd.f32 %v8388, %v8436
        %8438 = vmatmul.bf16.gmra.mxu0 %v7108
        %v8439 = vpop.f32.mrf.mxu0
        %v8440 = vadd.f32 %v8391, %v8439
        %v8441 = vpop.f32.mrf.mxu0
        %v8442 = vadd.f32 %v8393, %v8441
        %8443 = vmatmul.bf16.gmra.mxu0 %v7124
        %v8444 = vpop.f32.mrf.mxu0
        %v8445 = vadd.f32 %v8396, %v8444
        %v8446 = vpop.f32.mrf.mxu0
        %v8447 = vadd.f32 %v8398, %v8446
        %8448 = vmatmul.bf16.gmra.mxu0 %v7140
        %v8449 = vpop.f32.mrf.mxu0
        %v8450 = vadd.f32 %v8401, %v8449
        %v8451 = vpop.f32.mrf.mxu0
        %v8452 = vadd.f32 %v8403, %v8451
        %8453 = vdwg.mxu0
        %8454 = vmatpush.bf16.msra.mxu0 %v7754
        %8455 = vmatpush.bf16.msra.mxu0 %v7753
        %8456 = vmatpush.bf16.msra.mxu0 %v7752
        %8457 = vmatpush.bf16.msra.mxu0 %v7751
        %8458 = vmatpush.bf16.msra.mxu0 %v7750
        %8459 = vmatpush.bf16.msra.mxu0 %v7749
        %8460 = vmatpush.bf16.msra.mxu0 %v7748
        %8461 = vmatpush.bf16.msra.mxu0 %v7747
        %8462 = vmatmul.bf16.gmra.mxu0 %v7029
        %v8463 = vpop.f32.mrf.mxu0
        %v8464 = vadd.f32 %v8415, %v8463
        %v8465 = vpop.f32.mrf.mxu0
        %v8466 = vadd.f32 %v8417, %v8465
        %8467 = vmatmul.bf16.gmra.mxu0 %v7045
        %v8468 = vpop.f32.mrf.mxu0
        %v8469 = vadd.f32 %v8420, %v8468
        %v8470 = vpop.f32.mrf.mxu0
        %v8471 = vadd.f32 %v8422, %v8470
        %8472 = vmatmul.bf16.gmra.mxu0 %v7061
        %v8473 = vpop.f32.mrf.mxu0
        %v8474 = vadd.f32 %v8425, %v8473
        %v8475 = vpop.f32.mrf.mxu0
        %v8476 = vadd.f32 %v8427, %v8475
        %8477 = vmatmul.bf16.gmra.mxu0 %v7077
        %v8478 = vpop.f32.mrf.mxu0
        %v8479 = vadd.f32 %v8430, %v8478
        %v8480 = vpop.f32.mrf.mxu0
        %v8481 = vadd.f32 %v8432, %v8480
        %8482 = vmatmul.bf16.gmra.mxu0 %v7093
        %v8483 = vpop.f32.mrf.mxu0
        %v8484 = vadd.f32 %v8435, %v8483
        %v8485 = vpop.f32.mrf.mxu0
        %v8486 = vadd.f32 %v8437, %v8485
        %8487 = vmatmul.bf16.gmra.mxu0 %v7109
        %v8488 = vpop.f32.mrf.mxu0
        %v8489 = vadd.f32 %v8440, %v8488
        %v8490 = vpop.f32.mrf.mxu0
        %v8491 = vadd.f32 %v8442, %v8490
        %8492 = vmatmul.bf16.gmra.mxu0 %v7125
        %v8493 = vpop.f32.mrf.mxu0
        %v8494 = vadd.f32 %v8445, %v8493
        %v8495 = vpop.f32.mrf.mxu0
        %v8496 = vadd.f32 %v8447, %v8495
        %8497 = vmatmul.bf16.gmra.mxu0 %v7141
        %v8498 = vpop.f32.mrf.mxu0
        %v8499 = vadd.f32 %v8450, %v8498
        %v8500 = vpop.f32.mrf.mxu0
        %v8501 = vadd.f32 %v8452, %v8500
        %8502 = vdwg.mxu0
        %8503 = vmatpush.bf16.msra.mxu0 %v7762
        %8504 = vmatpush.bf16.msra.mxu0 %v7761
        %8505 = vmatpush.bf16.msra.mxu0 %v7760
        %8506 = vmatpush.bf16.msra.mxu0 %v7759
        %8507 = vmatpush.bf16.msra.mxu0 %v7758
        %8508 = vmatpush.bf16.msra.mxu0 %v7757
        %8509 = vmatpush.bf16.msra.mxu0 %v7756
        %8510 = vmatpush.bf16.msra.mxu0 %v7755
        %8511 = vmatmul.bf16.gmra.mxu0 %v7030
        %v8512 = vpop.f32.mrf.mxu0
        %v8513 = vadd.f32 %v8464, %v8512
        %v8514 = vpop.f32.mrf.mxu0
        %v8515 = vadd.f32 %v8466, %v8514
        %8516 = vmatmul.bf16.gmra.mxu0 %v7046
        %v8517 = vpop.f32.mrf.mxu0
        %v8518 = vadd.f32 %v8469, %v8517
        %v8519 = vpop.f32.mrf.mxu0
        %v8520 = vadd.f32 %v8471, %v8519
        %8521 = vmatmul.bf16.gmra.mxu0 %v7062
        %v8522 = vpop.f32.mrf.mxu0
        %v8523 = vadd.f32 %v8474, %v8522
        %v8524 = vpop.f32.mrf.mxu0
        %v8525 = vadd.f32 %v8476, %v8524
        %8526 = vmatmul.bf16.gmra.mxu0 %v7078
        %v8527 = vpop.f32.mrf.mxu0
        %v8528 = vadd.f32 %v8479, %v8527
        %v8529 = vpop.f32.mrf.mxu0
        %v8530 = vadd.f32 %v8481, %v8529
        %8531 = vmatmul.bf16.gmra.mxu0 %v7094
        %v8532 = vpop.f32.mrf.mxu0
        %v8533 = vadd.f32 %v8484, %v8532
        %v8534 = vpop.f32.mrf.mxu0
        %v8535 = vadd.f32 %v8486, %v8534
        %8536 = vmatmul.bf16.gmra.mxu0 %v7110
        %v8537 = vpop.f32.mrf.mxu0
        %v8538 = vadd.f32 %v8489, %v8537
        %v8539 = vpop.f32.mrf.mxu0
        %v8540 = vadd.f32 %v8491, %v8539
        %8541 = vmatmul.bf16.gmra.mxu0 %v7126
        %v8542 = vpop.f32.mrf.mxu0
        %v8543 = vadd.f32 %v8494, %v8542
        %v8544 = vpop.f32.mrf.mxu0
        %v8545 = vadd.f32 %v8496, %v8544
        %8546 = vmatmul.bf16.gmra.mxu0 %v7142
        %v8547 = vpop.f32.mrf.mxu0
        %v8548 = vadd.f32 %v8499, %v8547
        %v8549 = vpop.f32.mrf.mxu0
        %v8550 = vadd.f32 %v8501, %v8549
        %8551 = vdwg.mxu0
        %8552 = vmatpush.bf16.msra.mxu0 %v7770
        %8553 = vmatpush.bf16.msra.mxu0 %v7769
        %8554 = vmatpush.bf16.msra.mxu0 %v7768
        %8555 = vmatpush.bf16.msra.mxu0 %v7767
        %8556 = vmatpush.bf16.msra.mxu0 %v7766
        %8557 = vmatpush.bf16.msra.mxu0 %v7765
        %8558 = vmatpush.bf16.msra.mxu0 %v7764
        %8559 = vmatpush.bf16.msra.mxu0 %v7763
        %8560 = vmatmul.bf16.gmra.mxu0 %v7031
        %v8561 = vpop.f32.mrf.mxu0
        %v8562 = vadd.f32 %v8513, %v8561
        %v8563 = vpop.f32.mrf.mxu0
        %v8564 = vadd.f32 %v8515, %v8563
        %8565 = vmatmul.bf16.gmra.mxu0 %v7047
        %v8566 = vpop.f32.mrf.mxu0
        %v8567 = vadd.f32 %v8518, %v8566
        %v8568 = vpop.f32.mrf.mxu0
        %v8569 = vadd.f32 %v8520, %v8568
        %8570 = vmatmul.bf16.gmra.mxu0 %v7063
        %v8571 = vpop.f32.mrf.mxu0
        %v8572 = vadd.f32 %v8523, %v8571
        %v8573 = vpop.f32.mrf.mxu0
        %v8574 = vadd.f32 %v8525, %v8573
        %8575 = vmatmul.bf16.gmra.mxu0 %v7079
        %v8576 = vpop.f32.mrf.mxu0
        %v8577 = vadd.f32 %v8528, %v8576
        %v8578 = vpop.f32.mrf.mxu0
        %v8579 = vadd.f32 %v8530, %v8578
        %8580 = vmatmul.bf16.gmra.mxu0 %v7095
        %v8581 = vpop.f32.mrf.mxu0
        %v8582 = vadd.f32 %v8533, %v8581
        %v8583 = vpop.f32.mrf.mxu0
        %v8584 = vadd.f32 %v8535, %v8583
        %8585 = vmatmul.bf16.gmra.mxu0 %v7111
        %v8586 = vpop.f32.mrf.mxu0
        %v8587 = vadd.f32 %v8538, %v8586
        %v8588 = vpop.f32.mrf.mxu0
        %v8589 = vadd.f32 %v8540, %v8588
        %8590 = vmatmul.bf16.gmra.mxu0 %v7127
        %v8591 = vpop.f32.mrf.mxu0
        %v8592 = vadd.f32 %v8543, %v8591
        %v8593 = vpop.f32.mrf.mxu0
        %v8594 = vadd.f32 %v8545, %v8593
        %8595 = vmatmul.bf16.gmra.mxu0 %v7143
        %v8596 = vpop.f32.mrf.mxu0
        %v8597 = vadd.f32 %v8548, %v8596
        %v8598 = vpop.f32.mrf.mxu0
        %v8599 = vadd.f32 %v8550, %v8598
        %8600 = vdwg.mxu0
        %8601 = vmatpush.bf16.msra.mxu0 %v7778
        %8602 = vmatpush.bf16.msra.mxu0 %v7777
        %8603 = vmatpush.bf16.msra.mxu0 %v7776
        %8604 = vmatpush.bf16.msra.mxu0 %v7775
        %8605 = vmatpush.bf16.msra.mxu0 %v7774
        %8606 = vmatpush.bf16.msra.mxu0 %v7773
        %8607 = vmatpush.bf16.msra.mxu0 %v7772
        %8608 = vmatpush.bf16.msra.mxu0 %v7771
        %8609 = vmatmul.bf16.gmra.mxu0 %v7032
        %v8610 = vpop.f32.mrf.mxu0
        %v8611 = vadd.f32 %v8562, %v8610
        %v8612 = vpop.f32.mrf.mxu0
        %v8613 = vadd.f32 %v8564, %v8612
        %8614 = vmatmul.bf16.gmra.mxu0 %v7048
        %v8615 = vpop.f32.mrf.mxu0
        %v8616 = vadd.f32 %v8567, %v8615
        %v8617 = vpop.f32.mrf.mxu0
        %v8618 = vadd.f32 %v8569, %v8617
        %8619 = vmatmul.bf16.gmra.mxu0 %v7064
        %v8620 = vpop.f32.mrf.mxu0
        %v8621 = vadd.f32 %v8572, %v8620
        %v8622 = vpop.f32.mrf.mxu0
        %v8623 = vadd.f32 %v8574, %v8622
        %8624 = vmatmul.bf16.gmra.mxu0 %v7080
        %v8625 = vpop.f32.mrf.mxu0
        %v8626 = vadd.f32 %v8577, %v8625
        %v8627 = vpop.f32.mrf.mxu0
        %v8628 = vadd.f32 %v8579, %v8627
        %8629 = vmatmul.bf16.gmra.mxu0 %v7096
        %v8630 = vpop.f32.mrf.mxu0
        %v8631 = vadd.f32 %v8582, %v8630
        %v8632 = vpop.f32.mrf.mxu0
        %v8633 = vadd.f32 %v8584, %v8632
        %8634 = vmatmul.bf16.gmra.mxu0 %v7112
        %v8635 = vpop.f32.mrf.mxu0
        %v8636 = vadd.f32 %v8587, %v8635
        %v8637 = vpop.f32.mrf.mxu0
        %v8638 = vadd.f32 %v8589, %v8637
        %8639 = vmatmul.bf16.gmra.mxu0 %v7128
        %v8640 = vpop.f32.mrf.mxu0
        %v8641 = vadd.f32 %v8592, %v8640
        %v8642 = vpop.f32.mrf.mxu0
        %v8643 = vadd.f32 %v8594, %v8642
        %8644 = vmatmul.bf16.gmra.mxu0 %v7144
        %v8645 = vpop.f32.mrf.mxu0
        %v8646 = vadd.f32 %v8597, %v8645
        %v8647 = vpop.f32.mrf.mxu0
        %v8648 = vadd.f32 %v8599, %v8647
        %8649 = vdwg.mxu0
        %8650 = vmatpush.bf16.msra.mxu0 %v7786
        %8651 = vmatpush.bf16.msra.mxu0 %v7785
        %8652 = vmatpush.bf16.msra.mxu0 %v7784
        %8653 = vmatpush.bf16.msra.mxu0 %v7783
        %8654 = vmatpush.bf16.msra.mxu0 %v7782
        %8655 = vmatpush.bf16.msra.mxu0 %v7781
        %8656 = vmatpush.bf16.msra.mxu0 %v7780
        %8657 = vmatpush.bf16.msra.mxu0 %v7779
        %8658 = vmatmul.bf16.gmra.mxu0 %v7033
        %v8659 = vpop.f32.mrf.mxu0
        %v8660 = vadd.f32 %v8611, %v8659
        %v8661 = vpop.f32.mrf.mxu0
        %v8662 = vadd.f32 %v8613, %v8661
        %8663 = vmatmul.bf16.gmra.mxu0 %v7049
        %v8664 = vpop.f32.mrf.mxu0
        %v8665 = vadd.f32 %v8616, %v8664
        %v8666 = vpop.f32.mrf.mxu0
        %v8667 = vadd.f32 %v8618, %v8666
        %8668 = vmatmul.bf16.gmra.mxu0 %v7065
        %v8669 = vpop.f32.mrf.mxu0
        %v8670 = vadd.f32 %v8621, %v8669
        %v8671 = vpop.f32.mrf.mxu0
        %v8672 = vadd.f32 %v8623, %v8671
        %8673 = vmatmul.bf16.gmra.mxu0 %v7081
        %v8674 = vpop.f32.mrf.mxu0
        %v8675 = vadd.f32 %v8626, %v8674
        %v8676 = vpop.f32.mrf.mxu0
        %v8677 = vadd.f32 %v8628, %v8676
        %8678 = vmatmul.bf16.gmra.mxu0 %v7097
        %v8679 = vpop.f32.mrf.mxu0
        %v8680 = vadd.f32 %v8631, %v8679
        %v8681 = vpop.f32.mrf.mxu0
        %v8682 = vadd.f32 %v8633, %v8681
        %8683 = vmatmul.bf16.gmra.mxu0 %v7113
        %v8684 = vpop.f32.mrf.mxu0
        %v8685 = vadd.f32 %v8636, %v8684
        %v8686 = vpop.f32.mrf.mxu0
        %v8687 = vadd.f32 %v8638, %v8686
        %8688 = vmatmul.bf16.gmra.mxu0 %v7129
        %v8689 = vpop.f32.mrf.mxu0
        %v8690 = vadd.f32 %v8641, %v8689
        %v8691 = vpop.f32.mrf.mxu0
        %v8692 = vadd.f32 %v8643, %v8691
        %8693 = vmatmul.bf16.gmra.mxu0 %v7145
        %v8694 = vpop.f32.mrf.mxu0
        %v8695 = vadd.f32 %v8646, %v8694
        %v8696 = vpop.f32.mrf.mxu0
        %v8697 = vadd.f32 %v8648, %v8696
        %8698 = vdwg.mxu0
        %v8699 = vadd.f32 %v5248, %v8660
        %v8700 = vadd.f32 %v5249, %v8662
        %v8701 = vadd.f32 %v5250, %v8665
        %v8702 = vadd.f32 %v5251, %v8667
        %v8703 = vadd.f32 %v5252, %v8670
        %v8704 = vadd.f32 %v5253, %v8672
        %v8705 = vadd.f32 %v5254, %v8675
        %v8706 = vadd.f32 %v5255, %v8677
        %v8707 = vadd.f32 %v5256, %v8680
        %v8708 = vadd.f32 %v5257, %v8682
        %v8709 = vadd.f32 %v5258, %v8685
        %v8710 = vadd.f32 %v5259, %v8687
        %v8711 = vadd.f32 %v5260, %v8690
        %v8712 = vadd.f32 %v5261, %v8692
        %v8713 = vadd.f32 %v5262, %v8695
        %v8714 = vadd.f32 %v5263, %v8697
        %v8715 = vsel %vm376, %v8699, 0.0
        %8716 = vadd.xlane.f32.xlu0 %v8715
        %v8717 = vpop.xlane.xlu0 %8716
        %v8718 = vsel %vm376, %v8700, 0.0
        %8719 = vadd.xlane.f32.xlu0 %v8718
        %v8720 = vpop.xlane.xlu0 %8719
        %v8721 = vsel %vm376, %v8701, 0.0
        %8722 = vadd.xlane.f32.xlu0 %v8721
        %v8723 = vpop.xlane.xlu0 %8722
        %v8724 = vsel %vm376, %v8702, 0.0
        %8725 = vadd.xlane.f32.xlu0 %v8724
        %v8726 = vpop.xlane.xlu0 %8725
        %v8727 = vsel %vm376, %v8703, 0.0
        %8728 = vadd.xlane.f32.xlu0 %v8727
        %v8729 = vpop.xlane.xlu0 %8728
        %v8730 = vsel %vm376, %v8704, 0.0
        %8731 = vadd.xlane.f32.xlu0 %v8730
        %v8732 = vpop.xlane.xlu0 %8731
        %v8733 = vsel %vm376, %v8705, 0.0
        %8734 = vadd.xlane.f32.xlu0 %v8733
        %v8735 = vpop.xlane.xlu0 %8734
        %v8736 = vsel %vm376, %v8706, 0.0
        %8737 = vadd.xlane.f32.xlu0 %v8736
        %v8738 = vpop.xlane.xlu0 %8737
        %v8739 = vsel %vm376, %v8707, 0.0
        %8740 = vadd.xlane.f32.xlu0 %v8739
        %v8741 = vpop.xlane.xlu0 %8740
        %v8742 = vsel %vm376, %v8708, 0.0
        %8743 = vadd.xlane.f32.xlu0 %v8742
        %v8744 = vpop.xlane.xlu0 %8743
        %v8745 = vsel %vm376, %v8709, 0.0
        %8746 = vadd.xlane.f32.xlu0 %v8745
        %v8747 = vpop.xlane.xlu0 %8746
        %v8748 = vsel %vm376, %v8710, 0.0
        %8749 = vadd.xlane.f32.xlu0 %v8748
        %v8750 = vpop.xlane.xlu0 %8749
        %v8751 = vsel %vm376, %v8711, 0.0
        %8752 = vadd.xlane.f32.xlu0 %v8751
        %v8753 = vpop.xlane.xlu0 %8752
        %v8754 = vsel %vm376, %v8712, 0.0
        %8755 = vadd.xlane.f32.xlu0 %v8754
        %v8756 = vpop.xlane.xlu0 %8755
        %v8757 = vsel %vm376, %v8713, 0.0
        %8758 = vadd.xlane.f32.xlu0 %v8757
        %v8759 = vpop.xlane.xlu0 %8758
        %v8760 = vsel %vm376, %v8714, 0.0
        %8761 = vadd.xlane.f32.xlu0 %v8760
        %v8762 = vpop.xlane.xlu0 %8761
        %v8763 = vmul.f32 %v8717, %v560
        %v8764 = vmul.f32 %v8720, %v560
        %v8765 = vmul.f32 %v8723, %v560
        %v8766 = vmul.f32 %v8726, %v560
        %v8767 = vmul.f32 %v8729, %v560
        %v8768 = vmul.f32 %v8732, %v560
        %v8769 = vmul.f32 %v8735, %v560
        %v8770 = vmul.f32 %v8738, %v560
        %v8771 = vmul.f32 %v8741, %v560
        %v8772 = vmul.f32 %v8744, %v560
        %v8773 = vmul.f32 %v8747, %v560
        %v8774 = vmul.f32 %v8750, %v560
        %v8775 = vmul.f32 %v8753, %v560
        %v8776 = vmul.f32 %v8756, %v560
        %v8777 = vmul.f32 %v8759, %v560
        %v8778 = vmul.f32 %v8762, %v560
        %v8779 = vsub.f32 %v8699, %v8763
        %v8780 = vsub.f32 %v8700, %v8764
        %v8781 = vsub.f32 %v8701, %v8765
        %v8782 = vsub.f32 %v8702, %v8766
        %v8783 = vsub.f32 %v8703, %v8767
        %v8784 = vsub.f32 %v8704, %v8768
        %v8785 = vsub.f32 %v8705, %v8769
        %v8786 = vsub.f32 %v8706, %v8770
        %v8787 = vsub.f32 %v8707, %v8771
        %v8788 = vsub.f32 %v8708, %v8772
        %v8789 = vsub.f32 %v8709, %v8773
        %v8790 = vsub.f32 %v8710, %v8774
        %v8791 = vsub.f32 %v8711, %v8775
        %v8792 = vsub.f32 %v8712, %v8776
        %v8793 = vsub.f32 %v8713, %v8777
        %v8794 = vsub.f32 %v8714, %v8778
        %v8795 = vmul.f32 %v8779, %v8779
        %v8796 = vmul.f32 %v8780, %v8780
        %v8797 = vmul.f32 %v8781, %v8781
        %v8798 = vmul.f32 %v8782, %v8782
        %v8799 = vmul.f32 %v8783, %v8783
        %v8800 = vmul.f32 %v8784, %v8784
        %v8801 = vmul.f32 %v8785, %v8785
        %v8802 = vmul.f32 %v8786, %v8786
        %v8803 = vmul.f32 %v8787, %v8787
        %v8804 = vmul.f32 %v8788, %v8788
        %v8805 = vmul.f32 %v8789, %v8789
        %v8806 = vmul.f32 %v8790, %v8790
        %v8807 = vmul.f32 %v8791, %v8791
        %v8808 = vmul.f32 %v8792, %v8792
        %v8809 = vmul.f32 %v8793, %v8793
        %v8810 = vmul.f32 %v8794, %v8794
        %v8811 = vsel %vm376, %v8795, 0.0
        %8812 = vadd.xlane.f32.xlu0 %v8811
        %v8813 = vpop.xlane.xlu0 %8812
        %v8814 = vsel %vm376, %v8796, 0.0
        %8815 = vadd.xlane.f32.xlu0 %v8814
        %v8816 = vpop.xlane.xlu0 %8815
        %v8817 = vsel %vm376, %v8797, 0.0
        %8818 = vadd.xlane.f32.xlu0 %v8817
        %v8819 = vpop.xlane.xlu0 %8818
        %v8820 = vsel %vm376, %v8798, 0.0
        %8821 = vadd.xlane.f32.xlu0 %v8820
        %v8822 = vpop.xlane.xlu0 %8821
        %v8823 = vsel %vm376, %v8799, 0.0
        %8824 = vadd.xlane.f32.xlu0 %v8823
        %v8825 = vpop.xlane.xlu0 %8824
        %v8826 = vsel %vm376, %v8800, 0.0
        %8827 = vadd.xlane.f32.xlu0 %v8826
        %v8828 = vpop.xlane.xlu0 %8827
        %v8829 = vsel %vm376, %v8801, 0.0
        %8830 = vadd.xlane.f32.xlu0 %v8829
        %v8831 = vpop.xlane.xlu0 %8830
        %v8832 = vsel %vm376, %v8802, 0.0
        %8833 = vadd.xlane.f32.xlu0 %v8832
        %v8834 = vpop.xlane.xlu0 %8833
        %v8835 = vsel %vm376, %v8803, 0.0
        %8836 = vadd.xlane.f32.xlu0 %v8835
        %v8837 = vpop.xlane.xlu0 %8836
        %v8838 = vsel %vm376, %v8804, 0.0
        %8839 = vadd.xlane.f32.xlu0 %v8838
        %v8840 = vpop.xlane.xlu0 %8839
        %v8841 = vsel %vm376, %v8805, 0.0
        %8842 = vadd.xlane.f32.xlu0 %v8841
        %v8843 = vpop.xlane.xlu0 %8842
        %v8844 = vsel %vm376, %v8806, 0.0
        %8845 = vadd.xlane.f32.xlu0 %v8844
        %v8846 = vpop.xlane.xlu0 %8845
        %v8847 = vsel %vm376, %v8807, 0.0
        %8848 = vadd.xlane.f32.xlu0 %v8847
        %v8849 = vpop.xlane.xlu0 %8848
        %v8850 = vsel %vm376, %v8808, 0.0
        %8851 = vadd.xlane.f32.xlu0 %v8850
        %v8852 = vpop.xlane.xlu0 %8851
        %v8853 = vsel %vm376, %v8809, 0.0
        %8854 = vadd.xlane.f32.xlu0 %v8853
        %v8855 = vpop.xlane.xlu0 %8854
        %v8856 = vsel %vm376, %v8810, 0.0
        %8857 = vadd.xlane.f32.xlu0 %v8856
        %v8858 = vpop.xlane.xlu0 %8857
        %v8859 = vmul.f32 %v8813, %v560
        %v8860 = vmul.f32 %v8816, %v560
        %v8861 = vmul.f32 %v8819, %v560
        %v8862 = vmul.f32 %v8822, %v560
        %v8863 = vmul.f32 %v8825, %v560
        %v8864 = vmul.f32 %v8828, %v560
        %v8865 = vmul.f32 %v8831, %v560
        %v8866 = vmul.f32 %v8834, %v560
        %v8867 = vmul.f32 %v8837, %v560
        %v8868 = vmul.f32 %v8840, %v560
        %v8869 = vmul.f32 %v8843, %v560
        %v8870 = vmul.f32 %v8846, %v560
        %v8871 = vmul.f32 %v8849, %v560
        %v8872 = vmul.f32 %v8852, %v560
        %v8873 = vmul.f32 %v8855, %v560
        %v8874 = vmul.f32 %v8858, %v560
        %v8875 = vadd.f32 %v8859, 1e-05
        %v8876 = vadd.f32 %v8860, 1e-05
        %v8877 = vadd.f32 %v8861, 1e-05
        %v8878 = vadd.f32 %v8862, 1e-05
        %v8879 = vadd.f32 %v8863, 1e-05
        %v8880 = vadd.f32 %v8864, 1e-05
        %v8881 = vadd.f32 %v8865, 1e-05
        %v8882 = vadd.f32 %v8866, 1e-05
        %v8883 = vadd.f32 %v8867, 1e-05
        %v8884 = vadd.f32 %v8868, 1e-05
        %v8885 = vadd.f32 %v8869, 1e-05
        %v8886 = vadd.f32 %v8870, 1e-05
        %v8887 = vadd.f32 %v8871, 1e-05
        %v8888 = vadd.f32 %v8872, 1e-05
        %v8889 = vadd.f32 %v8873, 1e-05
        %v8890 = vadd.f32 %v8874, 1e-05
        %v8891 = vrsqrt.pop %v8875
        %v8892 = vmul.f32 %v8891, %v8875
        %v8893 = vmul.f32 %v8892, %v8891
        %v8894 = vmul.f32 0.5, %v8893
        %v8895 = vsub.f32 1.5, %v8894
        %v8896 = vmul.f32 %v8891, %v8895
        %vm8897 = vweird.f32 %v8875
        %vm8898 = vweird.f32 %v8891
        %vm8899 = vmor %vm8897, %vm8898
        %v8900 = vsel %vm8899, %v8891, %v8896
        %v8901 = vrsqrt.pop %v8876
        %v8902 = vmul.f32 %v8901, %v8876
        %v8903 = vmul.f32 %v8902, %v8901
        %v8904 = vmul.f32 0.5, %v8903
        %v8905 = vsub.f32 1.5, %v8904
        %v8906 = vmul.f32 %v8901, %v8905
        %vm8907 = vweird.f32 %v8876
        %vm8908 = vweird.f32 %v8901
        %vm8909 = vmor %vm8907, %vm8908
        %v8910 = vsel %vm8909, %v8901, %v8906
        %v8911 = vrsqrt.pop %v8877
        %v8912 = vmul.f32 %v8911, %v8877
        %v8913 = vmul.f32 %v8912, %v8911
        %v8914 = vmul.f32 0.5, %v8913
        %v8915 = vsub.f32 1.5, %v8914
        %v8916 = vmul.f32 %v8911, %v8915
        %vm8917 = vweird.f32 %v8877
        %vm8918 = vweird.f32 %v8911
        %vm8919 = vmor %vm8917, %vm8918
        %v8920 = vsel %vm8919, %v8911, %v8916
        %v8921 = vrsqrt.pop %v8878
        %v8922 = vmul.f32 %v8921, %v8878
        %v8923 = vmul.f32 %v8922, %v8921
        %v8924 = vmul.f32 0.5, %v8923
        %v8925 = vsub.f32 1.5, %v8924
        %v8926 = vmul.f32 %v8921, %v8925
        %vm8927 = vweird.f32 %v8878
        %vm8928 = vweird.f32 %v8921
        %vm8929 = vmor %vm8927, %vm8928
        %v8930 = vsel %vm8929, %v8921, %v8926
        %v8931 = vrsqrt.pop %v8879
        %v8932 = vmul.f32 %v8931, %v8879
        %v8933 = vmul.f32 %v8932, %v8931
        %v8934 = vmul.f32 0.5, %v8933
        %v8935 = vsub.f32 1.5, %v8934
        %v8936 = vmul.f32 %v8931, %v8935
        %vm8937 = vweird.f32 %v8879
        %vm8938 = vweird.f32 %v8931
        %vm8939 = vmor %vm8937, %vm8938
        %v8940 = vsel %vm8939, %v8931, %v8936
        %v8941 = vrsqrt.pop %v8880
        %v8942 = vmul.f32 %v8941, %v8880
        %v8943 = vmul.f32 %v8942, %v8941
        %v8944 = vmul.f32 0.5, %v8943
        %v8945 = vsub.f32 1.5, %v8944
        %v8946 = vmul.f32 %v8941, %v8945
        %vm8947 = vweird.f32 %v8880
        %vm8948 = vweird.f32 %v8941
        %vm8949 = vmor %vm8947, %vm8948
        %v8950 = vsel %vm8949, %v8941, %v8946
        %v8951 = vrsqrt.pop %v8881
        %v8952 = vmul.f32 %v8951, %v8881
        %v8953 = vmul.f32 %v8952, %v8951
        %v8954 = vmul.f32 0.5, %v8953
        %v8955 = vsub.f32 1.5, %v8954
        %v8956 = vmul.f32 %v8951, %v8955
        %vm8957 = vweird.f32 %v8881
        %vm8958 = vweird.f32 %v8951
        %vm8959 = vmor %vm8957, %vm8958
        %v8960 = vsel %vm8959, %v8951, %v8956
        %v8961 = vrsqrt.pop %v8882
        %v8962 = vmul.f32 %v8961, %v8882
        %v8963 = vmul.f32 %v8962, %v8961
        %v8964 = vmul.f32 0.5, %v8963
        %v8965 = vsub.f32 1.5, %v8964
        %v8966 = vmul.f32 %v8961, %v8965
        %vm8967 = vweird.f32 %v8882
        %vm8968 = vweird.f32 %v8961
        %vm8969 = vmor %vm8967, %vm8968
        %v8970 = vsel %vm8969, %v8961, %v8966
        %v8971 = vrsqrt.pop %v8883
        %v8972 = vmul.f32 %v8971, %v8883
        %v8973 = vmul.f32 %v8972, %v8971
        %v8974 = vmul.f32 0.5, %v8973
        %v8975 = vsub.f32 1.5, %v8974
        %v8976 = vmul.f32 %v8971, %v8975
        %vm8977 = vweird.f32 %v8883
        %vm8978 = vweird.f32 %v8971
        %vm8979 = vmor %vm8977, %vm8978
        %v8980 = vsel %vm8979, %v8971, %v8976
        %v8981 = vrsqrt.pop %v8884
        %v8982 = vmul.f32 %v8981, %v8884
        %v8983 = vmul.f32 %v8982, %v8981
        %v8984 = vmul.f32 0.5, %v8983
        %v8985 = vsub.f32 1.5, %v8984
        %v8986 = vmul.f32 %v8981, %v8985
        %vm8987 = vweird.f32 %v8884
        %vm8988 = vweird.f32 %v8981
        %vm8989 = vmor %vm8987, %vm8988
        %v8990 = vsel %vm8989, %v8981, %v8986
        %v8991 = vrsqrt.pop %v8885
        %v8992 = vmul.f32 %v8991, %v8885
        %v8993 = vmul.f32 %v8992, %v8991
        %v8994 = vmul.f32 0.5, %v8993
        %v8995 = vsub.f32 1.5, %v8994
        %v8996 = vmul.f32 %v8991, %v8995
        %vm8997 = vweird.f32 %v8885
        %vm8998 = vweird.f32 %v8991
        %vm8999 = vmor %vm8997, %vm8998
        %v9000 = vsel %vm8999, %v8991, %v8996
        %v9001 = vrsqrt.pop %v8886
        %v9002 = vmul.f32 %v9001, %v8886
        %v9003 = vmul.f32 %v9002, %v9001
        %v9004 = vmul.f32 0.5, %v9003
        %v9005 = vsub.f32 1.5, %v9004
        %v9006 = vmul.f32 %v9001, %v9005
        %vm9007 = vweird.f32 %v8886
        %vm9008 = vweird.f32 %v9001
        %vm9009 = vmor %vm9007, %vm9008
        %v9010 = vsel %vm9009, %v9001, %v9006
        %v9011 = vrsqrt.pop %v8887
        %v9012 = vmul.f32 %v9011, %v8887
        %v9013 = vmul.f32 %v9012, %v9011
        %v9014 = vmul.f32 0.5, %v9013
        %v9015 = vsub.f32 1.5, %v9014
        %v9016 = vmul.f32 %v9011, %v9015
        %vm9017 = vweird.f32 %v8887
        %vm9018 = vweird.f32 %v9011
        %vm9019 = vmor %vm9017, %vm9018
        %v9020 = vsel %vm9019, %v9011, %v9016
        %v9021 = vrsqrt.pop %v8888
        %v9022 = vmul.f32 %v9021, %v8888
        %v9023 = vmul.f32 %v9022, %v9021
        %v9024 = vmul.f32 0.5, %v9023
        %v9025 = vsub.f32 1.5, %v9024
        %v9026 = vmul.f32 %v9021, %v9025
        %vm9027 = vweird.f32 %v8888
        %vm9028 = vweird.f32 %v9021
        %vm9029 = vmor %vm9027, %vm9028
        %v9030 = vsel %vm9029, %v9021, %v9026
        %v9031 = vrsqrt.pop %v8889
        %v9032 = vmul.f32 %v9031, %v8889
        %v9033 = vmul.f32 %v9032, %v9031
        %v9034 = vmul.f32 0.5, %v9033
        %v9035 = vsub.f32 1.5, %v9034
        %v9036 = vmul.f32 %v9031, %v9035
        %vm9037 = vweird.f32 %v8889
        %vm9038 = vweird.f32 %v9031
        %vm9039 = vmor %vm9037, %vm9038
        %v9040 = vsel %vm9039, %v9031, %v9036
        %v9041 = vrsqrt.pop %v8890
        %v9042 = vmul.f32 %v9041, %v8890
        %v9043 = vmul.f32 %v9042, %v9041
        %v9044 = vmul.f32 0.5, %v9043
        %v9045 = vsub.f32 1.5, %v9044
        %v9046 = vmul.f32 %v9041, %v9045
        %vm9047 = vweird.f32 %v8890
        %vm9048 = vweird.f32 %v9041
        %vm9049 = vmor %vm9047, %vm9048
        %v9050 = vsel %vm9049, %v9041, %v9046
        %v9051 = vmul.f32 %v8779, %v8900
        %v9052 = vmul.f32 %v8780, %v8910
        %v9053 = vmul.f32 %v8781, %v8920
        %v9054 = vmul.f32 %v8782, %v8930
        %v9055 = vmul.f32 %v8783, %v8940
        %v9056 = vmul.f32 %v8784, %v8950
        %v9057 = vmul.f32 %v8785, %v8960
        %v9058 = vmul.f32 %v8786, %v8970
        %v9059 = vmul.f32 %v8787, %v8980
        %v9060 = vmul.f32 %v8788, %v8990
        %v9061 = vmul.f32 %v8789, %v9000
        %v9062 = vmul.f32 %v8790, %v9010
        %v9063 = vmul.f32 %v8791, %v9020
        %v9064 = vmul.f32 %v8792, %v9030
        %v9065 = vmul.f32 %v8793, %v9040
        %v9066 = vmul.f32 %v8794, %v9050
        %v9067 = vperm.slane %v4745, 0
        %v9068 = vmul.f32 %v9051, %v9067
        %v9069 = vmul.f32 %v9052, %v9067
        %v9070 = vmul.f32 %v9053, %v9067
        %v9071 = vmul.f32 %v9054, %v9067
        %v9072 = vmul.f32 %v9055, %v9067
        %v9073 = vmul.f32 %v9056, %v9067
        %v9074 = vmul.f32 %v9057, %v9067
        %v9075 = vmul.f32 %v9058, %v9067
        %v9076 = vmul.f32 %v9059, %v9067
        %v9077 = vmul.f32 %v9060, %v9067
        %v9078 = vmul.f32 %v9061, %v9067
        %v9079 = vmul.f32 %v9062, %v9067
        %v9080 = vmul.f32 %v9063, %v9067
        %v9081 = vmul.f32 %v9064, %v9067
        %v9082 = vmul.f32 %v9065, %v9067
        %v9083 = vmul.f32 %v9066, %v9067
        %v9084 = vperm.slane %v4746, 0
        %v9085 = vadd.f32 %v9068, %v9084
        %v9086 = vadd.f32 %v9069, %v9084
        %v9087 = vadd.f32 %v9070, %v9084
        %v9088 = vadd.f32 %v9071, %v9084
        %v9089 = vadd.f32 %v9072, %v9084
        %v9090 = vadd.f32 %v9073, %v9084
        %v9091 = vadd.f32 %v9074, %v9084
        %v9092 = vadd.f32 %v9075, %v9084
        %v9093 = vadd.f32 %v9076, %v9084
        %v9094 = vadd.f32 %v9077, %v9084
        %v9095 = vadd.f32 %v9078, %v9084
        %v9096 = vadd.f32 %v9079, %v9084
        %v9097 = vadd.f32 %v9080, %v9084
        %v9098 = vadd.f32 %v9081, %v9084
        %v9099 = vadd.f32 %v9082, %v9084
        %v9100 = vadd.f32 %v9083, %v9084
        %v9101 = vmax.f32 %v9085, 0.0
        %v9102 = vmax.f32 %v9086, 0.0
        %v9103 = vmax.f32 %v9087, 0.0
        %v9104 = vmax.f32 %v9088, 0.0
        %v9105 = vmax.f32 %v9089, 0.0
        %v9106 = vmax.f32 %v9090, 0.0
        %v9107 = vmax.f32 %v9091, 0.0
        %v9108 = vmax.f32 %v9092, 0.0
        %v9109 = vmax.f32 %v9093, 0.0
        %v9110 = vmax.f32 %v9094, 0.0
        %v9111 = vmax.f32 %v9095, 0.0
        %v9112 = vmax.f32 %v9096, 0.0
        %v9113 = vmax.f32 %v9097, 0.0
        %v9114 = vmax.f32 %v9098, 0.0
        %v9115 = vmax.f32 %v9099, 0.0
        %v9116 = vmax.f32 %v9100, 0.0
        %v9117 = vld [vmem:[%s2] sm:$0xff]
        %v9118 = vld [vmem:[%s2 + $0x8] sm:$0xff]
        %v9119 = vld [vmem:[%s2 + $0x10] sm:$0xff]
        %v9120 = vld [vmem:[%s2 + $0x18] sm:$0xff]
        %v9121 = vld [vmem:[%s2 + $0x20] sm:$0xff]
        %v9122 = vld [vmem:[%s2 + $0x28] sm:$0xff]
        %v9123 = vld [vmem:[%s2 + $0x30] sm:$0xff]
        %v9124 = vld [vmem:[%s2 + $0x38] sm:$0xff]
        %v9125 = vld [vmem:[%s2 + $0x40] sm:$0x1]
        %v9126 = vperm.slane %v9125, 0
        %v9128 = vsel %vm376, %v9101, 0
        %v9131 = vsel %vm376, %v9102, 0
        %v9134 = vsel %vm376, %v9103, 0
        %v9137 = vsel %vm376, %v9104, 0
        %v9140 = vsel %vm376, %v9105, 0
        %v9143 = vsel %vm376, %v9106, 0
        %v9146 = vsel %vm376, %v9107, 0
        %v9149 = vsel %vm376, %v9108, 0
        %v9152 = vsel %vm376, %v9109, 0
        %v9155 = vsel %vm376, %v9110, 0
        %v9158 = vsel %vm376, %v9111, 0
        %v9161 = vsel %vm376, %v9112, 0
        %v9164 = vsel %vm376, %v9113, 0
        %v9167 = vsel %vm376, %v9114, 0
        %v9170 = vsel %vm376, %v9115, 0
        %v9173 = vsel %vm376, %v9116, 0
        %9175 = vmatpush.msra.mxu0 0.0
        %9176 = vmatpush.msra.mxu0 0.0
        %9177 = vmatpush.msra.mxu0 0.0
        %9178 = vmatpush.msra.mxu0 0.0
        %9179 = vmatpush.msra.mxu0 0.0
        %9180 = vmatpush.msra.mxu0 0.0
        %9181 = vmatpush.msra.mxu0 0.0
        %9182 = vmatpush.msra.mxu0 0.0
        %9183 = vmatpush.msra.mxu0 %v9124
        %9184 = vmatpush.msra.mxu0 %v9123
        %9185 = vmatpush.msra.mxu0 %v9122
        %9186 = vmatpush.msra.mxu0 %v9121
        %9187 = vmatpush.msra.mxu0 %v9120
        %9188 = vmatpush.msra.mxu0 %v9119
        %9189 = vmatpush.msra.mxu0 %v9118
        %9190 = vmatpush.msra.mxu0 %v9117
        %9191 = vmatmul.f32.gmra.mxu0 %v9128
        %v9192 = vpop.f32.mrf.mxu0
        %v9193 = vadd.f32 %v9126, %v9192
        %9194 = vmatmul.f32.gmra.mxu0 %v9131
        %v9195 = vpop.f32.mrf.mxu0
        %v9196 = vadd.f32 %v9126, %v9195
        %9197 = vmatmul.f32.gmra.mxu0 %v9134
        %v9198 = vpop.f32.mrf.mxu0
        %v9199 = vadd.f32 %v9126, %v9198
        %9200 = vmatmul.f32.gmra.mxu0 %v9137
        %v9201 = vpop.f32.mrf.mxu0
        %v9202 = vadd.f32 %v9126, %v9201
        %9203 = vmatmul.f32.gmra.mxu0 %v9140
        %v9204 = vpop.f32.mrf.mxu0
        %v9205 = vadd.f32 %v9126, %v9204
        %9206 = vmatmul.f32.gmra.mxu0 %v9143
        %v9207 = vpop.f32.mrf.mxu0
        %v9208 = vadd.f32 %v9126, %v9207
        %9209 = vmatmul.f32.gmra.mxu0 %v9146
        %v9210 = vpop.f32.mrf.mxu0
        %v9211 = vadd.f32 %v9126, %v9210
        %9212 = vmatmul.f32.gmra.mxu0 %v9149
        %v9213 = vpop.f32.mrf.mxu0
        %v9214 = vadd.f32 %v9126, %v9213
        %9215 = vmatmul.f32.gmra.mxu0 %v9152
        %v9216 = vpop.f32.mrf.mxu0
        %v9217 = vadd.f32 %v9126, %v9216
        %9218 = vmatmul.f32.gmra.mxu0 %v9155
        %v9219 = vpop.f32.mrf.mxu0
        %v9220 = vadd.f32 %v9126, %v9219
        %9221 = vmatmul.f32.gmra.mxu0 %v9158
        %v9222 = vpop.f32.mrf.mxu0
        %v9223 = vadd.f32 %v9126, %v9222
        %9224 = vmatmul.f32.gmra.mxu0 %v9161
        %v9225 = vpop.f32.mrf.mxu0
        %v9226 = vadd.f32 %v9126, %v9225
        %9227 = vmatmul.f32.gmra.mxu0 %v9164
        %v9228 = vpop.f32.mrf.mxu0
        %v9229 = vadd.f32 %v9126, %v9228
        %9230 = vmatmul.f32.gmra.mxu0 %v9167
        %v9231 = vpop.f32.mrf.mxu0
        %v9232 = vadd.f32 %v9126, %v9231
        %9233 = vmatmul.f32.gmra.mxu0 %v9170
        %v9234 = vpop.f32.mrf.mxu0
        %v9235 = vadd.f32 %v9126, %v9234
        %9236 = vmatmul.f32.gmra.mxu0 %v9173
        %v9237 = vpop.f32.mrf.mxu0
        %v9238 = vadd.f32 %v9126, %v9237
        %9239 = vdwg.mxu0
        %9240 = vmax.xlane.f32.xlu0 %v9193
        %v9241 = vpop.xlane.xlu0 %9240
        %9242 = vmax.xlane.f32.xlu0 %v9196
        %v9243 = vpop.xlane.xlu0 %9242
        %9244 = vmax.xlane.f32.xlu0 %v9199
        %v9245 = vpop.xlane.xlu0 %9244
        %9246 = vmax.xlane.f32.xlu0 %v9202
        %v9247 = vpop.xlane.xlu0 %9246
        %9248 = vmax.xlane.f32.xlu0 %v9205
        %v9249 = vpop.xlane.xlu0 %9248
        %9250 = vmax.xlane.f32.xlu0 %v9208
        %v9251 = vpop.xlane.xlu0 %9250
        %9252 = vmax.xlane.f32.xlu0 %v9211
        %v9253 = vpop.xlane.xlu0 %9252
        %9254 = vmax.xlane.f32.xlu0 %v9214
        %v9255 = vpop.xlane.xlu0 %9254
        %9256 = vmax.xlane.f32.xlu0 %v9217
        %v9257 = vpop.xlane.xlu0 %9256
        %9258 = vmax.xlane.f32.xlu0 %v9220
        %v9259 = vpop.xlane.xlu0 %9258
        %9260 = vmax.xlane.f32.xlu0 %v9223
        %v9261 = vpop.xlane.xlu0 %9260
        %9262 = vmax.xlane.f32.xlu0 %v9226
        %v9263 = vpop.xlane.xlu0 %9262
        %9264 = vmax.xlane.f32.xlu0 %v9229
        %v9265 = vpop.xlane.xlu0 %9264
        %9266 = vmax.xlane.f32.xlu0 %v9232
        %v9267 = vpop.xlane.xlu0 %9266
        %9268 = vmax.xlane.f32.xlu0 %v9235
        %v9269 = vpop.xlane.xlu0 %9268
        %9270 = vmax.xlane.f32.xlu0 %v9238
        %v9271 = vpop.xlane.xlu0 %9270
        %v9272 = vsub.f32 %v9193, %v9241
        %v9273 = vsub.f32 %v9196, %v9243
        %v9274 = vsub.f32 %v9199, %v9245
        %v9275 = vsub.f32 %v9202, %v9247
        %v9276 = vsub.f32 %v9205, %v9249
        %v9277 = vsub.f32 %v9208, %v9251
        %v9278 = vsub.f32 %v9211, %v9253
        %v9279 = vsub.f32 %v9214, %v9255
        %v9280 = vsub.f32 %v9217, %v9257
        %v9281 = vsub.f32 %v9220, %v9259
        %v9282 = vsub.f32 %v9223, %v9261
        %v9283 = vsub.f32 %v9226, %v9263
        %v9284 = vsub.f32 %v9229, %v9265
        %v9285 = vsub.f32 %v9232, %v9267
        %v9286 = vsub.f32 %v9235, %v9269
        %v9287 = vsub.f32 %v9238, %v9271
        %v9288 = vmul.f32 %v9272, 1.442695
        %v9289 = vpow.pop %v9288
        %v9290 = vmul.f32 %v9273, 1.442695
        %v9291 = vpow.pop %v9290
        %v9292 = vmul.f32 %v9274, 1.442695
        %v9293 = vpow.pop %v9292
        %v9294 = vmul.f32 %v9275, 1.442695
        %v9295 = vpow.pop %v9294
        %v9296 = vmul.f32 %v9276, 1.442695
        %v9297 = vpow.pop %v9296
        %v9298 = vmul.f32 %v9277, 1.442695
        %v9299 = vpow.pop %v9298
        %v9300 = vmul.f32 %v9278, 1.442695
        %v9301 = vpow.pop %v9300
        %v9302 = vmul.f32 %v9279, 1.442695
        %v9303 = vpow.pop %v9302
        %v9304 = vmul.f32 %v9280, 1.442695
        %v9305 = vpow.pop %v9304
        %v9306 = vmul.f32 %v9281, 1.442695
        %v9307 = vpow.pop %v9306
        %v9308 = vmul.f32 %v9282, 1.442695
        %v9309 = vpow.pop %v9308
        %v9310 = vmul.f32 %v9283, 1.442695
        %v9311 = vpow.pop %v9310
        %v9312 = vmul.f32 %v9284, 1.442695
        %v9313 = vpow.pop %v9312
        %v9314 = vmul.f32 %v9285, 1.442695
        %v9315 = vpow.pop %v9314
        %v9316 = vmul.f32 %v9286, 1.442695
        %v9317 = vpow.pop %v9316
        %v9318 = vmul.f32 %v9287, 1.442695
        %v9319 = vpow.pop %v9318
        %9320 = vadd.xlane.f32.xlu0 %v9289
        %v9321 = vpop.xlane.xlu0 %9320
        %9322 = vadd.xlane.f32.xlu0 %v9291
        %v9323 = vpop.xlane.xlu0 %9322
        %9324 = vadd.xlane.f32.xlu0 %v9293
        %v9325 = vpop.xlane.xlu0 %9324
        %9326 = vadd.xlane.f32.xlu0 %v9295
        %v9327 = vpop.xlane.xlu0 %9326
        %9328 = vadd.xlane.f32.xlu0 %v9297
        %v9329 = vpop.xlane.xlu0 %9328
        %9330 = vadd.xlane.f32.xlu0 %v9299
        %v9331 = vpop.xlane.xlu0 %9330
        %9332 = vadd.xlane.f32.xlu0 %v9301
        %v9333 = vpop.xlane.xlu0 %9332
        %9334 = vadd.xlane.f32.xlu0 %v9303
        %v9335 = vpop.xlane.xlu0 %9334
        %9336 = vadd.xlane.f32.xlu0 %v9305
        %v9337 = vpop.xlane.xlu0 %9336
        %9338 = vadd.xlane.f32.xlu0 %v9307
        %v9339 = vpop.xlane.xlu0 %9338
        %9340 = vadd.xlane.f32.xlu0 %v9309
        %v9341 = vpop.xlane.xlu0 %9340
        %9342 = vadd.xlane.f32.xlu0 %v9311
        %v9343 = vpop.xlane.xlu0 %9342
        %9344 = vadd.xlane.f32.xlu0 %v9313
        %v9345 = vpop.xlane.xlu0 %9344
        %9346 = vadd.xlane.f32.xlu0 %v9315
        %v9347 = vpop.xlane.xlu0 %9346
        %9348 = vadd.xlane.f32.xlu0 %v9317
        %v9349 = vpop.xlane.xlu0 %9348
        %9350 = vadd.xlane.f32.xlu0 %v9319
        %v9351 = vpop.xlane.xlu0 %9350
        %v9352 = vrcp.pop %v9321
        %v9353 = vmul.f32 %v9321, %v9352
        %v9354 = vsub.f32 1.0, %v9353
        %v9355 = vmul.f32 %v9352, %v9354
        %v9356 = vadd.f32 %v9352, %v9355
        %vm9357 = vweird.f32 %v9321
        %vm9358 = vweird.f32 %v9352
        %vm9359 = vmor %vm9357, %vm9358
        %v9360 = vsel %vm9359, %v9352, %v9356
        %v9361 = vand.u32 2147483647, %v9321
        %vm9362 = vcmp.eq.f32.partialorder %v9361, 8.507059e+37
        %v9363 = vand.u32 %v9321, 2147483648
        %v9364 = vor.u32 1.1754944e-38, %v9363
        %v9365 = vsel %vm9362, %v9364, %v9360
        %v9366 = vmul.f32 %v9289, %v9365
        %v9367 = vrcp.pop %v9323
        %v9368 = vmul.f32 %v9323, %v9367
        %v9369 = vsub.f32 1.0, %v9368
        %v9370 = vmul.f32 %v9367, %v9369
        %v9371 = vadd.f32 %v9367, %v9370
        %vm9372 = vweird.f32 %v9323
        %vm9373 = vweird.f32 %v9367
        %vm9374 = vmor %vm9372, %vm9373
        %v9375 = vsel %vm9374, %v9367, %v9371
        %v9376 = vand.u32 2147483647, %v9323
        %vm9377 = vcmp.eq.f32.partialorder %v9376, 8.507059e+37
        %v9378 = vand.u32 %v9323, 2147483648
        %v9379 = vor.u32 1.1754944e-38, %v9378
        %v9380 = vsel %vm9377, %v9379, %v9375
        %v9381 = vmul.f32 %v9291, %v9380
        %v9382 = vrcp.pop %v9325
        %v9383 = vmul.f32 %v9325, %v9382
        %v9384 = vsub.f32 1.0, %v9383
        %v9385 = vmul.f32 %v9382, %v9384
        %v9386 = vadd.f32 %v9382, %v9385
        %vm9387 = vweird.f32 %v9325
        %vm9388 = vweird.f32 %v9382
        %vm9389 = vmor %vm9387, %vm9388
        %v9390 = vsel %vm9389, %v9382, %v9386
        %v9391 = vand.u32 2147483647, %v9325
        %vm9392 = vcmp.eq.f32.partialorder %v9391, 8.507059e+37
        %v9393 = vand.u32 %v9325, 2147483648
        %v9394 = vor.u32 1.1754944e-38, %v9393
        %v9395 = vsel %vm9392, %v9394, %v9390
        %v9396 = vmul.f32 %v9293, %v9395
        %v9397 = vrcp.pop %v9327
        %v9398 = vmul.f32 %v9327, %v9397
        %v9399 = vsub.f32 1.0, %v9398
        %v9400 = vmul.f32 %v9397, %v9399
        %v9401 = vadd.f32 %v9397, %v9400
        %vm9402 = vweird.f32 %v9327
        %vm9403 = vweird.f32 %v9397
        %vm9404 = vmor %vm9402, %vm9403
        %v9405 = vsel %vm9404, %v9397, %v9401
        %v9406 = vand.u32 2147483647, %v9327
        %vm9407 = vcmp.eq.f32.partialorder %v9406, 8.507059e+37
        %v9408 = vand.u32 %v9327, 2147483648
        %v9409 = vor.u32 1.1754944e-38, %v9408
        %v9410 = vsel %vm9407, %v9409, %v9405
        %v9411 = vmul.f32 %v9295, %v9410
        %v9412 = vrcp.pop %v9329
        %v9413 = vmul.f32 %v9329, %v9412
        %v9414 = vsub.f32 1.0, %v9413
        %v9415 = vmul.f32 %v9412, %v9414
        %v9416 = vadd.f32 %v9412, %v9415
        %vm9417 = vweird.f32 %v9329
        %vm9418 = vweird.f32 %v9412
        %vm9419 = vmor %vm9417, %vm9418
        %v9420 = vsel %vm9419, %v9412, %v9416
        %v9421 = vand.u32 2147483647, %v9329
        %vm9422 = vcmp.eq.f32.partialorder %v9421, 8.507059e+37
        %v9423 = vand.u32 %v9329, 2147483648
        %v9424 = vor.u32 1.1754944e-38, %v9423
        %v9425 = vsel %vm9422, %v9424, %v9420
        %v9426 = vmul.f32 %v9297, %v9425
        %v9427 = vrcp.pop %v9331
        %v9428 = vmul.f32 %v9331, %v9427
        %v9429 = vsub.f32 1.0, %v9428
        %v9430 = vmul.f32 %v9427, %v9429
        %v9431 = vadd.f32 %v9427, %v9430
        %vm9432 = vweird.f32 %v9331
        %vm9433 = vweird.f32 %v9427
        %vm9434 = vmor %vm9432, %vm9433
        %v9435 = vsel %vm9434, %v9427, %v9431
        %v9436 = vand.u32 2147483647, %v9331
        %vm9437 = vcmp.eq.f32.partialorder %v9436, 8.507059e+37
        %v9438 = vand.u32 %v9331, 2147483648
        %v9439 = vor.u32 1.1754944e-38, %v9438
        %v9440 = vsel %vm9437, %v9439, %v9435
        %v9441 = vmul.f32 %v9299, %v9440
        %v9442 = vrcp.pop %v9333
        %v9443 = vmul.f32 %v9333, %v9442
        %v9444 = vsub.f32 1.0, %v9443
        %v9445 = vmul.f32 %v9442, %v9444
        %v9446 = vadd.f32 %v9442, %v9445
        %vm9447 = vweird.f32 %v9333
        %vm9448 = vweird.f32 %v9442
        %vm9449 = vmor %vm9447, %vm9448
        %v9450 = vsel %vm9449, %v9442, %v9446
        %v9451 = vand.u32 2147483647, %v9333
        %vm9452 = vcmp.eq.f32.partialorder %v9451, 8.507059e+37
        %v9453 = vand.u32 %v9333, 2147483648
        %v9454 = vor.u32 1.1754944e-38, %v9453
        %v9455 = vsel %vm9452, %v9454, %v9450
        %v9456 = vmul.f32 %v9301, %v9455
        %v9457 = vrcp.pop %v9335
        %v9458 = vmul.f32 %v9335, %v9457
        %v9459 = vsub.f32 1.0, %v9458
        %v9460 = vmul.f32 %v9457, %v9459
        %v9461 = vadd.f32 %v9457, %v9460
        %vm9462 = vweird.f32 %v9335
        %vm9463 = vweird.f32 %v9457
        %vm9464 = vmor %vm9462, %vm9463
        %v9465 = vsel %vm9464, %v9457, %v9461
        %v9466 = vand.u32 2147483647, %v9335
        %vm9467 = vcmp.eq.f32.partialorder %v9466, 8.507059e+37
        %v9468 = vand.u32 %v9335, 2147483648
        %v9469 = vor.u32 1.1754944e-38, %v9468
        %v9470 = vsel %vm9467, %v9469, %v9465
        %v9471 = vmul.f32 %v9303, %v9470
        %v9472 = vrcp.pop %v9337
        %v9473 = vmul.f32 %v9337, %v9472
        %v9474 = vsub.f32 1.0, %v9473
        %v9475 = vmul.f32 %v9472, %v9474
        %v9476 = vadd.f32 %v9472, %v9475
        %vm9477 = vweird.f32 %v9337
        %vm9478 = vweird.f32 %v9472
        %vm9479 = vmor %vm9477, %vm9478
        %v9480 = vsel %vm9479, %v9472, %v9476
        %v9481 = vand.u32 2147483647, %v9337
        %vm9482 = vcmp.eq.f32.partialorder %v9481, 8.507059e+37
        %v9483 = vand.u32 %v9337, 2147483648
        %v9484 = vor.u32 1.1754944e-38, %v9483
        %v9485 = vsel %vm9482, %v9484, %v9480
        %v9486 = vmul.f32 %v9305, %v9485
        %v9487 = vrcp.pop %v9339
        %v9488 = vmul.f32 %v9339, %v9487
        %v9489 = vsub.f32 1.0, %v9488
        %v9490 = vmul.f32 %v9487, %v9489
        %v9491 = vadd.f32 %v9487, %v9490
        %vm9492 = vweird.f32 %v9339
        %vm9493 = vweird.f32 %v9487
        %vm9494 = vmor %vm9492, %vm9493
        %v9495 = vsel %vm9494, %v9487, %v9491
        %v9496 = vand.u32 2147483647, %v9339
        %vm9497 = vcmp.eq.f32.partialorder %v9496, 8.507059e+37
        %v9498 = vand.u32 %v9339, 2147483648
        %v9499 = vor.u32 1.1754944e-38, %v9498
        %v9500 = vsel %vm9497, %v9499, %v9495
        %v9501 = vmul.f32 %v9307, %v9500
        %v9502 = vrcp.pop %v9341
        %v9503 = vmul.f32 %v9341, %v9502
        %v9504 = vsub.f32 1.0, %v9503
        %v9505 = vmul.f32 %v9502, %v9504
        %v9506 = vadd.f32 %v9502, %v9505
        %vm9507 = vweird.f32 %v9341
        %vm9508 = vweird.f32 %v9502
        %vm9509 = vmor %vm9507, %vm9508
        %v9510 = vsel %vm9509, %v9502, %v9506
        %v9511 = vand.u32 2147483647, %v9341
        %vm9512 = vcmp.eq.f32.partialorder %v9511, 8.507059e+37
        %v9513 = vand.u32 %v9341, 2147483648
        %v9514 = vor.u32 1.1754944e-38, %v9513
        %v9515 = vsel %vm9512, %v9514, %v9510
        %v9516 = vmul.f32 %v9309, %v9515
        %v9517 = vrcp.pop %v9343
        %v9518 = vmul.f32 %v9343, %v9517
        %v9519 = vsub.f32 1.0, %v9518
        %v9520 = vmul.f32 %v9517, %v9519
        %v9521 = vadd.f32 %v9517, %v9520
        %vm9522 = vweird.f32 %v9343
        %vm9523 = vweird.f32 %v9517
        %vm9524 = vmor %vm9522, %vm9523
        %v9525 = vsel %vm9524, %v9517, %v9521
        %v9526 = vand.u32 2147483647, %v9343
        %vm9527 = vcmp.eq.f32.partialorder %v9526, 8.507059e+37
        %v9528 = vand.u32 %v9343, 2147483648
        %v9529 = vor.u32 1.1754944e-38, %v9528
        %v9530 = vsel %vm9527, %v9529, %v9525
        %v9531 = vmul.f32 %v9311, %v9530
        %v9532 = vrcp.pop %v9345
        %v9533 = vmul.f32 %v9345, %v9532
        %v9534 = vsub.f32 1.0, %v9533
        %v9535 = vmul.f32 %v9532, %v9534
        %v9536 = vadd.f32 %v9532, %v9535
        %vm9537 = vweird.f32 %v9345
        %vm9538 = vweird.f32 %v9532
        %vm9539 = vmor %vm9537, %vm9538
        %v9540 = vsel %vm9539, %v9532, %v9536
        %v9541 = vand.u32 2147483647, %v9345
        %vm9542 = vcmp.eq.f32.partialorder %v9541, 8.507059e+37
        %v9543 = vand.u32 %v9345, 2147483648
        %v9544 = vor.u32 1.1754944e-38, %v9543
        %v9545 = vsel %vm9542, %v9544, %v9540
        %v9546 = vmul.f32 %v9313, %v9545
        %v9547 = vrcp.pop %v9347
        %v9548 = vmul.f32 %v9347, %v9547
        %v9549 = vsub.f32 1.0, %v9548
        %v9550 = vmul.f32 %v9547, %v9549
        %v9551 = vadd.f32 %v9547, %v9550
        %vm9552 = vweird.f32 %v9347
        %vm9553 = vweird.f32 %v9547
        %vm9554 = vmor %vm9552, %vm9553
        %v9555 = vsel %vm9554, %v9547, %v9551
        %v9556 = vand.u32 2147483647, %v9347
        %vm9557 = vcmp.eq.f32.partialorder %v9556, 8.507059e+37
        %v9558 = vand.u32 %v9347, 2147483648
        %v9559 = vor.u32 1.1754944e-38, %v9558
        %v9560 = vsel %vm9557, %v9559, %v9555
        %v9561 = vmul.f32 %v9315, %v9560
        %v9562 = vrcp.pop %v9349
        %v9563 = vmul.f32 %v9349, %v9562
        %v9564 = vsub.f32 1.0, %v9563
        %v9565 = vmul.f32 %v9562, %v9564
        %v9566 = vadd.f32 %v9562, %v9565
        %vm9567 = vweird.f32 %v9349
        %vm9568 = vweird.f32 %v9562
        %vm9569 = vmor %vm9567, %vm9568
        %v9570 = vsel %vm9569, %v9562, %v9566
        %v9571 = vand.u32 2147483647, %v9349
        %vm9572 = vcmp.eq.f32.partialorder %v9571, 8.507059e+37
        %v9573 = vand.u32 %v9349, 2147483648
        %v9574 = vor.u32 1.1754944e-38, %v9573
        %v9575 = vsel %vm9572, %v9574, %v9570
        %v9576 = vmul.f32 %v9317, %v9575
        %v9577 = vrcp.pop %v9351
        %v9578 = vmul.f32 %v9351, %v9577
        %v9579 = vsub.f32 1.0, %v9578
        %v9580 = vmul.f32 %v9577, %v9579
        %v9581 = vadd.f32 %v9577, %v9580
        %vm9582 = vweird.f32 %v9351
        %vm9583 = vweird.f32 %v9577
        %vm9584 = vmor %vm9582, %vm9583
        %v9585 = vsel %vm9584, %v9577, %v9581
        %v9586 = vand.u32 2147483647, %v9351
        %vm9587 = vcmp.eq.f32.partialorder %v9586, 8.507059e+37
        %v9588 = vand.u32 %v9351, 2147483648
        %v9589 = vor.u32 1.1754944e-38, %v9588
        %v9590 = vsel %vm9587, %v9589, %v9585
        %v9591 = vmul.f32 %v9319, %v9590
        %9592 = vst [vmem:[%s218] sm:$0xff] %v9366
        %9593 = vst [vmem:[%s218 + $0x8] sm:$0xff] %v9381
        %9594 = vst [vmem:[%s218 + $0x10] sm:$0xff] %v9396
        %9595 = vst [vmem:[%s218 + $0x18] sm:$0xff] %v9411
        %9596 = vst [vmem:[%s218 + $0x20] sm:$0xff] %v9426
        %9597 = vst [vmem:[%s218 + $0x28] sm:$0xff] %v9441
        %9598 = vst [vmem:[%s218 + $0x30] sm:$0xff] %v9456
        %9599 = vst [vmem:[%s218 + $0x38] sm:$0xff] %v9471
        %9600 = vst [vmem:[%s218 + $0x40] sm:$0xff] %v9486
        %9601 = vst [vmem:[%s218 + $0x48] sm:$0xff] %v9501
        %9602 = vst [vmem:[%s218 + $0x50] sm:$0xff] %v9516
        %9603 = vst [vmem:[%s218 + $0x58] sm:$0xff] %v9531
        %9604 = vst [vmem:[%s218 + $0x60] sm:$0xff] %v9546
        %9605 = vst [vmem:[%s218 + $0x68] sm:$0xff] %v9561
        %9606 = vst [vmem:[%s218 + $0x70] sm:$0xff] %v9576
        %9607 = vst [vmem:[%s218 + $0x78] sm:$0xff] %v9591
        %s9608 = sand.u32 %s137, 1
        %s9609 = scalar_lea.sflag [#allocation3], %s9608
        %s9610 = sand.u32 %s137, 1
        %s9611 = smul.addr %s9610, 128
        %s9612 = scalar_lea.vmem [#allocation2], %s9611
        // Predicated region
        $region41: #{tpu_custom_call.1} parent=39 // pred_check
          %p9613 = pneg %p147
        $region42: #{tpu_custom_call.1} parent=39 // pred_check_branch
          %9615 = sbr.rel (%p9613) target = $region44
        $region43: #{tpu_custom_call.1} parent=39 // pred_region
          %s9616 = smul.u32 16, %s19
          %9618 = vsyncadd %s9609, 0
          %s9619 = smul.addr %s9616, 8
          %s9620 = scalar_lea.hbm %s5, %s9619
          %s9621 = sshll.u32 %s9612, 4
          %s9622 = int_to_ptr.vmem [resolvable:$true] %s9621
          %s9623 = sshll.u32 %s9620, 4
          %s9624 = int_to_ptr.hbm [resolvable:$true] %s9623
          %9629 = dma.vmem_to_hbm [thread:$0]  %s9622, 2048, %s9624, %s9609, 128, 128, 8
        $region44: #{tpu_custom_call.1} parent=39 // pred_fallthru
          _
      $region40: #{tpu_custom_call.1} parent=5 // pred_fallthru
        _
      %p9630 = scmp.le.s32.totalorder 2, %s14
      // Predicated region
      $region45: #{tpu_custom_call.1} parent=5 // pred_check
        %p9631 = pneg %p9630
      $region46: #{tpu_custom_call.1} parent=5 // pred_check_branch
        %9633 = sbr.rel (%p9631) target = $region48
      $region47: #{tpu_custom_call.1} parent=5 // pred_region
        %s9634 = ssub.s32 %s14, 2
        // Predicated region
        $region49: #{tpu_custom_call.1} parent=47 // pred_check
          %p9635 = pneg %p153
        $region50: #{tpu_custom_call.1} parent=47 // pred_check_branch
          %9637 = sbr.rel (%p9635) target = $region52
        $region51: #{tpu_custom_call.1} parent=47 // pred_region
          %s9638 = sand.u32 %s138, 1
          %s9639 = scalar_lea.sflag [#allocation3], %s9638
          %s9640 = sand.u32 %s138, 1
          %s9641 = smul.addr %s9640, 128
          %s9642 = scalar_lea.vmem [#allocation2], %s9641
          %9644 = dma.done %s9639, 2048
        $region52: #{tpu_custom_call.1} parent=47 // pred_fallthru
          _
      $region48: #{tpu_custom_call.1} parent=5 // pred_fallthru
        _
    $region6: #{tpu_custom_call.1} parent=1 // loop_footer
      %s18 = sadd.s32 1, %s14
    $region7: #{tpu_custom_call.1} parent=1 // loop_footer_branch
      %13 = sbr.rel target = $region3
    $region8: #{tpu_custom_call.1} parent=1 // loop_exit
      _
    %9645 = vsyncpa [#allocation3], 1
    %s9646 = scalar_lea.sflag [#allocation3], 1
    %9647 = vsyncpa %s9646, 1

</llo_original>
